<compile_context>
chip_gen: v7x
topology: tpu7x:2x2x1
jax: 0.10.0
libtpu: 0.0.40
codegen_flags: <defaults>
</compile_context>

<pallas_src>
import functools

import jax
import jax.numpy as jnp
from jax.experimental import pallas as pl
from jax.experimental.pallas import tpu as pltpu

_EPS = 1e-5


# --------------------------------------------------------------------------- #
# Phase 1: BatchNorm statistics (single pass: per-channel sum / sum-of-squares)
# --------------------------------------------------------------------------- #
def _bn_stats_kernel(gamma_ref, beta_ref, x_ref, scale_ref, shift_ref,
                     sum_ref, sq_ref, *, count):
    n = pl.program_id(0)
    t = pl.program_id(1)

    @pl.when(jnp.logical_and(n == 0, t == 0))
    def _init():
        sum_ref[...] = jnp.zeros_like(sum_ref)
        sq_ref[...] = jnp.zeros_like(sq_ref)

    _, th, w, cin = x_ref.shape
    x = x_ref[...].reshape(th * w, cin)
    sum_ref[...] += jnp.sum(x, axis=0, keepdims=True)
    sq_ref[...] += jnp.sum(x * x, axis=0, keepdims=True)

    last = jnp.logical_and(n == pl.num_programs(0) - 1,
                           t == pl.num_programs(1) - 1)

    @pl.when(last)
    def _finalize():
        inv_count = 1.0 / count
        mean = sum_ref[...] * inv_count
        var = sq_ref[...] * inv_count - mean * mean
        scale = gamma_ref[...] * jax.lax.rsqrt(var + _EPS)
        scale_ref[...] = scale
        shift_ref[...] = beta_ref[...] - mean * scale


# --------------------------------------------------------------------------- #
# Phase 2: folded BN + ReLU + 3x3 conv (im2col + single bf16 MXU matmul)
# --------------------------------------------------------------------------- #
def _conv3x3_kernel(scale_ref, shift_ref, w9_ref, b_ref, xc_ref, xu_ref, xd_ref,
                    out_ref, act_ref, col_ref):
    _, th, w, cin = xc_ref.shape
    cout = b_ref.shape[-1]
    rows = th * w
    hrows = (th + 2) * w

    scale = scale_ref[...].reshape(1, 1, cin)
    shift = shift_ref[...].reshape(1, 1, cin)

    t = pl.program_id(1)
    up_ok = (t > 0).astype(jnp.float32)
    dn_ok = (t < pl.num_programs(1) - 1).astype(jnp.float32)

    xc = xc_ref[...].reshape(th, w, cin)
    xu = xu_ref[...].reshape(1, w, cin)
    xd = xd_ref[...].reshape(1, w, cin)

    # Folded BatchNorm + ReLU.  Halo rows outside the image are zeroed *after*
    # the activation (the conv zero-pads its input y, not the raw x).
    act_ref[0:1] = jnp.maximum(xu * scale + shift, 0.0) * up_ok
    act_ref[1:th + 1] = jnp.maximum(xc * scale + shift, 0.0)
    act_ref[th + 1:th + 2] = jnp.maximum(xd * scale + shift, 0.0) * dn_ok

    a = act_ref[...].reshape(hrows, cin)

    # +/-1 column shifts via pltpu.roll (cheap XLU rotate, no relayout copies).
    # The wrapped-around positions are exactly the zero-padded columns -> mask.
    col = jax.lax.broadcasted_iota(jnp.int32, (th + 2, w, 1), 1).reshape(hrows, 1)
    a_m1 = pltpu.roll(a, 1, 0) * (col > 0).astype(jnp.float32)              # col c-1
    a_p1 = pltpu.roll(a, hrows - 1, 0) * (col < w - 1).astype(jnp.float32)  # col c+1
    taps = (a_m1, a, a_p1)

    # im2col: the dy row shifts are aligned sublane slices of the halo buffer;
    # the 9 taps land at static lane offsets of the (rows, 9*Cin) scratch.
    for dy in range(3):
        lo = dy * w
        for dx in range(3):
            k = dy * 3 + dx
            col_ref[:, k * cin:(k + 1) * cin] = taps[dx][lo:lo + rows]

    # One fused MXU matmul over K = 9*Cin, bf16 operands, f32 accumulation.
    patch = col_ref[...].astype(jnp.bfloat16)
    acc = jnp.dot(patch, w9_ref[...], preferred_element_type=jnp.float32)
    out = acc + b_ref[...]
    out_ref[...] = out.reshape(1, th, w, cout).astype(out_ref.dtype)


# --------------------------------------------------------------------------- #
# Wrappers
# --------------------------------------------------------------------------- #
def _pick_tile_h(h, w, cin, cout, vmem_budget_bytes=8 * 1024 * 1024):
    """Largest row-tile that divides H, fits the per-step VMEM budget (Cin grows
    per layer) and keeps >= 2 row-tiles when H is big enough (pipelining/halo)."""
    per_row = 4 * w * (2 * cin + 9 * cin + 2 * cout)  # f32 blocks + im2col scratch
    cap = max(8, min(h, vmem_budget_bytes // max(per_row, 1)))
    if h >= 16:
        cap = min(cap, h // 2)
    th = 1
    for cand in range(1, min(cap, h) + 1):
        if h % cand == 0:
            th = cand
    return th


def _mosaic_params(dim_sems, step_bytes):
    # Explicit scoped-VMEM limit: generous headroom over what we use, but capped
    # well below v7x's 64 MiB per-TensorCore VMEM.
    limit = int(min(max(8 * step_bytes, 16 * 1024 * 1024), 48 * 1024 * 1024))
    return pltpu.CompilerParams(dimension_semantics=dim_sems,
                                vmem_limit_bytes=limit)


def _bn_scale_shift(x, gamma, beta, th):
    n, h, w, cin = x.shape
    grid = (n, h // th)
    kernel = functools.partial(_bn_stats_kernel, count=float(n * h * w))
    step_bytes = 4 * th * w * cin
    scale, shift = pl.pallas_call(
        kernel,
        grid=grid,
        in_specs=[
            pl.BlockSpec((1, cin), lambda i, j: (0, 0)),
            pl.BlockSpec((1, cin), lambda i, j: (0, 0)),
            pl.BlockSpec((1, th, w, cin), lambda i, j: (i, j, 0, 0)),
        ],
        out_specs=[
            pl.BlockSpec((1, cin), lambda i, j: (0, 0)),
            pl.BlockSpec((1, cin), lambda i, j: (0, 0)),
        ],
        out_shape=[
            jax.ShapeDtypeStruct((1, cin), jnp.float32),
            jax.ShapeDtypeStruct((1, cin), jnp.float32),
        ],
        scratch_shapes=[pltpu.VMEM((1, cin), jnp.float32),
                        pltpu.VMEM((1, cin), jnp.float32)],
        compiler_params=_mosaic_params(("arbitrary", "arbitrary"), step_bytes),
    )(gamma, beta, x)
    return scale, shift


def _conv3x3(x, scale, shift, w9, b, th):
    n, h, w, cin = x.shape
    cout = w9.shape[-1]
    grid = (n, h // th)
    step_bytes = 4 * (th * w * (2 * cin + 9 * cin + cout) + 2 * w * cin)
    return pl.pallas_call(
        _conv3x3_kernel,
        grid=grid,
        in_specs=[
            pl.BlockSpec((1, cin), lambda i, j: (0, 0)),               # scale
            pl.BlockSpec((1, cin), lambda i, j: (0, 0)),               # shift
            pl.BlockSpec((9 * cin, cout), lambda i, j: (0, 0)),        # weights (bf16)
            pl.BlockSpec((1, cout), lambda i, j: (0, 0)),              # bias
            pl.BlockSpec((1, th, w, cin), lambda i, j: (i, j, 0, 0)),  # row tile
            pl.BlockSpec((1, 1, w, cin),                               # 1-row halo above
                         lambda i, j: (i, jnp.maximum(j * th - 1, 0), 0, 0)),
            pl.BlockSpec((1, 1, w, cin),                               # 1-row halo below
                         lambda i, j: (i, jnp.minimum(j * th + th, h - 1), 0, 0)),
        ],
        out_specs=pl.BlockSpec((1, th, w, cout), lambda i, j: (i, j, 0, 0)),
        out_shape=jax.ShapeDtypeStruct((n, h, w, cout), jnp.float32),
        scratch_shapes=[pltpu.VMEM((th + 2, w, cin), jnp.float32),
                        pltpu.VMEM((th * w, 9 * cin), jnp.float32)],
        compiler_params=_mosaic_params(("parallel", "parallel"), step_bytes),
    )(scale, shift, w9, b, x, x, x)


def dense_layer(x_nhwc, gamma, beta, w, b):
    """One DenseNetLayer; returns only the NEW conv channels (N, H, W, Cout)."""
    n, h, wd, cin = x_nhwc.shape
    cout = w.shape[-1]
    th = _pick_tile_h(h, wd, cin, cout)
    scale, shift = _bn_scale_shift(x_nhwc, gamma, beta, th)
    w9 = w.reshape(9 * cin, cout).astype(jnp.bfloat16)
    return _conv3x3(x_nhwc, scale, shift, w9, b, th)


def residual_dense_net(x_nchw, params):
    """ResidualDenseNet forward.  Input/output are NCHW like PyTorch."""
    feat = jnp.transpose(x_nchw, (0, 2, 3, 1)).astype(jnp.float32)  # NCHW -> NHWC
    for (gamma, beta, w, b) in params:
        y = dense_layer(feat, gamma, beta, w, b)
        # torch.cat([y, x], dim=1): new channels in front of the running features.
        feat = jnp.concatenate([y, feat], axis=-1)
    return jnp.transpose(feat, (0, 3, 1, 2))                        # NHWC -> NCHW


# ----------------------- pure-JAX reference (for checking) -----------------------
def _ref_layer(x, gamma, beta, w, b):
    mean = jnp.mean(x, axis=(0, 1, 2), keepdims=True)
    var = jnp.mean((x - mean) ** 2, axis=(0, 1, 2), keepdims=True)
    y = (x - mean) / jnp.sqrt(var + _EPS)
    y = y * gamma.reshape(1, 1, 1, -1) + beta.reshape(1, 1, 1, -1)
    y = jnp.maximum(y, 0.0)
    conv = jax.lax.conv_general_dilated(
        y, w, window_strides=(1, 1), padding="SAME",
        dimension_numbers=("NHWC", "HWIO", "NHWC"))
    conv = conv + b.reshape(1, 1, 1, -1)
    return jnp.concatenate([conv, x], axis=-1)


def residual_dense_net_ref(x_nchw, params):
    x = jnp.transpose(x_nchw, (0, 2, 3, 1))
    for (gamma, beta, w, b) in params:
        x = _ref_layer(x, gamma, beta, w, b)
    return jnp.transpose(x, (0, 3, 1, 2))


# ----------------------- deterministic parameter init -----------------------
def init_params(key, channels, depth):
    params = []
    for i in range(depth):
        cin = (i + 1) * channels
        key, k1, k2, k3, k4 = jax.random.split(key, 5)
        gamma = 1.0 + 0.1 * jax.random.normal(k1, (1, cin), jnp.float32)
        beta = 0.1 * jax.random.normal(k2, (1, cin), jnp.float32)
        fan_in = float(cin * 9)
        w = jax.random.normal(k3, (3, 3, cin, channels), jnp.float32) / jnp.sqrt(fan_in)
        b = 0.1 * jax.random.normal(k4, (1, channels), jnp.float32)
        params.append((gamma, beta, w, b))
    return params


if __name__ == "__main__":
    channels, depth = 4, 3
    N, H, W = 2, 16, 16

    key = jax.random.PRNGKey(0)
    key, kx = jax.random.split(key)
    x = jax.random.normal(kx, (N, channels, H, W), jnp.float32)  # NCHW like PyTorch
    params = init_params(key, channels, depth)

    fwd = jax.jit(residual_dense_net)
    out = jax.block_until_ready(fwd(x, params))

    assert out.shape == (N, (depth + 1) * channels, H, W), out.shape
    ref = residual_dense_net_ref(x, params)
    # bf16 matmul operands (f32 accumulate) -> loosened tolerance vs f32 reference.
    assert jnp.allclose(out, ref, rtol=5e-2, atol=5e-2), \
        float(jnp.max(jnp.abs(out - ref)))

    print("KERNEL_OK")
</pallas_src>

<mosaic_0001>
module attributes {stable_mosaic.version = 11 : i64} {
  func.func @_bn_stats_kernel(%arg0: i32, %arg1: i32, %arg2: memref<1x4xf32, #tpu.memory_space<vmem>>, %arg3: memref<1x4xf32, #tpu.memory_space<vmem>>, %arg4: memref<1x8x16x4xf32, #tpu.memory_space<vmem>>, %arg5: memref<1x4xf32, #tpu.memory_space<vmem>>, %arg6: memref<1x4xf32, #tpu.memory_space<vmem>>, %arg7: memref<1x4xf32, #tpu.memory_space<vmem>>, %arg8: memref<1x4xf32, #tpu.memory_space<vmem>>) attributes {dimension_semantics = [#tpu.dimension_semantics<arbitrary>, #tpu.dimension_semantics<arbitrary>], iteration_bounds = array<i64: 2, 2>, scalar_prefetch = 0 : i64, scratch_operands = 2 : i64, tpu.core_type = #tpu.core_type<tc>, window_params = [{pipeline_mode = #tpu.pipeline_mode<synchronous>, transform_indices = @transform_0, window_bounds = array<i64: 1, 4>}, {pipeline_mode = #tpu.pipeline_mode<synchronous>, transform_indices = @transform_1, window_bounds = array<i64: 1, 4>}, {transform_indices = @transform_2, window_bounds = array<i64: 1, 8, 16, 4>}, {pipeline_mode = #tpu.pipeline_mode<synchronous>, transform_indices = @transform_3, window_bounds = array<i64: 1, 4>}, {pipeline_mode = #tpu.pipeline_mode<synchronous>, transform_indices = @transform_4, window_bounds = array<i64: 1, 4>}]} {
    %c0_i32 = arith.constant 0 : i32
    %0 = arith.cmpi eq, %arg0, %c0_i32 : i32
    %c0_i32_0 = arith.constant 0 : i32
    %1 = arith.cmpi eq, %arg1, %c0_i32_0 : i32
    %2 = arith.andi %0, %1 : i1
    %3 = arith.extui %2 : i1 to i32
    %c0_i32_1 = arith.constant 0 : i32
    %4 = arith.cmpi ne, %3, %c0_i32_1 : i32
    scf.if %4 {
      %cst_16 = arith.constant 0.000000e+00 : f32
      %23 = vector.broadcast %cst_16 : f32 to vector<1x4xf32>
      %c0_17 = arith.constant 0 : index
      %c0_18 = arith.constant 0 : index
      %24 = vector.load %arg7[%c0_17, %c0_18] : memref<1x4xf32, #tpu.memory_space<vmem>>, vector<1x4xf32>
      tpu.vector_store %arg7[%c0_17, %c0_18], %23 {strides = array<i32>} : memref<1x4xf32, #tpu.memory_space<vmem>>, vector<1x4xf32>,
      %cst_19 = arith.constant 0.000000e+00 : f32
      %25 = vector.broadcast %cst_19 : f32 to vector<1x4xf32>
      %c0_20 = arith.constant 0 : index
      %c0_21 = arith.constant 0 : index
      %26 = vector.load %arg8[%c0_20, %c0_21] : memref<1x4xf32, #tpu.memory_space<vmem>>, vector<1x4xf32>
      tpu.vector_store %arg8[%c0_20, %c0_21], %25 {strides = array<i32>} : memref<1x4xf32, #tpu.memory_space<vmem>>, vector<1x4xf32>,
    } else {
    }
    %c0 = arith.constant 0 : index
    %c0_2 = arith.constant 0 : index
    %c0_3 = arith.constant 0 : index
    %c0_4 = arith.constant 0 : index
    %5 = vector.load %arg4[%c0, %c0_2, %c0_3, %c0_4] : memref<1x8x16x4xf32, #tpu.memory_space<vmem>>, vector<1x8x16x4xf32>
    %6 = vector.shape_cast %5 : vector<1x8x16x4xf32> to vector<128x4xf32>
    %c0_5 = arith.constant 0 : index
    %c0_6 = arith.constant 0 : index
    %7 = vector.load %arg7[%c0_5, %c0_6] : memref<1x4xf32, #tpu.memory_space<vmem>>, vector<1x4xf32>
    %cst = arith.constant dense<0.000000e+00> : vector<4xf32>
    %8 = vector.multi_reduction <add>, %6, %cst [0] : vector<128x4xf32> to vector<4xf32>
    %9 = vector.shape_cast %8 : vector<4xf32> to vector<1x4xf32>
    %10 = arith.addf %7, %9 : vector<1x4xf32>
    %c0_7 = arith.constant 0 : index
    %c0_8 = arith.constant 0 : index
    %11 = vector.load %arg7[%c0_7, %c0_8] : memref<1x4xf32, #tpu.memory_space<vmem>>, vector<1x4xf32>
    tpu.vector_store %arg7[%c0_7, %c0_8], %10 {strides = array<i32>} : memref<1x4xf32, #tpu.memory_space<vmem>>, vector<1x4xf32>,
    %c0_9 = arith.constant 0 : index
    %c0_10 = arith.constant 0 : index
    %12 = vector.load %arg8[%c0_9, %c0_10] : memref<1x4xf32, #tpu.memory_space<vmem>>, vector<1x4xf32>
    %13 = arith.mulf %6, %6 : vector<128x4xf32>
    %cst_11 = arith.constant dense<0.000000e+00> : vector<4xf32>
    %14 = vector.multi_reduction <add>, %13, %cst_11 [0] : vector<128x4xf32> to vector<4xf32>
    %15 = vector.shape_cast %14 : vector<4xf32> to vector<1x4xf32>
    %16 = arith.addf %12, %15 : vector<1x4xf32>
    %c0_12 = arith.constant 0 : index
    %c0_13 = arith.constant 0 : index
    %17 = vector.load %arg8[%c0_12, %c0_13] : memref<1x4xf32, #tpu.memory_space<vmem>>, vector<1x4xf32>
    tpu.vector_store %arg8[%c0_12, %c0_13], %16 {strides = array<i32>} : memref<1x4xf32, #tpu.memory_space<vmem>>, vector<1x4xf32>,
    %c1_i32 = arith.constant 1 : i32
    %18 = arith.cmpi eq, %arg0, %c1_i32 : i32
    %c1_i32_14 = arith.constant 1 : i32
    %19 = arith.cmpi eq, %arg1, %c1_i32_14 : i32
    %20 = arith.andi %18, %19 : i1
    %21 = arith.extui %20 : i1 to i32
    %c0_i32_15 = arith.constant 0 : i32
    %22 = arith.cmpi ne, %21, %c0_i32_15 : i32
    scf.if %22 {
      %c0_16 = arith.constant 0 : index
      %c0_17 = arith.constant 0 : index
      %23 = vector.load %arg7[%c0_16, %c0_17] : memref<1x4xf32, #tpu.memory_space<vmem>>, vector<1x4xf32>
      %cst_18 = arith.constant 0.001953125 : f32
      %24 = vector.broadcast %cst_18 : f32 to vector<1x4xf32>
      %25 = arith.mulf %23, %24 : vector<1x4xf32>
      %c0_19 = arith.constant 0 : index
      %c0_20 = arith.constant 0 : index
      %26 = vector.load %arg8[%c0_19, %c0_20] : memref<1x4xf32, #tpu.memory_space<vmem>>, vector<1x4xf32>
      %cst_21 = arith.constant 0.001953125 : f32
      %27 = vector.broadcast %cst_21 : f32 to vector<1x4xf32>
      %28 = arith.mulf %26, %27 : vector<1x4xf32>
      %29 = arith.mulf %25, %25 : vector<1x4xf32>
      %30 = arith.subf %28, %29 : vector<1x4xf32>
      %c0_22 = arith.constant 0 : index
      %c0_23 = arith.constant 0 : index
      %31 = vector.load %arg2[%c0_22, %c0_23] : memref<1x4xf32, #tpu.memory_space<vmem>>, vector<1x4xf32>
      %cst_24 = arith.constant 9.99999974E-6 : f32
      %32 = vector.broadcast %cst_24 : f32 to vector<1x4xf32>
      %33 = arith.addf %30, %32 : vector<1x4xf32>
      %34 = math.rsqrt %33 : vector<1x4xf32>
      %35 = arith.mulf %31, %34 : vector<1x4xf32>
      %c0_25 = arith.constant 0 : index
      %c0_26 = arith.constant 0 : index
      %36 = vector.load %arg5[%c0_25, %c0_26] : memref<1x4xf32, #tpu.memory_space<vmem>>, vector<1x4xf32>
      tpu.vector_store %arg5[%c0_25, %c0_26], %35 {strides = array<i32>} : memref<1x4xf32, #tpu.memory_space<vmem>>, vector<1x4xf32>,
      %c0_27 = arith.constant 0 : index
      %c0_28 = arith.constant 0 : index
      %37 = vector.load %arg3[%c0_27, %c0_28] : memref<1x4xf32, #tpu.memory_space<vmem>>, vector<1x4xf32>
      %38 = arith.mulf %25, %35 : vector<1x4xf32>
      %39 = arith.subf %37, %38 : vector<1x4xf32>
      %c0_29 = arith.constant 0 : index
      %c0_30 = arith.constant 0 : index
      %40 = vector.load %arg6[%c0_29, %c0_30] : memref<1x4xf32, #tpu.memory_space<vmem>>, vector<1x4xf32>
      tpu.vector_store %arg6[%c0_29, %c0_30], %39 {strides = array<i32>} : memref<1x4xf32, #tpu.memory_space<vmem>>, vector<1x4xf32>,
    } else {
    }
    return
  }
  func.func @transform_0(%arg0: i32, %arg1: i32) -> (i32, i32) {
    %c0_i32 = arith.constant 0 : i32
    %c0_i32_0 = arith.constant 0 : i32
    %c0_i32_1 = arith.constant 0 : i32
    return %c0_i32, %c0_i32_0 : i32, i32
  }
  func.func @transform_1(%arg0: i32, %arg1: i32) -> (i32, i32) {
    %c0_i32 = arith.constant 0 : i32
    %c0_i32_0 = arith.constant 0 : i32
    %c0_i32_1 = arith.constant 0 : i32
    return %c0_i32, %c0_i32_0 : i32, i32
  }
  func.func @transform_2(%arg0: i32, %arg1: i32) -> (i32, i32, i32, i32) {
    %c0_i32 = arith.constant 0 : i32
    %c0_i32_0 = arith.constant 0 : i32
    %c0_i32_1 = arith.constant 0 : i32
    return %arg0, %arg1, %c0_i32, %c0_i32_0 : i32, i32, i32, i32
  }
  func.func @transform_3(%arg0: i32, %arg1: i32) -> (i32, i32) {
    %c0_i32 = arith.constant 0 : i32
    %c0_i32_0 = arith.constant 0 : i32
    %c0_i32_1 = arith.constant 0 : i32
    return %c0_i32, %c0_i32_0 : i32, i32
  }
  func.func @transform_4(%arg0: i32, %arg1: i32) -> (i32, i32) {
    %c0_i32 = arith.constant 0 : i32
    %c0_i32_0 = arith.constant 0 : i32
    %c0_i32_1 = arith.constant 0 : i32
    return %c0_i32, %c0_i32_0 : i32, i32
  }
}

module attributes {stable_mosaic.version = 11 : i64} {
  func.func @_conv3x3_kernel(%arg0: i32, %arg1: i32, %arg2: memref<1x4xf32, #tpu.memory_space<vmem>>, %arg3: memref<1x4xf32, #tpu.memory_space<vmem>>, %arg4: memref<36x4xbf16, #tpu.memory_space<vmem>>, %arg5: memref<1x4xf32, #tpu.memory_space<vmem>>, %arg6: memref<1x8x16x4xf32, #tpu.memory_space<vmem>>, %arg7: memref<1x1x16x4xf32, #tpu.memory_space<vmem>>, %arg8: memref<1x1x16x4xf32, #tpu.memory_space<vmem>>, %arg9: memref<1x8x16x4xf32, #tpu.memory_space<vmem>>, %arg10: memref<10x16x4xf32, #tpu.memory_space<vmem>>, %arg11: memref<128x36xf32, #tpu.memory_space<vmem>>) attributes {dimension_semantics = [#tpu.dimension_semantics<parallel>, #tpu.dimension_semantics<parallel>], iteration_bounds = array<i64: 2, 2>, scalar_prefetch = 0 : i64, scratch_operands = 2 : i64, tpu.core_type = #tpu.core_type<tc>, window_params = [{pipeline_mode = #tpu.pipeline_mode<synchronous>, transform_indices = @transform_0, window_bounds = array<i64: 1, 4>}, {pipeline_mode = #tpu.pipeline_mode<synchronous>, transform_indices = @transform_1, window_bounds = array<i64: 1, 4>}, {pipeline_mode = #tpu.pipeline_mode<synchronous>, transform_indices = @transform_2, window_bounds = array<i64: 36, 4>}, {pipeline_mode = #tpu.pipeline_mode<synchronous>, transform_indices = @transform_3, window_bounds = array<i64: 1, 4>}, {transform_indices = @transform_4, window_bounds = array<i64: 1, 8, 16, 4>}, {transform_indices = @transform_5, window_bounds = array<i64: 1, 1, 16, 4>}, {transform_indices = @transform_6, window_bounds = array<i64: 1, 1, 16, 4>}, {transform_indices = @transform_7, window_bounds = array<i64: 1, 8, 16, 4>}]} {
    %c0 = arith.constant 0 : index
    %c0_0 = arith.constant 0 : index
    %0 = vector.load %arg2[%c0, %c0_0] : memref<1x4xf32, #tpu.memory_space<vmem>>, vector<1x4xf32>
    %1 = vector.shape_cast %0 : vector<1x4xf32> to vector<1x1x4xf32>
    %c0_1 = arith.constant 0 : index
    %c0_2 = arith.constant 0 : index
    %2 = vector.load %arg3[%c0_1, %c0_2] : memref<1x4xf32, #tpu.memory_space<vmem>>, vector<1x4xf32>
    %3 = vector.shape_cast %2 : vector<1x4xf32> to vector<1x1x4xf32>
    %c0_i32 = arith.constant 0 : i32
    %4 = arith.cmpi sgt, %arg1, %c0_i32 : i32
    %5 = arith.extui %4 : i1 to i32
    %6 = arith.sitofp %5 : i32 to f32
    %c1_i32 = arith.constant 1 : i32
    %7 = arith.cmpi slt, %arg1, %c1_i32 : i32
    %8 = arith.extui %7 : i1 to i32
    %9 = arith.sitofp %8 : i32 to f32
    %c0_3 = arith.constant 0 : index
    %c0_4 = arith.constant 0 : index
    %c0_5 = arith.constant 0 : index
    %c0_6 = arith.constant 0 : index
    %10 = vector.load %arg6[%c0_3, %c0_4, %c0_5, %c0_6] : memref<1x8x16x4xf32, #tpu.memory_space<vmem>>, vector<1x8x16x4xf32>
    %11 = vector.shape_cast %10 : vector<1x8x16x4xf32> to vector<8x16x4xf32>
    %c0_7 = arith.constant 0 : index
    %c0_8 = arith.constant 0 : index
    %c0_9 = arith.constant 0 : index
    %c0_10 = arith.constant 0 : index
    %12 = vector.load %arg7[%c0_7, %c0_8, %c0_9, %c0_10] : memref<1x1x16x4xf32, #tpu.memory_space<vmem>>, vector<1x1x16x4xf32>
    %13 = vector.shape_cast %12 : vector<1x1x16x4xf32> to vector<1x16x4xf32>
    %c0_11 = arith.constant 0 : index
    %c0_12 = arith.constant 0 : index
    %c0_13 = arith.constant 0 : index
    %c0_14 = arith.constant 0 : index
    %14 = vector.load %arg8[%c0_11, %c0_12, %c0_13, %c0_14] : memref<1x1x16x4xf32, #tpu.memory_space<vmem>>, vector<1x1x16x4xf32>
    %15 = vector.shape_cast %14 : vector<1x1x16x4xf32> to vector<1x16x4xf32>
    %16 = vector.broadcast %1 : vector<1x1x4xf32> to vector<1x16x4xf32>
    %17 = arith.mulf %13, %16 : vector<1x16x4xf32>
    %18 = vector.broadcast %3 : vector<1x1x4xf32> to vector<1x16x4xf32>
    %19 = arith.addf %17, %18 : vector<1x16x4xf32>
    %cst = arith.constant 0.000000e+00 : f32
    %20 = vector.broadcast %cst : f32 to vector<1x16x4xf32>
    %21 = arith.maximumf %19, %20 : vector<1x16x4xf32>
    %22 = vector.broadcast %6 : f32 to vector<1x16x4xf32>
    %23 = arith.mulf %21, %22 : vector<1x16x4xf32>
    %c0_15 = arith.constant 0 : index
    %c0_16 = arith.constant 0 : index
    %c0_17 = arith.constant 0 : index
    %24 = vector.load %arg10[%c0_15, %c0_16, %c0_17] : memref<10x16x4xf32, #tpu.memory_space<vmem>>, vector<1x16x4xf32>
    tpu.vector_store %arg10[%c0_15, %c0_16, %c0_17], %23 {strides = array<i32>} : memref<10x16x4xf32, #tpu.memory_space<vmem>>, vector<1x16x4xf32>,
    %25 = vector.broadcast %1 : vector<1x1x4xf32> to vector<8x16x4xf32>
    %26 = arith.mulf %11, %25 : vector<8x16x4xf32>
    %27 = vector.broadcast %3 : vector<1x1x4xf32> to vector<8x16x4xf32>
    %28 = arith.addf %26, %27 : vector<8x16x4xf32>
    %cst_18 = arith.constant 0.000000e+00 : f32
    %29 = vector.broadcast %cst_18 : f32 to vector<8x16x4xf32>
    %30 = arith.maximumf %28, %29 : vector<8x16x4xf32>
    %c1 = arith.constant 1 : index
    %c0_19 = arith.constant 0 : index
    %c0_20 = arith.constant 0 : index
    %31 = vector.load %arg10[%c1, %c0_19, %c0_20] : memref<10x16x4xf32, #tpu.memory_space<vmem>>, vector<8x16x4xf32>
    tpu.vector_store %arg10[%c1, %c0_19, %c0_20], %30 {strides = array<i32>} : memref<10x16x4xf32, #tpu.memory_space<vmem>>, vector<8x16x4xf32>,
    %32 = vector.broadcast %1 : vector<1x1x4xf32> to vector<1x16x4xf32>
    %33 = arith.mulf %15, %32 : vector<1x16x4xf32>
    %34 = vector.broadcast %3 : vector<1x1x4xf32> to vector<1x16x4xf32>
    %35 = arith.addf %33, %34 : vector<1x16x4xf32>
    %cst_21 = arith.constant 0.000000e+00 : f32
    %36 = vector.broadcast %cst_21 : f32 to vector<1x16x4xf32>
    %37 = arith.maximumf %35, %36 : vector<1x16x4xf32>
    %38 = vector.broadcast %9 : f32 to vector<1x16x4xf32>
    %39 = arith.mulf %37, %38 : vector<1x16x4xf32>
    %c9 = arith.constant 9 : index
    %c0_22 = arith.constant 0 : index
    %c0_23 = arith.constant 0 : index
    %40 = vector.load %arg10[%c9, %c0_22, %c0_23] : memref<10x16x4xf32, #tpu.memory_space<vmem>>, vector<1x16x4xf32>
    tpu.vector_store %arg10[%c9, %c0_22, %c0_23], %39 {strides = array<i32>} : memref<10x16x4xf32, #tpu.memory_space<vmem>>, vector<1x16x4xf32>,
    %c0_24 = arith.constant 0 : index
    %c0_25 = arith.constant 0 : index
    %c0_26 = arith.constant 0 : index
    %41 = vector.load %arg10[%c0_24, %c0_25, %c0_26] : memref<10x16x4xf32, #tpu.memory_space<vmem>>, vector<10x16x4xf32>
    %42 = vector.shape_cast %41 : vector<10x16x4xf32> to vector<160x4xf32>
    %43 = tpu.iota {dimensions = array<i32: 1>} : vector<10x16x1xi32>
    %44 = vector.shape_cast %43 : vector<10x16x1xi32> to vector<160x1xi32>
    %c1_i32_27 = arith.constant 1 : i32
    %45 = tpu.dynamic_rotate %42 by %c1_i32_27 dim 0 : vector<160x4xf32>, i32 -> vector<160x4xf32>
    %c0_i32_28 = arith.constant 0 : i32
    %46 = vector.broadcast %c0_i32_28 : i32 to vector<160x1xi32>
    %47 = arith.cmpi sgt, %44, %46 : vector<160x1xi32>
    %48 = arith.extui %47 : vector<160x1xi1> to vector<160x1xi32>
    %49 = arith.sitofp %48 : vector<160x1xi32> to vector<160x1xf32>
    %50 = vector.broadcast %49 : vector<160x1xf32> to vector<160x4xf32>
    %51 = arith.mulf %45, %50 : vector<160x4xf32>
    %c159_i32 = arith.constant 159 : i32
    %52 = tpu.dynamic_rotate %42 by %c159_i32 dim 0 : vector<160x4xf32>, i32 -> vector<160x4xf32>
    %c15_i32 = arith.constant 15 : i32
    %53 = vector.broadcast %c15_i32 : i32 to vector<160x1xi32>
    %54 = arith.cmpi slt, %44, %53 : vector<160x1xi32>
    %55 = arith.extui %54 : vector<160x1xi1> to vector<160x1xi32>
    %56 = arith.sitofp %55 : vector<160x1xi32> to vector<160x1xf32>
    %57 = vector.broadcast %56 : vector<160x1xf32> to vector<160x4xf32>
    %58 = arith.mulf %52, %57 : vector<160x4xf32>
    %59 = vector.extract_strided_slice %51 {offsets = [0, 0], sizes = [128, 4], strides = [1, 1]} : vector<160x4xf32> to vector<128x4xf32>
    %c0_29 = arith.constant 0 : index
    %c0_30 = arith.constant 0 : index
    %60 = vector.load %arg11[%c0_29, %c0_30] : memref<128x36xf32, #tpu.memory_space<vmem>>, vector<128x4xf32>
    tpu.vector_store %arg11[%c0_29, %c0_30], %59 {strides = array<i32>} : memref<128x36xf32, #tpu.memory_space<vmem>>, vector<128x4xf32>,
    %61 = vector.extract_strided_slice %42 {offsets = [0, 0], sizes = [128, 4], strides = [1, 1]} : vector<160x4xf32> to vector<128x4xf32>
    %c0_31 = arith.constant 0 : index
    %c4 = arith.constant 4 : index
    %62 = vector.load %arg11[%c0_31, %c4] : memref<128x36xf32, #tpu.memory_space<vmem>>, vector<128x4xf32>
    tpu.vector_store %arg11[%c0_31, %c4], %61 {strides = array<i32>} : memref<128x36xf32, #tpu.memory_space<vmem>>, vector<128x4xf32>,
    %63 = vector.extract_strided_slice %58 {offsets = [0, 0], sizes = [128, 4], strides = [1, 1]} : vector<160x4xf32> to vector<128x4xf32>
    %c0_32 = arith.constant 0 : index
    %c8 = arith.constant 8 : index
    %64 = vector.load %arg11[%c0_32, %c8] : memref<128x36xf32, #tpu.memory_space<vmem>>, vector<128x4xf32>
    tpu.vector_store %arg11[%c0_32, %c8], %63 {strides = array<i32>} : memref<128x36xf32, #tpu.memory_space<vmem>>, vector<128x4xf32>,
    %65 = vector.extract_strided_slice %51 {offsets = [16, 0], sizes = [128, 4], strides = [1, 1]} : vector<160x4xf32> to vector<128x4xf32>
    %c0_33 = arith.constant 0 : index
    %c12 = arith.constant 12 : index
    %66 = vector.load %arg11[%c0_33, %c12] : memref<128x36xf32, #tpu.memory_space<vmem>>, vector<128x4xf32>
    tpu.vector_store %arg11[%c0_33, %c12], %65 {strides = array<i32>} : memref<128x36xf32, #tpu.memory_space<vmem>>, vector<128x4xf32>,
    %67 = vector.extract_strided_slice %42 {offsets = [16, 0], sizes = [128, 4], strides = [1, 1]} : vector<160x4xf32> to vector<128x4xf32>
    %c0_34 = arith.constant 0 : index
    %c16 = arith.constant 16 : index
    %68 = vector.load %arg11[%c0_34, %c16] : memref<128x36xf32, #tpu.memory_space<vmem>>, vector<128x4xf32>
    tpu.vector_store %arg11[%c0_34, %c16], %67 {strides = array<i32>} : memref<128x36xf32, #tpu.memory_space<vmem>>, vector<128x4xf32>,
    %69 = vector.extract_strided_slice %58 {offsets = [16, 0], sizes = [128, 4], strides = [1, 1]} : vector<160x4xf32> to vector<128x4xf32>
    %c0_35 = arith.constant 0 : index
    %c20 = arith.constant 20 : index
    %70 = vector.load %arg11[%c0_35, %c20] : memref<128x36xf32, #tpu.memory_space<vmem>>, vector<128x4xf32>
    tpu.vector_store %arg11[%c0_35, %c20], %69 {strides = array<i32>} : memref<128x36xf32, #tpu.memory_space<vmem>>, vector<128x4xf32>,
    %71 = vector.extract_strided_slice %51 {offsets = [32, 0], sizes = [128, 4], strides = [1, 1]} : vector<160x4xf32> to vector<128x4xf32>
    %c0_36 = arith.constant 0 : index
    %c24 = arith.constant 24 : index
    %72 = vector.load %arg11[%c0_36, %c24] : memref<128x36xf32, #tpu.memory_space<vmem>>, vector<128x4xf32>
    tpu.vector_store %arg11[%c0_36, %c24], %71 {strides = array<i32>} : memref<128x36xf32, #tpu.memory_space<vmem>>, vector<128x4xf32>,
    %73 = vector.extract_strided_slice %42 {offsets = [32, 0], sizes = [128, 4], strides = [1, 1]} : vector<160x4xf32> to vector<128x4xf32>
    %c0_37 = arith.constant 0 : index
    %c28 = arith.constant 28 : index
    %74 = vector.load %arg11[%c0_37, %c28] : memref<128x36xf32, #tpu.memory_space<vmem>>, vector<128x4xf32>
    tpu.vector_store %arg11[%c0_37, %c28], %73 {strides = array<i32>} : memref<128x36xf32, #tpu.memory_space<vmem>>, vector<128x4xf32>,
    %75 = vector.extract_strided_slice %58 {offsets = [32, 0], sizes = [128, 4], strides = [1, 1]} : vector<160x4xf32> to vector<128x4xf32>
    %c0_38 = arith.constant 0 : index
    %c32 = arith.constant 32 : index
    %76 = vector.load %arg11[%c0_38, %c32] : memref<128x36xf32, #tpu.memory_space<vmem>>, vector<128x4xf32>
    tpu.vector_store %arg11[%c0_38, %c32], %75 {strides = array<i32>} : memref<128x36xf32, #tpu.memory_space<vmem>>, vector<128x4xf32>,
    %c0_39 = arith.constant 0 : index
    %c0_40 = arith.constant 0 : index
    %77 = vector.load %arg11[%c0_39, %c0_40] : memref<128x36xf32, #tpu.memory_space<vmem>>, vector<128x36xf32>
    %78 = arith.truncf %77 : vector<128x36xf32> to vector<128x36xbf16>
    %c0_41 = arith.constant 0 : index
    %c0_42 = arith.constant 0 : index
    %79 = vector.load %arg4[%c0_41, %c0_42] : memref<36x4xbf16, #tpu.memory_space<vmem>>, vector<36x4xbf16>
    %cst_43 = arith.constant dense<0.000000e+00> : vector<128x4xf32>
    %80 = tpu.matmul %78, %79, %cst_43 {dimension_numbers = #tpu.dot_dimension_numbers<[1], [0], [0], [1], [0, 0, 1, 1], [], []>} : vector<128x36xbf16>, vector<36x4xbf16>, vector<128x4xf32> -> vector<128x4xf32>
    %c0_44 = arith.constant 0 : index
    %c0_45 = arith.constant 0 : index
    %81 = vector.load %arg5[%c0_44, %c0_45] : memref<1x4xf32, #tpu.memory_space<vmem>>, vector<1x4xf32>
    %82 = vector.broadcast %81 : vector<1x4xf32> to vector<128x4xf32>
    %83 = arith.addf %80, %82 : vector<128x4xf32>
    %84 = vector.shape_cast %83 : vector<128x4xf32> to vector<1x8x16x4xf32>
    %c0_46 = arith.constant 0 : index
    %c0_47 = arith.constant 0 : index
    %c0_48 = arith.constant 0 : index
    %c0_49 = arith.constant 0 : index
    %85 = vector.load %arg9[%c0_46, %c0_47, %c0_48, %c0_49] : memref<1x8x16x4xf32, #tpu.memory_space<vmem>>, vector<1x8x16x4xf32>
    tpu.vector_store %arg9[%c0_46, %c0_47, %c0_48, %c0_49], %84 {strides = array<i32>} : memref<1x8x16x4xf32, #tpu.memory_space<vmem>>, vector<1x8x16x4xf32>,
    return
  }
  func.func @transform_0(%arg0: i32, %arg1: i32) -> (i32, i32) {
    %c0_i32 = arith.constant 0 : i32
    %c0_i32_0 = arith.constant 0 : i32
    %c0_i32_1 = arith.constant 0 : i32
    return %c0_i32, %c0_i32_0 : i32, i32
  }
  func.func @transform_1(%arg0: i32, %arg1: i32) -> (i32, i32) {
    %c0_i32 = arith.constant 0 : i32
    %c0_i32_0 = arith.constant 0 : i32
    %c0_i32_1 = arith.constant 0 : i32
    return %c0_i32, %c0_i32_0 : i32, i32
  }
  func.func @transform_2(%arg0: i32, %arg1: i32) -> (i32, i32) {
    %c0_i32 = arith.constant 0 : i32
    %c0_i32_0 = arith.constant 0 : i32
    %c0_i32_1 = arith.constant 0 : i32
    return %c0_i32, %c0_i32_0 : i32, i32
  }
  func.func @transform_3(%arg0: i32, %arg1: i32) -> (i32, i32) {
    %c0_i32 = arith.constant 0 : i32
    %c0_i32_0 = arith.constant 0 : i32
    %c0_i32_1 = arith.constant 0 : i32
    return %c0_i32, %c0_i32_0 : i32, i32
  }
  func.func @transform_4(%arg0: i32, %arg1: i32) -> (i32, i32, i32, i32) {
    %c0_i32 = arith.constant 0 : i32
    %c0_i32_0 = arith.constant 0 : i32
    %c0_i32_1 = arith.constant 0 : i32
    return %arg0, %arg1, %c0_i32, %c0_i32_0 : i32, i32, i32, i32
  }
  func.func @transform_5(%arg0: i32, %arg1: i32) -> (i32, i32, i32, i32) {
    %c8_i32 = arith.constant 8 : i32
    %0 = arith.muli %arg1, %c8_i32 : i32
    %c1_i32 = arith.constant 1 : i32
    %1 = arith.subi %0, %c1_i32 : i32
    %c0_i32 = arith.constant 0 : i32
    %2 = arith.maxsi %1, %c0_i32 : i32
    %c0_i32_0 = arith.constant 0 : i32
    %c0_i32_1 = arith.constant 0 : i32
    %c0_i32_2 = arith.constant 0 : i32
    return %arg0, %2, %c0_i32_0, %c0_i32_1 : i32, i32, i32, i32
  }
  func.func @transform_6(%arg0: i32, %arg1: i32) -> (i32, i32, i32, i32) {
    %c8_i32 = arith.constant 8 : i32
    %0 = arith.muli %arg1, %c8_i32 : i32
    %c8_i32_0 = arith.constant 8 : i32
    %1 = arith.addi %0, %c8_i32_0 : i32
    %c15_i32 = arith.constant 15 : i32
    %2 = arith.minsi %1, %c15_i32 : i32
    %c0_i32 = arith.constant 0 : i32
    %c0_i32_1 = arith.constant 0 : i32
    %c0_i32_2 = arith.constant 0 : i32
    return %arg0, %2, %c0_i32, %c0_i32_1 : i32, i32, i32, i32
  }
  func.func @transform_7(%arg0: i32, %arg1: i32) -> (i32, i32, i32, i32) {
    %c0_i32 = arith.constant 0 : i32
    %c0_i32_0 = arith.constant 0 : i32
    %c0_i32_1 = arith.constant 0 : i32
    return %arg0, %arg1, %c0_i32, %c0_i32_0 : i32, i32, i32, i32
  }
}

module attributes {stable_mosaic.version = 11 : i64} {
  func.func @_bn_stats_kernel(%arg0: i32, %arg1: i32, %arg2: memref<1x8xf32, #tpu.memory_space<vmem>>, %arg3: memref<1x8xf32, #tpu.memory_space<vmem>>, %arg4: memref<1x8x16x8xf32, #tpu.memory_space<vmem>>, %arg5: memref<1x8xf32, #tpu.memory_space<vmem>>, %arg6: memref<1x8xf32, #tpu.memory_space<vmem>>, %arg7: memref<1x8xf32, #tpu.memory_space<vmem>>, %arg8: memref<1x8xf32, #tpu.memory_space<vmem>>) attributes {dimension_semantics = [#tpu.dimension_semantics<arbitrary>, #tpu.dimension_semantics<arbitrary>], iteration_bounds = array<i64: 2, 2>, scalar_prefetch = 0 : i64, scratch_operands = 2 : i64, tpu.core_type = #tpu.core_type<tc>, window_params = [{pipeline_mode = #tpu.pipeline_mode<synchronous>, transform_indices = @transform_0, window_bounds = array<i64: 1, 8>}, {pipeline_mode = #tpu.pipeline_mode<synchronous>, transform_indices = @transform_1, window_bounds = array<i64: 1, 8>}, {transform_indices = @transform_2, window_bounds = array<i64: 1, 8, 16, 8>}, {pipeline_mode = #tpu.pipeline_mode<synchronous>, transform_indices = @transform_3, window_bounds = array<i64: 1, 8>}, {pipeline_mode = #tpu.pipeline_mode<synchronous>, transform_indices = @transform_4, window_bounds = array<i64: 1, 8>}]} {
    %c0_i32 = arith.constant 0 : i32
    %0 = arith.cmpi eq, %arg0, %c0_i32 : i32
    %c0_i32_0 = arith.constant 0 : i32
    %1 = arith.cmpi eq, %arg1, %c0_i32_0 : i32
    %2 = arith.andi %0, %1 : i1
    %3 = arith.extui %2 : i1 to i32
    %c0_i32_1 = arith.constant 0 : i32
    %4 = arith.cmpi ne, %3, %c0_i32_1 : i32
    scf.if %4 {
      %cst_16 = arith.constant 0.000000e+00 : f32
      %23 = vector.broadcast %cst_16 : f32 to vector<1x8xf32>
      %c0_17 = arith.constant 0 : index
      %c0_18 = arith.constant 0 : index
      %24 = vector.load %arg7[%c0_17, %c0_18] : memref<1x8xf32, #tpu.memory_space<vmem>>, vector<1x8xf32>
      tpu.vector_store %arg7[%c0_17, %c0_18], %23 {strides = array<i32>} : memref<1x8xf32, #tpu.memory_space<vmem>>, vector<1x8xf32>,
      %cst_19 = arith.constant 0.000000e+00 : f32
      %25 = vector.broadcast %cst_19 : f32 to vector<1x8xf32>
      %c0_20 = arith.constant 0 : index
      %c0_21 = arith.constant 0 : index
      %26 = vector.load %arg8[%c0_20, %c0_21] : memref<1x8xf32, #tpu.memory_space<vmem>>, vector<1x8xf32>
      tpu.vector_store %arg8[%c0_20, %c0_21], %25 {strides = array<i32>} : memref<1x8xf32, #tpu.memory_space<vmem>>, vector<1x8xf32>,
    } else {
    }
    %c0 = arith.constant 0 : index
    %c0_2 = arith.constant 0 : index
    %c0_3 = arith.constant 0 : index
    %c0_4 = arith.constant 0 : index
    %5 = vector.load %arg4[%c0, %c0_2, %c0_3, %c0_4] : memref<1x8x16x8xf32, #tpu.memory_space<vmem>>, vector<1x8x16x8xf32>
    %6 = vector.shape_cast %5 : vector<1x8x16x8xf32> to vector<128x8xf32>
    %c0_5 = arith.constant 0 : index
    %c0_6 = arith.constant 0 : index
    %7 = vector.load %arg7[%c0_5, %c0_6] : memref<1x8xf32, #tpu.memory_space<vmem>>, vector<1x8xf32>
    %cst = arith.constant dense<0.000000e+00> : vector<8xf32>
    %8 = vector.multi_reduction <add>, %6, %cst [0] : vector<128x8xf32> to vector<8xf32>
    %9 = vector.shape_cast %8 : vector<8xf32> to vector<1x8xf32>
    %10 = arith.addf %7, %9 : vector<1x8xf32>
    %c0_7 = arith.constant 0 : index
    %c0_8 = arith.constant 0 : index
    %11 = vector.load %arg7[%c0_7, %c0_8] : memref<1x8xf32, #tpu.memory_space<vmem>>, vector<1x8xf32>
    tpu.vector_store %arg7[%c0_7, %c0_8], %10 {strides = array<i32>} : memref<1x8xf32, #tpu.memory_space<vmem>>, vector<1x8xf32>,
    %c0_9 = arith.constant 0 : index
    %c0_10 = arith.constant 0 : index
    %12 = vector.load %arg8[%c0_9, %c0_10] : memref<1x8xf32, #tpu.memory_space<vmem>>, vector<1x8xf32>
    %13 = arith.mulf %6, %6 : vector<128x8xf32>
    %cst_11 = arith.constant dense<0.000000e+00> : vector<8xf32>
    %14 = vector.multi_reduction <add>, %13, %cst_11 [0] : vector<128x8xf32> to vector<8xf32>
    %15 = vector.shape_cast %14 : vector<8xf32> to vector<1x8xf32>
    %16 = arith.addf %12, %15 : vector<1x8xf32>
    %c0_12 = arith.constant 0 : index
    %c0_13 = arith.constant 0 : index
    %17 = vector.load %arg8[%c0_12, %c0_13] : memref<1x8xf32, #tpu.memory_space<vmem>>, vector<1x8xf32>
    tpu.vector_store %arg8[%c0_12, %c0_13], %16 {strides = array<i32>} : memref<1x8xf32, #tpu.memory_space<vmem>>, vector<1x8xf32>,
    %c1_i32 = arith.constant 1 : i32
    %18 = arith.cmpi eq, %arg0, %c1_i32 : i32
    %c1_i32_14 = arith.constant 1 : i32
    %19 = arith.cmpi eq, %arg1, %c1_i32_14 : i32
    %20 = arith.andi %18, %19 : i1
    %21 = arith.extui %20 : i1 to i32
    %c0_i32_15 = arith.constant 0 : i32
    %22 = arith.cmpi ne, %21, %c0_i32_15 : i32
    scf.if %22 {
      %c0_16 = arith.constant 0 : index
      %c0_17 = arith.constant 0 : index
      %23 = vector.load %arg7[%c0_16, %c0_17] : memref<1x8xf32, #tpu.memory_space<vmem>>, vector<1x8xf32>
      %cst_18 = arith.constant 0.001953125 : f32
      %24 = vector.broadcast %cst_18 : f32 to vector<1x8xf32>
      %25 = arith.mulf %23, %24 : vector<1x8xf32>
      %c0_19 = arith.constant 0 : index
      %c0_20 = arith.constant 0 : index
      %26 = vector.load %arg8[%c0_19, %c0_20] : memref<1x8xf32, #tpu.memory_space<vmem>>, vector<1x8xf32>
      %cst_21 = arith.constant 0.001953125 : f32
      %27 = vector.broadcast %cst_21 : f32 to vector<1x8xf32>
      %28 = arith.mulf %26, %27 : vector<1x8xf32>
      %29 = arith.mulf %25, %25 : vector<1x8xf32>
      %30 = arith.subf %28, %29 : vector<1x8xf32>
      %c0_22 = arith.constant 0 : index
      %c0_23 = arith.constant 0 : index
      %31 = vector.load %arg2[%c0_22, %c0_23] : memref<1x8xf32, #tpu.memory_space<vmem>>, vector<1x8xf32>
      %cst_24 = arith.constant 9.99999974E-6 : f32
      %32 = vector.broadcast %cst_24 : f32 to vector<1x8xf32>
      %33 = arith.addf %30, %32 : vector<1x8xf32>
      %34 = math.rsqrt %33 : vector<1x8xf32>
      %35 = arith.mulf %31, %34 : vector<1x8xf32>
      %c0_25 = arith.constant 0 : index
      %c0_26 = arith.constant 0 : index
      %36 = vector.load %arg5[%c0_25, %c0_26] : memref<1x8xf32, #tpu.memory_space<vmem>>, vector<1x8xf32>
      tpu.vector_store %arg5[%c0_25, %c0_26], %35 {strides = array<i32>} : memref<1x8xf32, #tpu.memory_space<vmem>>, vector<1x8xf32>,
      %c0_27 = arith.constant 0 : index
      %c0_28 = arith.constant 0 : index
      %37 = vector.load %arg3[%c0_27, %c0_28] : memref<1x8xf32, #tpu.memory_space<vmem>>, vector<1x8xf32>
      %38 = arith.mulf %25, %35 : vector<1x8xf32>
      %39 = arith.subf %37, %38 : vector<1x8xf32>
      %c0_29 = arith.constant 0 : index
      %c0_30 = arith.constant 0 : index
      %40 = vector.load %arg6[%c0_29, %c0_30] : memref<1x8xf32, #tpu.memory_space<vmem>>, vector<1x8xf32>
      tpu.vector_store %arg6[%c0_29, %c0_30], %39 {strides = array<i32>} : memref<1x8xf32, #tpu.memory_space<vmem>>, vector<1x8xf32>,
    } else {
    }
    return
  }
  func.func @transform_0(%arg0: i32, %arg1: i32) -> (i32, i32) {
    %c0_i32 = arith.constant 0 : i32
    %c0_i32_0 = arith.constant 0 : i32
    %c0_i32_1 = arith.constant 0 : i32
    return %c0_i32, %c0_i32_0 : i32, i32
  }
  func.func @transform_1(%arg0: i32, %arg1: i32) -> (i32, i32) {
    %c0_i32 = arith.constant 0 : i32
    %c0_i32_0 = arith.constant 0 : i32
    %c0_i32_1 = arith.constant 0 : i32
    return %c0_i32, %c0_i32_0 : i32, i32
  }
  func.func @transform_2(%arg0: i32, %arg1: i32) -> (i32, i32, i32, i32) {
    %c0_i32 = arith.constant 0 : i32
    %c0_i32_0 = arith.constant 0 : i32
    %c0_i32_1 = arith.constant 0 : i32
    return %arg0, %arg1, %c0_i32, %c0_i32_0 : i32, i32, i32, i32
  }
  func.func @transform_3(%arg0: i32, %arg1: i32) -> (i32, i32) {
    %c0_i32 = arith.constant 0 : i32
    %c0_i32_0 = arith.constant 0 : i32
    %c0_i32_1 = arith.constant 0 : i32
    return %c0_i32, %c0_i32_0 : i32, i32
  }
  func.func @transform_4(%arg0: i32, %arg1: i32) -> (i32, i32) {
    %c0_i32 = arith.constant 0 : i32
    %c0_i32_0 = arith.constant 0 : i32
    %c0_i32_1 = arith.constant 0 : i32
    return %c0_i32, %c0_i32_0 : i32, i32
  }
}

module attributes {stable_mosaic.version = 11 : i64} {
  func.func @_conv3x3_kernel(%arg0: i32, %arg1: i32, %arg2: memref<1x8xf32, #tpu.memory_space<vmem>>, %arg3: memref<1x8xf32, #tpu.memory_space<vmem>>, %arg4: memref<72x4xbf16, #tpu.memory_space<vmem>>, %arg5: memref<1x4xf32, #tpu.memory_space<vmem>>, %arg6: memref<1x8x16x8xf32, #tpu.memory_space<vmem>>, %arg7: memref<1x1x16x8xf32, #tpu.memory_space<vmem>>, %arg8: memref<1x1x16x8xf32, #tpu.memory_space<vmem>>, %arg9: memref<1x8x16x4xf32, #tpu.memory_space<vmem>>, %arg10: memref<10x16x8xf32, #tpu.memory_space<vmem>>, %arg11: memref<128x72xf32, #tpu.memory_space<vmem>>) attributes {dimension_semantics = [#tpu.dimension_semantics<parallel>, #tpu.dimension_semantics<parallel>], iteration_bounds = array<i64: 2, 2>, scalar_prefetch = 0 : i64, scratch_operands = 2 : i64, tpu.core_type = #tpu.core_type<tc>, window_params = [{pipeline_mode = #tpu.pipeline_mode<synchronous>, transform_indices = @transform_0, window_bounds = array<i64: 1, 8>}, {pipeline_mode = #tpu.pipeline_mode<synchronous>, transform_indices = @transform_1, window_bounds = array<i64: 1, 8>}, {pipeline_mode = #tpu.pipeline_mode<synchronous>, transform_indices = @transform_2, window_bounds = array<i64: 72, 4>}, {pipeline_mode = #tpu.pipeline_mode<synchronous>, transform_indices = @transform_3, window_bounds = array<i64: 1, 4>}, {transform_indices = @transform_4, window_bounds = array<i64: 1, 8, 16, 8>}, {transform_indices = @transform_5, window_bounds = array<i64: 1, 1, 16, 8>}, {transform_indices = @transform_6, window_bounds = array<i64: 1, 1, 16, 8>}, {transform_indices = @transform_7, window_bounds = array<i64: 1, 8, 16, 4>}]} {
    %c0 = arith.constant 0 : index
    %c0_0 = arith.constant 0 : index
    %0 = vector.load %arg2[%c0, %c0_0] : memref<1x8xf32, #tpu.memory_space<vmem>>, vector<1x8xf32>
    %1 = vector.shape_cast %0 : vector<1x8xf32> to vector<1x1x8xf32>
    %c0_1 = arith.constant 0 : index
    %c0_2 = arith.constant 0 : index
    %2 = vector.load %arg3[%c0_1, %c0_2] : memref<1x8xf32, #tpu.memory_space<vmem>>, vector<1x8xf32>
    %3 = vector.shape_cast %2 : vector<1x8xf32> to vector<1x1x8xf32>
    %c0_i32 = arith.constant 0 : i32
    %4 = arith.cmpi sgt, %arg1, %c0_i32 : i32
    %5 = arith.extui %4 : i1 to i32
    %6 = arith.sitofp %5 : i32 to f32
    %c1_i32 = arith.constant 1 : i32
    %7 = arith.cmpi slt, %arg1, %c1_i32 : i32
    %8 = arith.extui %7 : i1 to i32
    %9 = arith.sitofp %8 : i32 to f32
    %c0_3 = arith.constant 0 : index
    %c0_4 = arith.constant 0 : index
    %c0_5 = arith.constant 0 : index
    %c0_6 = arith.constant 0 : index
    %10 = vector.load %arg6[%c0_3, %c0_4, %c0_5, %c0_6] : memref<1x8x16x8xf32, #tpu.memory_space<vmem>>, vector<1x8x16x8xf32>
    %11 = vector.shape_cast %10 : vector<1x8x16x8xf32> to vector<8x16x8xf32>
    %c0_7 = arith.constant 0 : index
    %c0_8 = arith.constant 0 : index
    %c0_9 = arith.constant 0 : index
    %c0_10 = arith.constant 0 : index
    %12 = vector.load %arg7[%c0_7, %c0_8, %c0_9, %c0_10] : memref<1x1x16x8xf32, #tpu.memory_space<vmem>>, vector<1x1x16x8xf32>
    %13 = vector.shape_cast %12 : vector<1x1x16x8xf32> to vector<1x16x8xf32>
    %c0_11 = arith.constant 0 : index
    %c0_12 = arith.constant 0 : index
    %c0_13 = arith.constant 0 : index
    %c0_14 = arith.constant 0 : index
    %14 = vector.load %arg8[%c0_11, %c0_12, %c0_13, %c0_14] : memref<1x1x16x8xf32, #tpu.memory_space<vmem>>, vector<1x1x16x8xf32>
    %15 = vector.shape_cast %14 : vector<1x1x16x8xf32> to vector<1x16x8xf32>
    %16 = vector.broadcast %1 : vector<1x1x8xf32> to vector<1x16x8xf32>
    %17 = arith.mulf %13, %16 : vector<1x16x8xf32>
    %18 = vector.broadcast %3 : vector<1x1x8xf32> to vector<1x16x8xf32>
    %19 = arith.addf %17, %18 : vector<1x16x8xf32>
    %cst = arith.constant 0.000000e+00 : f32
    %20 = vector.broadcast %cst : f32 to vector<1x16x8xf32>
    %21 = arith.maximumf %19, %20 : vector<1x16x8xf32>
    %22 = vector.broadcast %6 : f32 to vector<1x16x8xf32>
    %23 = arith.mulf %21, %22 : vector<1x16x8xf32>
    %c0_15 = arith.constant 0 : index
    %c0_16 = arith.constant 0 : index
    %c0_17 = arith.constant 0 : index
    %24 = vector.load %arg10[%c0_15, %c0_16, %c0_17] : memref<10x16x8xf32, #tpu.memory_space<vmem>>, vector<1x16x8xf32>
    tpu.vector_store %arg10[%c0_15, %c0_16, %c0_17], %23 {strides = array<i32>} : memref<10x16x8xf32, #tpu.memory_space<vmem>>, vector<1x16x8xf32>,
    %25 = vector.broadcast %1 : vector<1x1x8xf32> to vector<8x16x8xf32>
    %26 = arith.mulf %11, %25 : vector<8x16x8xf32>
    %27 = vector.broadcast %3 : vector<1x1x8xf32> to vector<8x16x8xf32>
    %28 = arith.addf %26, %27 : vector<8x16x8xf32>
    %cst_18 = arith.constant 0.000000e+00 : f32
    %29 = vector.broadcast %cst_18 : f32 to vector<8x16x8xf32>
    %30 = arith.maximumf %28, %29 : vector<8x16x8xf32>
    %c1 = arith.constant 1 : index
    %c0_19 = arith.constant 0 : index
    %c0_20 = arith.constant 0 : index
    %31 = vector.load %arg10[%c1, %c0_19, %c0_20] : memref<10x16x8xf32, #tpu.memory_space<vmem>>, vector<8x16x8xf32>
    tpu.vector_store %arg10[%c1, %c0_19, %c0_20], %30 {strides = array<i32>} : memref<10x16x8xf32, #tpu.memory_space<vmem>>, vector<8x16x8xf32>,
    %32 = vector.broadcast %1 : vector<1x1x8xf32> to vector<1x16x8xf32>
    %33 = arith.mulf %15, %32 : vector<1x16x8xf32>
    %34 = vector.broadcast %3 : vector<1x1x8xf32> to vector<1x16x8xf32>
    %35 = arith.addf %33, %34 : vector<1x16x8xf32>
    %cst_21 = arith.constant 0.000000e+00 : f32
    %36 = vector.broadcast %cst_21 : f32 to vector<1x16x8xf32>
    %37 = arith.maximumf %35, %36 : vector<1x16x8xf32>
    %38 = vector.broadcast %9 : f32 to vector<1x16x8xf32>
    %39 = arith.mulf %37, %38 : vector<1x16x8xf32>
    %c9 = arith.constant 9 : index
    %c0_22 = arith.constant 0 : index
    %c0_23 = arith.constant 0 : index
    %40 = vector.load %arg10[%c9, %c0_22, %c0_23] : memref<10x16x8xf32, #tpu.memory_space<vmem>>, vector<1x16x8xf32>
    tpu.vector_store %arg10[%c9, %c0_22, %c0_23], %39 {strides = array<i32>} : memref<10x16x8xf32, #tpu.memory_space<vmem>>, vector<1x16x8xf32>,
    %c0_24 = arith.constant 0 : index
    %c0_25 = arith.constant 0 : index
    %c0_26 = arith.constant 0 : index
    %41 = vector.load %arg10[%c0_24, %c0_25, %c0_26] : memref<10x16x8xf32, #tpu.memory_space<vmem>>, vector<10x16x8xf32>
    %42 = vector.shape_cast %41 : vector<10x16x8xf32> to vector<160x8xf32>
    %43 = tpu.iota {dimensions = array<i32: 1>} : vector<10x16x1xi32>
    %44 = vector.shape_cast %43 : vector<10x16x1xi32> to vector<160x1xi32>
    %c1_i32_27 = arith.constant 1 : i32
    %45 = tpu.dynamic_rotate %42 by %c1_i32_27 dim 0 : vector<160x8xf32>, i32 -> vector<160x8xf32>
    %c0_i32_28 = arith.constant 0 : i32
    %46 = vector.broadcast %c0_i32_28 : i32 to vector<160x1xi32>
    %47 = arith.cmpi sgt, %44, %46 : vector<160x1xi32>
    %48 = arith.extui %47 : vector<160x1xi1> to vector<160x1xi32>
    %49 = arith.sitofp %48 : vector<160x1xi32> to vector<160x1xf32>
    %50 = vector.broadcast %49 : vector<160x1xf32> to vector<160x8xf32>
    %51 = arith.mulf %45, %50 : vector<160x8xf32>
    %c159_i32 = arith.constant 159 : i32
    %52 = tpu.dynamic_rotate %42 by %c159_i32 dim 0 : vector<160x8xf32>, i32 -> vector<160x8xf32>
    %c15_i32 = arith.constant 15 : i32
    %53 = vector.broadcast %c15_i32 : i32 to vector<160x1xi32>
    %54 = arith.cmpi slt, %44, %53 : vector<160x1xi32>
    %55 = arith.extui %54 : vector<160x1xi1> to vector<160x1xi32>
    %56 = arith.sitofp %55 : vector<160x1xi32> to vector<160x1xf32>
    %57 = vector.broadcast %56 : vector<160x1xf32> to vector<160x8xf32>
    %58 = arith.mulf %52, %57 : vector<160x8xf32>
    %59 = vector.extract_strided_slice %51 {offsets = [0, 0], sizes = [128, 8], strides = [1, 1]} : vector<160x8xf32> to vector<128x8xf32>
    %c0_29 = arith.constant 0 : index
    %c0_30 = arith.constant 0 : index
    %60 = vector.load %arg11[%c0_29, %c0_30] : memref<128x72xf32, #tpu.memory_space<vmem>>, vector<128x8xf32>
    tpu.vector_store %arg11[%c0_29, %c0_30], %59 {strides = array<i32>} : memref<128x72xf32, #tpu.memory_space<vmem>>, vector<128x8xf32>,
    %61 = vector.extract_strided_slice %42 {offsets = [0, 0], sizes = [128, 8], strides = [1, 1]} : vector<160x8xf32> to vector<128x8xf32>
    %c0_31 = arith.constant 0 : index
    %c8 = arith.constant 8 : index
    %62 = vector.load %arg11[%c0_31, %c8] : memref<128x72xf32, #tpu.memory_space<vmem>>, vector<128x8xf32>
    tpu.vector_store %arg11[%c0_31, %c8], %61 {strides = array<i32>} : memref<128x72xf32, #tpu.memory_space<vmem>>, vector<128x8xf32>,
    %63 = vector.extract_strided_slice %58 {offsets = [0, 0], sizes = [128, 8], strides = [1, 1]} : vector<160x8xf32> to vector<128x8xf32>
    %c0_32 = arith.constant 0 : index
    %c16 = arith.constant 16 : index
    %64 = vector.load %arg11[%c0_32, %c16] : memref<128x72xf32, #tpu.memory_space<vmem>>, vector<128x8xf32>
    tpu.vector_store %arg11[%c0_32, %c16], %63 {strides = array<i32>} : memref<128x72xf32, #tpu.memory_space<vmem>>, vector<128x8xf32>,
    %65 = vector.extract_strided_slice %51 {offsets = [16, 0], sizes = [128, 8], strides = [1, 1]} : vector<160x8xf32> to vector<128x8xf32>
    %c0_33 = arith.constant 0 : index
    %c24 = arith.constant 24 : index
    %66 = vector.load %arg11[%c0_33, %c24] : memref<128x72xf32, #tpu.memory_space<vmem>>, vector<128x8xf32>
    tpu.vector_store %arg11[%c0_33, %c24], %65 {strides = array<i32>} : memref<128x72xf32, #tpu.memory_space<vmem>>, vector<128x8xf32>,
    %67 = vector.extract_strided_slice %42 {offsets = [16, 0], sizes = [128, 8], strides = [1, 1]} : vector<160x8xf32> to vector<128x8xf32>
    %c0_34 = arith.constant 0 : index
    %c32 = arith.constant 32 : index
    %68 = vector.load %arg11[%c0_34, %c32] : memref<128x72xf32, #tpu.memory_space<vmem>>, vector<128x8xf32>
    tpu.vector_store %arg11[%c0_34, %c32], %67 {strides = array<i32>} : memref<128x72xf32, #tpu.memory_space<vmem>>, vector<128x8xf32>,
    %69 = vector.extract_strided_slice %58 {offsets = [16, 0], sizes = [128, 8], strides = [1, 1]} : vector<160x8xf32> to vector<128x8xf32>
    %c0_35 = arith.constant 0 : index
    %c40 = arith.constant 40 : index
    %70 = vector.load %arg11[%c0_35, %c40] : memref<128x72xf32, #tpu.memory_space<vmem>>, vector<128x8xf32>
    tpu.vector_store %arg11[%c0_35, %c40], %69 {strides = array<i32>} : memref<128x72xf32, #tpu.memory_space<vmem>>, vector<128x8xf32>,
    %71 = vector.extract_strided_slice %51 {offsets = [32, 0], sizes = [128, 8], strides = [1, 1]} : vector<160x8xf32> to vector<128x8xf32>
    %c0_36 = arith.constant 0 : index
    %c48 = arith.constant 48 : index
    %72 = vector.load %arg11[%c0_36, %c48] : memref<128x72xf32, #tpu.memory_space<vmem>>, vector<128x8xf32>
    tpu.vector_store %arg11[%c0_36, %c48], %71 {strides = array<i32>} : memref<128x72xf32, #tpu.memory_space<vmem>>, vector<128x8xf32>,
    %73 = vector.extract_strided_slice %42 {offsets = [32, 0], sizes = [128, 8], strides = [1, 1]} : vector<160x8xf32> to vector<128x8xf32>
    %c0_37 = arith.constant 0 : index
    %c56 = arith.constant 56 : index
    %74 = vector.load %arg11[%c0_37, %c56] : memref<128x72xf32, #tpu.memory_space<vmem>>, vector<128x8xf32>
    tpu.vector_store %arg11[%c0_37, %c56], %73 {strides = array<i32>} : memref<128x72xf32, #tpu.memory_space<vmem>>, vector<128x8xf32>,
    %75 = vector.extract_strided_slice %58 {offsets = [32, 0], sizes = [128, 8], strides = [1, 1]} : vector<160x8xf32> to vector<128x8xf32>
    %c0_38 = arith.constant 0 : index
    %c64 = arith.constant 64 : index
    %76 = vector.load %arg11[%c0_38, %c64] : memref<128x72xf32, #tpu.memory_space<vmem>>, vector<128x8xf32>
    tpu.vector_store %arg11[%c0_38, %c64], %75 {strides = array<i32>} : memref<128x72xf32, #tpu.memory_space<vmem>>, vector<128x8xf32>,
    %c0_39 = arith.constant 0 : index
    %c0_40 = arith.constant 0 : index
    %77 = vector.load %arg11[%c0_39, %c0_40] : memref<128x72xf32, #tpu.memory_space<vmem>>, vector<128x72xf32>
    %78 = arith.truncf %77 : vector<128x72xf32> to vector<128x72xbf16>
    %c0_41 = arith.constant 0 : index
    %c0_42 = arith.constant 0 : index
    %79 = vector.load %arg4[%c0_41, %c0_42] : memref<72x4xbf16, #tpu.memory_space<vmem>>, vector<72x4xbf16>
    %cst_43 = arith.constant dense<0.000000e+00> : vector<128x4xf32>
    %80 = tpu.matmul %78, %79, %cst_43 {dimension_numbers = #tpu.dot_dimension_numbers<[1], [0], [0], [1], [0, 0, 1, 1], [], []>} : vector<128x72xbf16>, vector<72x4xbf16>, vector<128x4xf32> -> vector<128x4xf32>
    %c0_44 = arith.constant 0 : index
    %c0_45 = arith.constant 0 : index
    %81 = vector.load %arg5[%c0_44, %c0_45] : memref<1x4xf32, #tpu.memory_space<vmem>>, vector<1x4xf32>
    %82 = vector.broadcast %81 : vector<1x4xf32> to vector<128x4xf32>
    %83 = arith.addf %80, %82 : vector<128x4xf32>
    %84 = vector.shape_cast %83 : vector<128x4xf32> to vector<1x8x16x4xf32>
    %c0_46 = arith.constant 0 : index
    %c0_47 = arith.constant 0 : index
    %c0_48 = arith.constant 0 : index
    %c0_49 = arith.constant 0 : index
    %85 = vector.load %arg9[%c0_46, %c0_47, %c0_48, %c0_49] : memref<1x8x16x4xf32, #tpu.memory_space<vmem>>, vector<1x8x16x4xf32>
    tpu.vector_store %arg9[%c0_46, %c0_47, %c0_48, %c0_49], %84 {strides = array<i32>} : memref<1x8x16x4xf32, #tpu.memory_space<vmem>>, vector<1x8x16x4xf32>,
    return
  }
  func.func @transform_0(%arg0: i32, %arg1: i32) -> (i32, i32) {
    %c0_i32 = arith.constant 0 : i32
    %c0_i32_0 = arith.constant 0 : i32
    %c0_i32_1 = arith.constant 0 : i32
    return %c0_i32, %c0_i32_0 : i32, i32
  }
  func.func @transform_1(%arg0: i32, %arg1: i32) -> (i32, i32) {
    %c0_i32 = arith.constant 0 : i32
    %c0_i32_0 = arith.constant 0 : i32
    %c0_i32_1 = arith.constant 0 : i32
    return %c0_i32, %c0_i32_0 : i32, i32
  }
  func.func @transform_2(%arg0: i32, %arg1: i32) -> (i32, i32) {
    %c0_i32 = arith.constant 0 : i32
    %c0_i32_0 = arith.constant 0 : i32
    %c0_i32_1 = arith.constant 0 : i32
    return %c0_i32, %c0_i32_0 : i32, i32
  }
  func.func @transform_3(%arg0: i32, %arg1: i32) -> (i32, i32) {
    %c0_i32 = arith.constant 0 : i32
    %c0_i32_0 = arith.constant 0 : i32
    %c0_i32_1 = arith.constant 0 : i32
    return %c0_i32, %c0_i32_0 : i32, i32
  }
  func.func @transform_4(%arg0: i32, %arg1: i32) -> (i32, i32, i32, i32) {
    %c0_i32 = arith.constant 0 : i32
    %c0_i32_0 = arith.constant 0 : i32
    %c0_i32_1 = arith.constant 0 : i32
    return %arg0, %arg1, %c0_i32, %c0_i32_0 : i32, i32, i32, i32
  }
  func.func @transform_5(%arg0: i32, %arg1: i32) -> (i32, i32, i32, i32) {
    %c8_i32 = arith.constant 8 : i32
    %0 = arith.muli %arg1, %c8_i32 : i32
    %c1_i32 = arith.constant 1 : i32
    %1 = arith.subi %0, %c1_i32 : i32
    %c0_i32 = arith.constant 0 : i32
    %2 = arith.maxsi %1, %c0_i32 : i32
    %c0_i32_0 = arith.constant 0 : i32
    %c0_i32_1 = arith.constant 0 : i32
    %c0_i32_2 = arith.constant 0 : i32
    return %arg0, %2, %c0_i32_0, %c0_i32_1 : i32, i32, i32, i32
  }
  func.func @transform_6(%arg0: i32, %arg1: i32) -> (i32, i32, i32, i32) {
    %c8_i32 = arith.constant 8 : i32
    %0 = arith.muli %arg1, %c8_i32 : i32
    %c8_i32_0 = arith.constant 8 : i32
    %1 = arith.addi %0, %c8_i32_0 : i32
    %c15_i32 = arith.constant 15 : i32
    %2 = arith.minsi %1, %c15_i32 : i32
    %c0_i32 = arith.constant 0 : i32
    %c0_i32_1 = arith.constant 0 : i32
    %c0_i32_2 = arith.constant 0 : i32
    return %arg0, %2, %c0_i32, %c0_i32_1 : i32, i32, i32, i32
  }
  func.func @transform_7(%arg0: i32, %arg1: i32) -> (i32, i32, i32, i32) {
    %c0_i32 = arith.constant 0 : i32
    %c0_i32_0 = arith.constant 0 : i32
    %c0_i32_1 = arith.constant 0 : i32
    return %arg0, %arg1, %c0_i32, %c0_i32_0 : i32, i32, i32, i32
  }
}

module attributes {stable_mosaic.version = 11 : i64} {
  func.func @_bn_stats_kernel(%arg0: i32, %arg1: i32, %arg2: memref<1x12xf32, #tpu.memory_space<vmem>>, %arg3: memref<1x12xf32, #tpu.memory_space<vmem>>, %arg4: memref<1x8x16x12xf32, #tpu.memory_space<vmem>>, %arg5: memref<1x12xf32, #tpu.memory_space<vmem>>, %arg6: memref<1x12xf32, #tpu.memory_space<vmem>>, %arg7: memref<1x12xf32, #tpu.memory_space<vmem>>, %arg8: memref<1x12xf32, #tpu.memory_space<vmem>>) attributes {dimension_semantics = [#tpu.dimension_semantics<arbitrary>, #tpu.dimension_semantics<arbitrary>], iteration_bounds = array<i64: 2, 2>, scalar_prefetch = 0 : i64, scratch_operands = 2 : i64, tpu.core_type = #tpu.core_type<tc>, window_params = [{pipeline_mode = #tpu.pipeline_mode<synchronous>, transform_indices = @transform_0, window_bounds = array<i64: 1, 12>}, {pipeline_mode = #tpu.pipeline_mode<synchronous>, transform_indices = @transform_1, window_bounds = array<i64: 1, 12>}, {transform_indices = @transform_2, window_bounds = array<i64: 1, 8, 16, 12>}, {pipeline_mode = #tpu.pipeline_mode<synchronous>, transform_indices = @transform_3, window_bounds = array<i64: 1, 12>}, {pipeline_mode = #tpu.pipeline_mode<synchronous>, transform_indices = @transform_4, window_bounds = array<i64: 1, 12>}]} {
    %c0_i32 = arith.constant 0 : i32
    %0 = arith.cmpi eq, %arg0, %c0_i32 : i32
    %c0_i32_0 = arith.constant 0 : i32
    %1 = arith.cmpi eq, %arg1, %c0_i32_0 : i32
    %2 = arith.andi %0, %1 : i1
    %3 = arith.extui %2 : i1 to i32
    %c0_i32_1 = arith.constant 0 : i32
    %4 = arith.cmpi ne, %3, %c0_i32_1 : i32
    scf.if %4 {
      %cst_16 = arith.constant 0.000000e+00 : f32
      %23 = vector.broadcast %cst_16 : f32 to vector<1x12xf32>
      %c0_17 = arith.constant 0 : index
      %c0_18 = arith.constant 0 : index
      %24 = vector.load %arg7[%c0_17, %c0_18] : memref<1x12xf32, #tpu.memory_space<vmem>>, vector<1x12xf32>
      tpu.vector_store %arg7[%c0_17, %c0_18], %23 {strides = array<i32>} : memref<1x12xf32, #tpu.memory_space<vmem>>, vector<1x12xf32>,
      %cst_19 = arith.constant 0.000000e+00 : f32
      %25 = vector.broadcast %cst_19 : f32 to vector<1x12xf32>
      %c0_20 = arith.constant 0 : index
      %c0_21 = arith.constant 0 : index
      %26 = vector.load %arg8[%c0_20, %c0_21] : memref<1x12xf32, #tpu.memory_space<vmem>>, vector<1x12xf32>
      tpu.vector_store %arg8[%c0_20, %c0_21], %25 {strides = array<i32>} : memref<1x12xf32, #tpu.memory_space<vmem>>, vector<1x12xf32>,
    } else {
    }
    %c0 = arith.constant 0 : index
    %c0_2 = arith.constant 0 : index
    %c0_3 = arith.constant 0 : index
    %c0_4 = arith.constant 0 : index
    %5 = vector.load %arg4[%c0, %c0_2, %c0_3, %c0_4] : memref<1x8x16x12xf32, #tpu.memory_space<vmem>>, vector<1x8x16x12xf32>
    %6 = vector.shape_cast %5 : vector<1x8x16x12xf32> to vector<128x12xf32>
    %c0_5 = arith.constant 0 : index
    %c0_6 = arith.constant 0 : index
    %7 = vector.load %arg7[%c0_5, %c0_6] : memref<1x12xf32, #tpu.memory_space<vmem>>, vector<1x12xf32>
    %cst = arith.constant dense<0.000000e+00> : vector<12xf32>
    %8 = vector.multi_reduction <add>, %6, %cst [0] : vector<128x12xf32> to vector<12xf32>
    %9 = vector.shape_cast %8 : vector<12xf32> to vector<1x12xf32>
    %10 = arith.addf %7, %9 : vector<1x12xf32>
    %c0_7 = arith.constant 0 : index
    %c0_8 = arith.constant 0 : index
    %11 = vector.load %arg7[%c0_7, %c0_8] : memref<1x12xf32, #tpu.memory_space<vmem>>, vector<1x12xf32>
    tpu.vector_store %arg7[%c0_7, %c0_8], %10 {strides = array<i32>} : memref<1x12xf32, #tpu.memory_space<vmem>>, vector<1x12xf32>,
    %c0_9 = arith.constant 0 : index
    %c0_10 = arith.constant 0 : index
    %12 = vector.load %arg8[%c0_9, %c0_10] : memref<1x12xf32, #tpu.memory_space<vmem>>, vector<1x12xf32>
    %13 = arith.mulf %6, %6 : vector<128x12xf32>
    %cst_11 = arith.constant dense<0.000000e+00> : vector<12xf32>
    %14 = vector.multi_reduction <add>, %13, %cst_11 [0] : vector<128x12xf32> to vector<12xf32>
    %15 = vector.shape_cast %14 : vector<12xf32> to vector<1x12xf32>
    %16 = arith.addf %12, %15 : vector<1x12xf32>
    %c0_12 = arith.constant 0 : index
    %c0_13 = arith.constant 0 : index
    %17 = vector.load %arg8[%c0_12, %c0_13] : memref<1x12xf32, #tpu.memory_space<vmem>>, vector<1x12xf32>
    tpu.vector_store %arg8[%c0_12, %c0_13], %16 {strides = array<i32>} : memref<1x12xf32, #tpu.memory_space<vmem>>, vector<1x12xf32>,
    %c1_i32 = arith.constant 1 : i32
    %18 = arith.cmpi eq, %arg0, %c1_i32 : i32
    %c1_i32_14 = arith.constant 1 : i32
    %19 = arith.cmpi eq, %arg1, %c1_i32_14 : i32
    %20 = arith.andi %18, %19 : i1
    %21 = arith.extui %20 : i1 to i32
    %c0_i32_15 = arith.constant 0 : i32
    %22 = arith.cmpi ne, %21, %c0_i32_15 : i32
    scf.if %22 {
      %c0_16 = arith.constant 0 : index
      %c0_17 = arith.constant 0 : index
      %23 = vector.load %arg7[%c0_16, %c0_17] : memref<1x12xf32, #tpu.memory_space<vmem>>, vector<1x12xf32>
      %cst_18 = arith.constant 0.001953125 : f32
      %24 = vector.broadcast %cst_18 : f32 to vector<1x12xf32>
      %25 = arith.mulf %23, %24 : vector<1x12xf32>
      %c0_19 = arith.constant 0 : index
      %c0_20 = arith.constant 0 : index
      %26 = vector.load %arg8[%c0_19, %c0_20] : memref<1x12xf32, #tpu.memory_space<vmem>>, vector<1x12xf32>
      %cst_21 = arith.constant 0.001953125 : f32
      %27 = vector.broadcast %cst_21 : f32 to vector<1x12xf32>
      %28 = arith.mulf %26, %27 : vector<1x12xf32>
      %29 = arith.mulf %25, %25 : vector<1x12xf32>
      %30 = arith.subf %28, %29 : vector<1x12xf32>
      %c0_22 = arith.constant 0 : index
      %c0_23 = arith.constant 0 : index
      %31 = vector.load %arg2[%c0_22, %c0_23] : memref<1x12xf32, #tpu.memory_space<vmem>>, vector<1x12xf32>
      %cst_24 = arith.constant 9.99999974E-6 : f32
      %32 = vector.broadcast %cst_24 : f32 to vector<1x12xf32>
      %33 = arith.addf %30, %32 : vector<1x12xf32>
      %34 = math.rsqrt %33 : vector<1x12xf32>
      %35 = arith.mulf %31, %34 : vector<1x12xf32>
      %c0_25 = arith.constant 0 : index
      %c0_26 = arith.constant 0 : index
      %36 = vector.load %arg5[%c0_25, %c0_26] : memref<1x12xf32, #tpu.memory_space<vmem>>, vector<1x12xf32>
      tpu.vector_store %arg5[%c0_25, %c0_26], %35 {strides = array<i32>} : memref<1x12xf32, #tpu.memory_space<vmem>>, vector<1x12xf32>,
      %c0_27 = arith.constant 0 : index
      %c0_28 = arith.constant 0 : index
      %37 = vector.load %arg3[%c0_27, %c0_28] : memref<1x12xf32, #tpu.memory_space<vmem>>, vector<1x12xf32>
      %38 = arith.mulf %25, %35 : vector<1x12xf32>
      %39 = arith.subf %37, %38 : vector<1x12xf32>
      %c0_29 = arith.constant 0 : index
      %c0_30 = arith.constant 0 : index
      %40 = vector.load %arg6[%c0_29, %c0_30] : memref<1x12xf32, #tpu.memory_space<vmem>>, vector<1x12xf32>
      tpu.vector_store %arg6[%c0_29, %c0_30], %39 {strides = array<i32>} : memref<1x12xf32, #tpu.memory_space<vmem>>, vector<1x12xf32>,
    } else {
    }
    return
  }
  func.func @transform_0(%arg0: i32, %arg1: i32) -> (i32, i32) {
    %c0_i32 = arith.constant 0 : i32
    %c0_i32_0 = arith.constant 0 : i32
    %c0_i32_1 = arith.constant 0 : i32
    return %c0_i32, %c0_i32_0 : i32, i32
  }
  func.func @transform_1(%arg0: i32, %arg1: i32) -> (i32, i32) {
    %c0_i32 = arith.constant 0 : i32
    %c0_i32_0 = arith.constant 0 : i32
    %c0_i32_1 = arith.constant 0 : i32
    return %c0_i32, %c0_i32_0 : i32, i32
  }
  func.func @transform_2(%arg0: i32, %arg1: i32) -> (i32, i32, i32, i32) {
    %c0_i32 = arith.constant 0 : i32
    %c0_i32_0 = arith.constant 0 : i32
    %c0_i32_1 = arith.constant 0 : i32
    return %arg0, %arg1, %c0_i32, %c0_i32_0 : i32, i32, i32, i32
  }
  func.func @transform_3(%arg0: i32, %arg1: i32) -> (i32, i32) {
    %c0_i32 = arith.constant 0 : i32
    %c0_i32_0 = arith.constant 0 : i32
    %c0_i32_1 = arith.constant 0 : i32
    return %c0_i32, %c0_i32_0 : i32, i32
  }
  func.func @transform_4(%arg0: i32, %arg1: i32) -> (i32, i32) {
    %c0_i32 = arith.constant 0 : i32
    %c0_i32_0 = arith.constant 0 : i32
    %c0_i32_1 = arith.constant 0 : i32
    return %c0_i32, %c0_i32_0 : i32, i32
  }
}

module attributes {stable_mosaic.version = 11 : i64} {
  func.func @_conv3x3_kernel(%arg0: i32, %arg1: i32, %arg2: memref<1x12xf32, #tpu.memory_space<vmem>>, %arg3: memref<1x12xf32, #tpu.memory_space<vmem>>, %arg4: memref<108x4xbf16, #tpu.memory_space<vmem>>, %arg5: memref<1x4xf32, #tpu.memory_space<vmem>>, %arg6: memref<1x8x16x12xf32, #tpu.memory_space<vmem>>, %arg7: memref<1x1x16x12xf32, #tpu.memory_space<vmem>>, %arg8: memref<1x1x16x12xf32, #tpu.memory_space<vmem>>, %arg9: memref<1x8x16x4xf32, #tpu.memory_space<vmem>>, %arg10: memref<10x16x12xf32, #tpu.memory_space<vmem>>, %arg11: memref<128x108xf32, #tpu.memory_space<vmem>>) attributes {dimension_semantics = [#tpu.dimension_semantics<parallel>, #tpu.dimension_semantics<parallel>], iteration_bounds = array<i64: 2, 2>, scalar_prefetch = 0 : i64, scratch_operands = 2 : i64, tpu.core_type = #tpu.core_type<tc>, window_params = [{pipeline_mode = #tpu.pipeline_mode<synchronous>, transform_indices = @transform_0, window_bounds = array<i64: 1, 12>}, {pipeline_mode = #tpu.pipeline_mode<synchronous>, transform_indices = @transform_1, window_bounds = array<i64: 1, 12>}, {pipeline_mode = #tpu.pipeline_mode<synchronous>, transform_indices = @transform_2, window_bounds = array<i64: 108, 4>}, {pipeline_mode = #tpu.pipeline_mode<synchronous>, transform_indices = @transform_3, window_bounds = array<i64: 1, 4>}, {transform_indices = @transform_4, window_bounds = array<i64: 1, 8, 16, 12>}, {transform_indices = @transform_5, window_bounds = array<i64: 1, 1, 16, 12>}, {transform_indices = @transform_6, window_bounds = array<i64: 1, 1, 16, 12>}, {transform_indices = @transform_7, window_bounds = array<i64: 1, 8, 16, 4>}]} {
    %c0 = arith.constant 0 : index
    %c0_0 = arith.constant 0 : index
    %0 = vector.load %arg2[%c0, %c0_0] : memref<1x12xf32, #tpu.memory_space<vmem>>, vector<1x12xf32>
    %1 = vector.shape_cast %0 : vector<1x12xf32> to vector<1x1x12xf32>
    %c0_1 = arith.constant 0 : index
    %c0_2 = arith.constant 0 : index
    %2 = vector.load %arg3[%c0_1, %c0_2] : memref<1x12xf32, #tpu.memory_space<vmem>>, vector<1x12xf32>
    %3 = vector.shape_cast %2 : vector<1x12xf32> to vector<1x1x12xf32>
    %c0_i32 = arith.constant 0 : i32
    %4 = arith.cmpi sgt, %arg1, %c0_i32 : i32
    %5 = arith.extui %4 : i1 to i32
    %6 = arith.sitofp %5 : i32 to f32
    %c1_i32 = arith.constant 1 : i32
    %7 = arith.cmpi slt, %arg1, %c1_i32 : i32
    %8 = arith.extui %7 : i1 to i32
    %9 = arith.sitofp %8 : i32 to f32
    %c0_3 = arith.constant 0 : index
    %c0_4 = arith.constant 0 : index
    %c0_5 = arith.constant 0 : index
    %c0_6 = arith.constant 0 : index
    %10 = vector.load %arg6[%c0_3, %c0_4, %c0_5, %c0_6] : memref<1x8x16x12xf32, #tpu.memory_space<vmem>>, vector<1x8x16x12xf32>
    %11 = vector.shape_cast %10 : vector<1x8x16x12xf32> to vector<8x16x12xf32>
    %c0_7 = arith.constant 0 : index
    %c0_8 = arith.constant 0 : index
    %c0_9 = arith.constant 0 : index
    %c0_10 = arith.constant 0 : index
    %12 = vector.load %arg7[%c0_7, %c0_8, %c0_9, %c0_10] : memref<1x1x16x12xf32, #tpu.memory_space<vmem>>, vector<1x1x16x12xf32>
    %13 = vector.shape_cast %12 : vector<1x1x16x12xf32> to vector<1x16x12xf32>
    %c0_11 = arith.constant 0 : index
    %c0_12 = arith.constant 0 : index
    %c0_13 = arith.constant 0 : index
    %c0_14 = arith.constant 0 : index
    %14 = vector.load %arg8[%c0_11, %c0_12, %c0_13, %c0_14] : memref<1x1x16x12xf32, #tpu.memory_space<vmem>>, vector<1x1x16x12xf32>
    %15 = vector.shape_cast %14 : vector<1x1x16x12xf32> to vector<1x16x12xf32>
    %16 = vector.broadcast %1 : vector<1x1x12xf32> to vector<1x16x12xf32>
    %17 = arith.mulf %13, %16 : vector<1x16x12xf32>
    %18 = vector.broadcast %3 : vector<1x1x12xf32> to vector<1x16x12xf32>
    %19 = arith.addf %17, %18 : vector<1x16x12xf32>
    %cst = arith.constant 0.000000e+00 : f32
    %20 = vector.broadcast %cst : f32 to vector<1x16x12xf32>
    %21 = arith.maximumf %19, %20 : vector<1x16x12xf32>
    %22 = vector.broadcast %6 : f32 to vector<1x16x12xf32>
    %23 = arith.mulf %21, %22 : vector<1x16x12xf32>
    %c0_15 = arith.constant 0 : index
    %c0_16 = arith.constant 0 : index
    %c0_17 = arith.constant 0 : index
    %24 = vector.load %arg10[%c0_15, %c0_16, %c0_17] : memref<10x16x12xf32, #tpu.memory_space<vmem>>, vector<1x16x12xf32>
    tpu.vector_store %arg10[%c0_15, %c0_16, %c0_17], %23 {strides = array<i32>} : memref<10x16x12xf32, #tpu.memory_space<vmem>>, vector<1x16x12xf32>,
    %25 = vector.broadcast %1 : vector<1x1x12xf32> to vector<8x16x12xf32>
    %26 = arith.mulf %11, %25 : vector<8x16x12xf32>
    %27 = vector.broadcast %3 : vector<1x1x12xf32> to vector<8x16x12xf32>
    %28 = arith.addf %26, %27 : vector<8x16x12xf32>
    %cst_18 = arith.constant 0.000000e+00 : f32
    %29 = vector.broadcast %cst_18 : f32 to vector<8x16x12xf32>
    %30 = arith.maximumf %28, %29 : vector<8x16x12xf32>
    %c1 = arith.constant 1 : index
    %c0_19 = arith.constant 0 : index
    %c0_20 = arith.constant 0 : index
    %31 = vector.load %arg10[%c1, %c0_19, %c0_20] : memref<10x16x12xf32, #tpu.memory_space<vmem>>, vector<8x16x12xf32>
    tpu.vector_store %arg10[%c1, %c0_19, %c0_20], %30 {strides = array<i32>} : memref<10x16x12xf32, #tpu.memory_space<vmem>>, vector<8x16x12xf32>,
    %32 = vector.broadcast %1 : vector<1x1x12xf32> to vector<1x16x12xf32>
    %33 = arith.mulf %15, %32 : vector<1x16x12xf32>
    %34 = vector.broadcast %3 : vector<1x1x12xf32> to vector<1x16x12xf32>
    %35 = arith.addf %33, %34 : vector<1x16x12xf32>
    %cst_21 = arith.constant 0.000000e+00 : f32
    %36 = vector.broadcast %cst_21 : f32 to vector<1x16x12xf32>
    %37 = arith.maximumf %35, %36 : vector<1x16x12xf32>
    %38 = vector.broadcast %9 : f32 to vector<1x16x12xf32>
    %39 = arith.mulf %37, %38 : vector<1x16x12xf32>
    %c9 = arith.constant 9 : index
    %c0_22 = arith.constant 0 : index
    %c0_23 = arith.constant 0 : index
    %40 = vector.load %arg10[%c9, %c0_22, %c0_23] : memref<10x16x12xf32, #tpu.memory_space<vmem>>, vector<1x16x12xf32>
    tpu.vector_store %arg10[%c9, %c0_22, %c0_23], %39 {strides = array<i32>} : memref<10x16x12xf32, #tpu.memory_space<vmem>>, vector<1x16x12xf32>,
    %c0_24 = arith.constant 0 : index
    %c0_25 = arith.constant 0 : index
    %c0_26 = arith.constant 0 : index
    %41 = vector.load %arg10[%c0_24, %c0_25, %c0_26] : memref<10x16x12xf32, #tpu.memory_space<vmem>>, vector<10x16x12xf32>
    %42 = vector.shape_cast %41 : vector<10x16x12xf32> to vector<160x12xf32>
    %43 = tpu.iota {dimensions = array<i32: 1>} : vector<10x16x1xi32>
    %44 = vector.shape_cast %43 : vector<10x16x1xi32> to vector<160x1xi32>
    %c1_i32_27 = arith.constant 1 : i32
    %45 = tpu.dynamic_rotate %42 by %c1_i32_27 dim 0 : vector<160x12xf32>, i32 -> vector<160x12xf32>
    %c0_i32_28 = arith.constant 0 : i32
    %46 = vector.broadcast %c0_i32_28 : i32 to vector<160x1xi32>
    %47 = arith.cmpi sgt, %44, %46 : vector<160x1xi32>
    %48 = arith.extui %47 : vector<160x1xi1> to vector<160x1xi32>
    %49 = arith.sitofp %48 : vector<160x1xi32> to vector<160x1xf32>
    %50 = vector.broadcast %49 : vector<160x1xf32> to vector<160x12xf32>
    %51 = arith.mulf %45, %50 : vector<160x12xf32>
    %c159_i32 = arith.constant 159 : i32
    %52 = tpu.dynamic_rotate %42 by %c159_i32 dim 0 : vector<160x12xf32>, i32 -> vector<160x12xf32>
    %c15_i32 = arith.constant 15 : i32
    %53 = vector.broadcast %c15_i32 : i32 to vector<160x1xi32>
    %54 = arith.cmpi slt, %44, %53 : vector<160x1xi32>
    %55 = arith.extui %54 : vector<160x1xi1> to vector<160x1xi32>
    %56 = arith.sitofp %55 : vector<160x1xi32> to vector<160x1xf32>
    %57 = vector.broadcast %56 : vector<160x1xf32> to vector<160x12xf32>
    %58 = arith.mulf %52, %57 : vector<160x12xf32>
    %59 = vector.extract_strided_slice %51 {offsets = [0, 0], sizes = [128, 12], strides = [1, 1]} : vector<160x12xf32> to vector<128x12xf32>
    %c0_29 = arith.constant 0 : index
    %c0_30 = arith.constant 0 : index
    %60 = vector.load %arg11[%c0_29, %c0_30] : memref<128x108xf32, #tpu.memory_space<vmem>>, vector<128x12xf32>
    tpu.vector_store %arg11[%c0_29, %c0_30], %59 {strides = array<i32>} : memref<128x108xf32, #tpu.memory_space<vmem>>, vector<128x12xf32>,
    %61 = vector.extract_strided_slice %42 {offsets = [0, 0], sizes = [128, 12], strides = [1, 1]} : vector<160x12xf32> to vector<128x12xf32>
    %c0_31 = arith.constant 0 : index
    %c12 = arith.constant 12 : index
    %62 = vector.load %arg11[%c0_31, %c12] : memref<128x108xf32, #tpu.memory_space<vmem>>, vector<128x12xf32>
    tpu.vector_store %arg11[%c0_31, %c12], %61 {strides = array<i32>} : memref<128x108xf32, #tpu.memory_space<vmem>>, vector<128x12xf32>,
    %63 = vector.extract_strided_slice %58 {offsets = [0, 0], sizes = [128, 12], strides = [1, 1]} : vector<160x12xf32> to vector<128x12xf32>
    %c0_32 = arith.constant 0 : index
    %c24 = arith.constant 24 : index
    %64 = vector.load %arg11[%c0_32, %c24] : memref<128x108xf32, #tpu.memory_space<vmem>>, vector<128x12xf32>
    tpu.vector_store %arg11[%c0_32, %c24], %63 {strides = array<i32>} : memref<128x108xf32, #tpu.memory_space<vmem>>, vector<128x12xf32>,
    %65 = vector.extract_strided_slice %51 {offsets = [16, 0], sizes = [128, 12], strides = [1, 1]} : vector<160x12xf32> to vector<128x12xf32>
    %c0_33 = arith.constant 0 : index
    %c36 = arith.constant 36 : index
    %66 = vector.load %arg11[%c0_33, %c36] : memref<128x108xf32, #tpu.memory_space<vmem>>, vector<128x12xf32>
    tpu.vector_store %arg11[%c0_33, %c36], %65 {strides = array<i32>} : memref<128x108xf32, #tpu.memory_space<vmem>>, vector<128x12xf32>,
    %67 = vector.extract_strided_slice %42 {offsets = [16, 0], sizes = [128, 12], strides = [1, 1]} : vector<160x12xf32> to vector<128x12xf32>
    %c0_34 = arith.constant 0 : index
    %c48 = arith.constant 48 : index
    %68 = vector.load %arg11[%c0_34, %c48] : memref<128x108xf32, #tpu.memory_space<vmem>>, vector<128x12xf32>
    tpu.vector_store %arg11[%c0_34, %c48], %67 {strides = array<i32>} : memref<128x108xf32, #tpu.memory_space<vmem>>, vector<128x12xf32>,
    %69 = vector.extract_strided_slice %58 {offsets = [16, 0], sizes = [128, 12], strides = [1, 1]} : vector<160x12xf32> to vector<128x12xf32>
    %c0_35 = arith.constant 0 : index
    %c60 = arith.constant 60 : index
    %70 = vector.load %arg11[%c0_35, %c60] : memref<128x108xf32, #tpu.memory_space<vmem>>, vector<128x12xf32>
    tpu.vector_store %arg11[%c0_35, %c60], %69 {strides = array<i32>} : memref<128x108xf32, #tpu.memory_space<vmem>>, vector<128x12xf32>,
    %71 = vector.extract_strided_slice %51 {offsets = [32, 0], sizes = [128, 12], strides = [1, 1]} : vector<160x12xf32> to vector<128x12xf32>
    %c0_36 = arith.constant 0 : index
    %c72 = arith.constant 72 : index
    %72 = vector.load %arg11[%c0_36, %c72] : memref<128x108xf32, #tpu.memory_space<vmem>>, vector<128x12xf32>
    tpu.vector_store %arg11[%c0_36, %c72], %71 {strides = array<i32>} : memref<128x108xf32, #tpu.memory_space<vmem>>, vector<128x12xf32>,
    %73 = vector.extract_strided_slice %42 {offsets = [32, 0], sizes = [128, 12], strides = [1, 1]} : vector<160x12xf32> to vector<128x12xf32>
    %c0_37 = arith.constant 0 : index
    %c84 = arith.constant 84 : index
    %74 = vector.load %arg11[%c0_37, %c84] : memref<128x108xf32, #tpu.memory_space<vmem>>, vector<128x12xf32>
    tpu.vector_store %arg11[%c0_37, %c84], %73 {strides = array<i32>} : memref<128x108xf32, #tpu.memory_space<vmem>>, vector<128x12xf32>,
    %75 = vector.extract_strided_slice %58 {offsets = [32, 0], sizes = [128, 12], strides = [1, 1]} : vector<160x12xf32> to vector<128x12xf32>
    %c0_38 = arith.constant 0 : index
    %c96 = arith.constant 96 : index
    %76 = vector.load %arg11[%c0_38, %c96] : memref<128x108xf32, #tpu.memory_space<vmem>>, vector<128x12xf32>
    tpu.vector_store %arg11[%c0_38, %c96], %75 {strides = array<i32>} : memref<128x108xf32, #tpu.memory_space<vmem>>, vector<128x12xf32>,
    %c0_39 = arith.constant 0 : index
    %c0_40 = arith.constant 0 : index
    %77 = vector.load %arg11[%c0_39, %c0_40] : memref<128x108xf32, #tpu.memory_space<vmem>>, vector<128x108xf32>
    %78 = arith.truncf %77 : vector<128x108xf32> to vector<128x108xbf16>
    %c0_41 = arith.constant 0 : index
    %c0_42 = arith.constant 0 : index
    %79 = vector.load %arg4[%c0_41, %c0_42] : memref<108x4xbf16, #tpu.memory_space<vmem>>, vector<108x4xbf16>
    %cst_43 = arith.constant dense<0.000000e+00> : vector<128x4xf32>
    %80 = tpu.matmul %78, %79, %cst_43 {dimension_numbers = #tpu.dot_dimension_numbers<[1], [0], [0], [1], [0, 0, 1, 1], [], []>} : vector<128x108xbf16>, vector<108x4xbf16>, vector<128x4xf32> -> vector<128x4xf32>
    %c0_44 = arith.constant 0 : index
    %c0_45 = arith.constant 0 : index
    %81 = vector.load %arg5[%c0_44, %c0_45] : memref<1x4xf32, #tpu.memory_space<vmem>>, vector<1x4xf32>
    %82 = vector.broadcast %81 : vector<1x4xf32> to vector<128x4xf32>
    %83 = arith.addf %80, %82 : vector<128x4xf32>
    %84 = vector.shape_cast %83 : vector<128x4xf32> to vector<1x8x16x4xf32>
    %c0_46 = arith.constant 0 : index
    %c0_47 = arith.constant 0 : index
    %c0_48 = arith.constant 0 : index
    %c0_49 = arith.constant 0 : index
    %85 = vector.load %arg9[%c0_46, %c0_47, %c0_48, %c0_49] : memref<1x8x16x4xf32, #tpu.memory_space<vmem>>, vector<1x8x16x4xf32>
    tpu.vector_store %arg9[%c0_46, %c0_47, %c0_48, %c0_49], %84 {strides = array<i32>} : memref<1x8x16x4xf32, #tpu.memory_space<vmem>>, vector<1x8x16x4xf32>,
    return
  }
  func.func @transform_0(%arg0: i32, %arg1: i32) -> (i32, i32) {
    %c0_i32 = arith.constant 0 : i32
    %c0_i32_0 = arith.constant 0 : i32
    %c0_i32_1 = arith.constant 0 : i32
    return %c0_i32, %c0_i32_0 : i32, i32
  }
  func.func @transform_1(%arg0: i32, %arg1: i32) -> (i32, i32) {
    %c0_i32 = arith.constant 0 : i32
    %c0_i32_0 = arith.constant 0 : i32
    %c0_i32_1 = arith.constant 0 : i32
    return %c0_i32, %c0_i32_0 : i32, i32
  }
  func.func @transform_2(%arg0: i32, %arg1: i32) -> (i32, i32) {
    %c0_i32 = arith.constant 0 : i32
    %c0_i32_0 = arith.constant 0 : i32
    %c0_i32_1 = arith.constant 0 : i32
    return %c0_i32, %c0_i32_0 : i32, i32
  }
  func.func @transform_3(%arg0: i32, %arg1: i32) -> (i32, i32) {
    %c0_i32 = arith.constant 0 : i32
    %c0_i32_0 = arith.constant 0 : i32
    %c0_i32_1 = arith.constant 0 : i32
    return %c0_i32, %c0_i32_0 : i32, i32
  }
  func.func @transform_4(%arg0: i32, %arg1: i32) -> (i32, i32, i32, i32) {
    %c0_i32 = arith.constant 0 : i32
    %c0_i32_0 = arith.constant 0 : i32
    %c0_i32_1 = arith.constant 0 : i32
    return %arg0, %arg1, %c0_i32, %c0_i32_0 : i32, i32, i32, i32
  }
  func.func @transform_5(%arg0: i32, %arg1: i32) -> (i32, i32, i32, i32) {
    %c8_i32 = arith.constant 8 : i32
    %0 = arith.muli %arg1, %c8_i32 : i32
    %c1_i32 = arith.constant 1 : i32
    %1 = arith.subi %0, %c1_i32 : i32
    %c0_i32 = arith.constant 0 : i32
    %2 = arith.maxsi %1, %c0_i32 : i32
    %c0_i32_0 = arith.constant 0 : i32
    %c0_i32_1 = arith.constant 0 : i32
    %c0_i32_2 = arith.constant 0 : i32
    return %arg0, %2, %c0_i32_0, %c0_i32_1 : i32, i32, i32, i32
  }
  func.func @transform_6(%arg0: i32, %arg1: i32) -> (i32, i32, i32, i32) {
    %c8_i32 = arith.constant 8 : i32
    %0 = arith.muli %arg1, %c8_i32 : i32
    %c8_i32_0 = arith.constant 8 : i32
    %1 = arith.addi %0, %c8_i32_0 : i32
    %c15_i32 = arith.constant 15 : i32
    %2 = arith.minsi %1, %c15_i32 : i32
    %c0_i32 = arith.constant 0 : i32
    %c0_i32_1 = arith.constant 0 : i32
    %c0_i32_2 = arith.constant 0 : i32
    return %arg0, %2, %c0_i32, %c0_i32_1 : i32, i32, i32, i32
  }
  func.func @transform_7(%arg0: i32, %arg1: i32) -> (i32, i32, i32, i32) {
    %c0_i32 = arith.constant 0 : i32
    %c0_i32_0 = arith.constant 0 : i32
    %c0_i32_1 = arith.constant 0 : i32
    return %arg0, %arg1, %c0_i32, %c0_i32_0 : i32, i32, i32, i32
  }
}

</mosaic_0001>

<llo_original>
// kernel: residual_dense_net.6
$region0: #{residual_dense_net.6}
  #allocation0 [shape = 'u32[]', space=smem, size = 0x4, offset = 0x4, fixed_abs, tag = 'smem constant byte address 0x4 - core index']
  #allocation1 [shape = 'u32[144,128]{1,0:T(1,128)}', space=vmem, size = 0x12000, scoped, tag = 'internal scratch']
  #allocation2 [shape = 'f32[1,4]{1,0:T(1,128)}', space=vmem, size = 0x200, scoped, tag = 'scratch operand']
  #allocation3 [shape = 'f32[1,4]{1,0:T(1,128)}', space=vmem, size = 0x200, scoped, tag = 'scratch operand']
  %s0 = inlined_call_operand.vmem [shape: f32[1,4], index: 0, kind: input, shape index: {}]
  %s1 = inlined_call_operand.vmem [shape: f32[1,4], index: 1, kind: input, shape index: {}]
  %s2 = inlined_call_operand.vmem [shape: f32[2,16,16,4], index: 2, kind: input, shape index: {}]
  %s3 = inlined_call_operand.vmem [shape: f32[1,4], index: 3, kind: output, shape index: {0}]
  %s4 = inlined_call_operand.vmem [shape: f32[1,4], index: 4, kind: output, shape index: {1}]
  %5 = xla_tuple %s3, %s4
  %s6 = sld [smem:[#allocation0]]
  $region61: #{residual_dense_net.6} parent=0
    _
  %s8 = ssub.s32 1, %s6
  %s9 = scalar_select 0, %s8, %s6
  loop: start=0, step=1, limit=6
  $region2: #{residual_dense_net.6} parent=0 // loop_pre_header
    _
  $region3: #{residual_dense_net.6} parent=0 // loop_header
    %s11 = sphi 0, %s15
    %p12 = scmp.ge.s32.totalorder %s11, 6
    %s18 = sphi 0, %s30
    %s19 = sphi 0, %s26
    %s20 = sphi 0, %s18
    %s21 = sphi 0, %s19
    %s22 = sphi 0, %s20
    %s23 = sphi 0, %s21
    %s31 = sphi 0, %s31
    %s33 = sphi 0, %s31
    %s34 = sphi 0, %s33
    %s48 = sphi 0, %s34
    %s52 = sphi 0, %s52
    %s54 = sphi 0, %s52
    %s55 = sphi 0, %s54
    %s69 = sphi 0, %s55
    %s77 = sphi 0, %s79
    %s80 = sphi 0, %s77
    %s81 = sphi 0, %s80
    %s97 = sphi 0, %s81
    %s101 = sphi 0, %s101
    %s103 = sphi 0, %s101
    %s104 = sphi 0, %s103
    %s118 = sphi 0, %s104
    %s122 = sphi 0, %s122
    %s124 = sphi 0, %s122
    %s125 = sphi 0, %s124
    %s139 = sphi 0, %s125
  $region4: #{residual_dense_net.6} parent=0 // loop_header_branch
    %14 = sbr.rel (%p12) target = $region8
  $region5: #{residual_dense_net.6} parent=0 // loop_body
    %s16 = ssub.s32 %s11, 1
    %s17 = ssub.s32 %s11, 2
    %s24 = sadd.s32 1, %s19
    %p25 = scmp.ge.s32.totalorder %s24, 2
    %s26 = scalar_select %p25, 0, %s24
    %s27 = sadd.s32 1, %s18
    %s28 = scalar_select %p25, %s27, %s18
    %p29 = scmp.ge.s32.totalorder %s28, 2
    %s30 = scalar_select %p29, 0, %s28
    %s32 = sadd.s32 %s31, 1
    %p35 = scmp.eq.s32.totalorder %s11, 3
    %p36 = scmp.ne.s32.totalorder %s31, %s33
    %p37 = scmp.eq.s32.totalorder %s11, 0
    %p38 = por %p36, %p37
    %p39 = scmp.ne.s32.totalorder %s31, %s33
    %p40 = scmp.eq.s32.totalorder %s16, 3
    %p41 = por %p39, %p40
    %p42 = scmp.ne.s32.totalorder %s33, %s34
    %p43 = scmp.eq.s32.totalorder %s16, 0
    %p44 = por %p42, %p43
    %p45 = scmp.ne.s32.totalorder %s33, %s34
    %p46 = scmp.eq.s32.totalorder %s17, 3
    %p47 = por %p45, %p46
    %p49 = scmp.ne.s32.totalorder %s34, %s48
    %p50 = scmp.eq.s32.totalorder %s17, 0
    %p51 = por %p49, %p50
    %s53 = sadd.s32 %s52, 1
    %p56 = scmp.eq.s32.totalorder %s11, 3
    %p57 = scmp.ne.s32.totalorder %s52, %s54
    %p58 = scmp.eq.s32.totalorder %s11, 0
    %p59 = por %p57, %p58
    %p60 = scmp.ne.s32.totalorder %s52, %s54
    %p61 = scmp.eq.s32.totalorder %s16, 3
    %p62 = por %p60, %p61
    %p63 = scmp.ne.s32.totalorder %s54, %s55
    %p64 = scmp.eq.s32.totalorder %s16, 0
    %p65 = por %p63, %p64
    %p66 = scmp.ne.s32.totalorder %s54, %s55
    %p67 = scmp.eq.s32.totalorder %s17, 3
    %p68 = por %p66, %p67
    %p70 = scmp.ne.s32.totalorder %s55, %s69
    %p71 = scmp.eq.s32.totalorder %s17, 0
    %p72 = por %p70, %p71
    %s73 = ssub.s32 %s18, %s30
    %s74 = ssub.s32 %s19, %s26
    %s75 = sor.u32 %s73, %s74
    %p76 = scmp.eq.s32.totalorder %s75, 0
    %s78 = sadd.s32 %s77, 1
    %s79 = scalar_select %p76, %s77, %s78
    %p82 = pneg %p76
    %p83 = scmp.eq.s32.totalorder %s11, 3
    %p84 = por %p82, %p83
    %p85 = scmp.ne.s32.totalorder %s77, %s80
    %p86 = scmp.eq.s32.totalorder %s11, 0
    %p87 = por %p85, %p86
    %p88 = scmp.ne.s32.totalorder %s77, %s80
    %p89 = scmp.eq.s32.totalorder %s16, 3
    %p90 = por %p88, %p89
    %p91 = scmp.ne.s32.totalorder %s80, %s81
    %p92 = scmp.eq.s32.totalorder %s16, 0
    %p93 = por %p91, %p92
    %p94 = scmp.ne.s32.totalorder %s80, %s81
    %p95 = scmp.eq.s32.totalorder %s17, 3
    %p96 = por %p94, %p95
    %p98 = scmp.ne.s32.totalorder %s81, %s97
    %p99 = scmp.eq.s32.totalorder %s17, 0
    %p100 = por %p98, %p99
    %s102 = sadd.s32 %s101, 1
    %p105 = scmp.eq.s32.totalorder %s11, 3
    %p106 = scmp.ne.s32.totalorder %s101, %s103
    %p107 = scmp.eq.s32.totalorder %s11, 0
    %p108 = por %p106, %p107
    %p109 = scmp.ne.s32.totalorder %s101, %s103
    %p110 = scmp.eq.s32.totalorder %s16, 3
    %p111 = por %p109, %p110
    %p112 = scmp.ne.s32.totalorder %s103, %s104
    %p113 = scmp.eq.s32.totalorder %s16, 0
    %p114 = por %p112, %p113
    %p115 = scmp.ne.s32.totalorder %s103, %s104
    %p116 = scmp.eq.s32.totalorder %s17, 3
    %p117 = por %p115, %p116
    %p119 = scmp.ne.s32.totalorder %s104, %s118
    %p120 = scmp.eq.s32.totalorder %s17, 0
    %p121 = por %p119, %p120
    %s123 = sadd.s32 %s122, 1
    %p126 = scmp.eq.s32.totalorder %s11, 3
    %p127 = scmp.ne.s32.totalorder %s122, %s124
    %p128 = scmp.eq.s32.totalorder %s11, 0
    %p129 = por %p127, %p128
    %p130 = scmp.ne.s32.totalorder %s122, %s124
    %p131 = scmp.eq.s32.totalorder %s16, 3
    %p132 = por %p130, %p131
    %p133 = scmp.ne.s32.totalorder %s124, %s125
    %p134 = scmp.eq.s32.totalorder %s16, 0
    %p135 = por %p133, %p134
    %p136 = scmp.ne.s32.totalorder %s124, %s125
    %p137 = scmp.eq.s32.totalorder %s17, 3
    %p138 = por %p136, %p137
    %p140 = scmp.ne.s32.totalorder %s125, %s139
    %p141 = scmp.eq.s32.totalorder %s17, 0
    %p142 = por %p140, %p141
    %p143 = scmp.le.s32.totalorder 1, %s11
    %p144 = scmp.lt.s32.totalorder %s11, 5
    %p145 = pnand %p143, %p144
    %p146 = pneg %p145
    // Predicated region
    $region9: #{residual_dense_net.6} parent=5 // pred_check
      _
    $region10: #{residual_dense_net.6} parent=5 // pred_check_branch
      %148 = sbr.rel (%p145) target = $region12
    $region11: #{residual_dense_net.6} parent=5 // pred_region
      %s149 = ssub.s32 %s11, 1
      // Predicated region
      $region13: #{residual_dense_net.6} parent=11 // pred_check
        %p150 = pneg %p44
      $region14: #{residual_dense_net.6} parent=11 // pred_check_branch
        %152 = sbr.rel (%p150) target = $region16
      $region15: #{residual_dense_net.6} parent=11 // pred_region
        _
      $region16: #{residual_dense_net.6} parent=11 // pred_fallthru
        _
      // Predicated region
      $region17: #{residual_dense_net.6} parent=11 // pred_check
        %p153 = pneg %p65
      $region18: #{residual_dense_net.6} parent=11 // pred_check_branch
        %155 = sbr.rel (%p153) target = $region20
      $region19: #{residual_dense_net.6} parent=11 // pred_region
        _
      $region20: #{residual_dense_net.6} parent=11 // pred_fallthru
        _
    $region12: #{residual_dense_net.6} parent=5 // pred_fallthru
      _
    %p156 = scmp.lt.s32.totalorder %s11, 4
    // Predicated region
    $region21: #{residual_dense_net.6} parent=5 // pred_check
      %p157 = pneg %p156
    $region22: #{residual_dense_net.6} parent=5 // pred_check_branch
      %159 = sbr.rel (%p157) target = $region24
    $region23: #{residual_dense_net.6} parent=5 // pred_region
      // Predicated region
      $region25: #{residual_dense_net.6} parent=23 // pred_check
        %p160 = pneg %p87
      $region26: #{residual_dense_net.6} parent=23 // pred_check_branch
        %162 = sbr.rel (%p160) target = $region28
      $region27: #{residual_dense_net.6} parent=23 // pred_region
        %s163 = smul.u32 8, %s19
        %p164 = scmp.lt.s32.totalorder %s18, 1
        %s165 = scalar_select %p164, %s18, 1
        %p166 = scmp.lt.s32.totalorder %s163, 15
        %s167 = scalar_select %p166, %s163, 15
        %s168 = smul.addr %s167, 2
        %s169 = smul.addr %s165, 32
        %s170 = sadd.s32 %s168, %s169
        %s171 = smul.addr %s170, 8
        %s172 = scalar_lea.vmem %s2, %s171
        %s173 = smul.u32 8, %s19
      $region28: #{residual_dense_net.6} parent=23 // pred_fallthru
        _
    $region24: #{residual_dense_net.6} parent=5 // pred_fallthru
      _
    %p174 = scmp.le.s32.totalorder 1, %s11
    %p175 = scmp.lt.s32.totalorder %s11, 5
    %p176 = pnand %p174, %p175
    %p177 = pneg %p176
    // Predicated region
    $region29: #{residual_dense_net.6} parent=5 // pred_check
      _
    $region30: #{residual_dense_net.6} parent=5 // pred_check_branch
      %179 = sbr.rel (%p176) target = $region32
    $region31: #{residual_dense_net.6} parent=5 // pred_region
      %s180 = ssub.s32 %s11, 1
      %p181 = pneg %p44
      %p182 = pneg %p41
      %p183 = pneg %p65
      %p184 = pneg %p62
      %s185 = smul.u32 8, %s21
      %p186 = scmp.lt.s32.totalorder %s20, 1
      %s187 = scalar_select %p186, %s20, 1
      %p188 = scmp.lt.s32.totalorder %s185, 15
      %s189 = scalar_select %p188, %s185, 15
      %s190 = smul.addr %s189, 2
      %s191 = smul.addr %s187, 32
      %s192 = sadd.s32 %s190, %s191
      %s193 = smul.addr %s192, 8
      %s194 = scalar_lea.vmem %s2, %s193
      %p195 = pneg %p93
      %p196 = pneg %p90
      %p197 = pneg %p114
      %p198 = pneg %p111
      %p199 = pneg %p135
      %p200 = pneg %p132
      %s201 = smul.u32 8, %s21
      %p202 = scmp.lt.s32.totalorder %s20, 1
      %s203 = scalar_select %p202, %s20, 1
      %p204 = scmp.lt.s32.totalorder %s201, 15
      %s205 = scalar_select %p204, %s201, 15
      %s206 = smul.addr %s205, 2
      %s207 = smul.addr %s203, 32
      %s208 = sadd.s32 %s206, %s207
      %s209 = smul.addr %s208, 8
      %s210 = scalar_lea.vmem %s2, %s209
      %s211 = smul.u32 8, %s21
      %p212 = scmp.eq.s32.totalorder %s20, 0
      %p213 = scmp.eq.s32.totalorder %s21, 0
      %p214 = pnand %p212, %p213
      %p215 = pneg %p214
      // Predicated region
      $region33: #{residual_dense_net.6} parent=31 // pred_check
        _
      $region34: #{residual_dense_net.6} parent=31 // pred_check_branch
        %217 = sbr.rel (%p214) target = $region36
      $region35: #{residual_dense_net.6} parent=31 // pred_region
        %vm218 = vcmask 24576
        %219 = vst.msk [vmem:[#allocation2] sm:$0x1] %vm218, 0.0
        %220 = vst.msk [vmem:[#allocation3] sm:$0x1] %vm218, 0.0
      $region36: #{residual_dense_net.6} parent=31 // pred_fallthru
        _
      %v221 = vld [vmem:[%s210] sm:$0xff]
      %v222 = vld [vmem:[%s210 + $0x8] sm:$0xff]
      %v223 = vld [vmem:[%s210 + $0x10] sm:$0xff]
      %v224 = vld [vmem:[%s210 + $0x18] sm:$0xff]
      %v225 = vld [vmem:[%s210 + $0x20] sm:$0xff]
      %v226 = vld [vmem:[%s210 + $0x28] sm:$0xff]
      %v227 = vld [vmem:[%s210 + $0x30] sm:$0xff]
      %v228 = vld [vmem:[%s210 + $0x38] sm:$0xff]
      %v229 = vld [vmem:[%s210 + $0x40] sm:$0xff]
      %v230 = vld [vmem:[%s210 + $0x48] sm:$0xff]
      %v231 = vld [vmem:[%s210 + $0x50] sm:$0xff]
      %v232 = vld [vmem:[%s210 + $0x58] sm:$0xff]
      %v233 = vld [vmem:[%s210 + $0x60] sm:$0xff]
      %v234 = vld [vmem:[%s210 + $0x68] sm:$0xff]
      %v235 = vld [vmem:[%s210 + $0x70] sm:$0xff]
      %v236 = vld [vmem:[%s210 + $0x78] sm:$0xff]
      %v237 = vld [vmem:[#allocation2] sm:$0x1]
      %vm238 = vcmask 31744
      %v239 = vsel %vm238, %v221, 0.0
      %v240 = vsel %vm238, %v222, 0.0
      %v241 = vadd.f32 %v239, %v240
      %v242 = vsel %vm238, %v223, 0.0
      %v243 = vadd.f32 %v241, %v242
      %v244 = vsel %vm238, %v224, 0.0
      %v245 = vadd.f32 %v243, %v244
      %v246 = vsel %vm238, %v225, 0.0
      %v247 = vadd.f32 %v245, %v246
      %v248 = vsel %vm238, %v226, 0.0
      %v249 = vadd.f32 %v247, %v248
      %v250 = vsel %vm238, %v227, 0.0
      %v251 = vadd.f32 %v249, %v250
      %v252 = vsel %vm238, %v228, 0.0
      %v253 = vadd.f32 %v251, %v252
      %v254 = vsel %vm238, %v229, 0.0
      %v255 = vadd.f32 %v253, %v254
      %v256 = vsel %vm238, %v230, 0.0
      %v257 = vadd.f32 %v255, %v256
      %v258 = vsel %vm238, %v231, 0.0
      %v259 = vadd.f32 %v257, %v258
      %v260 = vsel %vm238, %v232, 0.0
      %v261 = vadd.f32 %v259, %v260
      %v262 = vsel %vm238, %v233, 0.0
      %v263 = vadd.f32 %v261, %v262
      %v264 = vsel %vm238, %v234, 0.0
      %v265 = vadd.f32 %v263, %v264
      %v266 = vsel %vm238, %v235, 0.0
      %v267 = vadd.f32 %v265, %v266
      %v268 = vsel %vm238, %v236, 0.0
      %v269 = vadd.f32 %v267, %v268
      %v270 = vrot.slane %v269, 4
      %v271 = vadd.f32 %v269, %v270
      %v272 = vrot.slane %v271, 2
      %v273 = vadd.f32 %v271, %v272
      %v274 = vrot.slane %v273, 1
      %v275 = vadd.f32 %v273, %v274
      %v276 = vadd.f32 %v237, %v275
      %vm277 = vcmask 24576
      %278 = vst.msk [vmem:[#allocation2] sm:$0x1] %vm277, %v276
      %v279 = vld [vmem:[#allocation3] sm:$0x1]
      %v280 = vmul.f32 %v221, %v221
      %v281 = vmul.f32 %v222, %v222
      %v282 = vmul.f32 %v223, %v223
      %v283 = vmul.f32 %v224, %v224
      %v284 = vmul.f32 %v225, %v225
      %v285 = vmul.f32 %v226, %v226
      %v286 = vmul.f32 %v227, %v227
      %v287 = vmul.f32 %v228, %v228
      %v288 = vmul.f32 %v229, %v229
      %v289 = vmul.f32 %v230, %v230
      %v290 = vmul.f32 %v231, %v231
      %v291 = vmul.f32 %v232, %v232
      %v292 = vmul.f32 %v233, %v233
      %v293 = vmul.f32 %v234, %v234
      %v294 = vmul.f32 %v235, %v235
      %v295 = vmul.f32 %v236, %v236
      %v296 = vsel %vm238, %v280, 0.0
      %v297 = vsel %vm238, %v281, 0.0
      %v298 = vadd.f32 %v296, %v297
      %v299 = vsel %vm238, %v282, 0.0
      %v300 = vadd.f32 %v298, %v299
      %v301 = vsel %vm238, %v283, 0.0
      %v302 = vadd.f32 %v300, %v301
      %v303 = vsel %vm238, %v284, 0.0
      %v304 = vadd.f32 %v302, %v303
      %v305 = vsel %vm238, %v285, 0.0
      %v306 = vadd.f32 %v304, %v305
      %v307 = vsel %vm238, %v286, 0.0
      %v308 = vadd.f32 %v306, %v307
      %v309 = vsel %vm238, %v287, 0.0
      %v310 = vadd.f32 %v308, %v309
      %v311 = vsel %vm238, %v288, 0.0
      %v312 = vadd.f32 %v310, %v311
      %v313 = vsel %vm238, %v289, 0.0
      %v314 = vadd.f32 %v312, %v313
      %v315 = vsel %vm238, %v290, 0.0
      %v316 = vadd.f32 %v314, %v315
      %v317 = vsel %vm238, %v291, 0.0
      %v318 = vadd.f32 %v316, %v317
      %v319 = vsel %vm238, %v292, 0.0
      %v320 = vadd.f32 %v318, %v319
      %v321 = vsel %vm238, %v293, 0.0
      %v322 = vadd.f32 %v320, %v321
      %v323 = vsel %vm238, %v294, 0.0
      %v324 = vadd.f32 %v322, %v323
      %v325 = vsel %vm238, %v295, 0.0
      %v326 = vadd.f32 %v324, %v325
      %v327 = vrot.slane %v326, 4
      %v328 = vadd.f32 %v326, %v327
      %v329 = vrot.slane %v328, 2
      %v330 = vadd.f32 %v328, %v329
      %v331 = vrot.slane %v330, 1
      %v332 = vadd.f32 %v330, %v331
      %v333 = vadd.f32 %v279, %v332
      %334 = vst.msk [vmem:[#allocation3] sm:$0x1] %vm277, %v333
      %p335 = scmp.eq.s32.totalorder %s20, 1
      %p336 = scmp.eq.s32.totalorder %s21, 1
      %p337 = pnand %p335, %p336
      %p338 = pneg %p337
      // Predicated region
      $region37: #{residual_dense_net.6} parent=31 // pred_check
        _
      $region38: #{residual_dense_net.6} parent=31 // pred_check_branch
        %340 = sbr.rel (%p337) target = $region40
      $region39: #{residual_dense_net.6} parent=31 // pred_region
        %v341 = vld [vmem:[#allocation2] sm:$0x1]
        %v342 = vmul.f32 %v341, 0.001953125
        %v343 = vld [vmem:[#allocation3] sm:$0x1]
        %v344 = vmul.f32 %v343, 0.001953125
        %v345 = vmul.f32 %v342, %v342
        %v346 = vsub.f32 %v344, %v345
        %v347 = vld [vmem:[%s0] sm:$0x1]
        %v348 = vadd.f32 %v346, 1e-05
        %v349 = vrsqrt.pop %v348
        %v350 = vmul.f32 %v347, %v349
        %351 = vst.msk [vmem:[%s3] sm:$0x1] %vm277, %v350
        %v352 = vld [vmem:[%s1] sm:$0x1]
        %v353 = vmul.f32 %v342, %v350
        %v354 = vsub.f32 %v352, %v353
        %355 = vst.msk [vmem:[%s4] sm:$0x1] %vm277, %v354
      $region40: #{residual_dense_net.6} parent=31 // pred_fallthru
        _
      // Predicated region
      $region41: #{residual_dense_net.6} parent=31 // pred_check
        %p356 = pneg %p111
      $region42: #{residual_dense_net.6} parent=31 // pred_check_branch
        %358 = sbr.rel (%p356) target = $region44
      $region43: #{residual_dense_net.6} parent=31 // pred_region
        _
      $region44: #{residual_dense_net.6} parent=31 // pred_fallthru
        _
      // Predicated region
      $region45: #{residual_dense_net.6} parent=31 // pred_check
        %p359 = pneg %p132
      $region46: #{residual_dense_net.6} parent=31 // pred_check_branch
        %361 = sbr.rel (%p359) target = $region48
      $region47: #{residual_dense_net.6} parent=31 // pred_region
        _
      $region48: #{residual_dense_net.6} parent=31 // pred_fallthru
        _
      // Predicated region
      $region49: #{residual_dense_net.6} parent=31 // pred_check
        %p362 = pneg %p111
      $region50: #{residual_dense_net.6} parent=31 // pred_check_branch
        %364 = sbr.rel (%p362) target = $region52
      $region51: #{residual_dense_net.6} parent=31 // pred_region
        _
      $region52: #{residual_dense_net.6} parent=31 // pred_fallthru
        _
      // Predicated region
      $region53: #{residual_dense_net.6} parent=31 // pred_check
        %p365 = pneg %p132
      $region54: #{residual_dense_net.6} parent=31 // pred_check_branch
        %367 = sbr.rel (%p365) target = $region56
      $region55: #{residual_dense_net.6} parent=31 // pred_region
        _
      $region56: #{residual_dense_net.6} parent=31 // pred_fallthru
        _
    $region32: #{residual_dense_net.6} parent=5 // pred_fallthru
      _
    %p368 = scmp.le.s32.totalorder 2, %s11
    // Predicated region
    $region57: #{residual_dense_net.6} parent=5 // pred_check
      %p369 = pneg %p368
    $region58: #{residual_dense_net.6} parent=5 // pred_check_branch
      %371 = sbr.rel (%p369) target = $region60
    $region59: #{residual_dense_net.6} parent=5 // pred_region
      %s372 = ssub.s32 %s11, 2
    $region60: #{residual_dense_net.6} parent=5 // pred_fallthru
      _
  $region6: #{residual_dense_net.6} parent=0 // loop_footer
    %s15 = sadd.s32 1, %s11
  $region7: #{residual_dense_net.6} parent=0 // loop_footer_branch
    %10 = sbr.rel target = $region3
  $region8: #{residual_dense_net.6} parent=0 // loop_exit
    _

// kernel: residual_dense_net.8
$region0: #{residual_dense_net.8}
  #allocation0 [shape = 'u32[]', space=smem, size = 0x4, offset = 0x4, fixed_abs, tag = 'smem constant byte address 0x4 - core index']
  #allocation1 [shape = 'u32[144,128]{1,0:T(1,128)}', space=vmem, size = 0x12000, scoped, tag = 'internal scratch']
  #allocation2 [shape = 'f32[1,8]{1,0:T(1,128)}', space=vmem, size = 0x200, scoped, tag = 'scratch operand']
  #allocation3 [shape = 'f32[1,8]{1,0:T(1,128)}', space=vmem, size = 0x200, scoped, tag = 'scratch operand']
  %s0 = inlined_call_operand.vmem [shape: f32[1,8], index: 0, kind: input, shape index: {}]
  %s1 = inlined_call_operand.vmem [shape: f32[1,8], index: 1, kind: input, shape index: {}]
  %s2 = inlined_call_operand.vmem [shape: f32[2,16,16,8], index: 2, kind: input, shape index: {}]
  %s3 = inlined_call_operand.vmem [shape: f32[1,8], index: 3, kind: output, shape index: {0}]
  %s4 = inlined_call_operand.vmem [shape: f32[1,8], index: 4, kind: output, shape index: {1}]
  %5 = xla_tuple %s3, %s4
  %s6 = sld [smem:[#allocation0]]
  $region61: #{residual_dense_net.8} parent=0
    _
  %s8 = ssub.s32 1, %s6
  %s9 = scalar_select 0, %s8, %s6
  loop: start=0, step=1, limit=6
  $region2: #{residual_dense_net.8} parent=0 // loop_pre_header
    _
  $region3: #{residual_dense_net.8} parent=0 // loop_header
    %s11 = sphi 0, %s15
    %p12 = scmp.ge.s32.totalorder %s11, 6
    %s18 = sphi 0, %s30
    %s19 = sphi 0, %s26
    %s20 = sphi 0, %s18
    %s21 = sphi 0, %s19
    %s22 = sphi 0, %s20
    %s23 = sphi 0, %s21
    %s31 = sphi 0, %s31
    %s33 = sphi 0, %s31
    %s34 = sphi 0, %s33
    %s48 = sphi 0, %s34
    %s52 = sphi 0, %s52
    %s54 = sphi 0, %s52
    %s55 = sphi 0, %s54
    %s69 = sphi 0, %s55
    %s77 = sphi 0, %s79
    %s80 = sphi 0, %s77
    %s81 = sphi 0, %s80
    %s97 = sphi 0, %s81
    %s101 = sphi 0, %s101
    %s103 = sphi 0, %s101
    %s104 = sphi 0, %s103
    %s118 = sphi 0, %s104
    %s122 = sphi 0, %s122
    %s124 = sphi 0, %s122
    %s125 = sphi 0, %s124
    %s139 = sphi 0, %s125
  $region4: #{residual_dense_net.8} parent=0 // loop_header_branch
    %14 = sbr.rel (%p12) target = $region8
  $region5: #{residual_dense_net.8} parent=0 // loop_body
    %s16 = ssub.s32 %s11, 1
    %s17 = ssub.s32 %s11, 2
    %s24 = sadd.s32 1, %s19
    %p25 = scmp.ge.s32.totalorder %s24, 2
    %s26 = scalar_select %p25, 0, %s24
    %s27 = sadd.s32 1, %s18
    %s28 = scalar_select %p25, %s27, %s18
    %p29 = scmp.ge.s32.totalorder %s28, 2
    %s30 = scalar_select %p29, 0, %s28
    %s32 = sadd.s32 %s31, 1
    %p35 = scmp.eq.s32.totalorder %s11, 3
    %p36 = scmp.ne.s32.totalorder %s31, %s33
    %p37 = scmp.eq.s32.totalorder %s11, 0
    %p38 = por %p36, %p37
    %p39 = scmp.ne.s32.totalorder %s31, %s33
    %p40 = scmp.eq.s32.totalorder %s16, 3
    %p41 = por %p39, %p40
    %p42 = scmp.ne.s32.totalorder %s33, %s34
    %p43 = scmp.eq.s32.totalorder %s16, 0
    %p44 = por %p42, %p43
    %p45 = scmp.ne.s32.totalorder %s33, %s34
    %p46 = scmp.eq.s32.totalorder %s17, 3
    %p47 = por %p45, %p46
    %p49 = scmp.ne.s32.totalorder %s34, %s48
    %p50 = scmp.eq.s32.totalorder %s17, 0
    %p51 = por %p49, %p50
    %s53 = sadd.s32 %s52, 1
    %p56 = scmp.eq.s32.totalorder %s11, 3
    %p57 = scmp.ne.s32.totalorder %s52, %s54
    %p58 = scmp.eq.s32.totalorder %s11, 0
    %p59 = por %p57, %p58
    %p60 = scmp.ne.s32.totalorder %s52, %s54
    %p61 = scmp.eq.s32.totalorder %s16, 3
    %p62 = por %p60, %p61
    %p63 = scmp.ne.s32.totalorder %s54, %s55
    %p64 = scmp.eq.s32.totalorder %s16, 0
    %p65 = por %p63, %p64
    %p66 = scmp.ne.s32.totalorder %s54, %s55
    %p67 = scmp.eq.s32.totalorder %s17, 3
    %p68 = por %p66, %p67
    %p70 = scmp.ne.s32.totalorder %s55, %s69
    %p71 = scmp.eq.s32.totalorder %s17, 0
    %p72 = por %p70, %p71
    %s73 = ssub.s32 %s18, %s30
    %s74 = ssub.s32 %s19, %s26
    %s75 = sor.u32 %s73, %s74
    %p76 = scmp.eq.s32.totalorder %s75, 0
    %s78 = sadd.s32 %s77, 1
    %s79 = scalar_select %p76, %s77, %s78
    %p82 = pneg %p76
    %p83 = scmp.eq.s32.totalorder %s11, 3
    %p84 = por %p82, %p83
    %p85 = scmp.ne.s32.totalorder %s77, %s80
    %p86 = scmp.eq.s32.totalorder %s11, 0
    %p87 = por %p85, %p86
    %p88 = scmp.ne.s32.totalorder %s77, %s80
    %p89 = scmp.eq.s32.totalorder %s16, 3
    %p90 = por %p88, %p89
    %p91 = scmp.ne.s32.totalorder %s80, %s81
    %p92 = scmp.eq.s32.totalorder %s16, 0
    %p93 = por %p91, %p92
    %p94 = scmp.ne.s32.totalorder %s80, %s81
    %p95 = scmp.eq.s32.totalorder %s17, 3
    %p96 = por %p94, %p95
    %p98 = scmp.ne.s32.totalorder %s81, %s97
    %p99 = scmp.eq.s32.totalorder %s17, 0
    %p100 = por %p98, %p99
    %s102 = sadd.s32 %s101, 1
    %p105 = scmp.eq.s32.totalorder %s11, 3
    %p106 = scmp.ne.s32.totalorder %s101, %s103
    %p107 = scmp.eq.s32.totalorder %s11, 0
    %p108 = por %p106, %p107
    %p109 = scmp.ne.s32.totalorder %s101, %s103
    %p110 = scmp.eq.s32.totalorder %s16, 3
    %p111 = por %p109, %p110
    %p112 = scmp.ne.s32.totalorder %s103, %s104
    %p113 = scmp.eq.s32.totalorder %s16, 0
    %p114 = por %p112, %p113
    %p115 = scmp.ne.s32.totalorder %s103, %s104
    %p116 = scmp.eq.s32.totalorder %s17, 3
    %p117 = por %p115, %p116
    %p119 = scmp.ne.s32.totalorder %s104, %s118
    %p120 = scmp.eq.s32.totalorder %s17, 0
    %p121 = por %p119, %p120
    %s123 = sadd.s32 %s122, 1
    %p126 = scmp.eq.s32.totalorder %s11, 3
    %p127 = scmp.ne.s32.totalorder %s122, %s124
    %p128 = scmp.eq.s32.totalorder %s11, 0
    %p129 = por %p127, %p128
    %p130 = scmp.ne.s32.totalorder %s122, %s124
    %p131 = scmp.eq.s32.totalorder %s16, 3
    %p132 = por %p130, %p131
    %p133 = scmp.ne.s32.totalorder %s124, %s125
    %p134 = scmp.eq.s32.totalorder %s16, 0
    %p135 = por %p133, %p134
    %p136 = scmp.ne.s32.totalorder %s124, %s125
    %p137 = scmp.eq.s32.totalorder %s17, 3
    %p138 = por %p136, %p137
    %p140 = scmp.ne.s32.totalorder %s125, %s139
    %p141 = scmp.eq.s32.totalorder %s17, 0
    %p142 = por %p140, %p141
    %p143 = scmp.le.s32.totalorder 1, %s11
    %p144 = scmp.lt.s32.totalorder %s11, 5
    %p145 = pnand %p143, %p144
    %p146 = pneg %p145
    // Predicated region
    $region9: #{residual_dense_net.8} parent=5 // pred_check
      _
    $region10: #{residual_dense_net.8} parent=5 // pred_check_branch
      %148 = sbr.rel (%p145) target = $region12
    $region11: #{residual_dense_net.8} parent=5 // pred_region
      %s149 = ssub.s32 %s11, 1
      // Predicated region
      $region13: #{residual_dense_net.8} parent=11 // pred_check
        %p150 = pneg %p44
      $region14: #{residual_dense_net.8} parent=11 // pred_check_branch
        %152 = sbr.rel (%p150) target = $region16
      $region15: #{residual_dense_net.8} parent=11 // pred_region
        _
      $region16: #{residual_dense_net.8} parent=11 // pred_fallthru
        _
      // Predicated region
      $region17: #{residual_dense_net.8} parent=11 // pred_check
        %p153 = pneg %p65
      $region18: #{residual_dense_net.8} parent=11 // pred_check_branch
        %155 = sbr.rel (%p153) target = $region20
      $region19: #{residual_dense_net.8} parent=11 // pred_region
        _
      $region20: #{residual_dense_net.8} parent=11 // pred_fallthru
        _
    $region12: #{residual_dense_net.8} parent=5 // pred_fallthru
      _
    %p156 = scmp.lt.s32.totalorder %s11, 4
    // Predicated region
    $region21: #{residual_dense_net.8} parent=5 // pred_check
      %p157 = pneg %p156
    $region22: #{residual_dense_net.8} parent=5 // pred_check_branch
      %159 = sbr.rel (%p157) target = $region24
    $region23: #{residual_dense_net.8} parent=5 // pred_region
      // Predicated region
      $region25: #{residual_dense_net.8} parent=23 // pred_check
        %p160 = pneg %p87
      $region26: #{residual_dense_net.8} parent=23 // pred_check_branch
        %162 = sbr.rel (%p160) target = $region28
      $region27: #{residual_dense_net.8} parent=23 // pred_region
        %s163 = smul.u32 8, %s19
        %p164 = scmp.lt.s32.totalorder %s18, 1
        %s165 = scalar_select %p164, %s18, 1
        %p166 = scmp.lt.s32.totalorder %s163, 15
        %s167 = scalar_select %p166, %s163, 15
        %s168 = smul.addr %s167, 2
        %s169 = smul.addr %s165, 32
        %s170 = sadd.s32 %s168, %s169
        %s171 = smul.addr %s170, 8
        %s172 = scalar_lea.vmem %s2, %s171
        %s173 = smul.u32 8, %s19
      $region28: #{residual_dense_net.8} parent=23 // pred_fallthru
        _
    $region24: #{residual_dense_net.8} parent=5 // pred_fallthru
      _
    %p174 = scmp.le.s32.totalorder 1, %s11
    %p175 = scmp.lt.s32.totalorder %s11, 5
    %p176 = pnand %p174, %p175
    %p177 = pneg %p176
    // Predicated region
    $region29: #{residual_dense_net.8} parent=5 // pred_check
      _
    $region30: #{residual_dense_net.8} parent=5 // pred_check_branch
      %179 = sbr.rel (%p176) target = $region32
    $region31: #{residual_dense_net.8} parent=5 // pred_region
      %s180 = ssub.s32 %s11, 1
      %p181 = pneg %p44
      %p182 = pneg %p41
      %p183 = pneg %p65
      %p184 = pneg %p62
      %s185 = smul.u32 8, %s21
      %p186 = scmp.lt.s32.totalorder %s20, 1
      %s187 = scalar_select %p186, %s20, 1
      %p188 = scmp.lt.s32.totalorder %s185, 15
      %s189 = scalar_select %p188, %s185, 15
      %s190 = smul.addr %s189, 2
      %s191 = smul.addr %s187, 32
      %s192 = sadd.s32 %s190, %s191
      %s193 = smul.addr %s192, 8
      %s194 = scalar_lea.vmem %s2, %s193
      %p195 = pneg %p93
      %p196 = pneg %p90
      %p197 = pneg %p114
      %p198 = pneg %p111
      %p199 = pneg %p135
      %p200 = pneg %p132
      %s201 = smul.u32 8, %s21
      %p202 = scmp.lt.s32.totalorder %s20, 1
      %s203 = scalar_select %p202, %s20, 1
      %p204 = scmp.lt.s32.totalorder %s201, 15
      %s205 = scalar_select %p204, %s201, 15
      %s206 = smul.addr %s205, 2
      %s207 = smul.addr %s203, 32
      %s208 = sadd.s32 %s206, %s207
      %s209 = smul.addr %s208, 8
      %s210 = scalar_lea.vmem %s2, %s209
      %s211 = smul.u32 8, %s21
      %p212 = scmp.eq.s32.totalorder %s20, 0
      %p213 = scmp.eq.s32.totalorder %s21, 0
      %p214 = pnand %p212, %p213
      %p215 = pneg %p214
      // Predicated region
      $region33: #{residual_dense_net.8} parent=31 // pred_check
        _
      $region34: #{residual_dense_net.8} parent=31 // pred_check_branch
        %217 = sbr.rel (%p214) target = $region36
      $region35: #{residual_dense_net.8} parent=31 // pred_region
        %vm218 = vcmask 57344
        %219 = vst.msk [vmem:[#allocation2] sm:$0x1] %vm218, 0.0
        %220 = vst.msk [vmem:[#allocation3] sm:$0x1] %vm218, 0.0
      $region36: #{residual_dense_net.8} parent=31 // pred_fallthru
        _
      %v221 = vld [vmem:[%s210] sm:$0xff]
      %v222 = vld [vmem:[%s210 + $0x8] sm:$0xff]
      %v223 = vld [vmem:[%s210 + $0x10] sm:$0xff]
      %v224 = vld [vmem:[%s210 + $0x18] sm:$0xff]
      %v225 = vld [vmem:[%s210 + $0x20] sm:$0xff]
      %v226 = vld [vmem:[%s210 + $0x28] sm:$0xff]
      %v227 = vld [vmem:[%s210 + $0x30] sm:$0xff]
      %v228 = vld [vmem:[%s210 + $0x38] sm:$0xff]
      %v229 = vld [vmem:[%s210 + $0x40] sm:$0xff]
      %v230 = vld [vmem:[%s210 + $0x48] sm:$0xff]
      %v231 = vld [vmem:[%s210 + $0x50] sm:$0xff]
      %v232 = vld [vmem:[%s210 + $0x58] sm:$0xff]
      %v233 = vld [vmem:[%s210 + $0x60] sm:$0xff]
      %v234 = vld [vmem:[%s210 + $0x68] sm:$0xff]
      %v235 = vld [vmem:[%s210 + $0x70] sm:$0xff]
      %v236 = vld [vmem:[%s210 + $0x78] sm:$0xff]
      %v237 = vld [vmem:[#allocation2] sm:$0x1]
      %vm238 = vcmask 64512
      %v239 = vsel %vm238, %v221, 0.0
      %v240 = vsel %vm238, %v222, 0.0
      %v241 = vadd.f32 %v239, %v240
      %v242 = vsel %vm238, %v223, 0.0
      %v243 = vadd.f32 %v241, %v242
      %v244 = vsel %vm238, %v224, 0.0
      %v245 = vadd.f32 %v243, %v244
      %v246 = vsel %vm238, %v225, 0.0
      %v247 = vadd.f32 %v245, %v246
      %v248 = vsel %vm238, %v226, 0.0
      %v249 = vadd.f32 %v247, %v248
      %v250 = vsel %vm238, %v227, 0.0
      %v251 = vadd.f32 %v249, %v250
      %v252 = vsel %vm238, %v228, 0.0
      %v253 = vadd.f32 %v251, %v252
      %v254 = vsel %vm238, %v229, 0.0
      %v255 = vadd.f32 %v253, %v254
      %v256 = vsel %vm238, %v230, 0.0
      %v257 = vadd.f32 %v255, %v256
      %v258 = vsel %vm238, %v231, 0.0
      %v259 = vadd.f32 %v257, %v258
      %v260 = vsel %vm238, %v232, 0.0
      %v261 = vadd.f32 %v259, %v260
      %v262 = vsel %vm238, %v233, 0.0
      %v263 = vadd.f32 %v261, %v262
      %v264 = vsel %vm238, %v234, 0.0
      %v265 = vadd.f32 %v263, %v264
      %v266 = vsel %vm238, %v235, 0.0
      %v267 = vadd.f32 %v265, %v266
      %v268 = vsel %vm238, %v236, 0.0
      %v269 = vadd.f32 %v267, %v268
      %v270 = vrot.slane %v269, 4
      %v271 = vadd.f32 %v269, %v270
      %v272 = vrot.slane %v271, 2
      %v273 = vadd.f32 %v271, %v272
      %v274 = vrot.slane %v273, 1
      %v275 = vadd.f32 %v273, %v274
      %v276 = vadd.f32 %v237, %v275
      %vm277 = vcmask 57344
      %278 = vst.msk [vmem:[#allocation2] sm:$0x1] %vm277, %v276
      %v279 = vld [vmem:[#allocation3] sm:$0x1]
      %v280 = vmul.f32 %v221, %v221
      %v281 = vmul.f32 %v222, %v222
      %v282 = vmul.f32 %v223, %v223
      %v283 = vmul.f32 %v224, %v224
      %v284 = vmul.f32 %v225, %v225
      %v285 = vmul.f32 %v226, %v226
      %v286 = vmul.f32 %v227, %v227
      %v287 = vmul.f32 %v228, %v228
      %v288 = vmul.f32 %v229, %v229
      %v289 = vmul.f32 %v230, %v230
      %v290 = vmul.f32 %v231, %v231
      %v291 = vmul.f32 %v232, %v232
      %v292 = vmul.f32 %v233, %v233
      %v293 = vmul.f32 %v234, %v234
      %v294 = vmul.f32 %v235, %v235
      %v295 = vmul.f32 %v236, %v236
      %v296 = vsel %vm238, %v280, 0.0
      %v297 = vsel %vm238, %v281, 0.0
      %v298 = vadd.f32 %v296, %v297
      %v299 = vsel %vm238, %v282, 0.0
      %v300 = vadd.f32 %v298, %v299
      %v301 = vsel %vm238, %v283, 0.0
      %v302 = vadd.f32 %v300, %v301
      %v303 = vsel %vm238, %v284, 0.0
      %v304 = vadd.f32 %v302, %v303
      %v305 = vsel %vm238, %v285, 0.0
      %v306 = vadd.f32 %v304, %v305
      %v307 = vsel %vm238, %v286, 0.0
      %v308 = vadd.f32 %v306, %v307
      %v309 = vsel %vm238, %v287, 0.0
      %v310 = vadd.f32 %v308, %v309
      %v311 = vsel %vm238, %v288, 0.0
      %v312 = vadd.f32 %v310, %v311
      %v313 = vsel %vm238, %v289, 0.0
      %v314 = vadd.f32 %v312, %v313
      %v315 = vsel %vm238, %v290, 0.0
      %v316 = vadd.f32 %v314, %v315
      %v317 = vsel %vm238, %v291, 0.0
      %v318 = vadd.f32 %v316, %v317
      %v319 = vsel %vm238, %v292, 0.0
      %v320 = vadd.f32 %v318, %v319
      %v321 = vsel %vm238, %v293, 0.0
      %v322 = vadd.f32 %v320, %v321
      %v323 = vsel %vm238, %v294, 0.0
      %v324 = vadd.f32 %v322, %v323
      %v325 = vsel %vm238, %v295, 0.0
      %v326 = vadd.f32 %v324, %v325
      %v327 = vrot.slane %v326, 4
      %v328 = vadd.f32 %v326, %v327
      %v329 = vrot.slane %v328, 2
      %v330 = vadd.f32 %v328, %v329
      %v331 = vrot.slane %v330, 1
      %v332 = vadd.f32 %v330, %v331
      %v333 = vadd.f32 %v279, %v332
      %334 = vst.msk [vmem:[#allocation3] sm:$0x1] %vm277, %v333
      %p335 = scmp.eq.s32.totalorder %s20, 1
      %p336 = scmp.eq.s32.totalorder %s21, 1
      %p337 = pnand %p335, %p336
      %p338 = pneg %p337
      // Predicated region
      $region37: #{residual_dense_net.8} parent=31 // pred_check
        _
      $region38: #{residual_dense_net.8} parent=31 // pred_check_branch
        %340 = sbr.rel (%p337) target = $region40
      $region39: #{residual_dense_net.8} parent=31 // pred_region
        %v341 = vld [vmem:[#allocation2] sm:$0x1]
        %v342 = vmul.f32 %v341, 0.001953125
        %v343 = vld [vmem:[#allocation3] sm:$0x1]
        %v344 = vmul.f32 %v343, 0.001953125
        %v345 = vmul.f32 %v342, %v342
        %v346 = vsub.f32 %v344, %v345
        %v347 = vld [vmem:[%s0] sm:$0x1]
        %v348 = vadd.f32 %v346, 1e-05
        %v349 = vrsqrt.pop %v348
        %v350 = vmul.f32 %v347, %v349
        %351 = vst.msk [vmem:[%s3] sm:$0x1] %vm277, %v350
        %v352 = vld [vmem:[%s1] sm:$0x1]
        %v353 = vmul.f32 %v342, %v350
        %v354 = vsub.f32 %v352, %v353
        %355 = vst.msk [vmem:[%s4] sm:$0x1] %vm277, %v354
      $region40: #{residual_dense_net.8} parent=31 // pred_fallthru
        _
      // Predicated region
      $region41: #{residual_dense_net.8} parent=31 // pred_check
        %p356 = pneg %p111
      $region42: #{residual_dense_net.8} parent=31 // pred_check_branch
        %358 = sbr.rel (%p356) target = $region44
      $region43: #{residual_dense_net.8} parent=31 // pred_region
        _
      $region44: #{residual_dense_net.8} parent=31 // pred_fallthru
        _
      // Predicated region
      $region45: #{residual_dense_net.8} parent=31 // pred_check
        %p359 = pneg %p132
      $region46: #{residual_dense_net.8} parent=31 // pred_check_branch
        %361 = sbr.rel (%p359) target = $region48
      $region47: #{residual_dense_net.8} parent=31 // pred_region
        _
      $region48: #{residual_dense_net.8} parent=31 // pred_fallthru
        _
      // Predicated region
      $region49: #{residual_dense_net.8} parent=31 // pred_check
        %p362 = pneg %p111
      $region50: #{residual_dense_net.8} parent=31 // pred_check_branch
        %364 = sbr.rel (%p362) target = $region52
      $region51: #{residual_dense_net.8} parent=31 // pred_region
        _
      $region52: #{residual_dense_net.8} parent=31 // pred_fallthru
        _
      // Predicated region
      $region53: #{residual_dense_net.8} parent=31 // pred_check
        %p365 = pneg %p132
      $region54: #{residual_dense_net.8} parent=31 // pred_check_branch
        %367 = sbr.rel (%p365) target = $region56
      $region55: #{residual_dense_net.8} parent=31 // pred_region
        _
      $region56: #{residual_dense_net.8} parent=31 // pred_fallthru
        _
    $region32: #{residual_dense_net.8} parent=5 // pred_fallthru
      _
    %p368 = scmp.le.s32.totalorder 2, %s11
    // Predicated region
    $region57: #{residual_dense_net.8} parent=5 // pred_check
      %p369 = pneg %p368
    $region58: #{residual_dense_net.8} parent=5 // pred_check_branch
      %371 = sbr.rel (%p369) target = $region60
    $region59: #{residual_dense_net.8} parent=5 // pred_region
      %s372 = ssub.s32 %s11, 2
    $region60: #{residual_dense_net.8} parent=5 // pred_fallthru
      _
  $region6: #{residual_dense_net.8} parent=0 // loop_footer
    %s15 = sadd.s32 1, %s11
  $region7: #{residual_dense_net.8} parent=0 // loop_footer_branch
    %10 = sbr.rel target = $region3
  $region8: #{residual_dense_net.8} parent=0 // loop_exit
    _

// kernel: residual_dense_net.7
$region0: #{residual_dense_net.7}
  #allocation0 [shape = 'u32[]', space=smem, size = 0x4, offset = 0x4, fixed_abs, tag = 'smem constant byte address 0x4 - core index']
  #allocation1 [shape = 'u32[144,128]{1,0:T(1,128)}', space=vmem, size = 0x12000, scoped, tag = 'internal scratch']
  #allocation2 [shape = 'f32[10,16,4]{2,1,0:T(8,128)}', space=vmem, size = 0x14000, scoped, tag = 'scratch operand']
  #allocation3 [shape = 'f32[128,36]{1,0:T(8,128)}', space=vmem, size = 0x10000, scoped, tag = 'scratch operand']
  %s0 = inlined_call_operand.vmem [shape: f32[1,4], index: 0, kind: input, shape index: {}]
  %s1 = inlined_call_operand.vmem [shape: f32[1,4], index: 1, kind: input, shape index: {}]
  %s2 = inlined_call_operand.vmem [shape: bf16[36,4], index: 2, kind: input, shape index: {}]
  %s3 = inlined_call_operand.vmem [shape: f32[1,4], index: 3, kind: input, shape index: {}]
  %s4 = inlined_call_operand.vmem [shape: f32[2,16,16,4], index: 4, kind: input, shape index: {}, may-alias: {4,5,6}]
  %s5 = inlined_call_operand.vmem [shape: f32[2,16,16,4], index: 5, kind: input, shape index: {}, may-alias: {4,5,6}]
  %s6 = inlined_call_operand.vmem [shape: f32[2,16,16,4], index: 6, kind: input, shape index: {}, may-alias: {4,5,6}]
  %s7 = inlined_call_operand.vmem [shape: f32[2,16,16,4], index: 7, kind: output, shape index: {}]
  %s8 = sld [smem:[#allocation0]]
  $region61: #{residual_dense_net.7} parent=0
    _
  %s10 = ssub.s32 1, %s8
  %s11 = scalar_select 0, %s10, %s8
  loop: start=0, step=1, limit=6
  $region2: #{residual_dense_net.7} parent=0 // loop_pre_header
    _
  $region3: #{residual_dense_net.7} parent=0 // loop_header
    %s13 = sphi 0, %s17
    %p14 = scmp.ge.s32.totalorder %s13, 6
    %s20 = sphi 0, %s32
    %s21 = sphi 0, %s28
    %s22 = sphi 0, %s20
    %s23 = sphi 0, %s21
    %s24 = sphi 0, %s22
    %s25 = sphi 0, %s23
    %s33 = sphi 0, %s33
    %s35 = sphi 0, %s33
    %s36 = sphi 0, %s35
    %s50 = sphi 0, %s36
    %s54 = sphi 0, %s54
    %s56 = sphi 0, %s54
    %s57 = sphi 0, %s56
    %s71 = sphi 0, %s57
    %s75 = sphi 0, %s75
    %s77 = sphi 0, %s75
    %s78 = sphi 0, %s77
    %s92 = sphi 0, %s78
    %s96 = sphi 0, %s96
    %s98 = sphi 0, %s96
    %s99 = sphi 0, %s98
    %s113 = sphi 0, %s99
    %s121 = sphi 0, %s123
    %s124 = sphi 0, %s121
    %s125 = sphi 0, %s124
    %s141 = sphi 0, %s125
    %s157 = sphi 0, %s159
    %s160 = sphi 0, %s157
    %s161 = sphi 0, %s160
    %s177 = sphi 0, %s161
    %s193 = sphi 0, %s195
    %s196 = sphi 0, %s193
    %s197 = sphi 0, %s196
    %s213 = sphi 0, %s197
    %s221 = sphi 0, %s223
    %s224 = sphi 0, %s221
    %s225 = sphi 0, %s224
    %s241 = sphi 0, %s225
  $region4: #{residual_dense_net.7} parent=0 // loop_header_branch
    %16 = sbr.rel (%p14) target = $region8
  $region5: #{residual_dense_net.7} parent=0 // loop_body
    %s18 = ssub.s32 %s13, 1
    %s19 = ssub.s32 %s13, 2
    %s26 = sadd.s32 1, %s21
    %p27 = scmp.ge.s32.totalorder %s26, 2
    %s28 = scalar_select %p27, 0, %s26
    %s29 = sadd.s32 1, %s20
    %s30 = scalar_select %p27, %s29, %s20
    %p31 = scmp.ge.s32.totalorder %s30, 2
    %s32 = scalar_select %p31, 0, %s30
    %s34 = sadd.s32 %s33, 1
    %p37 = scmp.eq.s32.totalorder %s13, 3
    %p38 = scmp.ne.s32.totalorder %s33, %s35
    %p39 = scmp.eq.s32.totalorder %s13, 0
    %p40 = por %p38, %p39
    %p41 = scmp.ne.s32.totalorder %s33, %s35
    %p42 = scmp.eq.s32.totalorder %s18, 3
    %p43 = por %p41, %p42
    %p44 = scmp.ne.s32.totalorder %s35, %s36
    %p45 = scmp.eq.s32.totalorder %s18, 0
    %p46 = por %p44, %p45
    %p47 = scmp.ne.s32.totalorder %s35, %s36
    %p48 = scmp.eq.s32.totalorder %s19, 3
    %p49 = por %p47, %p48
    %p51 = scmp.ne.s32.totalorder %s36, %s50
    %p52 = scmp.eq.s32.totalorder %s19, 0
    %p53 = por %p51, %p52
    %s55 = sadd.s32 %s54, 1
    %p58 = scmp.eq.s32.totalorder %s13, 3
    %p59 = scmp.ne.s32.totalorder %s54, %s56
    %p60 = scmp.eq.s32.totalorder %s13, 0
    %p61 = por %p59, %p60
    %p62 = scmp.ne.s32.totalorder %s54, %s56
    %p63 = scmp.eq.s32.totalorder %s18, 3
    %p64 = por %p62, %p63
    %p65 = scmp.ne.s32.totalorder %s56, %s57
    %p66 = scmp.eq.s32.totalorder %s18, 0
    %p67 = por %p65, %p66
    %p68 = scmp.ne.s32.totalorder %s56, %s57
    %p69 = scmp.eq.s32.totalorder %s19, 3
    %p70 = por %p68, %p69
    %p72 = scmp.ne.s32.totalorder %s57, %s71
    %p73 = scmp.eq.s32.totalorder %s19, 0
    %p74 = por %p72, %p73
    %s76 = sadd.s32 %s75, 1
    %p79 = scmp.eq.s32.totalorder %s13, 3
    %p80 = scmp.ne.s32.totalorder %s75, %s77
    %p81 = scmp.eq.s32.totalorder %s13, 0
    %p82 = por %p80, %p81
    %p83 = scmp.ne.s32.totalorder %s75, %s77
    %p84 = scmp.eq.s32.totalorder %s18, 3
    %p85 = por %p83, %p84
    %p86 = scmp.ne.s32.totalorder %s77, %s78
    %p87 = scmp.eq.s32.totalorder %s18, 0
    %p88 = por %p86, %p87
    %p89 = scmp.ne.s32.totalorder %s77, %s78
    %p90 = scmp.eq.s32.totalorder %s19, 3
    %p91 = por %p89, %p90
    %p93 = scmp.ne.s32.totalorder %s78, %s92
    %p94 = scmp.eq.s32.totalorder %s19, 0
    %p95 = por %p93, %p94
    %s97 = sadd.s32 %s96, 1
    %p100 = scmp.eq.s32.totalorder %s13, 3
    %p101 = scmp.ne.s32.totalorder %s96, %s98
    %p102 = scmp.eq.s32.totalorder %s13, 0
    %p103 = por %p101, %p102
    %p104 = scmp.ne.s32.totalorder %s96, %s98
    %p105 = scmp.eq.s32.totalorder %s18, 3
    %p106 = por %p104, %p105
    %p107 = scmp.ne.s32.totalorder %s98, %s99
    %p108 = scmp.eq.s32.totalorder %s18, 0
    %p109 = por %p107, %p108
    %p110 = scmp.ne.s32.totalorder %s98, %s99
    %p111 = scmp.eq.s32.totalorder %s19, 3
    %p112 = por %p110, %p111
    %p114 = scmp.ne.s32.totalorder %s99, %s113
    %p115 = scmp.eq.s32.totalorder %s19, 0
    %p116 = por %p114, %p115
    %s117 = ssub.s32 %s20, %s32
    %s118 = ssub.s32 %s21, %s28
    %s119 = sor.u32 %s117, %s118
    %p120 = scmp.eq.s32.totalorder %s119, 0
    %s122 = sadd.s32 %s121, 1
    %s123 = scalar_select %p120, %s121, %s122
    %p126 = pneg %p120
    %p127 = scmp.eq.s32.totalorder %s13, 3
    %p128 = por %p126, %p127
    %p129 = scmp.ne.s32.totalorder %s121, %s124
    %p130 = scmp.eq.s32.totalorder %s13, 0
    %p131 = por %p129, %p130
    %p132 = scmp.ne.s32.totalorder %s121, %s124
    %p133 = scmp.eq.s32.totalorder %s18, 3
    %p134 = por %p132, %p133
    %p135 = scmp.ne.s32.totalorder %s124, %s125
    %p136 = scmp.eq.s32.totalorder %s18, 0
    %p137 = por %p135, %p136
    %p138 = scmp.ne.s32.totalorder %s124, %s125
    %p139 = scmp.eq.s32.totalorder %s19, 3
    %p140 = por %p138, %p139
    %p142 = scmp.ne.s32.totalorder %s125, %s141
    %p143 = scmp.eq.s32.totalorder %s19, 0
    %p144 = por %p142, %p143
    %s145 = smul.u32 %s21, 8
    %s146 = ssub.s32 %s145, 1
    %p147 = scmp.gt.s32.totalorder %s146, 0
    %s148 = scalar_select %p147, %s146, 0
    %s149 = smul.u32 %s28, 8
    %s150 = ssub.s32 %s149, 1
    %p151 = scmp.gt.s32.totalorder %s150, 0
    %s152 = scalar_select %p151, %s150, 0
    %s153 = ssub.s32 %s20, %s32
    %s154 = ssub.s32 %s148, %s152
    %s155 = sor.u32 %s153, %s154
    %p156 = scmp.eq.s32.totalorder %s155, 0
    %s158 = sadd.s32 %s157, 1
    %s159 = scalar_select %p156, %s157, %s158
    %p162 = pneg %p156
    %p163 = scmp.eq.s32.totalorder %s13, 3
    %p164 = por %p162, %p163
    %p165 = scmp.ne.s32.totalorder %s157, %s160
    %p166 = scmp.eq.s32.totalorder %s13, 0
    %p167 = por %p165, %p166
    %p168 = scmp.ne.s32.totalorder %s157, %s160
    %p169 = scmp.eq.s32.totalorder %s18, 3
    %p170 = por %p168, %p169
    %p171 = scmp.ne.s32.totalorder %s160, %s161
    %p172 = scmp.eq.s32.totalorder %s18, 0
    %p173 = por %p171, %p172
    %p174 = scmp.ne.s32.totalorder %s160, %s161
    %p175 = scmp.eq.s32.totalorder %s19, 3
    %p176 = por %p174, %p175
    %p178 = scmp.ne.s32.totalorder %s161, %s177
    %p179 = scmp.eq.s32.totalorder %s19, 0
    %p180 = por %p178, %p179
    %s181 = smul.u32 %s21, 8
    %s182 = sadd.s32 %s181, 8
    %p183 = scmp.lt.s32.totalorder %s182, 15
    %s184 = scalar_select %p183, %s182, 15
    %s185 = smul.u32 %s28, 8
    %s186 = sadd.s32 %s185, 8
    %p187 = scmp.lt.s32.totalorder %s186, 15
    %s188 = scalar_select %p187, %s186, 15
    %s189 = ssub.s32 %s20, %s32
    %s190 = ssub.s32 %s184, %s188
    %s191 = sor.u32 %s189, %s190
    %p192 = scmp.eq.s32.totalorder %s191, 0
    %s194 = sadd.s32 %s193, 1
    %s195 = scalar_select %p192, %s193, %s194
    %p198 = pneg %p192
    %p199 = scmp.eq.s32.totalorder %s13, 3
    %p200 = por %p198, %p199
    %p201 = scmp.ne.s32.totalorder %s193, %s196
    %p202 = scmp.eq.s32.totalorder %s13, 0
    %p203 = por %p201, %p202
    %p204 = scmp.ne.s32.totalorder %s193, %s196
    %p205 = scmp.eq.s32.totalorder %s18, 3
    %p206 = por %p204, %p205
    %p207 = scmp.ne.s32.totalorder %s196, %s197
    %p208 = scmp.eq.s32.totalorder %s18, 0
    %p209 = por %p207, %p208
    %p210 = scmp.ne.s32.totalorder %s196, %s197
    %p211 = scmp.eq.s32.totalorder %s19, 3
    %p212 = por %p210, %p211
    %p214 = scmp.ne.s32.totalorder %s197, %s213
    %p215 = scmp.eq.s32.totalorder %s19, 0
    %p216 = por %p214, %p215
    %s217 = ssub.s32 %s20, %s32
    %s218 = ssub.s32 %s21, %s28
    %s219 = sor.u32 %s217, %s218
    %p220 = scmp.eq.s32.totalorder %s219, 0
    %s222 = sadd.s32 %s221, 1
    %s223 = scalar_select %p220, %s221, %s222
    %p226 = pneg %p220
    %p227 = scmp.eq.s32.totalorder %s13, 3
    %p228 = por %p226, %p227
    %p229 = scmp.ne.s32.totalorder %s221, %s224
    %p230 = scmp.eq.s32.totalorder %s13, 0
    %p231 = por %p229, %p230
    %p232 = scmp.ne.s32.totalorder %s221, %s224
    %p233 = scmp.eq.s32.totalorder %s18, 3
    %p234 = por %p232, %p233
    %p235 = scmp.ne.s32.totalorder %s224, %s225
    %p236 = scmp.eq.s32.totalorder %s18, 0
    %p237 = por %p235, %p236
    %p238 = scmp.ne.s32.totalorder %s224, %s225
    %p239 = scmp.eq.s32.totalorder %s19, 3
    %p240 = por %p238, %p239
    %p242 = scmp.ne.s32.totalorder %s225, %s241
    %p243 = scmp.eq.s32.totalorder %s19, 0
    %p244 = por %p242, %p243
    %p245 = scmp.le.s32.totalorder 1, %s13
    %p246 = scmp.lt.s32.totalorder %s13, 5
    %p247 = pnand %p245, %p246
    %p248 = pneg %p247
    // Predicated region
    $region9: #{residual_dense_net.7} parent=5 // pred_check
      _
    $region10: #{residual_dense_net.7} parent=5 // pred_check_branch
      %250 = sbr.rel (%p247) target = $region12
    $region11: #{residual_dense_net.7} parent=5 // pred_region
      %s251 = ssub.s32 %s13, 1
      // Predicated region
      $region13: #{residual_dense_net.7} parent=11 // pred_check
        %p252 = pneg %p46
      $region14: #{residual_dense_net.7} parent=11 // pred_check_branch
        %254 = sbr.rel (%p252) target = $region16
      $region15: #{residual_dense_net.7} parent=11 // pred_region
        _
      $region16: #{residual_dense_net.7} parent=11 // pred_fallthru
        _
      // Predicated region
      $region17: #{residual_dense_net.7} parent=11 // pred_check
        %p255 = pneg %p67
      $region18: #{residual_dense_net.7} parent=11 // pred_check_branch
        %257 = sbr.rel (%p255) target = $region20
      $region19: #{residual_dense_net.7} parent=11 // pred_region
        _
      $region20: #{residual_dense_net.7} parent=11 // pred_fallthru
        _
      // Predicated region
      $region21: #{residual_dense_net.7} parent=11 // pred_check
        %p258 = pneg %p88
      $region22: #{residual_dense_net.7} parent=11 // pred_check_branch
        %260 = sbr.rel (%p258) target = $region24
      $region23: #{residual_dense_net.7} parent=11 // pred_region
        _
      $region24: #{residual_dense_net.7} parent=11 // pred_fallthru
        _
      // Predicated region
      $region25: #{residual_dense_net.7} parent=11 // pred_check
        %p261 = pneg %p109
      $region26: #{residual_dense_net.7} parent=11 // pred_check_branch
        %263 = sbr.rel (%p261) target = $region28
      $region27: #{residual_dense_net.7} parent=11 // pred_region
        _
      $region28: #{residual_dense_net.7} parent=11 // pred_fallthru
        _
    $region12: #{residual_dense_net.7} parent=5 // pred_fallthru
      _
    %p264 = scmp.lt.s32.totalorder %s13, 4
    // Predicated region
    $region29: #{residual_dense_net.7} parent=5 // pred_check
      %p265 = pneg %p264
    $region30: #{residual_dense_net.7} parent=5 // pred_check_branch
      %267 = sbr.rel (%p265) target = $region32
    $region31: #{residual_dense_net.7} parent=5 // pred_region
      // Predicated region
      $region33: #{residual_dense_net.7} parent=31 // pred_check
        %p268 = pneg %p131
      $region34: #{residual_dense_net.7} parent=31 // pred_check_branch
        %270 = sbr.rel (%p268) target = $region36
      $region35: #{residual_dense_net.7} parent=31 // pred_region
        %s271 = smul.u32 8, %s21
        %p272 = scmp.lt.s32.totalorder %s20, 1
        %s273 = scalar_select %p272, %s20, 1
        %p274 = scmp.lt.s32.totalorder %s271, 15
        %s275 = scalar_select %p274, %s271, 15
        %s276 = smul.addr %s275, 2
        %s277 = smul.addr %s273, 32
        %s278 = sadd.s32 %s276, %s277
        %s279 = smul.addr %s278, 8
        %s280 = scalar_lea.vmem %s4, %s279
        %s281 = smul.u32 8, %s21
      $region36: #{residual_dense_net.7} parent=31 // pred_fallthru
        _
      // Predicated region
      $region37: #{residual_dense_net.7} parent=31 // pred_check
        %p282 = pneg %p167
      $region38: #{residual_dense_net.7} parent=31 // pred_check_branch
        %284 = sbr.rel (%p282) target = $region40
      $region39: #{residual_dense_net.7} parent=31 // pred_region
        %s285 = smul.u32 %s21, 8
        %s286 = ssub.s32 %s285, 1
        %p287 = scmp.gt.s32.totalorder %s286, 0
        %s288 = scalar_select %p287, %s286, 0
        %p289 = scmp.lt.s32.totalorder %s20, 1
        %s290 = scalar_select %p289, %s20, 1
        %p291 = scmp.lt.s32.totalorder %s288, 15
        %s292 = scalar_select %p291, %s288, 15
        %s293 = smul.addr %s292, 2
        %s294 = smul.addr %s290, 32
        %s295 = sadd.s32 %s293, %s294
        %s296 = smul.addr %s295, 8
        %s297 = scalar_lea.vmem %s5, %s296
        %s298 = smul.u32 %s21, 8
        %s299 = ssub.s32 %s298, 1
        %p300 = scmp.gt.s32.totalorder %s299, 0
        %s301 = scalar_select %p300, %s299, 0
      $region40: #{residual_dense_net.7} parent=31 // pred_fallthru
        _
      // Predicated region
      $region41: #{residual_dense_net.7} parent=31 // pred_check
        %p302 = pneg %p203
      $region42: #{residual_dense_net.7} parent=31 // pred_check_branch
        %304 = sbr.rel (%p302) target = $region44
      $region43: #{residual_dense_net.7} parent=31 // pred_region
        %s305 = smul.u32 %s21, 8
        %s306 = sadd.s32 %s305, 8
        %p307 = scmp.lt.s32.totalorder %s306, 15
        %s308 = scalar_select %p307, %s306, 15
        %p309 = scmp.lt.s32.totalorder %s20, 1
        %s310 = scalar_select %p309, %s20, 1
        %p311 = scmp.lt.s32.totalorder %s308, 15
        %s312 = scalar_select %p311, %s308, 15
        %s313 = smul.addr %s312, 2
        %s314 = smul.addr %s310, 32
        %s315 = sadd.s32 %s313, %s314
        %s316 = smul.addr %s315, 8
        %s317 = scalar_lea.vmem %s6, %s316
        %s318 = smul.u32 %s21, 8
        %s319 = sadd.s32 %s318, 8
        %p320 = scmp.lt.s32.totalorder %s319, 15
        %s321 = scalar_select %p320, %s319, 15
      $region44: #{residual_dense_net.7} parent=31 // pred_fallthru
        _
    $region32: #{residual_dense_net.7} parent=5 // pred_fallthru
      _
    %p322 = scmp.le.s32.totalorder 1, %s13
    %p323 = scmp.lt.s32.totalorder %s13, 5
    %p324 = pnand %p322, %p323
    %p325 = pneg %p324
    // Predicated region
    $region45: #{residual_dense_net.7} parent=5 // pred_check
      _
    $region46: #{residual_dense_net.7} parent=5 // pred_check_branch
      %327 = sbr.rel (%p324) target = $region48
    $region47: #{residual_dense_net.7} parent=5 // pred_region
      %s328 = ssub.s32 %s13, 1
      %p329 = pneg %p46
      %p330 = pneg %p43
      %p331 = pneg %p67
      %p332 = pneg %p64
      %p333 = pneg %p88
      %p334 = pneg %p85
      %p335 = pneg %p109
      %p336 = pneg %p106
      %s337 = smul.u32 8, %s23
      %p338 = scmp.lt.s32.totalorder %s22, 1
      %s339 = scalar_select %p338, %s22, 1
      %p340 = scmp.lt.s32.totalorder %s337, 15
      %s341 = scalar_select %p340, %s337, 15
      %s342 = smul.addr %s341, 2
      %s343 = smul.addr %s339, 32
      %s344 = sadd.s32 %s342, %s343
      %s345 = smul.addr %s344, 8
      %s346 = scalar_lea.vmem %s4, %s345
      %p347 = pneg %p137
      %p348 = pneg %p134
      %s349 = smul.u32 %s23, 8
      %s350 = ssub.s32 %s349, 1
      %p351 = scmp.gt.s32.totalorder %s350, 0
      %s352 = scalar_select %p351, %s350, 0
      %p353 = scmp.lt.s32.totalorder %s22, 1
      %s354 = scalar_select %p353, %s22, 1
      %p355 = scmp.lt.s32.totalorder %s352, 15
      %s356 = scalar_select %p355, %s352, 15
      %s357 = smul.addr %s356, 2
      %s358 = smul.addr %s354, 32
      %s359 = sadd.s32 %s357, %s358
      %s360 = smul.addr %s359, 8
      %s361 = scalar_lea.vmem %s5, %s360
      %p362 = pneg %p173
      %p363 = pneg %p170
      %s364 = smul.u32 %s23, 8
      %s365 = sadd.s32 %s364, 8
      %p366 = scmp.lt.s32.totalorder %s365, 15
      %s367 = scalar_select %p366, %s365, 15
      %p368 = scmp.lt.s32.totalorder %s22, 1
      %s369 = scalar_select %p368, %s22, 1
      %p370 = scmp.lt.s32.totalorder %s367, 15
      %s371 = scalar_select %p370, %s367, 15
      %s372 = smul.addr %s371, 2
      %s373 = smul.addr %s369, 32
      %s374 = sadd.s32 %s372, %s373
      %s375 = smul.addr %s374, 8
      %s376 = scalar_lea.vmem %s6, %s375
      %p377 = pneg %p209
      %p378 = pneg %p206
      %p379 = pneg %p237
      %p380 = pneg %p234
      %s381 = smul.u32 8, %s23
      %p382 = scmp.lt.s32.totalorder %s22, 1
      %s383 = scalar_select %p382, %s22, 1
      %p384 = scmp.lt.s32.totalorder %s381, 15
      %s385 = scalar_select %p384, %s381, 15
      %s386 = smul.addr %s385, 2
      %s387 = smul.addr %s383, 32
      %s388 = sadd.s32 %s386, %s387
      %s389 = smul.addr %s388, 8
      %s390 = scalar_lea.vmem %s7, %s389
      %s391 = smul.u32 8, %s23
      %p392 = scmp.lt.s32.totalorder %s22, 1
      %s393 = scalar_select %p392, %s22, 1
      %p394 = scmp.lt.s32.totalorder %s391, 15
      %s395 = scalar_select %p394, %s391, 15
      %s396 = smul.addr %s395, 2
      %s397 = smul.addr %s393, 32
      %s398 = sadd.s32 %s396, %s397
      %s399 = smul.addr %s398, 8
      %s400 = scalar_lea.vmem %s4, %s399
      %s401 = smul.u32 8, %s23
      %s402 = smul.u32 %s23, 8
      %s403 = ssub.s32 %s402, 1
      %p404 = scmp.gt.s32.totalorder %s403, 0
      %s405 = scalar_select %p404, %s403, 0
      %p406 = scmp.lt.s32.totalorder %s22, 1
      %s407 = scalar_select %p406, %s22, 1
      %p408 = scmp.lt.s32.totalorder %s405, 15
      %s409 = scalar_select %p408, %s405, 15
      %s410 = smul.addr %s409, 2
      %s411 = smul.addr %s407, 32
      %s412 = sadd.s32 %s410, %s411
      %s413 = smul.addr %s412, 8
      %s414 = scalar_lea.vmem %s5, %s413
      %s415 = smul.u32 %s23, 8
      %s416 = ssub.s32 %s415, 1
      %p417 = scmp.gt.s32.totalorder %s416, 0
      %s418 = scalar_select %p417, %s416, 0
      %s419 = smul.u32 %s23, 8
      %s420 = sadd.s32 %s419, 8
      %p421 = scmp.lt.s32.totalorder %s420, 15
      %s422 = scalar_select %p421, %s420, 15
      %p423 = scmp.lt.s32.totalorder %s22, 1
      %s424 = scalar_select %p423, %s22, 1
      %p425 = scmp.lt.s32.totalorder %s422, 15
      %s426 = scalar_select %p425, %s422, 15
      %s427 = smul.addr %s426, 2
      %s428 = smul.addr %s424, 32
      %s429 = sadd.s32 %s427, %s428
      %s430 = smul.addr %s429, 8
      %s431 = scalar_lea.vmem %s6, %s430
      %s432 = smul.u32 %s23, 8
      %s433 = sadd.s32 %s432, 8
      %p434 = scmp.lt.s32.totalorder %s433, 15
      %s435 = scalar_select %p434, %s433, 15
      %s436 = smul.u32 8, %s23
      %p437 = scmp.lt.s32.totalorder %s22, 1
      %s438 = scalar_select %p437, %s22, 1
      %p439 = scmp.lt.s32.totalorder %s436, 15
      %s440 = scalar_select %p439, %s436, 15
      %s441 = smul.addr %s440, 2
      %s442 = smul.addr %s438, 32
      %s443 = sadd.s32 %s441, %s442
      %s444 = smul.addr %s443, 8
      %s445 = scalar_lea.vmem %s7, %s444
      %s446 = smul.u32 8, %s23
      %v448 = vld [vmem:[%s0] sm:$0x1]
      %v449 = vld [vmem:[%s1] sm:$0x1]
      %p450 = scmp.gt.s32.totalorder %s23, 0
      %s451 = scalar_select %p450, 1, 0
      %s452 = scvt.s32.f32 %s451
      %p453 = scmp.lt.s32.totalorder %s23, 1
      %s454 = scalar_select %p453, 1, 0
      %s455 = scvt.s32.f32 %s454
      %v456 = vld [vmem:[%s400] sm:$0xff]
      %v457 = vld [vmem:[%s400 + $0x8] sm:$0xff]
      %v458 = vld [vmem:[%s400 + $0x10] sm:$0xff]
      %v459 = vld [vmem:[%s400 + $0x18] sm:$0xff]
      %v460 = vld [vmem:[%s400 + $0x20] sm:$0xff]
      %v461 = vld [vmem:[%s400 + $0x28] sm:$0xff]
      %v462 = vld [vmem:[%s400 + $0x30] sm:$0xff]
      %v463 = vld [vmem:[%s400 + $0x38] sm:$0xff]
      %v464 = vld [vmem:[%s400 + $0x40] sm:$0xff]
      %v465 = vld [vmem:[%s400 + $0x48] sm:$0xff]
      %v466 = vld [vmem:[%s400 + $0x50] sm:$0xff]
      %v467 = vld [vmem:[%s400 + $0x58] sm:$0xff]
      %v468 = vld [vmem:[%s400 + $0x60] sm:$0xff]
      %v469 = vld [vmem:[%s400 + $0x68] sm:$0xff]
      %v470 = vld [vmem:[%s400 + $0x70] sm:$0xff]
      %v471 = vld [vmem:[%s400 + $0x78] sm:$0xff]
      %v472 = vld [vmem:[%s414] sm:$0xff]
      %v473 = vld [vmem:[%s414 + $0x8] sm:$0xff]
      %v474 = vld [vmem:[%s431] sm:$0xff]
      %v475 = vld [vmem:[%s431 + $0x8] sm:$0xff]
      %v477 = vlaneseq
      %v478 = vshrl.u32 %v477, 7
      %v479 = vsub.s32 0, %v478
      %v480 = vrot.slane %v448, %v479
      %v482 = vmul.f32 %v472, %v480
      %v483 = vmul.f32 %v473, %v480
      %v485 = vlaneseq
      %v486 = vshrl.u32 %v485, 7
      %v487 = vsub.s32 0, %v486
      %v488 = vrot.slane %v449, %v487
      %v490 = vadd.f32 %v482, %v488
      %v491 = vadd.f32 %v483, %v488
      %v492 = vmax.f32 %v490, 0.0
      %v493 = vmax.f32 %v491, 0.0
      %v494 = vstv %s452
      %v495 = vmul.f32 %v492, %v494
      %v496 = vmul.f32 %v493, %v494
      %vm497 = vcmask 31744
      %498 = vst.msk [vmem:[#allocation2] sm:$0xff] %vm497, %v495
      %499 = vst.msk [vmem:[#allocation2 + $0x8] sm:$0xff] %vm497, %v496
      %v500 = vmul.f32 %v456, %v480
      %v501 = vmul.f32 %v457, %v480
      %v502 = vmul.f32 %v458, %v480
      %v503 = vmul.f32 %v459, %v480
      %v504 = vmul.f32 %v460, %v480
      %v505 = vmul.f32 %v461, %v480
      %v506 = vmul.f32 %v462, %v480
      %v507 = vmul.f32 %v463, %v480
      %v508 = vmul.f32 %v464, %v480
      %v509 = vmul.f32 %v465, %v480
      %v510 = vmul.f32 %v466, %v480
      %v511 = vmul.f32 %v467, %v480
      %v512 = vmul.f32 %v468, %v480
      %v513 = vmul.f32 %v469, %v480
      %v514 = vmul.f32 %v470, %v480
      %v515 = vmul.f32 %v471, %v480
      %v516 = vadd.f32 %v500, %v488
      %v517 = vadd.f32 %v501, %v488
      %v518 = vadd.f32 %v502, %v488
      %v519 = vadd.f32 %v503, %v488
      %v520 = vadd.f32 %v504, %v488
      %v521 = vadd.f32 %v505, %v488
      %v522 = vadd.f32 %v506, %v488
      %v523 = vadd.f32 %v507, %v488
      %v524 = vadd.f32 %v508, %v488
      %v525 = vadd.f32 %v509, %v488
      %v526 = vadd.f32 %v510, %v488
      %v527 = vadd.f32 %v511, %v488
      %v528 = vadd.f32 %v512, %v488
      %v529 = vadd.f32 %v513, %v488
      %v530 = vadd.f32 %v514, %v488
      %v531 = vadd.f32 %v515, %v488
      %v532 = vmax.f32 %v516, 0.0
      %v533 = vmax.f32 %v517, 0.0
      %v534 = vmax.f32 %v518, 0.0
      %v535 = vmax.f32 %v519, 0.0
      %v536 = vmax.f32 %v520, 0.0
      %v537 = vmax.f32 %v521, 0.0
      %v538 = vmax.f32 %v522, 0.0
      %v539 = vmax.f32 %v523, 0.0
      %v540 = vmax.f32 %v524, 0.0
      %v541 = vmax.f32 %v525, 0.0
      %v542 = vmax.f32 %v526, 0.0
      %v543 = vmax.f32 %v527, 0.0
      %v544 = vmax.f32 %v528, 0.0
      %v545 = vmax.f32 %v529, 0.0
      %v546 = vmax.f32 %v530, 0.0
      %v547 = vmax.f32 %v531, 0.0
      %s548 = scalar_lea.vmem [#allocation2], 16
      %549 = vst.msk [vmem:[%s548] sm:$0xff] %vm497, %v532
      %550 = vst.msk [vmem:[%s548 + $0x8] sm:$0xff] %vm497, %v533
      %551 = vst.msk [vmem:[%s548 + $0x10] sm:$0xff] %vm497, %v534
      %552 = vst.msk [vmem:[%s548 + $0x18] sm:$0xff] %vm497, %v535
      %553 = vst.msk [vmem:[%s548 + $0x20] sm:$0xff] %vm497, %v536
      %554 = vst.msk [vmem:[%s548 + $0x28] sm:$0xff] %vm497, %v537
      %555 = vst.msk [vmem:[%s548 + $0x30] sm:$0xff] %vm497, %v538
      %556 = vst.msk [vmem:[%s548 + $0x38] sm:$0xff] %vm497, %v539
      %557 = vst.msk [vmem:[%s548 + $0x40] sm:$0xff] %vm497, %v540
      %558 = vst.msk [vmem:[%s548 + $0x48] sm:$0xff] %vm497, %v541
      %559 = vst.msk [vmem:[%s548 + $0x50] sm:$0xff] %vm497, %v542
      %560 = vst.msk [vmem:[%s548 + $0x58] sm:$0xff] %vm497, %v543
      %561 = vst.msk [vmem:[%s548 + $0x60] sm:$0xff] %vm497, %v544
      %562 = vst.msk [vmem:[%s548 + $0x68] sm:$0xff] %vm497, %v545
      %563 = vst.msk [vmem:[%s548 + $0x70] sm:$0xff] %vm497, %v546
      %564 = vst.msk [vmem:[%s548 + $0x78] sm:$0xff] %vm497, %v547
      %v565 = vmul.f32 %v474, %v480
      %v566 = vmul.f32 %v475, %v480
      %v567 = vadd.f32 %v565, %v488
      %v568 = vadd.f32 %v566, %v488
      %v569 = vmax.f32 %v567, 0.0
      %v570 = vmax.f32 %v568, 0.0
      %v571 = vstv %s455
      %v572 = vmul.f32 %v569, %v571
      %v573 = vmul.f32 %v570, %v571
      %s574 = scalar_lea.vmem [#allocation2], 144
      %575 = vst.msk [vmem:[%s574] sm:$0xff] %vm497, %v572
      %576 = vst.msk [vmem:[%s574 + $0x8] sm:$0xff] %vm497, %v573
      %v577 = vld [vmem:[#allocation2] sm:$0xff]
      %v578 = vld [vmem:[#allocation2 + $0x8] sm:$0xff]
      %v579 = vld [vmem:[#allocation2 + $0x10] sm:$0xff]
      %v580 = vld [vmem:[#allocation2 + $0x18] sm:$0xff]
      %v581 = vld [vmem:[#allocation2 + $0x20] sm:$0xff]
      %v582 = vld [vmem:[#allocation2 + $0x28] sm:$0xff]
      %v583 = vld [vmem:[#allocation2 + $0x30] sm:$0xff]
      %v584 = vld [vmem:[#allocation2 + $0x38] sm:$0xff]
      %v585 = vld [vmem:[#allocation2 + $0x40] sm:$0xff]
      %v586 = vld [vmem:[#allocation2 + $0x48] sm:$0xff]
      %v587 = vld [vmem:[#allocation2 + $0x50] sm:$0xff]
      %v588 = vld [vmem:[#allocation2 + $0x58] sm:$0xff]
      %v589 = vld [vmem:[#allocation2 + $0x60] sm:$0xff]
      %v590 = vld [vmem:[#allocation2 + $0x68] sm:$0xff]
      %v591 = vld [vmem:[#allocation2 + $0x70] sm:$0xff]
      %v592 = vld [vmem:[#allocation2 + $0x78] sm:$0xff]
      %v593 = vld [vmem:[#allocation2 + $0x80] sm:$0xff]
      %v594 = vld [vmem:[#allocation2 + $0x88] sm:$0xff]
      %v595 = vld [vmem:[#allocation2 + $0x90] sm:$0xff]
      %v596 = vld [vmem:[#allocation2 + $0x98] sm:$0xff]
      %v597 = vlaneseq
      %v598 = vshrl.u32 %v597, 7
      %v599 = vadd.s32 %v598, 8
      %v600 = vrot.slane %v577, 7
      %v601 = vrot.slane %v578, 7
      %v602 = vrot.slane %v579, 7
      %v603 = vrot.slane %v580, 7
      %v604 = vrot.slane %v581, 7
      %v605 = vrot.slane %v582, 7
      %v606 = vrot.slane %v583, 7
      %v607 = vrot.slane %v584, 7
      %v608 = vrot.slane %v585, 7
      %v609 = vrot.slane %v586, 7
      %v610 = vrot.slane %v587, 7
      %v611 = vrot.slane %v588, 7
      %v612 = vrot.slane %v589, 7
      %v613 = vrot.slane %v590, 7
      %v614 = vrot.slane %v591, 7
      %v615 = vrot.slane %v592, 7
      %v616 = vrot.slane %v593, 7
      %v617 = vrot.slane %v594, 7
      %v618 = vrot.slane %v595, 7
      %v619 = vrot.slane %v596, 7
      %vm620 = vcmp.lt.s32.totalorder %v598, 1
      %v621 = vsel %vm620, %v618, %v619
      %v622 = vsel %vm620, %v617, %v618
      %v623 = vsel %vm620, %v616, %v617
      %v624 = vsel %vm620, %v615, %v616
      %v625 = vsel %vm620, %v614, %v615
      %v626 = vsel %vm620, %v613, %v614
      %v627 = vsel %vm620, %v612, %v613
      %v628 = vsel %vm620, %v611, %v612
      %v629 = vsel %vm620, %v610, %v611
      %v630 = vsel %vm620, %v609, %v610
      %v631 = vsel %vm620, %v608, %v609
      %v632 = vsel %vm620, %v607, %v608
      %v633 = vsel %vm620, %v606, %v607
      %v634 = vsel %vm620, %v605, %v606
      %v635 = vsel %vm620, %v604, %v605
      %v636 = vsel %vm620, %v603, %v604
      %v637 = vsel %vm620, %v602, %v603
      %v638 = vsel %vm620, %v601, %v602
      %v639 = vsel %vm620, %v600, %v601
      %v640 = vsel %vm620, %v619, %v600
      %vm641 = vcmp.gt.s32.totalorder %v598, 0
      %vm642 = vcmp.gt.s32.totalorder %v599, 0
      %v643 = vsel %vm641, 1, 0
      %v644 = vsel %vm642, 1, 0
      %v645 = vcvt.s32.f32 %v643
      %v646 = vcvt.s32.f32 %v644
      %v647 = vmul.f32 %v640, %v645
      %v648 = vmul.f32 %v639, %v646
      %v649 = vmul.f32 %v638, %v645
      %v650 = vmul.f32 %v637, %v646
      %v651 = vmul.f32 %v636, %v645
      %v652 = vmul.f32 %v635, %v646
      %v653 = vmul.f32 %v634, %v645
      %v654 = vmul.f32 %v633, %v646
      %v655 = vmul.f32 %v632, %v645
      %v656 = vmul.f32 %v631, %v646
      %v657 = vmul.f32 %v630, %v645
      %v658 = vmul.f32 %v629, %v646
      %v659 = vmul.f32 %v628, %v645
      %v660 = vmul.f32 %v627, %v646
      %v661 = vmul.f32 %v626, %v645
      %v662 = vmul.f32 %v625, %v646
      %v663 = vmul.f32 %v624, %v645
      %v664 = vmul.f32 %v623, %v646
      %v665 = vmul.f32 %v622, %v645
      %v666 = vmul.f32 %v621, %v646
      %v667 = vrot.slane %v577, 1
      %v668 = vrot.slane %v578, 1
      %v669 = vrot.slane %v579, 1
      %v670 = vrot.slane %v580, 1
      %v671 = vrot.slane %v581, 1
      %v672 = vrot.slane %v582, 1
      %v673 = vrot.slane %v583, 1
      %v674 = vrot.slane %v584, 1
      %v675 = vrot.slane %v585, 1
      %v676 = vrot.slane %v586, 1
      %v677 = vrot.slane %v587, 1
      %v678 = vrot.slane %v588, 1
      %v679 = vrot.slane %v589, 1
      %v680 = vrot.slane %v590, 1
      %v681 = vrot.slane %v591, 1
      %v682 = vrot.slane %v592, 1
      %v683 = vrot.slane %v593, 1
      %v684 = vrot.slane %v594, 1
      %v685 = vrot.slane %v595, 1
      %v686 = vrot.slane %v596, 1
      %vm687 = vcmp.lt.s32.totalorder %v598, 7
      %v688 = vsel %vm687, %v685, %v686
      %v689 = vsel %vm687, %v684, %v685
      %v690 = vsel %vm687, %v683, %v684
      %v691 = vsel %vm687, %v682, %v683
      %v692 = vsel %vm687, %v681, %v682
      %v693 = vsel %vm687, %v680, %v681
      %v694 = vsel %vm687, %v679, %v680
      %v695 = vsel %vm687, %v678, %v679
      %v696 = vsel %vm687, %v677, %v678
      %v697 = vsel %vm687, %v676, %v677
      %v698 = vsel %vm687, %v675, %v676
      %v699 = vsel %vm687, %v674, %v675
      %v700 = vsel %vm687, %v673, %v674
      %v701 = vsel %vm687, %v672, %v673
      %v702 = vsel %vm687, %v671, %v672
      %v703 = vsel %vm687, %v670, %v671
      %v704 = vsel %vm687, %v669, %v670
      %v705 = vsel %vm687, %v668, %v669
      %v706 = vsel %vm687, %v667, %v668
      %v707 = vsel %vm687, %v686, %v667
      %vm708 = vcmp.lt.s32.totalorder %v598, 15
      %vm709 = vcmp.lt.s32.totalorder %v599, 15
      %v710 = vsel %vm708, 1, 0
      %v711 = vsel %vm709, 1, 0
      %v712 = vcvt.s32.f32 %v710
      %v713 = vcvt.s32.f32 %v711
      %v714 = vmul.f32 %v706, %v712
      %v715 = vmul.f32 %v705, %v713
      %v716 = vmul.f32 %v704, %v712
      %v717 = vmul.f32 %v703, %v713
      %v718 = vmul.f32 %v702, %v712
      %v719 = vmul.f32 %v701, %v713
      %v720 = vmul.f32 %v700, %v712
      %v721 = vmul.f32 %v699, %v713
      %v722 = vmul.f32 %v698, %v712
      %v723 = vmul.f32 %v697, %v713
      %v724 = vmul.f32 %v696, %v712
      %v725 = vmul.f32 %v695, %v713
      %v726 = vmul.f32 %v694, %v712
      %v727 = vmul.f32 %v693, %v713
      %v728 = vmul.f32 %v692, %v712
      %v729 = vmul.f32 %v691, %v713
      %v730 = vmul.f32 %v690, %v712
      %v731 = vmul.f32 %v689, %v713
      %v732 = vmul.f32 %v688, %v712
      %v733 = vmul.f32 %v707, %v713
      %734 = vst.msk [vmem:[#allocation3] sm:$0xff] %vm497, %v647
      %735 = vst.msk [vmem:[#allocation3 + $0x8] sm:$0xff] %vm497, %v648
      %736 = vst.msk [vmem:[#allocation3 + $0x10] sm:$0xff] %vm497, %v649
      %737 = vst.msk [vmem:[#allocation3 + $0x18] sm:$0xff] %vm497, %v650
      %738 = vst.msk [vmem:[#allocation3 + $0x20] sm:$0xff] %vm497, %v651
      %739 = vst.msk [vmem:[#allocation3 + $0x28] sm:$0xff] %vm497, %v652
      %740 = vst.msk [vmem:[#allocation3 + $0x30] sm:$0xff] %vm497, %v653
      %741 = vst.msk [vmem:[#allocation3 + $0x38] sm:$0xff] %vm497, %v654
      %742 = vst.msk [vmem:[#allocation3 + $0x40] sm:$0xff] %vm497, %v655
      %743 = vst.msk [vmem:[#allocation3 + $0x48] sm:$0xff] %vm497, %v656
      %744 = vst.msk [vmem:[#allocation3 + $0x50] sm:$0xff] %vm497, %v657
      %745 = vst.msk [vmem:[#allocation3 + $0x58] sm:$0xff] %vm497, %v658
      %746 = vst.msk [vmem:[#allocation3 + $0x60] sm:$0xff] %vm497, %v659
      %747 = vst.msk [vmem:[#allocation3 + $0x68] sm:$0xff] %vm497, %v660
      %748 = vst.msk [vmem:[#allocation3 + $0x70] sm:$0xff] %vm497, %v661
      %749 = vst.msk [vmem:[#allocation3 + $0x78] sm:$0xff] %vm497, %v662
      %766 = vrot.lane.b32.xlu0 %v577, 4
      %v767 = vpop.permute.xlu0 %766
      %768 = vrot.lane.b32.xlu0 %v578, 4
      %v769 = vpop.permute.xlu0 %768
      %770 = vrot.lane.b32.xlu0 %v579, 4
      %v771 = vpop.permute.xlu0 %770
      %772 = vrot.lane.b32.xlu0 %v580, 4
      %v773 = vpop.permute.xlu0 %772
      %774 = vrot.lane.b32.xlu0 %v581, 4
      %v775 = vpop.permute.xlu0 %774
      %776 = vrot.lane.b32.xlu0 %v582, 4
      %v777 = vpop.permute.xlu0 %776
      %778 = vrot.lane.b32.xlu0 %v583, 4
      %v779 = vpop.permute.xlu0 %778
      %780 = vrot.lane.b32.xlu0 %v584, 4
      %v781 = vpop.permute.xlu0 %780
      %782 = vrot.lane.b32.xlu0 %v585, 4
      %v783 = vpop.permute.xlu0 %782
      %784 = vrot.lane.b32.xlu0 %v586, 4
      %v785 = vpop.permute.xlu0 %784
      %786 = vrot.lane.b32.xlu0 %v587, 4
      %v787 = vpop.permute.xlu0 %786
      %788 = vrot.lane.b32.xlu0 %v588, 4
      %v789 = vpop.permute.xlu0 %788
      %790 = vrot.lane.b32.xlu0 %v589, 4
      %v791 = vpop.permute.xlu0 %790
      %792 = vrot.lane.b32.xlu0 %v590, 4
      %v793 = vpop.permute.xlu0 %792
      %794 = vrot.lane.b32.xlu0 %v591, 4
      %v795 = vpop.permute.xlu0 %794
      %796 = vrot.lane.b32.xlu0 %v592, 4
      %v797 = vpop.permute.xlu0 %796
      %vm814 = vcmask 64544
      %815 = vst.msk [vmem:[#allocation3] sm:$0xff] %vm814, %v767
      %816 = vst.msk [vmem:[#allocation3 + $0x8] sm:$0xff] %vm814, %v769
      %817 = vst.msk [vmem:[#allocation3 + $0x10] sm:$0xff] %vm814, %v771
      %818 = vst.msk [vmem:[#allocation3 + $0x18] sm:$0xff] %vm814, %v773
      %819 = vst.msk [vmem:[#allocation3 + $0x20] sm:$0xff] %vm814, %v775
      %820 = vst.msk [vmem:[#allocation3 + $0x28] sm:$0xff] %vm814, %v777
      %821 = vst.msk [vmem:[#allocation3 + $0x30] sm:$0xff] %vm814, %v779
      %822 = vst.msk [vmem:[#allocation3 + $0x38] sm:$0xff] %vm814, %v781
      %823 = vst.msk [vmem:[#allocation3 + $0x40] sm:$0xff] %vm814, %v783
      %824 = vst.msk [vmem:[#allocation3 + $0x48] sm:$0xff] %vm814, %v785
      %825 = vst.msk [vmem:[#allocation3 + $0x50] sm:$0xff] %vm814, %v787
      %826 = vst.msk [vmem:[#allocation3 + $0x58] sm:$0xff] %vm814, %v789
      %827 = vst.msk [vmem:[#allocation3 + $0x60] sm:$0xff] %vm814, %v791
      %828 = vst.msk [vmem:[#allocation3 + $0x68] sm:$0xff] %vm814, %v793
      %829 = vst.msk [vmem:[#allocation3 + $0x70] sm:$0xff] %vm814, %v795
      %830 = vst.msk [vmem:[#allocation3 + $0x78] sm:$0xff] %vm814, %v797
      %847 = vrot.lane.b32.xlu0 %v714, 8
      %v848 = vpop.permute.xlu0 %847
      %849 = vrot.lane.b32.xlu0 %v715, 8
      %v850 = vpop.permute.xlu0 %849
      %851 = vrot.lane.b32.xlu0 %v716, 8
      %v852 = vpop.permute.xlu0 %851
      %853 = vrot.lane.b32.xlu0 %v717, 8
      %v854 = vpop.permute.xlu0 %853
      %855 = vrot.lane.b32.xlu0 %v718, 8
      %v856 = vpop.permute.xlu0 %855
      %857 = vrot.lane.b32.xlu0 %v719, 8
      %v858 = vpop.permute.xlu0 %857
      %859 = vrot.lane.b32.xlu0 %v720, 8
      %v860 = vpop.permute.xlu0 %859
      %861 = vrot.lane.b32.xlu0 %v721, 8
      %v862 = vpop.permute.xlu0 %861
      %863 = vrot.lane.b32.xlu0 %v722, 8
      %v864 = vpop.permute.xlu0 %863
      %865 = vrot.lane.b32.xlu0 %v723, 8
      %v866 = vpop.permute.xlu0 %865
      %867 = vrot.lane.b32.xlu0 %v724, 8
      %v868 = vpop.permute.xlu0 %867
      %869 = vrot.lane.b32.xlu0 %v725, 8
      %v870 = vpop.permute.xlu0 %869
      %871 = vrot.lane.b32.xlu0 %v726, 8
      %v872 = vpop.permute.xlu0 %871
      %873 = vrot.lane.b32.xlu0 %v727, 8
      %v874 = vpop.permute.xlu0 %873
      %875 = vrot.lane.b32.xlu0 %v728, 8
      %v876 = vpop.permute.xlu0 %875
      %877 = vrot.lane.b32.xlu0 %v729, 8
      %v878 = vpop.permute.xlu0 %877
      %vm895 = vcmask 97344
      %896 = vst.msk [vmem:[#allocation3] sm:$0xff] %vm895, %v848
      %897 = vst.msk [vmem:[#allocation3 + $0x8] sm:$0xff] %vm895, %v850
      %898 = vst.msk [vmem:[#allocation3 + $0x10] sm:$0xff] %vm895, %v852
      %899 = vst.msk [vmem:[#allocation3 + $0x18] sm:$0xff] %vm895, %v854
      %900 = vst.msk [vmem:[#allocation3 + $0x20] sm:$0xff] %vm895, %v856
      %901 = vst.msk [vmem:[#allocation3 + $0x28] sm:$0xff] %vm895, %v858
      %902 = vst.msk [vmem:[#allocation3 + $0x30] sm:$0xff] %vm895, %v860
      %903 = vst.msk [vmem:[#allocation3 + $0x38] sm:$0xff] %vm895, %v862
      %904 = vst.msk [vmem:[#allocation3 + $0x40] sm:$0xff] %vm895, %v864
      %905 = vst.msk [vmem:[#allocation3 + $0x48] sm:$0xff] %vm895, %v866
      %906 = vst.msk [vmem:[#allocation3 + $0x50] sm:$0xff] %vm895, %v868
      %907 = vst.msk [vmem:[#allocation3 + $0x58] sm:$0xff] %vm895, %v870
      %908 = vst.msk [vmem:[#allocation3 + $0x60] sm:$0xff] %vm895, %v872
      %909 = vst.msk [vmem:[#allocation3 + $0x68] sm:$0xff] %vm895, %v874
      %910 = vst.msk [vmem:[#allocation3 + $0x70] sm:$0xff] %vm895, %v876
      %911 = vst.msk [vmem:[#allocation3 + $0x78] sm:$0xff] %vm895, %v878
      %928 = vrot.lane.b32.xlu0 %v649, 12
      %v929 = vpop.permute.xlu0 %928
      %930 = vrot.lane.b32.xlu0 %v650, 12
      %v931 = vpop.permute.xlu0 %930
      %932 = vrot.lane.b32.xlu0 %v651, 12
      %v933 = vpop.permute.xlu0 %932
      %934 = vrot.lane.b32.xlu0 %v652, 12
      %v935 = vpop.permute.xlu0 %934
      %936 = vrot.lane.b32.xlu0 %v653, 12
      %v937 = vpop.permute.xlu0 %936
      %938 = vrot.lane.b32.xlu0 %v654, 12
      %v939 = vpop.permute.xlu0 %938
      %940 = vrot.lane.b32.xlu0 %v655, 12
      %v941 = vpop.permute.xlu0 %940
      %942 = vrot.lane.b32.xlu0 %v656, 12
      %v943 = vpop.permute.xlu0 %942
      %944 = vrot.lane.b32.xlu0 %v657, 12
      %v945 = vpop.permute.xlu0 %944
      %946 = vrot.lane.b32.xlu0 %v658, 12
      %v947 = vpop.permute.xlu0 %946
      %948 = vrot.lane.b32.xlu0 %v659, 12
      %v949 = vpop.permute.xlu0 %948
      %950 = vrot.lane.b32.xlu0 %v660, 12
      %v951 = vpop.permute.xlu0 %950
      %952 = vrot.lane.b32.xlu0 %v661, 12
      %v953 = vpop.permute.xlu0 %952
      %954 = vrot.lane.b32.xlu0 %v662, 12
      %v955 = vpop.permute.xlu0 %954
      %956 = vrot.lane.b32.xlu0 %v663, 12
      %v957 = vpop.permute.xlu0 %956
      %958 = vrot.lane.b32.xlu0 %v664, 12
      %v959 = vpop.permute.xlu0 %958
      %vm976 = vcmask 130144
      %977 = vst.msk [vmem:[#allocation3] sm:$0xff] %vm976, %v929
      %978 = vst.msk [vmem:[#allocation3 + $0x8] sm:$0xff] %vm976, %v931
      %979 = vst.msk [vmem:[#allocation3 + $0x10] sm:$0xff] %vm976, %v933
      %980 = vst.msk [vmem:[#allocation3 + $0x18] sm:$0xff] %vm976, %v935
      %981 = vst.msk [vmem:[#allocation3 + $0x20] sm:$0xff] %vm976, %v937
      %982 = vst.msk [vmem:[#allocation3 + $0x28] sm:$0xff] %vm976, %v939
      %983 = vst.msk [vmem:[#allocation3 + $0x30] sm:$0xff] %vm976, %v941
      %984 = vst.msk [vmem:[#allocation3 + $0x38] sm:$0xff] %vm976, %v943
      %985 = vst.msk [vmem:[#allocation3 + $0x40] sm:$0xff] %vm976, %v945
      %986 = vst.msk [vmem:[#allocation3 + $0x48] sm:$0xff] %vm976, %v947
      %987 = vst.msk [vmem:[#allocation3 + $0x50] sm:$0xff] %vm976, %v949
      %988 = vst.msk [vmem:[#allocation3 + $0x58] sm:$0xff] %vm976, %v951
      %989 = vst.msk [vmem:[#allocation3 + $0x60] sm:$0xff] %vm976, %v953
      %990 = vst.msk [vmem:[#allocation3 + $0x68] sm:$0xff] %vm976, %v955
      %991 = vst.msk [vmem:[#allocation3 + $0x70] sm:$0xff] %vm976, %v957
      %992 = vst.msk [vmem:[#allocation3 + $0x78] sm:$0xff] %vm976, %v959
      %995 = vrot.lane.b32.xlu0 %v579, 16
      %v996 = vpop.permute.xlu0 %995
      %997 = vrot.lane.b32.xlu0 %v580, 16
      %v998 = vpop.permute.xlu0 %997
      %999 = vrot.lane.b32.xlu0 %v581, 16
      %v1000 = vpop.permute.xlu0 %999
      %1001 = vrot.lane.b32.xlu0 %v582, 16
      %v1002 = vpop.permute.xlu0 %1001
      %1003 = vrot.lane.b32.xlu0 %v583, 16
      %v1004 = vpop.permute.xlu0 %1003
      %1005 = vrot.lane.b32.xlu0 %v584, 16
      %v1006 = vpop.permute.xlu0 %1005
      %1007 = vrot.lane.b32.xlu0 %v585, 16
      %v1008 = vpop.permute.xlu0 %1007
      %1009 = vrot.lane.b32.xlu0 %v586, 16
      %v1010 = vpop.permute.xlu0 %1009
      %1011 = vrot.lane.b32.xlu0 %v587, 16
      %v1012 = vpop.permute.xlu0 %1011
      %1013 = vrot.lane.b32.xlu0 %v588, 16
      %v1014 = vpop.permute.xlu0 %1013
      %1015 = vrot.lane.b32.xlu0 %v589, 16
      %v1016 = vpop.permute.xlu0 %1015
      %1017 = vrot.lane.b32.xlu0 %v590, 16
      %v1018 = vpop.permute.xlu0 %1017
      %1019 = vrot.lane.b32.xlu0 %v591, 16
      %v1020 = vpop.permute.xlu0 %1019
      %1021 = vrot.lane.b32.xlu0 %v592, 16
      %v1022 = vpop.permute.xlu0 %1021
      %1023 = vrot.lane.b32.xlu0 %v593, 16
      %v1024 = vpop.permute.xlu0 %1023
      %1025 = vrot.lane.b32.xlu0 %v594, 16
      %v1026 = vpop.permute.xlu0 %1025
      %vm1043 = vcmask 162944
      %1044 = vst.msk [vmem:[#allocation3] sm:$0xff] %vm1043, %v996
      %1045 = vst.msk [vmem:[#allocation3 + $0x8] sm:$0xff] %vm1043, %v998
      %1046 = vst.msk [vmem:[#allocation3 + $0x10] sm:$0xff] %vm1043, %v1000
      %1047 = vst.msk [vmem:[#allocation3 + $0x18] sm:$0xff] %vm1043, %v1002
      %1048 = vst.msk [vmem:[#allocation3 + $0x20] sm:$0xff] %vm1043, %v1004
      %1049 = vst.msk [vmem:[#allocation3 + $0x28] sm:$0xff] %vm1043, %v1006
      %1050 = vst.msk [vmem:[#allocation3 + $0x30] sm:$0xff] %vm1043, %v1008
      %1051 = vst.msk [vmem:[#allocation3 + $0x38] sm:$0xff] %vm1043, %v1010
      %1052 = vst.msk [vmem:[#allocation3 + $0x40] sm:$0xff] %vm1043, %v1012
      %1053 = vst.msk [vmem:[#allocation3 + $0x48] sm:$0xff] %vm1043, %v1014
      %1054 = vst.msk [vmem:[#allocation3 + $0x50] sm:$0xff] %vm1043, %v1016
      %1055 = vst.msk [vmem:[#allocation3 + $0x58] sm:$0xff] %vm1043, %v1018
      %1056 = vst.msk [vmem:[#allocation3 + $0x60] sm:$0xff] %vm1043, %v1020
      %1057 = vst.msk [vmem:[#allocation3 + $0x68] sm:$0xff] %vm1043, %v1022
      %1058 = vst.msk [vmem:[#allocation3 + $0x70] sm:$0xff] %vm1043, %v1024
      %1059 = vst.msk [vmem:[#allocation3 + $0x78] sm:$0xff] %vm1043, %v1026
      %1062 = vrot.lane.b32.xlu0 %v716, 20
      %v1063 = vpop.permute.xlu0 %1062
      %1064 = vrot.lane.b32.xlu0 %v717, 20
      %v1065 = vpop.permute.xlu0 %1064
      %1066 = vrot.lane.b32.xlu0 %v718, 20
      %v1067 = vpop.permute.xlu0 %1066
      %1068 = vrot.lane.b32.xlu0 %v719, 20
      %v1069 = vpop.permute.xlu0 %1068
      %1070 = vrot.lane.b32.xlu0 %v720, 20
      %v1071 = vpop.permute.xlu0 %1070
      %1072 = vrot.lane.b32.xlu0 %v721, 20
      %v1073 = vpop.permute.xlu0 %1072
      %1074 = vrot.lane.b32.xlu0 %v722, 20
      %v1075 = vpop.permute.xlu0 %1074
      %1076 = vrot.lane.b32.xlu0 %v723, 20
      %v1077 = vpop.permute.xlu0 %1076
      %1078 = vrot.lane.b32.xlu0 %v724, 20
      %v1079 = vpop.permute.xlu0 %1078
      %1080 = vrot.lane.b32.xlu0 %v725, 20
      %v1081 = vpop.permute.xlu0 %1080
      %1082 = vrot.lane.b32.xlu0 %v726, 20
      %v1083 = vpop.permute.xlu0 %1082
      %1084 = vrot.lane.b32.xlu0 %v727, 20
      %v1085 = vpop.permute.xlu0 %1084
      %1086 = vrot.lane.b32.xlu0 %v728, 20
      %v1087 = vpop.permute.xlu0 %1086
      %1088 = vrot.lane.b32.xlu0 %v729, 20
      %v1089 = vpop.permute.xlu0 %1088
      %1090 = vrot.lane.b32.xlu0 %v730, 20
      %v1091 = vpop.permute.xlu0 %1090
      %1092 = vrot.lane.b32.xlu0 %v731, 20
      %v1093 = vpop.permute.xlu0 %1092
      %vm1110 = vcmask 195744
      %1111 = vst.msk [vmem:[#allocation3] sm:$0xff] %vm1110, %v1063
      %1112 = vst.msk [vmem:[#allocation3 + $0x8] sm:$0xff] %vm1110, %v1065
      %1113 = vst.msk [vmem:[#allocation3 + $0x10] sm:$0xff] %vm1110, %v1067
      %1114 = vst.msk [vmem:[#allocation3 + $0x18] sm:$0xff] %vm1110, %v1069
      %1115 = vst.msk [vmem:[#allocation3 + $0x20] sm:$0xff] %vm1110, %v1071
      %1116 = vst.msk [vmem:[#allocation3 + $0x28] sm:$0xff] %vm1110, %v1073
      %1117 = vst.msk [vmem:[#allocation3 + $0x30] sm:$0xff] %vm1110, %v1075
      %1118 = vst.msk [vmem:[#allocation3 + $0x38] sm:$0xff] %vm1110, %v1077
      %1119 = vst.msk [vmem:[#allocation3 + $0x40] sm:$0xff] %vm1110, %v1079
      %1120 = vst.msk [vmem:[#allocation3 + $0x48] sm:$0xff] %vm1110, %v1081
      %1121 = vst.msk [vmem:[#allocation3 + $0x50] sm:$0xff] %vm1110, %v1083
      %1122 = vst.msk [vmem:[#allocation3 + $0x58] sm:$0xff] %vm1110, %v1085
      %1123 = vst.msk [vmem:[#allocation3 + $0x60] sm:$0xff] %vm1110, %v1087
      %1124 = vst.msk [vmem:[#allocation3 + $0x68] sm:$0xff] %vm1110, %v1089
      %1125 = vst.msk [vmem:[#allocation3 + $0x70] sm:$0xff] %vm1110, %v1091
      %1126 = vst.msk [vmem:[#allocation3 + $0x78] sm:$0xff] %vm1110, %v1093
      %1129 = vrot.lane.b32.xlu0 %v651, 24
      %v1130 = vpop.permute.xlu0 %1129
      %1131 = vrot.lane.b32.xlu0 %v652, 24
      %v1132 = vpop.permute.xlu0 %1131
      %1133 = vrot.lane.b32.xlu0 %v653, 24
      %v1134 = vpop.permute.xlu0 %1133
      %1135 = vrot.lane.b32.xlu0 %v654, 24
      %v1136 = vpop.permute.xlu0 %1135
      %1137 = vrot.lane.b32.xlu0 %v655, 24
      %v1138 = vpop.permute.xlu0 %1137
      %1139 = vrot.lane.b32.xlu0 %v656, 24
      %v1140 = vpop.permute.xlu0 %1139
      %1141 = vrot.lane.b32.xlu0 %v657, 24
      %v1142 = vpop.permute.xlu0 %1141
      %1143 = vrot.lane.b32.xlu0 %v658, 24
      %v1144 = vpop.permute.xlu0 %1143
      %1145 = vrot.lane.b32.xlu0 %v659, 24
      %v1146 = vpop.permute.xlu0 %1145
      %1147 = vrot.lane.b32.xlu0 %v660, 24
      %v1148 = vpop.permute.xlu0 %1147
      %1149 = vrot.lane.b32.xlu0 %v661, 24
      %v1150 = vpop.permute.xlu0 %1149
      %1151 = vrot.lane.b32.xlu0 %v662, 24
      %v1152 = vpop.permute.xlu0 %1151
      %1153 = vrot.lane.b32.xlu0 %v663, 24
      %v1154 = vpop.permute.xlu0 %1153
      %1155 = vrot.lane.b32.xlu0 %v664, 24
      %v1156 = vpop.permute.xlu0 %1155
      %1157 = vrot.lane.b32.xlu0 %v665, 24
      %v1158 = vpop.permute.xlu0 %1157
      %1159 = vrot.lane.b32.xlu0 %v666, 24
      %v1160 = vpop.permute.xlu0 %1159
      %vm1177 = vcmask 228544
      %1178 = vst.msk [vmem:[#allocation3] sm:$0xff] %vm1177, %v1130
      %1179 = vst.msk [vmem:[#allocation3 + $0x8] sm:$0xff] %vm1177, %v1132
      %1180 = vst.msk [vmem:[#allocation3 + $0x10] sm:$0xff] %vm1177, %v1134
      %1181 = vst.msk [vmem:[#allocation3 + $0x18] sm:$0xff] %vm1177, %v1136
      %1182 = vst.msk [vmem:[#allocation3 + $0x20] sm:$0xff] %vm1177, %v1138
      %1183 = vst.msk [vmem:[#allocation3 + $0x28] sm:$0xff] %vm1177, %v1140
      %1184 = vst.msk [vmem:[#allocation3 + $0x30] sm:$0xff] %vm1177, %v1142
      %1185 = vst.msk [vmem:[#allocation3 + $0x38] sm:$0xff] %vm1177, %v1144
      %1186 = vst.msk [vmem:[#allocation3 + $0x40] sm:$0xff] %vm1177, %v1146
      %1187 = vst.msk [vmem:[#allocation3 + $0x48] sm:$0xff] %vm1177, %v1148
      %1188 = vst.msk [vmem:[#allocation3 + $0x50] sm:$0xff] %vm1177, %v1150
      %1189 = vst.msk [vmem:[#allocation3 + $0x58] sm:$0xff] %vm1177, %v1152
      %1190 = vst.msk [vmem:[#allocation3 + $0x60] sm:$0xff] %vm1177, %v1154
      %1191 = vst.msk [vmem:[#allocation3 + $0x68] sm:$0xff] %vm1177, %v1156
      %1192 = vst.msk [vmem:[#allocation3 + $0x70] sm:$0xff] %vm1177, %v1158
      %1193 = vst.msk [vmem:[#allocation3 + $0x78] sm:$0xff] %vm1177, %v1160
      %1196 = vrot.lane.b32.xlu0 %v581, 28
      %v1197 = vpop.permute.xlu0 %1196
      %1198 = vrot.lane.b32.xlu0 %v582, 28
      %v1199 = vpop.permute.xlu0 %1198
      %1200 = vrot.lane.b32.xlu0 %v583, 28
      %v1201 = vpop.permute.xlu0 %1200
      %1202 = vrot.lane.b32.xlu0 %v584, 28
      %v1203 = vpop.permute.xlu0 %1202
      %1204 = vrot.lane.b32.xlu0 %v585, 28
      %v1205 = vpop.permute.xlu0 %1204
      %1206 = vrot.lane.b32.xlu0 %v586, 28
      %v1207 = vpop.permute.xlu0 %1206
      %1208 = vrot.lane.b32.xlu0 %v587, 28
      %v1209 = vpop.permute.xlu0 %1208
      %1210 = vrot.lane.b32.xlu0 %v588, 28
      %v1211 = vpop.permute.xlu0 %1210
      %1212 = vrot.lane.b32.xlu0 %v589, 28
      %v1213 = vpop.permute.xlu0 %1212
      %1214 = vrot.lane.b32.xlu0 %v590, 28
      %v1215 = vpop.permute.xlu0 %1214
      %1216 = vrot.lane.b32.xlu0 %v591, 28
      %v1217 = vpop.permute.xlu0 %1216
      %1218 = vrot.lane.b32.xlu0 %v592, 28
      %v1219 = vpop.permute.xlu0 %1218
      %1220 = vrot.lane.b32.xlu0 %v593, 28
      %v1221 = vpop.permute.xlu0 %1220
      %1222 = vrot.lane.b32.xlu0 %v594, 28
      %v1223 = vpop.permute.xlu0 %1222
      %1224 = vrot.lane.b32.xlu0 %v595, 28
      %v1225 = vpop.permute.xlu0 %1224
      %1226 = vrot.lane.b32.xlu0 %v596, 28
      %v1227 = vpop.permute.xlu0 %1226
      %vm1244 = vcmask 261344
      %1245 = vst.msk [vmem:[#allocation3] sm:$0xff] %vm1244, %v1197
      %1246 = vst.msk [vmem:[#allocation3 + $0x8] sm:$0xff] %vm1244, %v1199
      %1247 = vst.msk [vmem:[#allocation3 + $0x10] sm:$0xff] %vm1244, %v1201
      %1248 = vst.msk [vmem:[#allocation3 + $0x18] sm:$0xff] %vm1244, %v1203
      %1249 = vst.msk [vmem:[#allocation3 + $0x20] sm:$0xff] %vm1244, %v1205
      %1250 = vst.msk [vmem:[#allocation3 + $0x28] sm:$0xff] %vm1244, %v1207
      %1251 = vst.msk [vmem:[#allocation3 + $0x30] sm:$0xff] %vm1244, %v1209
      %1252 = vst.msk [vmem:[#allocation3 + $0x38] sm:$0xff] %vm1244, %v1211
      %1253 = vst.msk [vmem:[#allocation3 + $0x40] sm:$0xff] %vm1244, %v1213
      %1254 = vst.msk [vmem:[#allocation3 + $0x48] sm:$0xff] %vm1244, %v1215
      %1255 = vst.msk [vmem:[#allocation3 + $0x50] sm:$0xff] %vm1244, %v1217
      %1256 = vst.msk [vmem:[#allocation3 + $0x58] sm:$0xff] %vm1244, %v1219
      %1257 = vst.msk [vmem:[#allocation3 + $0x60] sm:$0xff] %vm1244, %v1221
      %1258 = vst.msk [vmem:[#allocation3 + $0x68] sm:$0xff] %vm1244, %v1223
      %1259 = vst.msk [vmem:[#allocation3 + $0x70] sm:$0xff] %vm1244, %v1225
      %1260 = vst.msk [vmem:[#allocation3 + $0x78] sm:$0xff] %vm1244, %v1227
      %1263 = vrot.lane.b32.xlu0 %v718, 32
      %v1264 = vpop.permute.xlu0 %1263
      %1265 = vrot.lane.b32.xlu0 %v719, 32
      %v1266 = vpop.permute.xlu0 %1265
      %1267 = vrot.lane.b32.xlu0 %v720, 32
      %v1268 = vpop.permute.xlu0 %1267
      %1269 = vrot.lane.b32.xlu0 %v721, 32
      %v1270 = vpop.permute.xlu0 %1269
      %1271 = vrot.lane.b32.xlu0 %v722, 32
      %v1272 = vpop.permute.xlu0 %1271
      %1273 = vrot.lane.b32.xlu0 %v723, 32
      %v1274 = vpop.permute.xlu0 %1273
      %1275 = vrot.lane.b32.xlu0 %v724, 32
      %v1276 = vpop.permute.xlu0 %1275
      %1277 = vrot.lane.b32.xlu0 %v725, 32
      %v1278 = vpop.permute.xlu0 %1277
      %1279 = vrot.lane.b32.xlu0 %v726, 32
      %v1280 = vpop.permute.xlu0 %1279
      %1281 = vrot.lane.b32.xlu0 %v727, 32
      %v1282 = vpop.permute.xlu0 %1281
      %1283 = vrot.lane.b32.xlu0 %v728, 32
      %v1284 = vpop.permute.xlu0 %1283
      %1285 = vrot.lane.b32.xlu0 %v729, 32
      %v1286 = vpop.permute.xlu0 %1285
      %1287 = vrot.lane.b32.xlu0 %v730, 32
      %v1288 = vpop.permute.xlu0 %1287
      %1289 = vrot.lane.b32.xlu0 %v731, 32
      %v1290 = vpop.permute.xlu0 %1289
      %1291 = vrot.lane.b32.xlu0 %v732, 32
      %v1292 = vpop.permute.xlu0 %1291
      %1293 = vrot.lane.b32.xlu0 %v733, 32
      %v1294 = vpop.permute.xlu0 %1293
      %vm1311 = vcmask 294144
      %1312 = vst.msk [vmem:[#allocation3] sm:$0xff] %vm1311, %v1264
      %1313 = vst.msk [vmem:[#allocation3 + $0x8] sm:$0xff] %vm1311, %v1266
      %1314 = vst.msk [vmem:[#allocation3 + $0x10] sm:$0xff] %vm1311, %v1268
      %1315 = vst.msk [vmem:[#allocation3 + $0x18] sm:$0xff] %vm1311, %v1270
      %1316 = vst.msk [vmem:[#allocation3 + $0x20] sm:$0xff] %vm1311, %v1272
      %1317 = vst.msk [vmem:[#allocation3 + $0x28] sm:$0xff] %vm1311, %v1274
      %1318 = vst.msk [vmem:[#allocation3 + $0x30] sm:$0xff] %vm1311, %v1276
      %1319 = vst.msk [vmem:[#allocation3 + $0x38] sm:$0xff] %vm1311, %v1278
      %1320 = vst.msk [vmem:[#allocation3 + $0x40] sm:$0xff] %vm1311, %v1280
      %1321 = vst.msk [vmem:[#allocation3 + $0x48] sm:$0xff] %vm1311, %v1282
      %1322 = vst.msk [vmem:[#allocation3 + $0x50] sm:$0xff] %vm1311, %v1284
      %1323 = vst.msk [vmem:[#allocation3 + $0x58] sm:$0xff] %vm1311, %v1286
      %1324 = vst.msk [vmem:[#allocation3 + $0x60] sm:$0xff] %vm1311, %v1288
      %1325 = vst.msk [vmem:[#allocation3 + $0x68] sm:$0xff] %vm1311, %v1290
      %1326 = vst.msk [vmem:[#allocation3 + $0x70] sm:$0xff] %vm1311, %v1292
      %1327 = vst.msk [vmem:[#allocation3 + $0x78] sm:$0xff] %vm1311, %v1294
      %v1328 = vld [vmem:[#allocation3] sm:$0xff]
      %v1329 = vld [vmem:[#allocation3 + $0x8] sm:$0xff]
      %v1330 = vld [vmem:[#allocation3 + $0x10] sm:$0xff]
      %v1331 = vld [vmem:[#allocation3 + $0x18] sm:$0xff]
      %v1332 = vld [vmem:[#allocation3 + $0x20] sm:$0xff]
      %v1333 = vld [vmem:[#allocation3 + $0x28] sm:$0xff]
      %v1334 = vld [vmem:[#allocation3 + $0x30] sm:$0xff]
      %v1335 = vld [vmem:[#allocation3 + $0x38] sm:$0xff]
      %v1336 = vld [vmem:[#allocation3 + $0x40] sm:$0xff]
      %v1337 = vld [vmem:[#allocation3 + $0x48] sm:$0xff]
      %v1338 = vld [vmem:[#allocation3 + $0x50] sm:$0xff]
      %v1339 = vld [vmem:[#allocation3 + $0x58] sm:$0xff]
      %v1340 = vld [vmem:[#allocation3 + $0x60] sm:$0xff]
      %v1341 = vld [vmem:[#allocation3 + $0x68] sm:$0xff]
      %v1342 = vld [vmem:[#allocation3 + $0x70] sm:$0xff]
      %v1343 = vld [vmem:[#allocation3 + $0x78] sm:$0xff]
      %v1344 = vpack.c.bf16 %v1329, %v1328
      %v1345 = vpack.c.bf16 %v1331, %v1330
      %v1346 = vpack.c.bf16 %v1333, %v1332
      %v1347 = vpack.c.bf16 %v1335, %v1334
      %v1348 = vpack.c.bf16 %v1337, %v1336
      %v1349 = vpack.c.bf16 %v1339, %v1338
      %v1350 = vpack.c.bf16 %v1341, %v1340
      %v1351 = vpack.c.bf16 %v1343, %v1342
      %v1352 = vld [vmem:[%s2] sm:$0xf]
      %v1353 = vld [vmem:[%s2 + $0x4] sm:$0xf]
      %v1354 = vld [vmem:[%s2 + $0x8] sm:$0xf]
      %v1355 = vld [vmem:[%s2 + $0xc] sm:$0xf]
      %v1356 = vld [vmem:[%s2 + $0x10] sm:$0x3]
      %v1357 = vld [vmem:[%s3] sm:$0x1]
      %v1359 = vlaneseq
      %v1360 = vshrl.u32 %v1359, 7
      %v1361 = vsub.s32 0, %v1360
      %v1362 = vrot.slane %v1357, %v1361
      %v1369 = vunpack.c.l.b16 %v1352
      %v1370 = vunpack.c.l.b16 %v1353
      %v1371 = vunpack.c.l.b16 %v1354
      %v1372 = vunpack.c.l.b16 %v1355
      %v1373 = vunpack.c.l.b16 %v1356
      %v1374 = vpack.c.b16 %v1370, %v1369
      %v1375 = vpack.c.b16 %v1372, %v1371
      %v1376 = vpack.c.b16 %v1373, %v1373
      %vm1379 = vcmask 293888
      %v1381 = vsel %vm1379, %v1344, 0
      %v1384 = vsel %vm1379, %v1345, 0
      %v1387 = vsel %vm1379, %v1346, 0
      %v1390 = vsel %vm1379, %v1347, 0
      %v1393 = vsel %vm1379, %v1348, 0
      %v1396 = vsel %vm1379, %v1349, 0
      %v1399 = vsel %vm1379, %v1350, 0
      %v1402 = vsel %vm1379, %v1351, 0
      %vm1404 = vcmask 1041408
      %v1406 = vsel %vm1404, %v1376, 0
      %1408 = vmatprep.subr.bf16.mxu0 0
      %1409 = vmatpush1.bf16.msra.mxu0 %v1374
      %1410 = vmatprep.subr.bf16.mxu0 0
      %1411 = vmatpush1.bf16.msra.mxu0 %v1375
      %1412 = vmatprep.subr.bf16.mxu0 0
      %1413 = vmatpush1.bf16.msra.mxu0 %v1406
      %1414 = vmatprep.subr.bf16.mxu0 0
      %1415 = vmatpush1.bf16.msra.mxu0 0
      %1416 = vmatprep.subr.bf16.mxu0 0
      %1417 = vmatpush1.bf16.msra.mxu0 0
      %1418 = vmatprep.subr.bf16.mxu0 0
      %1419 = vmatpush1.bf16.msra.mxu0 0
      %1420 = vmatprep.subr.bf16.mxu0 0
      %1421 = vmatpush1.bf16.msra.mxu0 0
      %1422 = vmatprep.subr.bf16.mxu0 0
      %1423 = vmatpush1.bf16.msra.mxu0 0
      %1424 = vmatprep.subr.bf16.mxu0 0
      %1425 = vmatpush1.bf16.msra.mxu0 0
      %1426 = vmatprep.subr.bf16.mxu0 0
      %1427 = vmatpush1.bf16.msra.mxu0 0
      %1428 = vmatprep.subr.bf16.mxu0 0
      %1429 = vmatpush1.bf16.msra.mxu0 0
      %1430 = vmatprep.subr.bf16.mxu0 0
      %1431 = vmatpush1.bf16.msra.mxu0 0
      %1432 = vmatprep.subr.bf16.mxu0 0
      %1433 = vmatpush1.bf16.msra.mxu0 0
      %1434 = vmatprep.subr.bf16.mxu0 0
      %1435 = vmatpush1.bf16.msra.mxu0 0
      %1436 = vmatprep.subr.bf16.mxu0 0
      %1437 = vmatpush1.bf16.msra.mxu0 0
      %1438 = vmatprep.subr.bf16.mxu0 0
      %1439 = vmatpush1.bf16.msra.mxu0 0
      %1440 = vmatprep.mubr.bf16.mxu0 0
      %1441 = vmatmul.mubr.bf16.gmra.mrb[0].mxu0 %v1381
      %v1442 = vpop.f32.mrb[0].mxu0
      %v1443 = vadd.f32 %v1362, %v1442
      %v1444 = vpop.f32.mrb[0].mxu0
      %v1445 = vpop.f32.mrb[0].mxu0
      %v1446 = vadd.f32 %v1362, %v1445
      %v1447 = vpop.f32.mrb[0].mxu0
      %1448 = vmatprep.mubr.bf16.mxu0 0
      %1449 = vmatmul.mubr.bf16.gmra.mrb[0].mxu0 %v1384
      %v1450 = vpop.f32.mrb[0].mxu0
      %v1451 = vadd.f32 %v1362, %v1450
      %v1452 = vpop.f32.mrb[0].mxu0
      %v1453 = vpop.f32.mrb[0].mxu0
      %v1454 = vadd.f32 %v1362, %v1453
      %v1455 = vpop.f32.mrb[0].mxu0
      %1456 = vmatprep.mubr.bf16.mxu0 0
      %1457 = vmatmul.mubr.bf16.gmra.mrb[0].mxu0 %v1387
      %v1458 = vpop.f32.mrb[0].mxu0
      %v1459 = vadd.f32 %v1362, %v1458
      %v1460 = vpop.f32.mrb[0].mxu0
      %v1461 = vpop.f32.mrb[0].mxu0
      %v1462 = vadd.f32 %v1362, %v1461
      %v1463 = vpop.f32.mrb[0].mxu0
      %1464 = vmatprep.mubr.bf16.mxu0 0
      %1465 = vmatmul.mubr.bf16.gmra.mrb[0].mxu0 %v1390
      %v1466 = vpop.f32.mrb[0].mxu0
      %v1467 = vadd.f32 %v1362, %v1466
      %v1468 = vpop.f32.mrb[0].mxu0
      %v1469 = vpop.f32.mrb[0].mxu0
      %v1470 = vadd.f32 %v1362, %v1469
      %v1471 = vpop.f32.mrb[0].mxu0
      %1472 = vmatprep.mubr.bf16.mxu0 0
      %1473 = vmatmul.mubr.bf16.gmra.mrb[0].mxu0 %v1393
      %v1474 = vpop.f32.mrb[0].mxu0
      %v1475 = vadd.f32 %v1362, %v1474
      %v1476 = vpop.f32.mrb[0].mxu0
      %v1477 = vpop.f32.mrb[0].mxu0
      %v1478 = vadd.f32 %v1362, %v1477
      %v1479 = vpop.f32.mrb[0].mxu0
      %1480 = vmatprep.mubr.bf16.mxu0 0
      %1481 = vmatmul.mubr.bf16.gmra.mrb[0].mxu0 %v1396
      %v1482 = vpop.f32.mrb[0].mxu0
      %v1483 = vadd.f32 %v1362, %v1482
      %v1484 = vpop.f32.mrb[0].mxu0
      %v1485 = vpop.f32.mrb[0].mxu0
      %v1486 = vadd.f32 %v1362, %v1485
      %v1487 = vpop.f32.mrb[0].mxu0
      %1488 = vmatprep.mubr.bf16.mxu0 0
      %1489 = vmatmul.mubr.bf16.gmra.mrb[0].mxu0 %v1399
      %v1490 = vpop.f32.mrb[0].mxu0
      %v1491 = vadd.f32 %v1362, %v1490
      %v1492 = vpop.f32.mrb[0].mxu0
      %v1493 = vpop.f32.mrb[0].mxu0
      %v1494 = vadd.f32 %v1362, %v1493
      %v1495 = vpop.f32.mrb[0].mxu0
      %1496 = vmatprep.mubr.bf16.mxu0 0
      %1497 = vmatmul.mubr.bf16.gmra.mrb[0].mxu0 %v1402
      %v1498 = vpop.f32.mrb[0].mxu0
      %v1499 = vadd.f32 %v1362, %v1498
      %v1500 = vpop.f32.mrb[0].mxu0
      %v1501 = vpop.f32.mrb[0].mxu0
      %v1502 = vadd.f32 %v1362, %v1501
      %v1503 = vpop.f32.mrb[0].mxu0
      %1504 = vdwg.mxu0
      %1505 = vst.msk [vmem:[%s445] sm:$0xff] %vm497, %v1443
      %1506 = vst.msk [vmem:[%s445 + $0x8] sm:$0xff] %vm497, %v1446
      %1507 = vst.msk [vmem:[%s445 + $0x10] sm:$0xff] %vm497, %v1451
      %1508 = vst.msk [vmem:[%s445 + $0x18] sm:$0xff] %vm497, %v1454
      %1509 = vst.msk [vmem:[%s445 + $0x20] sm:$0xff] %vm497, %v1459
      %1510 = vst.msk [vmem:[%s445 + $0x28] sm:$0xff] %vm497, %v1462
      %1511 = vst.msk [vmem:[%s445 + $0x30] sm:$0xff] %vm497, %v1467
      %1512 = vst.msk [vmem:[%s445 + $0x38] sm:$0xff] %vm497, %v1470
      %1513 = vst.msk [vmem:[%s445 + $0x40] sm:$0xff] %vm497, %v1475
      %1514 = vst.msk [vmem:[%s445 + $0x48] sm:$0xff] %vm497, %v1478
      %1515 = vst.msk [vmem:[%s445 + $0x50] sm:$0xff] %vm497, %v1483
      %1516 = vst.msk [vmem:[%s445 + $0x58] sm:$0xff] %vm497, %v1486
      %1517 = vst.msk [vmem:[%s445 + $0x60] sm:$0xff] %vm497, %v1491
      %1518 = vst.msk [vmem:[%s445 + $0x68] sm:$0xff] %vm497, %v1494
      %1519 = vst.msk [vmem:[%s445 + $0x70] sm:$0xff] %vm497, %v1499
      %1520 = vst.msk [vmem:[%s445 + $0x78] sm:$0xff] %vm497, %v1502
      %s1521 = smul.u32 8, %s23
      %p1522 = scmp.lt.s32.totalorder %s22, 1
      %s1523 = scalar_select %p1522, %s22, 1
      %p1524 = scmp.lt.s32.totalorder %s1521, 15
      %s1525 = scalar_select %p1524, %s1521, 15
      %s1526 = smul.addr %s1525, 2
      %s1527 = smul.addr %s1523, 32
      %s1528 = sadd.s32 %s1526, %s1527
      %s1529 = smul.addr %s1528, 8
      %s1530 = scalar_lea.vmem %s7, %s1529
      // Predicated region
      $region49: #{residual_dense_net.7} parent=47 // pred_check
        %p1531 = pneg %p234
      $region50: #{residual_dense_net.7} parent=47 // pred_check_branch
        %1533 = sbr.rel (%p1531) target = $region52
      $region51: #{residual_dense_net.7} parent=47 // pred_region
        %s1534 = smul.u32 8, %s23
      $region52: #{residual_dense_net.7} parent=47 // pred_fallthru
        _
    $region48: #{residual_dense_net.7} parent=5 // pred_fallthru
      _
    %p1535 = scmp.le.s32.totalorder 2, %s13
    // Predicated region
    $region53: #{residual_dense_net.7} parent=5 // pred_check
      %p1536 = pneg %p1535
    $region54: #{residual_dense_net.7} parent=5 // pred_check_branch
      %1538 = sbr.rel (%p1536) target = $region56
    $region55: #{residual_dense_net.7} parent=5 // pred_region
      %s1539 = ssub.s32 %s13, 2
      // Predicated region
      $region57: #{residual_dense_net.7} parent=55 // pred_check
        %p1540 = pneg %p240
      $region58: #{residual_dense_net.7} parent=55 // pred_check_branch
        %1542 = sbr.rel (%p1540) target = $region60
      $region59: #{residual_dense_net.7} parent=55 // pred_region
        %s1543 = smul.u32 8, %s25
        %p1544 = scmp.lt.s32.totalorder %s24, 1
        %s1545 = scalar_select %p1544, %s24, 1
        %p1546 = scmp.lt.s32.totalorder %s1543, 15
        %s1547 = scalar_select %p1546, %s1543, 15
        %s1548 = smul.addr %s1547, 2
        %s1549 = smul.addr %s1545, 32
        %s1550 = sadd.s32 %s1548, %s1549
        %s1551 = smul.addr %s1550, 8
        %s1552 = scalar_lea.vmem %s7, %s1551
      $region60: #{residual_dense_net.7} parent=55 // pred_fallthru
        _
    $region56: #{residual_dense_net.7} parent=5 // pred_fallthru
      _
  $region6: #{residual_dense_net.7} parent=0 // loop_footer
    %s17 = sadd.s32 1, %s13
  $region7: #{residual_dense_net.7} parent=0 // loop_footer_branch
    %12 = sbr.rel target = $region3
  $region8: #{residual_dense_net.7} parent=0 // loop_exit
    _

// kernel: residual_dense_net.9
$region0: #{residual_dense_net.9}
  #allocation0 [shape = 'u32[]', space=smem, size = 0x4, offset = 0x4, fixed_abs, tag = 'smem constant byte address 0x4 - core index']
  #allocation1 [shape = 'u32[144,128]{1,0:T(1,128)}', space=vmem, size = 0x12000, scoped, tag = 'internal scratch']
  #allocation2 [shape = 'f32[10,16,8]{2,1,0:T(8,128)}', space=vmem, size = 0x14000, scoped, tag = 'scratch operand']
  #allocation3 [shape = 'f32[128,72]{1,0:T(8,128)}', space=vmem, size = 0x10000, scoped, tag = 'scratch operand']
  %s0 = inlined_call_operand.vmem [shape: f32[1,8], index: 0, kind: input, shape index: {}]
  %s1 = inlined_call_operand.vmem [shape: f32[1,8], index: 1, kind: input, shape index: {}]
  %s2 = inlined_call_operand.vmem [shape: bf16[72,4], index: 2, kind: input, shape index: {}]
  %s3 = inlined_call_operand.vmem [shape: f32[1,4], index: 3, kind: input, shape index: {}]
  %s4 = inlined_call_operand.vmem [shape: f32[2,16,16,8], index: 4, kind: input, shape index: {}, may-alias: {4,5,6}]
  %s5 = inlined_call_operand.vmem [shape: f32[2,16,16,8], index: 5, kind: input, shape index: {}, may-alias: {4,5,6}]
  %s6 = inlined_call_operand.vmem [shape: f32[2,16,16,8], index: 6, kind: input, shape index: {}, may-alias: {4,5,6}]
  %s7 = inlined_call_operand.vmem [shape: f32[2,16,16,4], index: 7, kind: output, shape index: {}]
  %s8 = sld [smem:[#allocation0]]
  $region61: #{residual_dense_net.9} parent=0
    _
  %s10 = ssub.s32 1, %s8
  %s11 = scalar_select 0, %s10, %s8
  loop: start=0, step=1, limit=6
  $region2: #{residual_dense_net.9} parent=0 // loop_pre_header
    _
  $region3: #{residual_dense_net.9} parent=0 // loop_header
    %s13 = sphi 0, %s17
    %p14 = scmp.ge.s32.totalorder %s13, 6
    %s20 = sphi 0, %s32
    %s21 = sphi 0, %s28
    %s22 = sphi 0, %s20
    %s23 = sphi 0, %s21
    %s24 = sphi 0, %s22
    %s25 = sphi 0, %s23
    %s33 = sphi 0, %s33
    %s35 = sphi 0, %s33
    %s36 = sphi 0, %s35
    %s50 = sphi 0, %s36
    %s54 = sphi 0, %s54
    %s56 = sphi 0, %s54
    %s57 = sphi 0, %s56
    %s71 = sphi 0, %s57
    %s75 = sphi 0, %s75
    %s77 = sphi 0, %s75
    %s78 = sphi 0, %s77
    %s92 = sphi 0, %s78
    %s96 = sphi 0, %s96
    %s98 = sphi 0, %s96
    %s99 = sphi 0, %s98
    %s113 = sphi 0, %s99
    %s121 = sphi 0, %s123
    %s124 = sphi 0, %s121
    %s125 = sphi 0, %s124
    %s141 = sphi 0, %s125
    %s157 = sphi 0, %s159
    %s160 = sphi 0, %s157
    %s161 = sphi 0, %s160
    %s177 = sphi 0, %s161
    %s193 = sphi 0, %s195
    %s196 = sphi 0, %s193
    %s197 = sphi 0, %s196
    %s213 = sphi 0, %s197
    %s221 = sphi 0, %s223
    %s224 = sphi 0, %s221
    %s225 = sphi 0, %s224
    %s241 = sphi 0, %s225
  $region4: #{residual_dense_net.9} parent=0 // loop_header_branch
    %16 = sbr.rel (%p14) target = $region8
  $region5: #{residual_dense_net.9} parent=0 // loop_body
    %s18 = ssub.s32 %s13, 1
    %s19 = ssub.s32 %s13, 2
    %s26 = sadd.s32 1, %s21
    %p27 = scmp.ge.s32.totalorder %s26, 2
    %s28 = scalar_select %p27, 0, %s26
    %s29 = sadd.s32 1, %s20
    %s30 = scalar_select %p27, %s29, %s20
    %p31 = scmp.ge.s32.totalorder %s30, 2
    %s32 = scalar_select %p31, 0, %s30
    %s34 = sadd.s32 %s33, 1
    %p37 = scmp.eq.s32.totalorder %s13, 3
    %p38 = scmp.ne.s32.totalorder %s33, %s35
    %p39 = scmp.eq.s32.totalorder %s13, 0
    %p40 = por %p38, %p39
    %p41 = scmp.ne.s32.totalorder %s33, %s35
    %p42 = scmp.eq.s32.totalorder %s18, 3
    %p43 = por %p41, %p42
    %p44 = scmp.ne.s32.totalorder %s35, %s36
    %p45 = scmp.eq.s32.totalorder %s18, 0
    %p46 = por %p44, %p45
    %p47 = scmp.ne.s32.totalorder %s35, %s36
    %p48 = scmp.eq.s32.totalorder %s19, 3
    %p49 = por %p47, %p48
    %p51 = scmp.ne.s32.totalorder %s36, %s50
    %p52 = scmp.eq.s32.totalorder %s19, 0
    %p53 = por %p51, %p52
    %s55 = sadd.s32 %s54, 1
    %p58 = scmp.eq.s32.totalorder %s13, 3
    %p59 = scmp.ne.s32.totalorder %s54, %s56
    %p60 = scmp.eq.s32.totalorder %s13, 0
    %p61 = por %p59, %p60
    %p62 = scmp.ne.s32.totalorder %s54, %s56
    %p63 = scmp.eq.s32.totalorder %s18, 3
    %p64 = por %p62, %p63
    %p65 = scmp.ne.s32.totalorder %s56, %s57
    %p66 = scmp.eq.s32.totalorder %s18, 0
    %p67 = por %p65, %p66
    %p68 = scmp.ne.s32.totalorder %s56, %s57
    %p69 = scmp.eq.s32.totalorder %s19, 3
    %p70 = por %p68, %p69
    %p72 = scmp.ne.s32.totalorder %s57, %s71
    %p73 = scmp.eq.s32.totalorder %s19, 0
    %p74 = por %p72, %p73
    %s76 = sadd.s32 %s75, 1
    %p79 = scmp.eq.s32.totalorder %s13, 3
    %p80 = scmp.ne.s32.totalorder %s75, %s77
    %p81 = scmp.eq.s32.totalorder %s13, 0
    %p82 = por %p80, %p81
    %p83 = scmp.ne.s32.totalorder %s75, %s77
    %p84 = scmp.eq.s32.totalorder %s18, 3
    %p85 = por %p83, %p84
    %p86 = scmp.ne.s32.totalorder %s77, %s78
    %p87 = scmp.eq.s32.totalorder %s18, 0
    %p88 = por %p86, %p87
    %p89 = scmp.ne.s32.totalorder %s77, %s78
    %p90 = scmp.eq.s32.totalorder %s19, 3
    %p91 = por %p89, %p90
    %p93 = scmp.ne.s32.totalorder %s78, %s92
    %p94 = scmp.eq.s32.totalorder %s19, 0
    %p95 = por %p93, %p94
    %s97 = sadd.s32 %s96, 1
    %p100 = scmp.eq.s32.totalorder %s13, 3
    %p101 = scmp.ne.s32.totalorder %s96, %s98
    %p102 = scmp.eq.s32.totalorder %s13, 0
    %p103 = por %p101, %p102
    %p104 = scmp.ne.s32.totalorder %s96, %s98
    %p105 = scmp.eq.s32.totalorder %s18, 3
    %p106 = por %p104, %p105
    %p107 = scmp.ne.s32.totalorder %s98, %s99
    %p108 = scmp.eq.s32.totalorder %s18, 0
    %p109 = por %p107, %p108
    %p110 = scmp.ne.s32.totalorder %s98, %s99
    %p111 = scmp.eq.s32.totalorder %s19, 3
    %p112 = por %p110, %p111
    %p114 = scmp.ne.s32.totalorder %s99, %s113
    %p115 = scmp.eq.s32.totalorder %s19, 0
    %p116 = por %p114, %p115
    %s117 = ssub.s32 %s20, %s32
    %s118 = ssub.s32 %s21, %s28
    %s119 = sor.u32 %s117, %s118
    %p120 = scmp.eq.s32.totalorder %s119, 0
    %s122 = sadd.s32 %s121, 1
    %s123 = scalar_select %p120, %s121, %s122
    %p126 = pneg %p120
    %p127 = scmp.eq.s32.totalorder %s13, 3
    %p128 = por %p126, %p127
    %p129 = scmp.ne.s32.totalorder %s121, %s124
    %p130 = scmp.eq.s32.totalorder %s13, 0
    %p131 = por %p129, %p130
    %p132 = scmp.ne.s32.totalorder %s121, %s124
    %p133 = scmp.eq.s32.totalorder %s18, 3
    %p134 = por %p132, %p133
    %p135 = scmp.ne.s32.totalorder %s124, %s125
    %p136 = scmp.eq.s32.totalorder %s18, 0
    %p137 = por %p135, %p136
    %p138 = scmp.ne.s32.totalorder %s124, %s125
    %p139 = scmp.eq.s32.totalorder %s19, 3
    %p140 = por %p138, %p139
    %p142 = scmp.ne.s32.totalorder %s125, %s141
    %p143 = scmp.eq.s32.totalorder %s19, 0
    %p144 = por %p142, %p143
    %s145 = smul.u32 %s21, 8
    %s146 = ssub.s32 %s145, 1
    %p147 = scmp.gt.s32.totalorder %s146, 0
    %s148 = scalar_select %p147, %s146, 0
    %s149 = smul.u32 %s28, 8
    %s150 = ssub.s32 %s149, 1
    %p151 = scmp.gt.s32.totalorder %s150, 0
    %s152 = scalar_select %p151, %s150, 0
    %s153 = ssub.s32 %s20, %s32
    %s154 = ssub.s32 %s148, %s152
    %s155 = sor.u32 %s153, %s154
    %p156 = scmp.eq.s32.totalorder %s155, 0
    %s158 = sadd.s32 %s157, 1
    %s159 = scalar_select %p156, %s157, %s158
    %p162 = pneg %p156
    %p163 = scmp.eq.s32.totalorder %s13, 3
    %p164 = por %p162, %p163
    %p165 = scmp.ne.s32.totalorder %s157, %s160
    %p166 = scmp.eq.s32.totalorder %s13, 0
    %p167 = por %p165, %p166
    %p168 = scmp.ne.s32.totalorder %s157, %s160
    %p169 = scmp.eq.s32.totalorder %s18, 3
    %p170 = por %p168, %p169
    %p171 = scmp.ne.s32.totalorder %s160, %s161
    %p172 = scmp.eq.s32.totalorder %s18, 0
    %p173 = por %p171, %p172
    %p174 = scmp.ne.s32.totalorder %s160, %s161
    %p175 = scmp.eq.s32.totalorder %s19, 3
    %p176 = por %p174, %p175
    %p178 = scmp.ne.s32.totalorder %s161, %s177
    %p179 = scmp.eq.s32.totalorder %s19, 0
    %p180 = por %p178, %p179
    %s181 = smul.u32 %s21, 8
    %s182 = sadd.s32 %s181, 8
    %p183 = scmp.lt.s32.totalorder %s182, 15
    %s184 = scalar_select %p183, %s182, 15
    %s185 = smul.u32 %s28, 8
    %s186 = sadd.s32 %s185, 8
    %p187 = scmp.lt.s32.totalorder %s186, 15
    %s188 = scalar_select %p187, %s186, 15
    %s189 = ssub.s32 %s20, %s32
    %s190 = ssub.s32 %s184, %s188
    %s191 = sor.u32 %s189, %s190
    %p192 = scmp.eq.s32.totalorder %s191, 0
    %s194 = sadd.s32 %s193, 1
    %s195 = scalar_select %p192, %s193, %s194
    %p198 = pneg %p192
    %p199 = scmp.eq.s32.totalorder %s13, 3
    %p200 = por %p198, %p199
    %p201 = scmp.ne.s32.totalorder %s193, %s196
    %p202 = scmp.eq.s32.totalorder %s13, 0
    %p203 = por %p201, %p202
    %p204 = scmp.ne.s32.totalorder %s193, %s196
    %p205 = scmp.eq.s32.totalorder %s18, 3
    %p206 = por %p204, %p205
    %p207 = scmp.ne.s32.totalorder %s196, %s197
    %p208 = scmp.eq.s32.totalorder %s18, 0
    %p209 = por %p207, %p208
    %p210 = scmp.ne.s32.totalorder %s196, %s197
    %p211 = scmp.eq.s32.totalorder %s19, 3
    %p212 = por %p210, %p211
    %p214 = scmp.ne.s32.totalorder %s197, %s213
    %p215 = scmp.eq.s32.totalorder %s19, 0
    %p216 = por %p214, %p215
    %s217 = ssub.s32 %s20, %s32
    %s218 = ssub.s32 %s21, %s28
    %s219 = sor.u32 %s217, %s218
    %p220 = scmp.eq.s32.totalorder %s219, 0
    %s222 = sadd.s32 %s221, 1
    %s223 = scalar_select %p220, %s221, %s222
    %p226 = pneg %p220
    %p227 = scmp.eq.s32.totalorder %s13, 3
    %p228 = por %p226, %p227
    %p229 = scmp.ne.s32.totalorder %s221, %s224
    %p230 = scmp.eq.s32.totalorder %s13, 0
    %p231 = por %p229, %p230
    %p232 = scmp.ne.s32.totalorder %s221, %s224
    %p233 = scmp.eq.s32.totalorder %s18, 3
    %p234 = por %p232, %p233
    %p235 = scmp.ne.s32.totalorder %s224, %s225
    %p236 = scmp.eq.s32.totalorder %s18, 0
    %p237 = por %p235, %p236
    %p238 = scmp.ne.s32.totalorder %s224, %s225
    %p239 = scmp.eq.s32.totalorder %s19, 3
    %p240 = por %p238, %p239
    %p242 = scmp.ne.s32.totalorder %s225, %s241
    %p243 = scmp.eq.s32.totalorder %s19, 0
    %p244 = por %p242, %p243
    %p245 = scmp.le.s32.totalorder 1, %s13
    %p246 = scmp.lt.s32.totalorder %s13, 5
    %p247 = pnand %p245, %p246
    %p248 = pneg %p247
    // Predicated region
    $region9: #{residual_dense_net.9} parent=5 // pred_check
      _
    $region10: #{residual_dense_net.9} parent=5 // pred_check_branch
      %250 = sbr.rel (%p247) target = $region12
    $region11: #{residual_dense_net.9} parent=5 // pred_region
      %s251 = ssub.s32 %s13, 1
      // Predicated region
      $region13: #{residual_dense_net.9} parent=11 // pred_check
        %p252 = pneg %p46
      $region14: #{residual_dense_net.9} parent=11 // pred_check_branch
        %254 = sbr.rel (%p252) target = $region16
      $region15: #{residual_dense_net.9} parent=11 // pred_region
        _
      $region16: #{residual_dense_net.9} parent=11 // pred_fallthru
        _
      // Predicated region
      $region17: #{residual_dense_net.9} parent=11 // pred_check
        %p255 = pneg %p67
      $region18: #{residual_dense_net.9} parent=11 // pred_check_branch
        %257 = sbr.rel (%p255) target = $region20
      $region19: #{residual_dense_net.9} parent=11 // pred_region
        _
      $region20: #{residual_dense_net.9} parent=11 // pred_fallthru
        _
      // Predicated region
      $region21: #{residual_dense_net.9} parent=11 // pred_check
        %p258 = pneg %p88
      $region22: #{residual_dense_net.9} parent=11 // pred_check_branch
        %260 = sbr.rel (%p258) target = $region24
      $region23: #{residual_dense_net.9} parent=11 // pred_region
        _
      $region24: #{residual_dense_net.9} parent=11 // pred_fallthru
        _
      // Predicated region
      $region25: #{residual_dense_net.9} parent=11 // pred_check
        %p261 = pneg %p109
      $region26: #{residual_dense_net.9} parent=11 // pred_check_branch
        %263 = sbr.rel (%p261) target = $region28
      $region27: #{residual_dense_net.9} parent=11 // pred_region
        _
      $region28: #{residual_dense_net.9} parent=11 // pred_fallthru
        _
    $region12: #{residual_dense_net.9} parent=5 // pred_fallthru
      _
    %p264 = scmp.lt.s32.totalorder %s13, 4
    // Predicated region
    $region29: #{residual_dense_net.9} parent=5 // pred_check
      %p265 = pneg %p264
    $region30: #{residual_dense_net.9} parent=5 // pred_check_branch
      %267 = sbr.rel (%p265) target = $region32
    $region31: #{residual_dense_net.9} parent=5 // pred_region
      // Predicated region
      $region33: #{residual_dense_net.9} parent=31 // pred_check
        %p268 = pneg %p131
      $region34: #{residual_dense_net.9} parent=31 // pred_check_branch
        %270 = sbr.rel (%p268) target = $region36
      $region35: #{residual_dense_net.9} parent=31 // pred_region
        %s271 = smul.u32 8, %s21
        %p272 = scmp.lt.s32.totalorder %s20, 1
        %s273 = scalar_select %p272, %s20, 1
        %p274 = scmp.lt.s32.totalorder %s271, 15
        %s275 = scalar_select %p274, %s271, 15
        %s276 = smul.addr %s275, 2
        %s277 = smul.addr %s273, 32
        %s278 = sadd.s32 %s276, %s277
        %s279 = smul.addr %s278, 8
        %s280 = scalar_lea.vmem %s4, %s279
        %s281 = smul.u32 8, %s21
      $region36: #{residual_dense_net.9} parent=31 // pred_fallthru
        _
      // Predicated region
      $region37: #{residual_dense_net.9} parent=31 // pred_check
        %p282 = pneg %p167
      $region38: #{residual_dense_net.9} parent=31 // pred_check_branch
        %284 = sbr.rel (%p282) target = $region40
      $region39: #{residual_dense_net.9} parent=31 // pred_region
        %s285 = smul.u32 %s21, 8
        %s286 = ssub.s32 %s285, 1
        %p287 = scmp.gt.s32.totalorder %s286, 0
        %s288 = scalar_select %p287, %s286, 0
        %p289 = scmp.lt.s32.totalorder %s20, 1
        %s290 = scalar_select %p289, %s20, 1
        %p291 = scmp.lt.s32.totalorder %s288, 15
        %s292 = scalar_select %p291, %s288, 15
        %s293 = smul.addr %s292, 2
        %s294 = smul.addr %s290, 32
        %s295 = sadd.s32 %s293, %s294
        %s296 = smul.addr %s295, 8
        %s297 = scalar_lea.vmem %s5, %s296
        %s298 = smul.u32 %s21, 8
        %s299 = ssub.s32 %s298, 1
        %p300 = scmp.gt.s32.totalorder %s299, 0
        %s301 = scalar_select %p300, %s299, 0
      $region40: #{residual_dense_net.9} parent=31 // pred_fallthru
        _
      // Predicated region
      $region41: #{residual_dense_net.9} parent=31 // pred_check
        %p302 = pneg %p203
      $region42: #{residual_dense_net.9} parent=31 // pred_check_branch
        %304 = sbr.rel (%p302) target = $region44
      $region43: #{residual_dense_net.9} parent=31 // pred_region
        %s305 = smul.u32 %s21, 8
        %s306 = sadd.s32 %s305, 8
        %p307 = scmp.lt.s32.totalorder %s306, 15
        %s308 = scalar_select %p307, %s306, 15
        %p309 = scmp.lt.s32.totalorder %s20, 1
        %s310 = scalar_select %p309, %s20, 1
        %p311 = scmp.lt.s32.totalorder %s308, 15
        %s312 = scalar_select %p311, %s308, 15
        %s313 = smul.addr %s312, 2
        %s314 = smul.addr %s310, 32
        %s315 = sadd.s32 %s313, %s314
        %s316 = smul.addr %s315, 8
        %s317 = scalar_lea.vmem %s6, %s316
        %s318 = smul.u32 %s21, 8
        %s319 = sadd.s32 %s318, 8
        %p320 = scmp.lt.s32.totalorder %s319, 15
        %s321 = scalar_select %p320, %s319, 15
      $region44: #{residual_dense_net.9} parent=31 // pred_fallthru
        _
    $region32: #{residual_dense_net.9} parent=5 // pred_fallthru
      _
    %p322 = scmp.le.s32.totalorder 1, %s13
    %p323 = scmp.lt.s32.totalorder %s13, 5
    %p324 = pnand %p322, %p323
    %p325 = pneg %p324
    // Predicated region
    $region45: #{residual_dense_net.9} parent=5 // pred_check
      _
    $region46: #{residual_dense_net.9} parent=5 // pred_check_branch
      %327 = sbr.rel (%p324) target = $region48
    $region47: #{residual_dense_net.9} parent=5 // pred_region
      %s328 = ssub.s32 %s13, 1
      %p329 = pneg %p46
      %p330 = pneg %p43
      %p331 = pneg %p67
      %p332 = pneg %p64
      %p333 = pneg %p88
      %p334 = pneg %p85
      %p335 = pneg %p109
      %p336 = pneg %p106
      %s337 = smul.u32 8, %s23
      %p338 = scmp.lt.s32.totalorder %s22, 1
      %s339 = scalar_select %p338, %s22, 1
      %p340 = scmp.lt.s32.totalorder %s337, 15
      %s341 = scalar_select %p340, %s337, 15
      %s342 = smul.addr %s341, 2
      %s343 = smul.addr %s339, 32
      %s344 = sadd.s32 %s342, %s343
      %s345 = smul.addr %s344, 8
      %s346 = scalar_lea.vmem %s4, %s345
      %p347 = pneg %p137
      %p348 = pneg %p134
      %s349 = smul.u32 %s23, 8
      %s350 = ssub.s32 %s349, 1
      %p351 = scmp.gt.s32.totalorder %s350, 0
      %s352 = scalar_select %p351, %s350, 0
      %p353 = scmp.lt.s32.totalorder %s22, 1
      %s354 = scalar_select %p353, %s22, 1
      %p355 = scmp.lt.s32.totalorder %s352, 15
      %s356 = scalar_select %p355, %s352, 15
      %s357 = smul.addr %s356, 2
      %s358 = smul.addr %s354, 32
      %s359 = sadd.s32 %s357, %s358
      %s360 = smul.addr %s359, 8
      %s361 = scalar_lea.vmem %s5, %s360
      %p362 = pneg %p173
      %p363 = pneg %p170
      %s364 = smul.u32 %s23, 8
      %s365 = sadd.s32 %s364, 8
      %p366 = scmp.lt.s32.totalorder %s365, 15
      %s367 = scalar_select %p366, %s365, 15
      %p368 = scmp.lt.s32.totalorder %s22, 1
      %s369 = scalar_select %p368, %s22, 1
      %p370 = scmp.lt.s32.totalorder %s367, 15
      %s371 = scalar_select %p370, %s367, 15
      %s372 = smul.addr %s371, 2
      %s373 = smul.addr %s369, 32
      %s374 = sadd.s32 %s372, %s373
      %s375 = smul.addr %s374, 8
      %s376 = scalar_lea.vmem %s6, %s375
      %p377 = pneg %p209
      %p378 = pneg %p206
      %p379 = pneg %p237
      %p380 = pneg %p234
      %s381 = smul.u32 8, %s23
      %p382 = scmp.lt.s32.totalorder %s22, 1
      %s383 = scalar_select %p382, %s22, 1
      %p384 = scmp.lt.s32.totalorder %s381, 15
      %s385 = scalar_select %p384, %s381, 15
      %s386 = smul.addr %s385, 2
      %s387 = smul.addr %s383, 32
      %s388 = sadd.s32 %s386, %s387
      %s389 = smul.addr %s388, 8
      %s390 = scalar_lea.vmem %s7, %s389
      %s391 = smul.u32 8, %s23
      %p392 = scmp.lt.s32.totalorder %s22, 1
      %s393 = scalar_select %p392, %s22, 1
      %p394 = scmp.lt.s32.totalorder %s391, 15
      %s395 = scalar_select %p394, %s391, 15
      %s396 = smul.addr %s395, 2
      %s397 = smul.addr %s393, 32
      %s398 = sadd.s32 %s396, %s397
      %s399 = smul.addr %s398, 8
      %s400 = scalar_lea.vmem %s4, %s399
      %s401 = smul.u32 8, %s23
      %s402 = smul.u32 %s23, 8
      %s403 = ssub.s32 %s402, 1
      %p404 = scmp.gt.s32.totalorder %s403, 0
      %s405 = scalar_select %p404, %s403, 0
      %p406 = scmp.lt.s32.totalorder %s22, 1
      %s407 = scalar_select %p406, %s22, 1
      %p408 = scmp.lt.s32.totalorder %s405, 15
      %s409 = scalar_select %p408, %s405, 15
      %s410 = smul.addr %s409, 2
      %s411 = smul.addr %s407, 32
      %s412 = sadd.s32 %s410, %s411
      %s413 = smul.addr %s412, 8
      %s414 = scalar_lea.vmem %s5, %s413
      %s415 = smul.u32 %s23, 8
      %s416 = ssub.s32 %s415, 1
      %p417 = scmp.gt.s32.totalorder %s416, 0
      %s418 = scalar_select %p417, %s416, 0
      %s419 = smul.u32 %s23, 8
      %s420 = sadd.s32 %s419, 8
      %p421 = scmp.lt.s32.totalorder %s420, 15
      %s422 = scalar_select %p421, %s420, 15
      %p423 = scmp.lt.s32.totalorder %s22, 1
      %s424 = scalar_select %p423, %s22, 1
      %p425 = scmp.lt.s32.totalorder %s422, 15
      %s426 = scalar_select %p425, %s422, 15
      %s427 = smul.addr %s426, 2
      %s428 = smul.addr %s424, 32
      %s429 = sadd.s32 %s427, %s428
      %s430 = smul.addr %s429, 8
      %s431 = scalar_lea.vmem %s6, %s430
      %s432 = smul.u32 %s23, 8
      %s433 = sadd.s32 %s432, 8
      %p434 = scmp.lt.s32.totalorder %s433, 15
      %s435 = scalar_select %p434, %s433, 15
      %s436 = smul.u32 8, %s23
      %p437 = scmp.lt.s32.totalorder %s22, 1
      %s438 = scalar_select %p437, %s22, 1
      %p439 = scmp.lt.s32.totalorder %s436, 15
      %s440 = scalar_select %p439, %s436, 15
      %s441 = smul.addr %s440, 2
      %s442 = smul.addr %s438, 32
      %s443 = sadd.s32 %s441, %s442
      %s444 = smul.addr %s443, 8
      %s445 = scalar_lea.vmem %s7, %s444
      %s446 = smul.u32 8, %s23
      %v448 = vld [vmem:[%s0] sm:$0x1]
      %v449 = vld [vmem:[%s1] sm:$0x1]
      %p450 = scmp.gt.s32.totalorder %s23, 0
      %s451 = scalar_select %p450, 1, 0
      %s452 = scvt.s32.f32 %s451
      %p453 = scmp.lt.s32.totalorder %s23, 1
      %s454 = scalar_select %p453, 1, 0
      %s455 = scvt.s32.f32 %s454
      %v456 = vld [vmem:[%s400] sm:$0xff]
      %v457 = vld [vmem:[%s400 + $0x8] sm:$0xff]
      %v458 = vld [vmem:[%s400 + $0x10] sm:$0xff]
      %v459 = vld [vmem:[%s400 + $0x18] sm:$0xff]
      %v460 = vld [vmem:[%s400 + $0x20] sm:$0xff]
      %v461 = vld [vmem:[%s400 + $0x28] sm:$0xff]
      %v462 = vld [vmem:[%s400 + $0x30] sm:$0xff]
      %v463 = vld [vmem:[%s400 + $0x38] sm:$0xff]
      %v464 = vld [vmem:[%s400 + $0x40] sm:$0xff]
      %v465 = vld [vmem:[%s400 + $0x48] sm:$0xff]
      %v466 = vld [vmem:[%s400 + $0x50] sm:$0xff]
      %v467 = vld [vmem:[%s400 + $0x58] sm:$0xff]
      %v468 = vld [vmem:[%s400 + $0x60] sm:$0xff]
      %v469 = vld [vmem:[%s400 + $0x68] sm:$0xff]
      %v470 = vld [vmem:[%s400 + $0x70] sm:$0xff]
      %v471 = vld [vmem:[%s400 + $0x78] sm:$0xff]
      %v472 = vld [vmem:[%s414] sm:$0xff]
      %v473 = vld [vmem:[%s414 + $0x8] sm:$0xff]
      %v474 = vld [vmem:[%s431] sm:$0xff]
      %v475 = vld [vmem:[%s431 + $0x8] sm:$0xff]
      %v477 = vlaneseq
      %v478 = vshrl.u32 %v477, 7
      %v479 = vsub.s32 0, %v478
      %v480 = vrot.slane %v448, %v479
      %v482 = vmul.f32 %v472, %v480
      %v483 = vmul.f32 %v473, %v480
      %v485 = vlaneseq
      %v486 = vshrl.u32 %v485, 7
      %v487 = vsub.s32 0, %v486
      %v488 = vrot.slane %v449, %v487
      %v490 = vadd.f32 %v482, %v488
      %v491 = vadd.f32 %v483, %v488
      %v492 = vmax.f32 %v490, 0.0
      %v493 = vmax.f32 %v491, 0.0
      %v494 = vstv %s452
      %v495 = vmul.f32 %v492, %v494
      %v496 = vmul.f32 %v493, %v494
      %vm497 = vcmask 64512
      %498 = vst.msk [vmem:[#allocation2] sm:$0xff] %vm497, %v495
      %499 = vst.msk [vmem:[#allocation2 + $0x8] sm:$0xff] %vm497, %v496
      %v500 = vmul.f32 %v456, %v480
      %v501 = vmul.f32 %v457, %v480
      %v502 = vmul.f32 %v458, %v480
      %v503 = vmul.f32 %v459, %v480
      %v504 = vmul.f32 %v460, %v480
      %v505 = vmul.f32 %v461, %v480
      %v506 = vmul.f32 %v462, %v480
      %v507 = vmul.f32 %v463, %v480
      %v508 = vmul.f32 %v464, %v480
      %v509 = vmul.f32 %v465, %v480
      %v510 = vmul.f32 %v466, %v480
      %v511 = vmul.f32 %v467, %v480
      %v512 = vmul.f32 %v468, %v480
      %v513 = vmul.f32 %v469, %v480
      %v514 = vmul.f32 %v470, %v480
      %v515 = vmul.f32 %v471, %v480
      %v516 = vadd.f32 %v500, %v488
      %v517 = vadd.f32 %v501, %v488
      %v518 = vadd.f32 %v502, %v488
      %v519 = vadd.f32 %v503, %v488
      %v520 = vadd.f32 %v504, %v488
      %v521 = vadd.f32 %v505, %v488
      %v522 = vadd.f32 %v506, %v488
      %v523 = vadd.f32 %v507, %v488
      %v524 = vadd.f32 %v508, %v488
      %v525 = vadd.f32 %v509, %v488
      %v526 = vadd.f32 %v510, %v488
      %v527 = vadd.f32 %v511, %v488
      %v528 = vadd.f32 %v512, %v488
      %v529 = vadd.f32 %v513, %v488
      %v530 = vadd.f32 %v514, %v488
      %v531 = vadd.f32 %v515, %v488
      %v532 = vmax.f32 %v516, 0.0
      %v533 = vmax.f32 %v517, 0.0
      %v534 = vmax.f32 %v518, 0.0
      %v535 = vmax.f32 %v519, 0.0
      %v536 = vmax.f32 %v520, 0.0
      %v537 = vmax.f32 %v521, 0.0
      %v538 = vmax.f32 %v522, 0.0
      %v539 = vmax.f32 %v523, 0.0
      %v540 = vmax.f32 %v524, 0.0
      %v541 = vmax.f32 %v525, 0.0
      %v542 = vmax.f32 %v526, 0.0
      %v543 = vmax.f32 %v527, 0.0
      %v544 = vmax.f32 %v528, 0.0
      %v545 = vmax.f32 %v529, 0.0
      %v546 = vmax.f32 %v530, 0.0
      %v547 = vmax.f32 %v531, 0.0
      %s548 = scalar_lea.vmem [#allocation2], 16
      %549 = vst.msk [vmem:[%s548] sm:$0xff] %vm497, %v532
      %550 = vst.msk [vmem:[%s548 + $0x8] sm:$0xff] %vm497, %v533
      %551 = vst.msk [vmem:[%s548 + $0x10] sm:$0xff] %vm497, %v534
      %552 = vst.msk [vmem:[%s548 + $0x18] sm:$0xff] %vm497, %v535
      %553 = vst.msk [vmem:[%s548 + $0x20] sm:$0xff] %vm497, %v536
      %554 = vst.msk [vmem:[%s548 + $0x28] sm:$0xff] %vm497, %v537
      %555 = vst.msk [vmem:[%s548 + $0x30] sm:$0xff] %vm497, %v538
      %556 = vst.msk [vmem:[%s548 + $0x38] sm:$0xff] %vm497, %v539
      %557 = vst.msk [vmem:[%s548 + $0x40] sm:$0xff] %vm497, %v540
      %558 = vst.msk [vmem:[%s548 + $0x48] sm:$0xff] %vm497, %v541
      %559 = vst.msk [vmem:[%s548 + $0x50] sm:$0xff] %vm497, %v542
      %560 = vst.msk [vmem:[%s548 + $0x58] sm:$0xff] %vm497, %v543
      %561 = vst.msk [vmem:[%s548 + $0x60] sm:$0xff] %vm497, %v544
      %562 = vst.msk [vmem:[%s548 + $0x68] sm:$0xff] %vm497, %v545
      %563 = vst.msk [vmem:[%s548 + $0x70] sm:$0xff] %vm497, %v546
      %564 = vst.msk [vmem:[%s548 + $0x78] sm:$0xff] %vm497, %v547
      %v565 = vmul.f32 %v474, %v480
      %v566 = vmul.f32 %v475, %v480
      %v567 = vadd.f32 %v565, %v488
      %v568 = vadd.f32 %v566, %v488
      %v569 = vmax.f32 %v567, 0.0
      %v570 = vmax.f32 %v568, 0.0
      %v571 = vstv %s455
      %v572 = vmul.f32 %v569, %v571
      %v573 = vmul.f32 %v570, %v571
      %s574 = scalar_lea.vmem [#allocation2], 144
      %575 = vst.msk [vmem:[%s574] sm:$0xff] %vm497, %v572
      %576 = vst.msk [vmem:[%s574 + $0x8] sm:$0xff] %vm497, %v573
      %v577 = vld [vmem:[#allocation2] sm:$0xff]
      %v578 = vld [vmem:[#allocation2 + $0x8] sm:$0xff]
      %v579 = vld [vmem:[#allocation2 + $0x10] sm:$0xff]
      %v580 = vld [vmem:[#allocation2 + $0x18] sm:$0xff]
      %v581 = vld [vmem:[#allocation2 + $0x20] sm:$0xff]
      %v582 = vld [vmem:[#allocation2 + $0x28] sm:$0xff]
      %v583 = vld [vmem:[#allocation2 + $0x30] sm:$0xff]
      %v584 = vld [vmem:[#allocation2 + $0x38] sm:$0xff]
      %v585 = vld [vmem:[#allocation2 + $0x40] sm:$0xff]
      %v586 = vld [vmem:[#allocation2 + $0x48] sm:$0xff]
      %v587 = vld [vmem:[#allocation2 + $0x50] sm:$0xff]
      %v588 = vld [vmem:[#allocation2 + $0x58] sm:$0xff]
      %v589 = vld [vmem:[#allocation2 + $0x60] sm:$0xff]
      %v590 = vld [vmem:[#allocation2 + $0x68] sm:$0xff]
      %v591 = vld [vmem:[#allocation2 + $0x70] sm:$0xff]
      %v592 = vld [vmem:[#allocation2 + $0x78] sm:$0xff]
      %v593 = vld [vmem:[#allocation2 + $0x80] sm:$0xff]
      %v594 = vld [vmem:[#allocation2 + $0x88] sm:$0xff]
      %v595 = vld [vmem:[#allocation2 + $0x90] sm:$0xff]
      %v596 = vld [vmem:[#allocation2 + $0x98] sm:$0xff]
      %v597 = vlaneseq
      %v598 = vshrl.u32 %v597, 7
      %v599 = vadd.s32 %v598, 8
      %v600 = vrot.slane %v577, 7
      %v601 = vrot.slane %v578, 7
      %v602 = vrot.slane %v579, 7
      %v603 = vrot.slane %v580, 7
      %v604 = vrot.slane %v581, 7
      %v605 = vrot.slane %v582, 7
      %v606 = vrot.slane %v583, 7
      %v607 = vrot.slane %v584, 7
      %v608 = vrot.slane %v585, 7
      %v609 = vrot.slane %v586, 7
      %v610 = vrot.slane %v587, 7
      %v611 = vrot.slane %v588, 7
      %v612 = vrot.slane %v589, 7
      %v613 = vrot.slane %v590, 7
      %v614 = vrot.slane %v591, 7
      %v615 = vrot.slane %v592, 7
      %v616 = vrot.slane %v593, 7
      %v617 = vrot.slane %v594, 7
      %v618 = vrot.slane %v595, 7
      %v619 = vrot.slane %v596, 7
      %vm620 = vcmp.lt.s32.totalorder %v598, 1
      %v621 = vsel %vm620, %v618, %v619
      %v622 = vsel %vm620, %v617, %v618
      %v623 = vsel %vm620, %v616, %v617
      %v624 = vsel %vm620, %v615, %v616
      %v625 = vsel %vm620, %v614, %v615
      %v626 = vsel %vm620, %v613, %v614
      %v627 = vsel %vm620, %v612, %v613
      %v628 = vsel %vm620, %v611, %v612
      %v629 = vsel %vm620, %v610, %v611
      %v630 = vsel %vm620, %v609, %v610
      %v631 = vsel %vm620, %v608, %v609
      %v632 = vsel %vm620, %v607, %v608
      %v633 = vsel %vm620, %v606, %v607
      %v634 = vsel %vm620, %v605, %v606
      %v635 = vsel %vm620, %v604, %v605
      %v636 = vsel %vm620, %v603, %v604
      %v637 = vsel %vm620, %v602, %v603
      %v638 = vsel %vm620, %v601, %v602
      %v639 = vsel %vm620, %v600, %v601
      %v640 = vsel %vm620, %v619, %v600
      %vm641 = vcmp.gt.s32.totalorder %v598, 0
      %vm642 = vcmp.gt.s32.totalorder %v599, 0
      %v643 = vsel %vm641, 1, 0
      %v644 = vsel %vm642, 1, 0
      %v645 = vcvt.s32.f32 %v643
      %v646 = vcvt.s32.f32 %v644
      %v647 = vmul.f32 %v640, %v645
      %v648 = vmul.f32 %v639, %v646
      %v649 = vmul.f32 %v638, %v645
      %v650 = vmul.f32 %v637, %v646
      %v651 = vmul.f32 %v636, %v645
      %v652 = vmul.f32 %v635, %v646
      %v653 = vmul.f32 %v634, %v645
      %v654 = vmul.f32 %v633, %v646
      %v655 = vmul.f32 %v632, %v645
      %v656 = vmul.f32 %v631, %v646
      %v657 = vmul.f32 %v630, %v645
      %v658 = vmul.f32 %v629, %v646
      %v659 = vmul.f32 %v628, %v645
      %v660 = vmul.f32 %v627, %v646
      %v661 = vmul.f32 %v626, %v645
      %v662 = vmul.f32 %v625, %v646
      %v663 = vmul.f32 %v624, %v645
      %v664 = vmul.f32 %v623, %v646
      %v665 = vmul.f32 %v622, %v645
      %v666 = vmul.f32 %v621, %v646
      %v667 = vrot.slane %v577, 1
      %v668 = vrot.slane %v578, 1
      %v669 = vrot.slane %v579, 1
      %v670 = vrot.slane %v580, 1
      %v671 = vrot.slane %v581, 1
      %v672 = vrot.slane %v582, 1
      %v673 = vrot.slane %v583, 1
      %v674 = vrot.slane %v584, 1
      %v675 = vrot.slane %v585, 1
      %v676 = vrot.slane %v586, 1
      %v677 = vrot.slane %v587, 1
      %v678 = vrot.slane %v588, 1
      %v679 = vrot.slane %v589, 1
      %v680 = vrot.slane %v590, 1
      %v681 = vrot.slane %v591, 1
      %v682 = vrot.slane %v592, 1
      %v683 = vrot.slane %v593, 1
      %v684 = vrot.slane %v594, 1
      %v685 = vrot.slane %v595, 1
      %v686 = vrot.slane %v596, 1
      %vm687 = vcmp.lt.s32.totalorder %v598, 7
      %v688 = vsel %vm687, %v685, %v686
      %v689 = vsel %vm687, %v684, %v685
      %v690 = vsel %vm687, %v683, %v684
      %v691 = vsel %vm687, %v682, %v683
      %v692 = vsel %vm687, %v681, %v682
      %v693 = vsel %vm687, %v680, %v681
      %v694 = vsel %vm687, %v679, %v680
      %v695 = vsel %vm687, %v678, %v679
      %v696 = vsel %vm687, %v677, %v678
      %v697 = vsel %vm687, %v676, %v677
      %v698 = vsel %vm687, %v675, %v676
      %v699 = vsel %vm687, %v674, %v675
      %v700 = vsel %vm687, %v673, %v674
      %v701 = vsel %vm687, %v672, %v673
      %v702 = vsel %vm687, %v671, %v672
      %v703 = vsel %vm687, %v670, %v671
      %v704 = vsel %vm687, %v669, %v670
      %v705 = vsel %vm687, %v668, %v669
      %v706 = vsel %vm687, %v667, %v668
      %v707 = vsel %vm687, %v686, %v667
      %vm708 = vcmp.lt.s32.totalorder %v598, 15
      %vm709 = vcmp.lt.s32.totalorder %v599, 15
      %v710 = vsel %vm708, 1, 0
      %v711 = vsel %vm709, 1, 0
      %v712 = vcvt.s32.f32 %v710
      %v713 = vcvt.s32.f32 %v711
      %v714 = vmul.f32 %v706, %v712
      %v715 = vmul.f32 %v705, %v713
      %v716 = vmul.f32 %v704, %v712
      %v717 = vmul.f32 %v703, %v713
      %v718 = vmul.f32 %v702, %v712
      %v719 = vmul.f32 %v701, %v713
      %v720 = vmul.f32 %v700, %v712
      %v721 = vmul.f32 %v699, %v713
      %v722 = vmul.f32 %v698, %v712
      %v723 = vmul.f32 %v697, %v713
      %v724 = vmul.f32 %v696, %v712
      %v725 = vmul.f32 %v695, %v713
      %v726 = vmul.f32 %v694, %v712
      %v727 = vmul.f32 %v693, %v713
      %v728 = vmul.f32 %v692, %v712
      %v729 = vmul.f32 %v691, %v713
      %v730 = vmul.f32 %v690, %v712
      %v731 = vmul.f32 %v689, %v713
      %v732 = vmul.f32 %v688, %v712
      %v733 = vmul.f32 %v707, %v713
      %734 = vst.msk [vmem:[#allocation3] sm:$0xff] %vm497, %v647
      %735 = vst.msk [vmem:[#allocation3 + $0x8] sm:$0xff] %vm497, %v648
      %736 = vst.msk [vmem:[#allocation3 + $0x10] sm:$0xff] %vm497, %v649
      %737 = vst.msk [vmem:[#allocation3 + $0x18] sm:$0xff] %vm497, %v650
      %738 = vst.msk [vmem:[#allocation3 + $0x20] sm:$0xff] %vm497, %v651
      %739 = vst.msk [vmem:[#allocation3 + $0x28] sm:$0xff] %vm497, %v652
      %740 = vst.msk [vmem:[#allocation3 + $0x30] sm:$0xff] %vm497, %v653
      %741 = vst.msk [vmem:[#allocation3 + $0x38] sm:$0xff] %vm497, %v654
      %742 = vst.msk [vmem:[#allocation3 + $0x40] sm:$0xff] %vm497, %v655
      %743 = vst.msk [vmem:[#allocation3 + $0x48] sm:$0xff] %vm497, %v656
      %744 = vst.msk [vmem:[#allocation3 + $0x50] sm:$0xff] %vm497, %v657
      %745 = vst.msk [vmem:[#allocation3 + $0x58] sm:$0xff] %vm497, %v658
      %746 = vst.msk [vmem:[#allocation3 + $0x60] sm:$0xff] %vm497, %v659
      %747 = vst.msk [vmem:[#allocation3 + $0x68] sm:$0xff] %vm497, %v660
      %748 = vst.msk [vmem:[#allocation3 + $0x70] sm:$0xff] %vm497, %v661
      %749 = vst.msk [vmem:[#allocation3 + $0x78] sm:$0xff] %vm497, %v662
      %766 = vrot.lane.b32.xlu0 %v577, 8
      %v767 = vpop.permute.xlu0 %766
      %768 = vrot.lane.b32.xlu0 %v578, 8
      %v769 = vpop.permute.xlu0 %768
      %770 = vrot.lane.b32.xlu0 %v579, 8
      %v771 = vpop.permute.xlu0 %770
      %772 = vrot.lane.b32.xlu0 %v580, 8
      %v773 = vpop.permute.xlu0 %772
      %774 = vrot.lane.b32.xlu0 %v581, 8
      %v775 = vpop.permute.xlu0 %774
      %776 = vrot.lane.b32.xlu0 %v582, 8
      %v777 = vpop.permute.xlu0 %776
      %778 = vrot.lane.b32.xlu0 %v583, 8
      %v779 = vpop.permute.xlu0 %778
      %780 = vrot.lane.b32.xlu0 %v584, 8
      %v781 = vpop.permute.xlu0 %780
      %782 = vrot.lane.b32.xlu0 %v585, 8
      %v783 = vpop.permute.xlu0 %782
      %784 = vrot.lane.b32.xlu0 %v586, 8
      %v785 = vpop.permute.xlu0 %784
      %786 = vrot.lane.b32.xlu0 %v587, 8
      %v787 = vpop.permute.xlu0 %786
      %788 = vrot.lane.b32.xlu0 %v588, 8
      %v789 = vpop.permute.xlu0 %788
      %790 = vrot.lane.b32.xlu0 %v589, 8
      %v791 = vpop.permute.xlu0 %790
      %792 = vrot.lane.b32.xlu0 %v590, 8
      %v793 = vpop.permute.xlu0 %792
      %794 = vrot.lane.b32.xlu0 %v591, 8
      %v795 = vpop.permute.xlu0 %794
      %796 = vrot.lane.b32.xlu0 %v592, 8
      %v797 = vpop.permute.xlu0 %796
      %vm814 = vcmask 130112
      %815 = vst.msk [vmem:[#allocation3] sm:$0xff] %vm814, %v767
      %816 = vst.msk [vmem:[#allocation3 + $0x8] sm:$0xff] %vm814, %v769
      %817 = vst.msk [vmem:[#allocation3 + $0x10] sm:$0xff] %vm814, %v771
      %818 = vst.msk [vmem:[#allocation3 + $0x18] sm:$0xff] %vm814, %v773
      %819 = vst.msk [vmem:[#allocation3 + $0x20] sm:$0xff] %vm814, %v775
      %820 = vst.msk [vmem:[#allocation3 + $0x28] sm:$0xff] %vm814, %v777
      %821 = vst.msk [vmem:[#allocation3 + $0x30] sm:$0xff] %vm814, %v779
      %822 = vst.msk [vmem:[#allocation3 + $0x38] sm:$0xff] %vm814, %v781
      %823 = vst.msk [vmem:[#allocation3 + $0x40] sm:$0xff] %vm814, %v783
      %824 = vst.msk [vmem:[#allocation3 + $0x48] sm:$0xff] %vm814, %v785
      %825 = vst.msk [vmem:[#allocation3 + $0x50] sm:$0xff] %vm814, %v787
      %826 = vst.msk [vmem:[#allocation3 + $0x58] sm:$0xff] %vm814, %v789
      %827 = vst.msk [vmem:[#allocation3 + $0x60] sm:$0xff] %vm814, %v791
      %828 = vst.msk [vmem:[#allocation3 + $0x68] sm:$0xff] %vm814, %v793
      %829 = vst.msk [vmem:[#allocation3 + $0x70] sm:$0xff] %vm814, %v795
      %830 = vst.msk [vmem:[#allocation3 + $0x78] sm:$0xff] %vm814, %v797
      %847 = vrot.lane.b32.xlu0 %v714, 16
      %v848 = vpop.permute.xlu0 %847
      %849 = vrot.lane.b32.xlu0 %v715, 16
      %v850 = vpop.permute.xlu0 %849
      %851 = vrot.lane.b32.xlu0 %v716, 16
      %v852 = vpop.permute.xlu0 %851
      %853 = vrot.lane.b32.xlu0 %v717, 16
      %v854 = vpop.permute.xlu0 %853
      %855 = vrot.lane.b32.xlu0 %v718, 16
      %v856 = vpop.permute.xlu0 %855
      %857 = vrot.lane.b32.xlu0 %v719, 16
      %v858 = vpop.permute.xlu0 %857
      %859 = vrot.lane.b32.xlu0 %v720, 16
      %v860 = vpop.permute.xlu0 %859
      %861 = vrot.lane.b32.xlu0 %v721, 16
      %v862 = vpop.permute.xlu0 %861
      %863 = vrot.lane.b32.xlu0 %v722, 16
      %v864 = vpop.permute.xlu0 %863
      %865 = vrot.lane.b32.xlu0 %v723, 16
      %v866 = vpop.permute.xlu0 %865
      %867 = vrot.lane.b32.xlu0 %v724, 16
      %v868 = vpop.permute.xlu0 %867
      %869 = vrot.lane.b32.xlu0 %v725, 16
      %v870 = vpop.permute.xlu0 %869
      %871 = vrot.lane.b32.xlu0 %v726, 16
      %v872 = vpop.permute.xlu0 %871
      %873 = vrot.lane.b32.xlu0 %v727, 16
      %v874 = vpop.permute.xlu0 %873
      %875 = vrot.lane.b32.xlu0 %v728, 16
      %v876 = vpop.permute.xlu0 %875
      %877 = vrot.lane.b32.xlu0 %v729, 16
      %v878 = vpop.permute.xlu0 %877
      %vm895 = vcmask 195712
      %896 = vst.msk [vmem:[#allocation3] sm:$0xff] %vm895, %v848
      %897 = vst.msk [vmem:[#allocation3 + $0x8] sm:$0xff] %vm895, %v850
      %898 = vst.msk [vmem:[#allocation3 + $0x10] sm:$0xff] %vm895, %v852
      %899 = vst.msk [vmem:[#allocation3 + $0x18] sm:$0xff] %vm895, %v854
      %900 = vst.msk [vmem:[#allocation3 + $0x20] sm:$0xff] %vm895, %v856
      %901 = vst.msk [vmem:[#allocation3 + $0x28] sm:$0xff] %vm895, %v858
      %902 = vst.msk [vmem:[#allocation3 + $0x30] sm:$0xff] %vm895, %v860
      %903 = vst.msk [vmem:[#allocation3 + $0x38] sm:$0xff] %vm895, %v862
      %904 = vst.msk [vmem:[#allocation3 + $0x40] sm:$0xff] %vm895, %v864
      %905 = vst.msk [vmem:[#allocation3 + $0x48] sm:$0xff] %vm895, %v866
      %906 = vst.msk [vmem:[#allocation3 + $0x50] sm:$0xff] %vm895, %v868
      %907 = vst.msk [vmem:[#allocation3 + $0x58] sm:$0xff] %vm895, %v870
      %908 = vst.msk [vmem:[#allocation3 + $0x60] sm:$0xff] %vm895, %v872
      %909 = vst.msk [vmem:[#allocation3 + $0x68] sm:$0xff] %vm895, %v874
      %910 = vst.msk [vmem:[#allocation3 + $0x70] sm:$0xff] %vm895, %v876
      %911 = vst.msk [vmem:[#allocation3 + $0x78] sm:$0xff] %vm895, %v878
      %928 = vrot.lane.b32.xlu0 %v649, 24
      %v929 = vpop.permute.xlu0 %928
      %930 = vrot.lane.b32.xlu0 %v650, 24
      %v931 = vpop.permute.xlu0 %930
      %932 = vrot.lane.b32.xlu0 %v651, 24
      %v933 = vpop.permute.xlu0 %932
      %934 = vrot.lane.b32.xlu0 %v652, 24
      %v935 = vpop.permute.xlu0 %934
      %936 = vrot.lane.b32.xlu0 %v653, 24
      %v937 = vpop.permute.xlu0 %936
      %938 = vrot.lane.b32.xlu0 %v654, 24
      %v939 = vpop.permute.xlu0 %938
      %940 = vrot.lane.b32.xlu0 %v655, 24
      %v941 = vpop.permute.xlu0 %940
      %942 = vrot.lane.b32.xlu0 %v656, 24
      %v943 = vpop.permute.xlu0 %942
      %944 = vrot.lane.b32.xlu0 %v657, 24
      %v945 = vpop.permute.xlu0 %944
      %946 = vrot.lane.b32.xlu0 %v658, 24
      %v947 = vpop.permute.xlu0 %946
      %948 = vrot.lane.b32.xlu0 %v659, 24
      %v949 = vpop.permute.xlu0 %948
      %950 = vrot.lane.b32.xlu0 %v660, 24
      %v951 = vpop.permute.xlu0 %950
      %952 = vrot.lane.b32.xlu0 %v661, 24
      %v953 = vpop.permute.xlu0 %952
      %954 = vrot.lane.b32.xlu0 %v662, 24
      %v955 = vpop.permute.xlu0 %954
      %956 = vrot.lane.b32.xlu0 %v663, 24
      %v957 = vpop.permute.xlu0 %956
      %958 = vrot.lane.b32.xlu0 %v664, 24
      %v959 = vpop.permute.xlu0 %958
      %vm976 = vcmask 261312
      %977 = vst.msk [vmem:[#allocation3] sm:$0xff] %vm976, %v929
      %978 = vst.msk [vmem:[#allocation3 + $0x8] sm:$0xff] %vm976, %v931
      %979 = vst.msk [vmem:[#allocation3 + $0x10] sm:$0xff] %vm976, %v933
      %980 = vst.msk [vmem:[#allocation3 + $0x18] sm:$0xff] %vm976, %v935
      %981 = vst.msk [vmem:[#allocation3 + $0x20] sm:$0xff] %vm976, %v937
      %982 = vst.msk [vmem:[#allocation3 + $0x28] sm:$0xff] %vm976, %v939
      %983 = vst.msk [vmem:[#allocation3 + $0x30] sm:$0xff] %vm976, %v941
      %984 = vst.msk [vmem:[#allocation3 + $0x38] sm:$0xff] %vm976, %v943
      %985 = vst.msk [vmem:[#allocation3 + $0x40] sm:$0xff] %vm976, %v945
      %986 = vst.msk [vmem:[#allocation3 + $0x48] sm:$0xff] %vm976, %v947
      %987 = vst.msk [vmem:[#allocation3 + $0x50] sm:$0xff] %vm976, %v949
      %988 = vst.msk [vmem:[#allocation3 + $0x58] sm:$0xff] %vm976, %v951
      %989 = vst.msk [vmem:[#allocation3 + $0x60] sm:$0xff] %vm976, %v953
      %990 = vst.msk [vmem:[#allocation3 + $0x68] sm:$0xff] %vm976, %v955
      %991 = vst.msk [vmem:[#allocation3 + $0x70] sm:$0xff] %vm976, %v957
      %992 = vst.msk [vmem:[#allocation3 + $0x78] sm:$0xff] %vm976, %v959
      %995 = vrot.lane.b32.xlu0 %v579, 32
      %v996 = vpop.permute.xlu0 %995
      %997 = vrot.lane.b32.xlu0 %v580, 32
      %v998 = vpop.permute.xlu0 %997
      %999 = vrot.lane.b32.xlu0 %v581, 32
      %v1000 = vpop.permute.xlu0 %999
      %1001 = vrot.lane.b32.xlu0 %v582, 32
      %v1002 = vpop.permute.xlu0 %1001
      %1003 = vrot.lane.b32.xlu0 %v583, 32
      %v1004 = vpop.permute.xlu0 %1003
      %1005 = vrot.lane.b32.xlu0 %v584, 32
      %v1006 = vpop.permute.xlu0 %1005
      %1007 = vrot.lane.b32.xlu0 %v585, 32
      %v1008 = vpop.permute.xlu0 %1007
      %1009 = vrot.lane.b32.xlu0 %v586, 32
      %v1010 = vpop.permute.xlu0 %1009
      %1011 = vrot.lane.b32.xlu0 %v587, 32
      %v1012 = vpop.permute.xlu0 %1011
      %1013 = vrot.lane.b32.xlu0 %v588, 32
      %v1014 = vpop.permute.xlu0 %1013
      %1015 = vrot.lane.b32.xlu0 %v589, 32
      %v1016 = vpop.permute.xlu0 %1015
      %1017 = vrot.lane.b32.xlu0 %v590, 32
      %v1018 = vpop.permute.xlu0 %1017
      %1019 = vrot.lane.b32.xlu0 %v591, 32
      %v1020 = vpop.permute.xlu0 %1019
      %1021 = vrot.lane.b32.xlu0 %v592, 32
      %v1022 = vpop.permute.xlu0 %1021
      %1023 = vrot.lane.b32.xlu0 %v593, 32
      %v1024 = vpop.permute.xlu0 %1023
      %1025 = vrot.lane.b32.xlu0 %v594, 32
      %v1026 = vpop.permute.xlu0 %1025
      %vm1043 = vcmask 326912
      %1044 = vst.msk [vmem:[#allocation3] sm:$0xff] %vm1043, %v996
      %1045 = vst.msk [vmem:[#allocation3 + $0x8] sm:$0xff] %vm1043, %v998
      %1046 = vst.msk [vmem:[#allocation3 + $0x10] sm:$0xff] %vm1043, %v1000
      %1047 = vst.msk [vmem:[#allocation3 + $0x18] sm:$0xff] %vm1043, %v1002
      %1048 = vst.msk [vmem:[#allocation3 + $0x20] sm:$0xff] %vm1043, %v1004
      %1049 = vst.msk [vmem:[#allocation3 + $0x28] sm:$0xff] %vm1043, %v1006
      %1050 = vst.msk [vmem:[#allocation3 + $0x30] sm:$0xff] %vm1043, %v1008
      %1051 = vst.msk [vmem:[#allocation3 + $0x38] sm:$0xff] %vm1043, %v1010
      %1052 = vst.msk [vmem:[#allocation3 + $0x40] sm:$0xff] %vm1043, %v1012
      %1053 = vst.msk [vmem:[#allocation3 + $0x48] sm:$0xff] %vm1043, %v1014
      %1054 = vst.msk [vmem:[#allocation3 + $0x50] sm:$0xff] %vm1043, %v1016
      %1055 = vst.msk [vmem:[#allocation3 + $0x58] sm:$0xff] %vm1043, %v1018
      %1056 = vst.msk [vmem:[#allocation3 + $0x60] sm:$0xff] %vm1043, %v1020
      %1057 = vst.msk [vmem:[#allocation3 + $0x68] sm:$0xff] %vm1043, %v1022
      %1058 = vst.msk [vmem:[#allocation3 + $0x70] sm:$0xff] %vm1043, %v1024
      %1059 = vst.msk [vmem:[#allocation3 + $0x78] sm:$0xff] %vm1043, %v1026
      %1062 = vrot.lane.b32.xlu0 %v716, 40
      %v1063 = vpop.permute.xlu0 %1062
      %1064 = vrot.lane.b32.xlu0 %v717, 40
      %v1065 = vpop.permute.xlu0 %1064
      %1066 = vrot.lane.b32.xlu0 %v718, 40
      %v1067 = vpop.permute.xlu0 %1066
      %1068 = vrot.lane.b32.xlu0 %v719, 40
      %v1069 = vpop.permute.xlu0 %1068
      %1070 = vrot.lane.b32.xlu0 %v720, 40
      %v1071 = vpop.permute.xlu0 %1070
      %1072 = vrot.lane.b32.xlu0 %v721, 40
      %v1073 = vpop.permute.xlu0 %1072
      %1074 = vrot.lane.b32.xlu0 %v722, 40
      %v1075 = vpop.permute.xlu0 %1074
      %1076 = vrot.lane.b32.xlu0 %v723, 40
      %v1077 = vpop.permute.xlu0 %1076
      %1078 = vrot.lane.b32.xlu0 %v724, 40
      %v1079 = vpop.permute.xlu0 %1078
      %1080 = vrot.lane.b32.xlu0 %v725, 40
      %v1081 = vpop.permute.xlu0 %1080
      %1082 = vrot.lane.b32.xlu0 %v726, 40
      %v1083 = vpop.permute.xlu0 %1082
      %1084 = vrot.lane.b32.xlu0 %v727, 40
      %v1085 = vpop.permute.xlu0 %1084
      %1086 = vrot.lane.b32.xlu0 %v728, 40
      %v1087 = vpop.permute.xlu0 %1086
      %1088 = vrot.lane.b32.xlu0 %v729, 40
      %v1089 = vpop.permute.xlu0 %1088
      %1090 = vrot.lane.b32.xlu0 %v730, 40
      %v1091 = vpop.permute.xlu0 %1090
      %1092 = vrot.lane.b32.xlu0 %v731, 40
      %v1093 = vpop.permute.xlu0 %1092
      %vm1110 = vcmask 392512
      %1111 = vst.msk [vmem:[#allocation3] sm:$0xff] %vm1110, %v1063
      %1112 = vst.msk [vmem:[#allocation3 + $0x8] sm:$0xff] %vm1110, %v1065
      %1113 = vst.msk [vmem:[#allocation3 + $0x10] sm:$0xff] %vm1110, %v1067
      %1114 = vst.msk [vmem:[#allocation3 + $0x18] sm:$0xff] %vm1110, %v1069
      %1115 = vst.msk [vmem:[#allocation3 + $0x20] sm:$0xff] %vm1110, %v1071
      %1116 = vst.msk [vmem:[#allocation3 + $0x28] sm:$0xff] %vm1110, %v1073
      %1117 = vst.msk [vmem:[#allocation3 + $0x30] sm:$0xff] %vm1110, %v1075
      %1118 = vst.msk [vmem:[#allocation3 + $0x38] sm:$0xff] %vm1110, %v1077
      %1119 = vst.msk [vmem:[#allocation3 + $0x40] sm:$0xff] %vm1110, %v1079
      %1120 = vst.msk [vmem:[#allocation3 + $0x48] sm:$0xff] %vm1110, %v1081
      %1121 = vst.msk [vmem:[#allocation3 + $0x50] sm:$0xff] %vm1110, %v1083
      %1122 = vst.msk [vmem:[#allocation3 + $0x58] sm:$0xff] %vm1110, %v1085
      %1123 = vst.msk [vmem:[#allocation3 + $0x60] sm:$0xff] %vm1110, %v1087
      %1124 = vst.msk [vmem:[#allocation3 + $0x68] sm:$0xff] %vm1110, %v1089
      %1125 = vst.msk [vmem:[#allocation3 + $0x70] sm:$0xff] %vm1110, %v1091
      %1126 = vst.msk [vmem:[#allocation3 + $0x78] sm:$0xff] %vm1110, %v1093
      %1129 = vrot.lane.b32.xlu0 %v651, 48
      %v1130 = vpop.permute.xlu0 %1129
      %1131 = vrot.lane.b32.xlu0 %v652, 48
      %v1132 = vpop.permute.xlu0 %1131
      %1133 = vrot.lane.b32.xlu0 %v653, 48
      %v1134 = vpop.permute.xlu0 %1133
      %1135 = vrot.lane.b32.xlu0 %v654, 48
      %v1136 = vpop.permute.xlu0 %1135
      %1137 = vrot.lane.b32.xlu0 %v655, 48
      %v1138 = vpop.permute.xlu0 %1137
      %1139 = vrot.lane.b32.xlu0 %v656, 48
      %v1140 = vpop.permute.xlu0 %1139
      %1141 = vrot.lane.b32.xlu0 %v657, 48
      %v1142 = vpop.permute.xlu0 %1141
      %1143 = vrot.lane.b32.xlu0 %v658, 48
      %v1144 = vpop.permute.xlu0 %1143
      %1145 = vrot.lane.b32.xlu0 %v659, 48
      %v1146 = vpop.permute.xlu0 %1145
      %1147 = vrot.lane.b32.xlu0 %v660, 48
      %v1148 = vpop.permute.xlu0 %1147
      %1149 = vrot.lane.b32.xlu0 %v661, 48
      %v1150 = vpop.permute.xlu0 %1149
      %1151 = vrot.lane.b32.xlu0 %v662, 48
      %v1152 = vpop.permute.xlu0 %1151
      %1153 = vrot.lane.b32.xlu0 %v663, 48
      %v1154 = vpop.permute.xlu0 %1153
      %1155 = vrot.lane.b32.xlu0 %v664, 48
      %v1156 = vpop.permute.xlu0 %1155
      %1157 = vrot.lane.b32.xlu0 %v665, 48
      %v1158 = vpop.permute.xlu0 %1157
      %1159 = vrot.lane.b32.xlu0 %v666, 48
      %v1160 = vpop.permute.xlu0 %1159
      %vm1177 = vcmask 458112
      %1178 = vst.msk [vmem:[#allocation3] sm:$0xff] %vm1177, %v1130
      %1179 = vst.msk [vmem:[#allocation3 + $0x8] sm:$0xff] %vm1177, %v1132
      %1180 = vst.msk [vmem:[#allocation3 + $0x10] sm:$0xff] %vm1177, %v1134
      %1181 = vst.msk [vmem:[#allocation3 + $0x18] sm:$0xff] %vm1177, %v1136
      %1182 = vst.msk [vmem:[#allocation3 + $0x20] sm:$0xff] %vm1177, %v1138
      %1183 = vst.msk [vmem:[#allocation3 + $0x28] sm:$0xff] %vm1177, %v1140
      %1184 = vst.msk [vmem:[#allocation3 + $0x30] sm:$0xff] %vm1177, %v1142
      %1185 = vst.msk [vmem:[#allocation3 + $0x38] sm:$0xff] %vm1177, %v1144
      %1186 = vst.msk [vmem:[#allocation3 + $0x40] sm:$0xff] %vm1177, %v1146
      %1187 = vst.msk [vmem:[#allocation3 + $0x48] sm:$0xff] %vm1177, %v1148
      %1188 = vst.msk [vmem:[#allocation3 + $0x50] sm:$0xff] %vm1177, %v1150
      %1189 = vst.msk [vmem:[#allocation3 + $0x58] sm:$0xff] %vm1177, %v1152
      %1190 = vst.msk [vmem:[#allocation3 + $0x60] sm:$0xff] %vm1177, %v1154
      %1191 = vst.msk [vmem:[#allocation3 + $0x68] sm:$0xff] %vm1177, %v1156
      %1192 = vst.msk [vmem:[#allocation3 + $0x70] sm:$0xff] %vm1177, %v1158
      %1193 = vst.msk [vmem:[#allocation3 + $0x78] sm:$0xff] %vm1177, %v1160
      %1196 = vrot.lane.b32.xlu0 %v581, 56
      %v1197 = vpop.permute.xlu0 %1196
      %1198 = vrot.lane.b32.xlu0 %v582, 56
      %v1199 = vpop.permute.xlu0 %1198
      %1200 = vrot.lane.b32.xlu0 %v583, 56
      %v1201 = vpop.permute.xlu0 %1200
      %1202 = vrot.lane.b32.xlu0 %v584, 56
      %v1203 = vpop.permute.xlu0 %1202
      %1204 = vrot.lane.b32.xlu0 %v585, 56
      %v1205 = vpop.permute.xlu0 %1204
      %1206 = vrot.lane.b32.xlu0 %v586, 56
      %v1207 = vpop.permute.xlu0 %1206
      %1208 = vrot.lane.b32.xlu0 %v587, 56
      %v1209 = vpop.permute.xlu0 %1208
      %1210 = vrot.lane.b32.xlu0 %v588, 56
      %v1211 = vpop.permute.xlu0 %1210
      %1212 = vrot.lane.b32.xlu0 %v589, 56
      %v1213 = vpop.permute.xlu0 %1212
      %1214 = vrot.lane.b32.xlu0 %v590, 56
      %v1215 = vpop.permute.xlu0 %1214
      %1216 = vrot.lane.b32.xlu0 %v591, 56
      %v1217 = vpop.permute.xlu0 %1216
      %1218 = vrot.lane.b32.xlu0 %v592, 56
      %v1219 = vpop.permute.xlu0 %1218
      %1220 = vrot.lane.b32.xlu0 %v593, 56
      %v1221 = vpop.permute.xlu0 %1220
      %1222 = vrot.lane.b32.xlu0 %v594, 56
      %v1223 = vpop.permute.xlu0 %1222
      %1224 = vrot.lane.b32.xlu0 %v595, 56
      %v1225 = vpop.permute.xlu0 %1224
      %1226 = vrot.lane.b32.xlu0 %v596, 56
      %v1227 = vpop.permute.xlu0 %1226
      %vm1244 = vcmask 523712
      %1245 = vst.msk [vmem:[#allocation3] sm:$0xff] %vm1244, %v1197
      %1246 = vst.msk [vmem:[#allocation3 + $0x8] sm:$0xff] %vm1244, %v1199
      %1247 = vst.msk [vmem:[#allocation3 + $0x10] sm:$0xff] %vm1244, %v1201
      %1248 = vst.msk [vmem:[#allocation3 + $0x18] sm:$0xff] %vm1244, %v1203
      %1249 = vst.msk [vmem:[#allocation3 + $0x20] sm:$0xff] %vm1244, %v1205
      %1250 = vst.msk [vmem:[#allocation3 + $0x28] sm:$0xff] %vm1244, %v1207
      %1251 = vst.msk [vmem:[#allocation3 + $0x30] sm:$0xff] %vm1244, %v1209
      %1252 = vst.msk [vmem:[#allocation3 + $0x38] sm:$0xff] %vm1244, %v1211
      %1253 = vst.msk [vmem:[#allocation3 + $0x40] sm:$0xff] %vm1244, %v1213
      %1254 = vst.msk [vmem:[#allocation3 + $0x48] sm:$0xff] %vm1244, %v1215
      %1255 = vst.msk [vmem:[#allocation3 + $0x50] sm:$0xff] %vm1244, %v1217
      %1256 = vst.msk [vmem:[#allocation3 + $0x58] sm:$0xff] %vm1244, %v1219
      %1257 = vst.msk [vmem:[#allocation3 + $0x60] sm:$0xff] %vm1244, %v1221
      %1258 = vst.msk [vmem:[#allocation3 + $0x68] sm:$0xff] %vm1244, %v1223
      %1259 = vst.msk [vmem:[#allocation3 + $0x70] sm:$0xff] %vm1244, %v1225
      %1260 = vst.msk [vmem:[#allocation3 + $0x78] sm:$0xff] %vm1244, %v1227
      %1263 = vrot.lane.b32.xlu0 %v718, 64
      %v1264 = vpop.permute.xlu0 %1263
      %1265 = vrot.lane.b32.xlu0 %v719, 64
      %v1266 = vpop.permute.xlu0 %1265
      %1267 = vrot.lane.b32.xlu0 %v720, 64
      %v1268 = vpop.permute.xlu0 %1267
      %1269 = vrot.lane.b32.xlu0 %v721, 64
      %v1270 = vpop.permute.xlu0 %1269
      %1271 = vrot.lane.b32.xlu0 %v722, 64
      %v1272 = vpop.permute.xlu0 %1271
      %1273 = vrot.lane.b32.xlu0 %v723, 64
      %v1274 = vpop.permute.xlu0 %1273
      %1275 = vrot.lane.b32.xlu0 %v724, 64
      %v1276 = vpop.permute.xlu0 %1275
      %1277 = vrot.lane.b32.xlu0 %v725, 64
      %v1278 = vpop.permute.xlu0 %1277
      %1279 = vrot.lane.b32.xlu0 %v726, 64
      %v1280 = vpop.permute.xlu0 %1279
      %1281 = vrot.lane.b32.xlu0 %v727, 64
      %v1282 = vpop.permute.xlu0 %1281
      %1283 = vrot.lane.b32.xlu0 %v728, 64
      %v1284 = vpop.permute.xlu0 %1283
      %1285 = vrot.lane.b32.xlu0 %v729, 64
      %v1286 = vpop.permute.xlu0 %1285
      %1287 = vrot.lane.b32.xlu0 %v730, 64
      %v1288 = vpop.permute.xlu0 %1287
      %1289 = vrot.lane.b32.xlu0 %v731, 64
      %v1290 = vpop.permute.xlu0 %1289
      %1291 = vrot.lane.b32.xlu0 %v732, 64
      %v1292 = vpop.permute.xlu0 %1291
      %1293 = vrot.lane.b32.xlu0 %v733, 64
      %v1294 = vpop.permute.xlu0 %1293
      %vm1311 = vcmask 589312
      %1312 = vst.msk [vmem:[#allocation3] sm:$0xff] %vm1311, %v1264
      %1313 = vst.msk [vmem:[#allocation3 + $0x8] sm:$0xff] %vm1311, %v1266
      %1314 = vst.msk [vmem:[#allocation3 + $0x10] sm:$0xff] %vm1311, %v1268
      %1315 = vst.msk [vmem:[#allocation3 + $0x18] sm:$0xff] %vm1311, %v1270
      %1316 = vst.msk [vmem:[#allocation3 + $0x20] sm:$0xff] %vm1311, %v1272
      %1317 = vst.msk [vmem:[#allocation3 + $0x28] sm:$0xff] %vm1311, %v1274
      %1318 = vst.msk [vmem:[#allocation3 + $0x30] sm:$0xff] %vm1311, %v1276
      %1319 = vst.msk [vmem:[#allocation3 + $0x38] sm:$0xff] %vm1311, %v1278
      %1320 = vst.msk [vmem:[#allocation3 + $0x40] sm:$0xff] %vm1311, %v1280
      %1321 = vst.msk [vmem:[#allocation3 + $0x48] sm:$0xff] %vm1311, %v1282
      %1322 = vst.msk [vmem:[#allocation3 + $0x50] sm:$0xff] %vm1311, %v1284
      %1323 = vst.msk [vmem:[#allocation3 + $0x58] sm:$0xff] %vm1311, %v1286
      %1324 = vst.msk [vmem:[#allocation3 + $0x60] sm:$0xff] %vm1311, %v1288
      %1325 = vst.msk [vmem:[#allocation3 + $0x68] sm:$0xff] %vm1311, %v1290
      %1326 = vst.msk [vmem:[#allocation3 + $0x70] sm:$0xff] %vm1311, %v1292
      %1327 = vst.msk [vmem:[#allocation3 + $0x78] sm:$0xff] %vm1311, %v1294
      %v1328 = vld [vmem:[#allocation3] sm:$0xff]
      %v1329 = vld [vmem:[#allocation3 + $0x8] sm:$0xff]
      %v1330 = vld [vmem:[#allocation3 + $0x10] sm:$0xff]
      %v1331 = vld [vmem:[#allocation3 + $0x18] sm:$0xff]
      %v1332 = vld [vmem:[#allocation3 + $0x20] sm:$0xff]
      %v1333 = vld [vmem:[#allocation3 + $0x28] sm:$0xff]
      %v1334 = vld [vmem:[#allocation3 + $0x30] sm:$0xff]
      %v1335 = vld [vmem:[#allocation3 + $0x38] sm:$0xff]
      %v1336 = vld [vmem:[#allocation3 + $0x40] sm:$0xff]
      %v1337 = vld [vmem:[#allocation3 + $0x48] sm:$0xff]
      %v1338 = vld [vmem:[#allocation3 + $0x50] sm:$0xff]
      %v1339 = vld [vmem:[#allocation3 + $0x58] sm:$0xff]
      %v1340 = vld [vmem:[#allocation3 + $0x60] sm:$0xff]
      %v1341 = vld [vmem:[#allocation3 + $0x68] sm:$0xff]
      %v1342 = vld [vmem:[#allocation3 + $0x70] sm:$0xff]
      %v1343 = vld [vmem:[#allocation3 + $0x78] sm:$0xff]
      %v1344 = vpack.c.bf16 %v1329, %v1328
      %v1345 = vpack.c.bf16 %v1331, %v1330
      %v1346 = vpack.c.bf16 %v1333, %v1332
      %v1347 = vpack.c.bf16 %v1335, %v1334
      %v1348 = vpack.c.bf16 %v1337, %v1336
      %v1349 = vpack.c.bf16 %v1339, %v1338
      %v1350 = vpack.c.bf16 %v1341, %v1340
      %v1351 = vpack.c.bf16 %v1343, %v1342
      %v1352 = vld [vmem:[%s2] sm:$0xf]
      %v1353 = vld [vmem:[%s2 + $0x4] sm:$0xf]
      %v1354 = vld [vmem:[%s2 + $0x8] sm:$0xf]
      %v1355 = vld [vmem:[%s2 + $0xc] sm:$0xf]
      %v1356 = vld [vmem:[%s2 + $0x10] sm:$0xf]
      %v1357 = vld [vmem:[%s2 + $0x14] sm:$0xf]
      %v1358 = vld [vmem:[%s2 + $0x18] sm:$0xf]
      %v1359 = vld [vmem:[%s2 + $0x1c] sm:$0xf]
      %v1360 = vld [vmem:[%s2 + $0x20] sm:$0xf]
      %v1361 = vld [vmem:[%s3] sm:$0x1]
      %v1363 = vlaneseq
      %v1364 = vshrl.u32 %v1363, 7
      %v1365 = vsub.s32 0, %v1364
      %v1366 = vrot.slane %v1361, %v1365
      %v1377 = vunpack.c.l.b16 %v1352
      %v1378 = vunpack.c.l.b16 %v1353
      %v1379 = vunpack.c.l.b16 %v1354
      %v1380 = vunpack.c.l.b16 %v1355
      %v1381 = vunpack.c.l.b16 %v1356
      %v1382 = vunpack.c.l.b16 %v1357
      %v1383 = vunpack.c.l.b16 %v1358
      %v1384 = vunpack.c.l.b16 %v1359
      %v1385 = vunpack.c.l.b16 %v1360
      %v1386 = vpack.c.b16 %v1378, %v1377
      %v1387 = vpack.c.b16 %v1380, %v1379
      %v1388 = vpack.c.b16 %v1382, %v1381
      %v1389 = vpack.c.b16 %v1384, %v1383
      %v1390 = vpack.c.b16 %v1385, %v1385
      %vm1395 = vcmask 588800
      %v1397 = vsel %vm1395, %v1344, 0
      %v1400 = vsel %vm1395, %v1345, 0
      %v1403 = vsel %vm1395, %v1346, 0
      %v1406 = vsel %vm1395, %v1347, 0
      %v1409 = vsel %vm1395, %v1348, 0
      %v1412 = vsel %vm1395, %v1349, 0
      %v1415 = vsel %vm1395, %v1350, 0
      %v1418 = vsel %vm1395, %v1351, 0
      %vm1420 = vcmask 1043456
      %v1422 = vsel %vm1420, %v1390, 0
      %1424 = vmatprep.subr.bf16.mxu0 0
      %1425 = vmatpush1.bf16.msra.mxu0 %v1386
      %1426 = vmatprep.subr.bf16.mxu0 0
      %1427 = vmatpush1.bf16.msra.mxu0 %v1387
      %1428 = vmatprep.subr.bf16.mxu0 0
      %1429 = vmatpush1.bf16.msra.mxu0 %v1388
      %1430 = vmatprep.subr.bf16.mxu0 0
      %1431 = vmatpush1.bf16.msra.mxu0 %v1389
      %1432 = vmatprep.subr.bf16.mxu0 0
      %1433 = vmatpush1.bf16.msra.mxu0 %v1422
      %1434 = vmatprep.subr.bf16.mxu0 0
      %1435 = vmatpush1.bf16.msra.mxu0 0
      %1436 = vmatprep.subr.bf16.mxu0 0
      %1437 = vmatpush1.bf16.msra.mxu0 0
      %1438 = vmatprep.subr.bf16.mxu0 0
      %1439 = vmatpush1.bf16.msra.mxu0 0
      %1440 = vmatprep.subr.bf16.mxu0 0
      %1441 = vmatpush1.bf16.msra.mxu0 0
      %1442 = vmatprep.subr.bf16.mxu0 0
      %1443 = vmatpush1.bf16.msra.mxu0 0
      %1444 = vmatprep.subr.bf16.mxu0 0
      %1445 = vmatpush1.bf16.msra.mxu0 0
      %1446 = vmatprep.subr.bf16.mxu0 0
      %1447 = vmatpush1.bf16.msra.mxu0 0
      %1448 = vmatprep.subr.bf16.mxu0 0
      %1449 = vmatpush1.bf16.msra.mxu0 0
      %1450 = vmatprep.subr.bf16.mxu0 0
      %1451 = vmatpush1.bf16.msra.mxu0 0
      %1452 = vmatprep.subr.bf16.mxu0 0
      %1453 = vmatpush1.bf16.msra.mxu0 0
      %1454 = vmatprep.subr.bf16.mxu0 0
      %1455 = vmatpush1.bf16.msra.mxu0 0
      %1456 = vmatprep.mubr.bf16.mxu0 0
      %1457 = vmatmul.mubr.bf16.gmra.mrb[0].mxu0 %v1397
      %v1458 = vpop.f32.mrb[0].mxu0
      %v1459 = vadd.f32 %v1366, %v1458
      %v1460 = vpop.f32.mrb[0].mxu0
      %v1461 = vpop.f32.mrb[0].mxu0
      %v1462 = vadd.f32 %v1366, %v1461
      %v1463 = vpop.f32.mrb[0].mxu0
      %1464 = vmatprep.mubr.bf16.mxu0 0
      %1465 = vmatmul.mubr.bf16.gmra.mrb[0].mxu0 %v1400
      %v1466 = vpop.f32.mrb[0].mxu0
      %v1467 = vadd.f32 %v1366, %v1466
      %v1468 = vpop.f32.mrb[0].mxu0
      %v1469 = vpop.f32.mrb[0].mxu0
      %v1470 = vadd.f32 %v1366, %v1469
      %v1471 = vpop.f32.mrb[0].mxu0
      %1472 = vmatprep.mubr.bf16.mxu0 0
      %1473 = vmatmul.mubr.bf16.gmra.mrb[0].mxu0 %v1403
      %v1474 = vpop.f32.mrb[0].mxu0
      %v1475 = vadd.f32 %v1366, %v1474
      %v1476 = vpop.f32.mrb[0].mxu0
      %v1477 = vpop.f32.mrb[0].mxu0
      %v1478 = vadd.f32 %v1366, %v1477
      %v1479 = vpop.f32.mrb[0].mxu0
      %1480 = vmatprep.mubr.bf16.mxu0 0
      %1481 = vmatmul.mubr.bf16.gmra.mrb[0].mxu0 %v1406
      %v1482 = vpop.f32.mrb[0].mxu0
      %v1483 = vadd.f32 %v1366, %v1482
      %v1484 = vpop.f32.mrb[0].mxu0
      %v1485 = vpop.f32.mrb[0].mxu0
      %v1486 = vadd.f32 %v1366, %v1485
      %v1487 = vpop.f32.mrb[0].mxu0
      %1488 = vmatprep.mubr.bf16.mxu0 0
      %1489 = vmatmul.mubr.bf16.gmra.mrb[0].mxu0 %v1409
      %v1490 = vpop.f32.mrb[0].mxu0
      %v1491 = vadd.f32 %v1366, %v1490
      %v1492 = vpop.f32.mrb[0].mxu0
      %v1493 = vpop.f32.mrb[0].mxu0
      %v1494 = vadd.f32 %v1366, %v1493
      %v1495 = vpop.f32.mrb[0].mxu0
      %1496 = vmatprep.mubr.bf16.mxu0 0
      %1497 = vmatmul.mubr.bf16.gmra.mrb[0].mxu0 %v1412
      %v1498 = vpop.f32.mrb[0].mxu0
      %v1499 = vadd.f32 %v1366, %v1498
      %v1500 = vpop.f32.mrb[0].mxu0
      %v1501 = vpop.f32.mrb[0].mxu0
      %v1502 = vadd.f32 %v1366, %v1501
      %v1503 = vpop.f32.mrb[0].mxu0
      %1504 = vmatprep.mubr.bf16.mxu0 0
      %1505 = vmatmul.mubr.bf16.gmra.mrb[0].mxu0 %v1415
      %v1506 = vpop.f32.mrb[0].mxu0
      %v1507 = vadd.f32 %v1366, %v1506
      %v1508 = vpop.f32.mrb[0].mxu0
      %v1509 = vpop.f32.mrb[0].mxu0
      %v1510 = vadd.f32 %v1366, %v1509
      %v1511 = vpop.f32.mrb[0].mxu0
      %1512 = vmatprep.mubr.bf16.mxu0 0
      %1513 = vmatmul.mubr.bf16.gmra.mrb[0].mxu0 %v1418
      %v1514 = vpop.f32.mrb[0].mxu0
      %v1515 = vadd.f32 %v1366, %v1514
      %v1516 = vpop.f32.mrb[0].mxu0
      %v1517 = vpop.f32.mrb[0].mxu0
      %v1518 = vadd.f32 %v1366, %v1517
      %v1519 = vpop.f32.mrb[0].mxu0
      %1520 = vdwg.mxu0
      %vm1521 = vcmask 31744
      %1522 = vst.msk [vmem:[%s445] sm:$0xff] %vm1521, %v1459
      %1523 = vst.msk [vmem:[%s445 + $0x8] sm:$0xff] %vm1521, %v1462
      %1524 = vst.msk [vmem:[%s445 + $0x10] sm:$0xff] %vm1521, %v1467
      %1525 = vst.msk [vmem:[%s445 + $0x18] sm:$0xff] %vm1521, %v1470
      %1526 = vst.msk [vmem:[%s445 + $0x20] sm:$0xff] %vm1521, %v1475
      %1527 = vst.msk [vmem:[%s445 + $0x28] sm:$0xff] %vm1521, %v1478
      %1528 = vst.msk [vmem:[%s445 + $0x30] sm:$0xff] %vm1521, %v1483
      %1529 = vst.msk [vmem:[%s445 + $0x38] sm:$0xff] %vm1521, %v1486
      %1530 = vst.msk [vmem:[%s445 + $0x40] sm:$0xff] %vm1521, %v1491
      %1531 = vst.msk [vmem:[%s445 + $0x48] sm:$0xff] %vm1521, %v1494
      %1532 = vst.msk [vmem:[%s445 + $0x50] sm:$0xff] %vm1521, %v1499
      %1533 = vst.msk [vmem:[%s445 + $0x58] sm:$0xff] %vm1521, %v1502
      %1534 = vst.msk [vmem:[%s445 + $0x60] sm:$0xff] %vm1521, %v1507
      %1535 = vst.msk [vmem:[%s445 + $0x68] sm:$0xff] %vm1521, %v1510
      %1536 = vst.msk [vmem:[%s445 + $0x70] sm:$0xff] %vm1521, %v1515
      %1537 = vst.msk [vmem:[%s445 + $0x78] sm:$0xff] %vm1521, %v1518
      %s1538 = smul.u32 8, %s23
      %p1539 = scmp.lt.s32.totalorder %s22, 1
      %s1540 = scalar_select %p1539, %s22, 1
      %p1541 = scmp.lt.s32.totalorder %s1538, 15
      %s1542 = scalar_select %p1541, %s1538, 15
      %s1543 = smul.addr %s1542, 2
      %s1544 = smul.addr %s1540, 32
      %s1545 = sadd.s32 %s1543, %s1544
      %s1546 = smul.addr %s1545, 8
      %s1547 = scalar_lea.vmem %s7, %s1546
      // Predicated region
      $region49: #{residual_dense_net.9} parent=47 // pred_check
        %p1548 = pneg %p234
      $region50: #{residual_dense_net.9} parent=47 // pred_check_branch
        %1550 = sbr.rel (%p1548) target = $region52
      $region51: #{residual_dense_net.9} parent=47 // pred_region
        %s1551 = smul.u32 8, %s23
      $region52: #{residual_dense_net.9} parent=47 // pred_fallthru
        _
    $region48: #{residual_dense_net.9} parent=5 // pred_fallthru
      _
    %p1552 = scmp.le.s32.totalorder 2, %s13
    // Predicated region
    $region53: #{residual_dense_net.9} parent=5 // pred_check
      %p1553 = pneg %p1552
    $region54: #{residual_dense_net.9} parent=5 // pred_check_branch
      %1555 = sbr.rel (%p1553) target = $region56
    $region55: #{residual_dense_net.9} parent=5 // pred_region
      %s1556 = ssub.s32 %s13, 2
      // Predicated region
      $region57: #{residual_dense_net.9} parent=55 // pred_check
        %p1557 = pneg %p240
      $region58: #{residual_dense_net.9} parent=55 // pred_check_branch
        %1559 = sbr.rel (%p1557) target = $region60
      $region59: #{residual_dense_net.9} parent=55 // pred_region
        %s1560 = smul.u32 8, %s25
        %p1561 = scmp.lt.s32.totalorder %s24, 1
        %s1562 = scalar_select %p1561, %s24, 1
        %p1563 = scmp.lt.s32.totalorder %s1560, 15
        %s1564 = scalar_select %p1563, %s1560, 15
        %s1565 = smul.addr %s1564, 2
        %s1566 = smul.addr %s1562, 32
        %s1567 = sadd.s32 %s1565, %s1566
        %s1568 = smul.addr %s1567, 8
        %s1569 = scalar_lea.vmem %s7, %s1568
      $region60: #{residual_dense_net.9} parent=55 // pred_fallthru
        _
    $region56: #{residual_dense_net.9} parent=5 // pred_fallthru
      _
  $region6: #{residual_dense_net.9} parent=0 // loop_footer
    %s17 = sadd.s32 1, %s13
  $region7: #{residual_dense_net.9} parent=0 // loop_footer_branch
    %12 = sbr.rel target = $region3
  $region8: #{residual_dense_net.9} parent=0 // loop_exit
    _

// kernel: residual_dense_net.10
$region0: #{residual_dense_net.10}
  #allocation0 [shape = 'u32[]', space=smem, size = 0x4, offset = 0x4, fixed_abs, tag = 'smem constant byte address 0x4 - core index']
  #allocation1 [shape = 'u32[144,128]{1,0:T(1,128)}', space=vmem, size = 0x12000, scoped, tag = 'internal scratch']
  #allocation2 [shape = 'f32[1,12]{1,0:T(1,128)}', space=vmem, size = 0x200, scoped, tag = 'scratch operand']
  #allocation3 [shape = 'f32[1,12]{1,0:T(1,128)}', space=vmem, size = 0x200, scoped, tag = 'scratch operand']
  %s0 = inlined_call_operand.vmem [shape: f32[1,12], index: 0, kind: input, shape index: {}]
  %s1 = inlined_call_operand.vmem [shape: f32[1,12], index: 1, kind: input, shape index: {}]
  %s2 = inlined_call_operand.vmem [shape: f32[2,16,16,12], index: 2, kind: input, shape index: {}]
  %s3 = inlined_call_operand.vmem [shape: f32[1,12], index: 3, kind: output, shape index: {0}]
  %s4 = inlined_call_operand.vmem [shape: f32[1,12], index: 4, kind: output, shape index: {1}]
  %5 = xla_tuple %s3, %s4
  %s6 = sld [smem:[#allocation0]]
  $region61: #{residual_dense_net.10} parent=0
    _
  %s8 = ssub.s32 1, %s6
  %s9 = scalar_select 0, %s8, %s6
  loop: start=0, step=1, limit=6
  $region2: #{residual_dense_net.10} parent=0 // loop_pre_header
    _
  $region3: #{residual_dense_net.10} parent=0 // loop_header
    %s11 = sphi 0, %s15
    %p12 = scmp.ge.s32.totalorder %s11, 6
    %s18 = sphi 0, %s30
    %s19 = sphi 0, %s26
    %s20 = sphi 0, %s18
    %s21 = sphi 0, %s19
    %s22 = sphi 0, %s20
    %s23 = sphi 0, %s21
    %s31 = sphi 0, %s31
    %s33 = sphi 0, %s31
    %s34 = sphi 0, %s33
    %s48 = sphi 0, %s34
    %s52 = sphi 0, %s52
    %s54 = sphi 0, %s52
    %s55 = sphi 0, %s54
    %s69 = sphi 0, %s55
    %s77 = sphi 0, %s79
    %s80 = sphi 0, %s77
    %s81 = sphi 0, %s80
    %s97 = sphi 0, %s81
    %s101 = sphi 0, %s101
    %s103 = sphi 0, %s101
    %s104 = sphi 0, %s103
    %s118 = sphi 0, %s104
    %s122 = sphi 0, %s122
    %s124 = sphi 0, %s122
    %s125 = sphi 0, %s124
    %s139 = sphi 0, %s125
  $region4: #{residual_dense_net.10} parent=0 // loop_header_branch
    %14 = sbr.rel (%p12) target = $region8
  $region5: #{residual_dense_net.10} parent=0 // loop_body
    %s16 = ssub.s32 %s11, 1
    %s17 = ssub.s32 %s11, 2
    %s24 = sadd.s32 1, %s19
    %p25 = scmp.ge.s32.totalorder %s24, 2
    %s26 = scalar_select %p25, 0, %s24
    %s27 = sadd.s32 1, %s18
    %s28 = scalar_select %p25, %s27, %s18
    %p29 = scmp.ge.s32.totalorder %s28, 2
    %s30 = scalar_select %p29, 0, %s28
    %s32 = sadd.s32 %s31, 1
    %p35 = scmp.eq.s32.totalorder %s11, 3
    %p36 = scmp.ne.s32.totalorder %s31, %s33
    %p37 = scmp.eq.s32.totalorder %s11, 0
    %p38 = por %p36, %p37
    %p39 = scmp.ne.s32.totalorder %s31, %s33
    %p40 = scmp.eq.s32.totalorder %s16, 3
    %p41 = por %p39, %p40
    %p42 = scmp.ne.s32.totalorder %s33, %s34
    %p43 = scmp.eq.s32.totalorder %s16, 0
    %p44 = por %p42, %p43
    %p45 = scmp.ne.s32.totalorder %s33, %s34
    %p46 = scmp.eq.s32.totalorder %s17, 3
    %p47 = por %p45, %p46
    %p49 = scmp.ne.s32.totalorder %s34, %s48
    %p50 = scmp.eq.s32.totalorder %s17, 0
    %p51 = por %p49, %p50
    %s53 = sadd.s32 %s52, 1
    %p56 = scmp.eq.s32.totalorder %s11, 3
    %p57 = scmp.ne.s32.totalorder %s52, %s54
    %p58 = scmp.eq.s32.totalorder %s11, 0
    %p59 = por %p57, %p58
    %p60 = scmp.ne.s32.totalorder %s52, %s54
    %p61 = scmp.eq.s32.totalorder %s16, 3
    %p62 = por %p60, %p61
    %p63 = scmp.ne.s32.totalorder %s54, %s55
    %p64 = scmp.eq.s32.totalorder %s16, 0
    %p65 = por %p63, %p64
    %p66 = scmp.ne.s32.totalorder %s54, %s55
    %p67 = scmp.eq.s32.totalorder %s17, 3
    %p68 = por %p66, %p67
    %p70 = scmp.ne.s32.totalorder %s55, %s69
    %p71 = scmp.eq.s32.totalorder %s17, 0
    %p72 = por %p70, %p71
    %s73 = ssub.s32 %s18, %s30
    %s74 = ssub.s32 %s19, %s26
    %s75 = sor.u32 %s73, %s74
    %p76 = scmp.eq.s32.totalorder %s75, 0
    %s78 = sadd.s32 %s77, 1
    %s79 = scalar_select %p76, %s77, %s78
    %p82 = pneg %p76
    %p83 = scmp.eq.s32.totalorder %s11, 3
    %p84 = por %p82, %p83
    %p85 = scmp.ne.s32.totalorder %s77, %s80
    %p86 = scmp.eq.s32.totalorder %s11, 0
    %p87 = por %p85, %p86
    %p88 = scmp.ne.s32.totalorder %s77, %s80
    %p89 = scmp.eq.s32.totalorder %s16, 3
    %p90 = por %p88, %p89
    %p91 = scmp.ne.s32.totalorder %s80, %s81
    %p92 = scmp.eq.s32.totalorder %s16, 0
    %p93 = por %p91, %p92
    %p94 = scmp.ne.s32.totalorder %s80, %s81
    %p95 = scmp.eq.s32.totalorder %s17, 3
    %p96 = por %p94, %p95
    %p98 = scmp.ne.s32.totalorder %s81, %s97
    %p99 = scmp.eq.s32.totalorder %s17, 0
    %p100 = por %p98, %p99
    %s102 = sadd.s32 %s101, 1
    %p105 = scmp.eq.s32.totalorder %s11, 3
    %p106 = scmp.ne.s32.totalorder %s101, %s103
    %p107 = scmp.eq.s32.totalorder %s11, 0
    %p108 = por %p106, %p107
    %p109 = scmp.ne.s32.totalorder %s101, %s103
    %p110 = scmp.eq.s32.totalorder %s16, 3
    %p111 = por %p109, %p110
    %p112 = scmp.ne.s32.totalorder %s103, %s104
    %p113 = scmp.eq.s32.totalorder %s16, 0
    %p114 = por %p112, %p113
    %p115 = scmp.ne.s32.totalorder %s103, %s104
    %p116 = scmp.eq.s32.totalorder %s17, 3
    %p117 = por %p115, %p116
    %p119 = scmp.ne.s32.totalorder %s104, %s118
    %p120 = scmp.eq.s32.totalorder %s17, 0
    %p121 = por %p119, %p120
    %s123 = sadd.s32 %s122, 1
    %p126 = scmp.eq.s32.totalorder %s11, 3
    %p127 = scmp.ne.s32.totalorder %s122, %s124
    %p128 = scmp.eq.s32.totalorder %s11, 0
    %p129 = por %p127, %p128
    %p130 = scmp.ne.s32.totalorder %s122, %s124
    %p131 = scmp.eq.s32.totalorder %s16, 3
    %p132 = por %p130, %p131
    %p133 = scmp.ne.s32.totalorder %s124, %s125
    %p134 = scmp.eq.s32.totalorder %s16, 0
    %p135 = por %p133, %p134
    %p136 = scmp.ne.s32.totalorder %s124, %s125
    %p137 = scmp.eq.s32.totalorder %s17, 3
    %p138 = por %p136, %p137
    %p140 = scmp.ne.s32.totalorder %s125, %s139
    %p141 = scmp.eq.s32.totalorder %s17, 0
    %p142 = por %p140, %p141
    %p143 = scmp.le.s32.totalorder 1, %s11
    %p144 = scmp.lt.s32.totalorder %s11, 5
    %p145 = pnand %p143, %p144
    %p146 = pneg %p145
    // Predicated region
    $region9: #{residual_dense_net.10} parent=5 // pred_check
      _
    $region10: #{residual_dense_net.10} parent=5 // pred_check_branch
      %148 = sbr.rel (%p145) target = $region12
    $region11: #{residual_dense_net.10} parent=5 // pred_region
      %s149 = ssub.s32 %s11, 1
      // Predicated region
      $region13: #{residual_dense_net.10} parent=11 // pred_check
        %p150 = pneg %p44
      $region14: #{residual_dense_net.10} parent=11 // pred_check_branch
        %152 = sbr.rel (%p150) target = $region16
      $region15: #{residual_dense_net.10} parent=11 // pred_region
        _
      $region16: #{residual_dense_net.10} parent=11 // pred_fallthru
        _
      // Predicated region
      $region17: #{residual_dense_net.10} parent=11 // pred_check
        %p153 = pneg %p65
      $region18: #{residual_dense_net.10} parent=11 // pred_check_branch
        %155 = sbr.rel (%p153) target = $region20
      $region19: #{residual_dense_net.10} parent=11 // pred_region
        _
      $region20: #{residual_dense_net.10} parent=11 // pred_fallthru
        _
    $region12: #{residual_dense_net.10} parent=5 // pred_fallthru
      _
    %p156 = scmp.lt.s32.totalorder %s11, 4
    // Predicated region
    $region21: #{residual_dense_net.10} parent=5 // pred_check
      %p157 = pneg %p156
    $region22: #{residual_dense_net.10} parent=5 // pred_check_branch
      %159 = sbr.rel (%p157) target = $region24
    $region23: #{residual_dense_net.10} parent=5 // pred_region
      // Predicated region
      $region25: #{residual_dense_net.10} parent=23 // pred_check
        %p160 = pneg %p87
      $region26: #{residual_dense_net.10} parent=23 // pred_check_branch
        %162 = sbr.rel (%p160) target = $region28
      $region27: #{residual_dense_net.10} parent=23 // pred_region
        %s163 = smul.u32 8, %s19
        %p164 = scmp.lt.s32.totalorder %s18, 1
        %s165 = scalar_select %p164, %s18, 1
        %p166 = scmp.lt.s32.totalorder %s163, 15
        %s167 = scalar_select %p166, %s163, 15
        %s168 = smul.addr %s167, 2
        %s169 = smul.addr %s165, 32
        %s170 = sadd.s32 %s168, %s169
        %s171 = smul.addr %s170, 8
        %s172 = scalar_lea.vmem %s2, %s171
        %s173 = smul.u32 8, %s19
      $region28: #{residual_dense_net.10} parent=23 // pred_fallthru
        _
    $region24: #{residual_dense_net.10} parent=5 // pred_fallthru
      _
    %p174 = scmp.le.s32.totalorder 1, %s11
    %p175 = scmp.lt.s32.totalorder %s11, 5
    %p176 = pnand %p174, %p175
    %p177 = pneg %p176
    // Predicated region
    $region29: #{residual_dense_net.10} parent=5 // pred_check
      _
    $region30: #{residual_dense_net.10} parent=5 // pred_check_branch
      %179 = sbr.rel (%p176) target = $region32
    $region31: #{residual_dense_net.10} parent=5 // pred_region
      %s180 = ssub.s32 %s11, 1
      %p181 = pneg %p44
      %p182 = pneg %p41
      %p183 = pneg %p65
      %p184 = pneg %p62
      %s185 = smul.u32 8, %s21
      %p186 = scmp.lt.s32.totalorder %s20, 1
      %s187 = scalar_select %p186, %s20, 1
      %p188 = scmp.lt.s32.totalorder %s185, 15
      %s189 = scalar_select %p188, %s185, 15
      %s190 = smul.addr %s189, 2
      %s191 = smul.addr %s187, 32
      %s192 = sadd.s32 %s190, %s191
      %s193 = smul.addr %s192, 8
      %s194 = scalar_lea.vmem %s2, %s193
      %p195 = pneg %p93
      %p196 = pneg %p90
      %p197 = pneg %p114
      %p198 = pneg %p111
      %p199 = pneg %p135
      %p200 = pneg %p132
      %s201 = smul.u32 8, %s21
      %p202 = scmp.lt.s32.totalorder %s20, 1
      %s203 = scalar_select %p202, %s20, 1
      %p204 = scmp.lt.s32.totalorder %s201, 15
      %s205 = scalar_select %p204, %s201, 15
      %s206 = smul.addr %s205, 2
      %s207 = smul.addr %s203, 32
      %s208 = sadd.s32 %s206, %s207
      %s209 = smul.addr %s208, 8
      %s210 = scalar_lea.vmem %s2, %s209
      %s211 = smul.u32 8, %s21
      %p212 = scmp.eq.s32.totalorder %s20, 0
      %p213 = scmp.eq.s32.totalorder %s21, 0
      %p214 = pnand %p212, %p213
      %p215 = pneg %p214
      // Predicated region
      $region33: #{residual_dense_net.10} parent=31 // pred_check
        _
      $region34: #{residual_dense_net.10} parent=31 // pred_check_branch
        %217 = sbr.rel (%p214) target = $region36
      $region35: #{residual_dense_net.10} parent=31 // pred_region
        %vm218 = vcmask 90112
        %219 = vst.msk [vmem:[#allocation2] sm:$0x1] %vm218, 0.0
        %220 = vst.msk [vmem:[#allocation3] sm:$0x1] %vm218, 0.0
      $region36: #{residual_dense_net.10} parent=31 // pred_fallthru
        _
      %v221 = vld [vmem:[%s210] sm:$0xff]
      %v222 = vld [vmem:[%s210 + $0x8] sm:$0xff]
      %v223 = vld [vmem:[%s210 + $0x10] sm:$0xff]
      %v224 = vld [vmem:[%s210 + $0x18] sm:$0xff]
      %v225 = vld [vmem:[%s210 + $0x20] sm:$0xff]
      %v226 = vld [vmem:[%s210 + $0x28] sm:$0xff]
      %v227 = vld [vmem:[%s210 + $0x30] sm:$0xff]
      %v228 = vld [vmem:[%s210 + $0x38] sm:$0xff]
      %v229 = vld [vmem:[%s210 + $0x40] sm:$0xff]
      %v230 = vld [vmem:[%s210 + $0x48] sm:$0xff]
      %v231 = vld [vmem:[%s210 + $0x50] sm:$0xff]
      %v232 = vld [vmem:[%s210 + $0x58] sm:$0xff]
      %v233 = vld [vmem:[%s210 + $0x60] sm:$0xff]
      %v234 = vld [vmem:[%s210 + $0x68] sm:$0xff]
      %v235 = vld [vmem:[%s210 + $0x70] sm:$0xff]
      %v236 = vld [vmem:[%s210 + $0x78] sm:$0xff]
      %v237 = vld [vmem:[#allocation2] sm:$0x1]
      %vm238 = vcmask 97280
      %v239 = vsel %vm238, %v221, 0.0
      %v240 = vsel %vm238, %v222, 0.0
      %v241 = vadd.f32 %v239, %v240
      %v242 = vsel %vm238, %v223, 0.0
      %v243 = vadd.f32 %v241, %v242
      %v244 = vsel %vm238, %v224, 0.0
      %v245 = vadd.f32 %v243, %v244
      %v246 = vsel %vm238, %v225, 0.0
      %v247 = vadd.f32 %v245, %v246
      %v248 = vsel %vm238, %v226, 0.0
      %v249 = vadd.f32 %v247, %v248
      %v250 = vsel %vm238, %v227, 0.0
      %v251 = vadd.f32 %v249, %v250
      %v252 = vsel %vm238, %v228, 0.0
      %v253 = vadd.f32 %v251, %v252
      %v254 = vsel %vm238, %v229, 0.0
      %v255 = vadd.f32 %v253, %v254
      %v256 = vsel %vm238, %v230, 0.0
      %v257 = vadd.f32 %v255, %v256
      %v258 = vsel %vm238, %v231, 0.0
      %v259 = vadd.f32 %v257, %v258
      %v260 = vsel %vm238, %v232, 0.0
      %v261 = vadd.f32 %v259, %v260
      %v262 = vsel %vm238, %v233, 0.0
      %v263 = vadd.f32 %v261, %v262
      %v264 = vsel %vm238, %v234, 0.0
      %v265 = vadd.f32 %v263, %v264
      %v266 = vsel %vm238, %v235, 0.0
      %v267 = vadd.f32 %v265, %v266
      %v268 = vsel %vm238, %v236, 0.0
      %v269 = vadd.f32 %v267, %v268
      %v270 = vrot.slane %v269, 4
      %v271 = vadd.f32 %v269, %v270
      %v272 = vrot.slane %v271, 2
      %v273 = vadd.f32 %v271, %v272
      %v274 = vrot.slane %v273, 1
      %v275 = vadd.f32 %v273, %v274
      %v276 = vadd.f32 %v237, %v275
      %vm277 = vcmask 90112
      %278 = vst.msk [vmem:[#allocation2] sm:$0x1] %vm277, %v276
      %v279 = vld [vmem:[#allocation3] sm:$0x1]
      %v280 = vmul.f32 %v221, %v221
      %v281 = vmul.f32 %v222, %v222
      %v282 = vmul.f32 %v223, %v223
      %v283 = vmul.f32 %v224, %v224
      %v284 = vmul.f32 %v225, %v225
      %v285 = vmul.f32 %v226, %v226
      %v286 = vmul.f32 %v227, %v227
      %v287 = vmul.f32 %v228, %v228
      %v288 = vmul.f32 %v229, %v229
      %v289 = vmul.f32 %v230, %v230
      %v290 = vmul.f32 %v231, %v231
      %v291 = vmul.f32 %v232, %v232
      %v292 = vmul.f32 %v233, %v233
      %v293 = vmul.f32 %v234, %v234
      %v294 = vmul.f32 %v235, %v235
      %v295 = vmul.f32 %v236, %v236
      %v296 = vsel %vm238, %v280, 0.0
      %v297 = vsel %vm238, %v281, 0.0
      %v298 = vadd.f32 %v296, %v297
      %v299 = vsel %vm238, %v282, 0.0
      %v300 = vadd.f32 %v298, %v299
      %v301 = vsel %vm238, %v283, 0.0
      %v302 = vadd.f32 %v300, %v301
      %v303 = vsel %vm238, %v284, 0.0
      %v304 = vadd.f32 %v302, %v303
      %v305 = vsel %vm238, %v285, 0.0
      %v306 = vadd.f32 %v304, %v305
      %v307 = vsel %vm238, %v286, 0.0
      %v308 = vadd.f32 %v306, %v307
      %v309 = vsel %vm238, %v287, 0.0
      %v310 = vadd.f32 %v308, %v309
      %v311 = vsel %vm238, %v288, 0.0
      %v312 = vadd.f32 %v310, %v311
      %v313 = vsel %vm238, %v289, 0.0
      %v314 = vadd.f32 %v312, %v313
      %v315 = vsel %vm238, %v290, 0.0
      %v316 = vadd.f32 %v314, %v315
      %v317 = vsel %vm238, %v291, 0.0
      %v318 = vadd.f32 %v316, %v317
      %v319 = vsel %vm238, %v292, 0.0
      %v320 = vadd.f32 %v318, %v319
      %v321 = vsel %vm238, %v293, 0.0
      %v322 = vadd.f32 %v320, %v321
      %v323 = vsel %vm238, %v294, 0.0
      %v324 = vadd.f32 %v322, %v323
      %v325 = vsel %vm238, %v295, 0.0
      %v326 = vadd.f32 %v324, %v325
      %v327 = vrot.slane %v326, 4
      %v328 = vadd.f32 %v326, %v327
      %v329 = vrot.slane %v328, 2
      %v330 = vadd.f32 %v328, %v329
      %v331 = vrot.slane %v330, 1
      %v332 = vadd.f32 %v330, %v331
      %v333 = vadd.f32 %v279, %v332
      %334 = vst.msk [vmem:[#allocation3] sm:$0x1] %vm277, %v333
      %p335 = scmp.eq.s32.totalorder %s20, 1
      %p336 = scmp.eq.s32.totalorder %s21, 1
      %p337 = pnand %p335, %p336
      %p338 = pneg %p337
      // Predicated region
      $region37: #{residual_dense_net.10} parent=31 // pred_check
        _
      $region38: #{residual_dense_net.10} parent=31 // pred_check_branch
        %340 = sbr.rel (%p337) target = $region40
      $region39: #{residual_dense_net.10} parent=31 // pred_region
        %v341 = vld [vmem:[#allocation2] sm:$0x1]
        %v342 = vmul.f32 %v341, 0.001953125
        %v343 = vld [vmem:[#allocation3] sm:$0x1]
        %v344 = vmul.f32 %v343, 0.001953125
        %v345 = vmul.f32 %v342, %v342
        %v346 = vsub.f32 %v344, %v345
        %v347 = vld [vmem:[%s0] sm:$0x1]
        %v348 = vadd.f32 %v346, 1e-05
        %v349 = vrsqrt.pop %v348
        %v350 = vmul.f32 %v347, %v349
        %351 = vst.msk [vmem:[%s3] sm:$0x1] %vm277, %v350
        %v352 = vld [vmem:[%s1] sm:$0x1]
        %v353 = vmul.f32 %v342, %v350
        %v354 = vsub.f32 %v352, %v353
        %355 = vst.msk [vmem:[%s4] sm:$0x1] %vm277, %v354
      $region40: #{residual_dense_net.10} parent=31 // pred_fallthru
        _
      // Predicated region
      $region41: #{residual_dense_net.10} parent=31 // pred_check
        %p356 = pneg %p111
      $region42: #{residual_dense_net.10} parent=31 // pred_check_branch
        %358 = sbr.rel (%p356) target = $region44
      $region43: #{residual_dense_net.10} parent=31 // pred_region
        _
      $region44: #{residual_dense_net.10} parent=31 // pred_fallthru
        _
      // Predicated region
      $region45: #{residual_dense_net.10} parent=31 // pred_check
        %p359 = pneg %p132
      $region46: #{residual_dense_net.10} parent=31 // pred_check_branch
        %361 = sbr.rel (%p359) target = $region48
      $region47: #{residual_dense_net.10} parent=31 // pred_region
        _
      $region48: #{residual_dense_net.10} parent=31 // pred_fallthru
        _
      // Predicated region
      $region49: #{residual_dense_net.10} parent=31 // pred_check
        %p362 = pneg %p111
      $region50: #{residual_dense_net.10} parent=31 // pred_check_branch
        %364 = sbr.rel (%p362) target = $region52
      $region51: #{residual_dense_net.10} parent=31 // pred_region
        _
      $region52: #{residual_dense_net.10} parent=31 // pred_fallthru
        _
      // Predicated region
      $region53: #{residual_dense_net.10} parent=31 // pred_check
        %p365 = pneg %p132
      $region54: #{residual_dense_net.10} parent=31 // pred_check_branch
        %367 = sbr.rel (%p365) target = $region56
      $region55: #{residual_dense_net.10} parent=31 // pred_region
        _
      $region56: #{residual_dense_net.10} parent=31 // pred_fallthru
        _
    $region32: #{residual_dense_net.10} parent=5 // pred_fallthru
      _
    %p368 = scmp.le.s32.totalorder 2, %s11
    // Predicated region
    $region57: #{residual_dense_net.10} parent=5 // pred_check
      %p369 = pneg %p368
    $region58: #{residual_dense_net.10} parent=5 // pred_check_branch
      %371 = sbr.rel (%p369) target = $region60
    $region59: #{residual_dense_net.10} parent=5 // pred_region
      %s372 = ssub.s32 %s11, 2
    $region60: #{residual_dense_net.10} parent=5 // pred_fallthru
      _
  $region6: #{residual_dense_net.10} parent=0 // loop_footer
    %s15 = sadd.s32 1, %s11
  $region7: #{residual_dense_net.10} parent=0 // loop_footer_branch
    %10 = sbr.rel target = $region3
  $region8: #{residual_dense_net.10} parent=0 // loop_exit
    _

// kernel: residual_dense_net.11
$region0: #{residual_dense_net.11}
  #allocation0 [shape = 'u32[]', space=smem, size = 0x4, offset = 0x4, fixed_abs, tag = 'smem constant byte address 0x4 - core index']
  #allocation1 [shape = 'u32[144,128]{1,0:T(1,128)}', space=vmem, size = 0x12000, scoped, tag = 'internal scratch']
  #allocation2 [shape = 'f32[10,16,12]{2,1,0:T(8,128)}', space=vmem, size = 0x14000, scoped, tag = 'scratch operand']
  #allocation3 [shape = 'f32[128,108]{1,0:T(8,128)}', space=vmem, size = 0x10000, scoped, tag = 'scratch operand']
  %s0 = inlined_call_operand.vmem [shape: f32[1,12], index: 0, kind: input, shape index: {}]
  %s1 = inlined_call_operand.vmem [shape: f32[1,12], index: 1, kind: input, shape index: {}]
  %s2 = inlined_call_operand.vmem [shape: bf16[108,4], index: 2, kind: input, shape index: {}]
  %s3 = inlined_call_operand.vmem [shape: f32[1,4], index: 3, kind: input, shape index: {}]
  %s4 = inlined_call_operand.vmem [shape: f32[2,16,16,12], index: 4, kind: input, shape index: {}, may-alias: {4,5,6}]
  %s5 = inlined_call_operand.vmem [shape: f32[2,16,16,12], index: 5, kind: input, shape index: {}, may-alias: {4,5,6}]
  %s6 = inlined_call_operand.vmem [shape: f32[2,16,16,12], index: 6, kind: input, shape index: {}, may-alias: {4,5,6}]
  %s7 = inlined_call_operand.vmem [shape: f32[2,16,16,4], index: 7, kind: output, shape index: {}]
  %s8 = sld [smem:[#allocation0]]
  $region61: #{residual_dense_net.11} parent=0
    _
  %s10 = ssub.s32 1, %s8
  %s11 = scalar_select 0, %s10, %s8
  loop: start=0, step=1, limit=6
  $region2: #{residual_dense_net.11} parent=0 // loop_pre_header
    _
  $region3: #{residual_dense_net.11} parent=0 // loop_header
    %s13 = sphi 0, %s17
    %p14 = scmp.ge.s32.totalorder %s13, 6
    %s20 = sphi 0, %s32
    %s21 = sphi 0, %s28
    %s22 = sphi 0, %s20
    %s23 = sphi 0, %s21
    %s24 = sphi 0, %s22
    %s25 = sphi 0, %s23
    %s33 = sphi 0, %s33
    %s35 = sphi 0, %s33
    %s36 = sphi 0, %s35
    %s50 = sphi 0, %s36
    %s54 = sphi 0, %s54
    %s56 = sphi 0, %s54
    %s57 = sphi 0, %s56
    %s71 = sphi 0, %s57
    %s75 = sphi 0, %s75
    %s77 = sphi 0, %s75
    %s78 = sphi 0, %s77
    %s92 = sphi 0, %s78
    %s96 = sphi 0, %s96
    %s98 = sphi 0, %s96
    %s99 = sphi 0, %s98
    %s113 = sphi 0, %s99
    %s121 = sphi 0, %s123
    %s124 = sphi 0, %s121
    %s125 = sphi 0, %s124
    %s141 = sphi 0, %s125
    %s157 = sphi 0, %s159
    %s160 = sphi 0, %s157
    %s161 = sphi 0, %s160
    %s177 = sphi 0, %s161
    %s193 = sphi 0, %s195
    %s196 = sphi 0, %s193
    %s197 = sphi 0, %s196
    %s213 = sphi 0, %s197
    %s221 = sphi 0, %s223
    %s224 = sphi 0, %s221
    %s225 = sphi 0, %s224
    %s241 = sphi 0, %s225
  $region4: #{residual_dense_net.11} parent=0 // loop_header_branch
    %16 = sbr.rel (%p14) target = $region8
  $region5: #{residual_dense_net.11} parent=0 // loop_body
    %s18 = ssub.s32 %s13, 1
    %s19 = ssub.s32 %s13, 2
    %s26 = sadd.s32 1, %s21
    %p27 = scmp.ge.s32.totalorder %s26, 2
    %s28 = scalar_select %p27, 0, %s26
    %s29 = sadd.s32 1, %s20
    %s30 = scalar_select %p27, %s29, %s20
    %p31 = scmp.ge.s32.totalorder %s30, 2
    %s32 = scalar_select %p31, 0, %s30
    %s34 = sadd.s32 %s33, 1
    %p37 = scmp.eq.s32.totalorder %s13, 3
    %p38 = scmp.ne.s32.totalorder %s33, %s35
    %p39 = scmp.eq.s32.totalorder %s13, 0
    %p40 = por %p38, %p39
    %p41 = scmp.ne.s32.totalorder %s33, %s35
    %p42 = scmp.eq.s32.totalorder %s18, 3
    %p43 = por %p41, %p42
    %p44 = scmp.ne.s32.totalorder %s35, %s36
    %p45 = scmp.eq.s32.totalorder %s18, 0
    %p46 = por %p44, %p45
    %p47 = scmp.ne.s32.totalorder %s35, %s36
    %p48 = scmp.eq.s32.totalorder %s19, 3
    %p49 = por %p47, %p48
    %p51 = scmp.ne.s32.totalorder %s36, %s50
    %p52 = scmp.eq.s32.totalorder %s19, 0
    %p53 = por %p51, %p52
    %s55 = sadd.s32 %s54, 1
    %p58 = scmp.eq.s32.totalorder %s13, 3
    %p59 = scmp.ne.s32.totalorder %s54, %s56
    %p60 = scmp.eq.s32.totalorder %s13, 0
    %p61 = por %p59, %p60
    %p62 = scmp.ne.s32.totalorder %s54, %s56
    %p63 = scmp.eq.s32.totalorder %s18, 3
    %p64 = por %p62, %p63
    %p65 = scmp.ne.s32.totalorder %s56, %s57
    %p66 = scmp.eq.s32.totalorder %s18, 0
    %p67 = por %p65, %p66
    %p68 = scmp.ne.s32.totalorder %s56, %s57
    %p69 = scmp.eq.s32.totalorder %s19, 3
    %p70 = por %p68, %p69
    %p72 = scmp.ne.s32.totalorder %s57, %s71
    %p73 = scmp.eq.s32.totalorder %s19, 0
    %p74 = por %p72, %p73
    %s76 = sadd.s32 %s75, 1
    %p79 = scmp.eq.s32.totalorder %s13, 3
    %p80 = scmp.ne.s32.totalorder %s75, %s77
    %p81 = scmp.eq.s32.totalorder %s13, 0
    %p82 = por %p80, %p81
    %p83 = scmp.ne.s32.totalorder %s75, %s77
    %p84 = scmp.eq.s32.totalorder %s18, 3
    %p85 = por %p83, %p84
    %p86 = scmp.ne.s32.totalorder %s77, %s78
    %p87 = scmp.eq.s32.totalorder %s18, 0
    %p88 = por %p86, %p87
    %p89 = scmp.ne.s32.totalorder %s77, %s78
    %p90 = scmp.eq.s32.totalorder %s19, 3
    %p91 = por %p89, %p90
    %p93 = scmp.ne.s32.totalorder %s78, %s92
    %p94 = scmp.eq.s32.totalorder %s19, 0
    %p95 = por %p93, %p94
    %s97 = sadd.s32 %s96, 1
    %p100 = scmp.eq.s32.totalorder %s13, 3
    %p101 = scmp.ne.s32.totalorder %s96, %s98
    %p102 = scmp.eq.s32.totalorder %s13, 0
    %p103 = por %p101, %p102
    %p104 = scmp.ne.s32.totalorder %s96, %s98
    %p105 = scmp.eq.s32.totalorder %s18, 3
    %p106 = por %p104, %p105
    %p107 = scmp.ne.s32.totalorder %s98, %s99
    %p108 = scmp.eq.s32.totalorder %s18, 0
    %p109 = por %p107, %p108
    %p110 = scmp.ne.s32.totalorder %s98, %s99
    %p111 = scmp.eq.s32.totalorder %s19, 3
    %p112 = por %p110, %p111
    %p114 = scmp.ne.s32.totalorder %s99, %s113
    %p115 = scmp.eq.s32.totalorder %s19, 0
    %p116 = por %p114, %p115
    %s117 = ssub.s32 %s20, %s32
    %s118 = ssub.s32 %s21, %s28
    %s119 = sor.u32 %s117, %s118
    %p120 = scmp.eq.s32.totalorder %s119, 0
    %s122 = sadd.s32 %s121, 1
    %s123 = scalar_select %p120, %s121, %s122
    %p126 = pneg %p120
    %p127 = scmp.eq.s32.totalorder %s13, 3
    %p128 = por %p126, %p127
    %p129 = scmp.ne.s32.totalorder %s121, %s124
    %p130 = scmp.eq.s32.totalorder %s13, 0
    %p131 = por %p129, %p130
    %p132 = scmp.ne.s32.totalorder %s121, %s124
    %p133 = scmp.eq.s32.totalorder %s18, 3
    %p134 = por %p132, %p133
    %p135 = scmp.ne.s32.totalorder %s124, %s125
    %p136 = scmp.eq.s32.totalorder %s18, 0
    %p137 = por %p135, %p136
    %p138 = scmp.ne.s32.totalorder %s124, %s125
    %p139 = scmp.eq.s32.totalorder %s19, 3
    %p140 = por %p138, %p139
    %p142 = scmp.ne.s32.totalorder %s125, %s141
    %p143 = scmp.eq.s32.totalorder %s19, 0
    %p144 = por %p142, %p143
    %s145 = smul.u32 %s21, 8
    %s146 = ssub.s32 %s145, 1
    %p147 = scmp.gt.s32.totalorder %s146, 0
    %s148 = scalar_select %p147, %s146, 0
    %s149 = smul.u32 %s28, 8
    %s150 = ssub.s32 %s149, 1
    %p151 = scmp.gt.s32.totalorder %s150, 0
    %s152 = scalar_select %p151, %s150, 0
    %s153 = ssub.s32 %s20, %s32
    %s154 = ssub.s32 %s148, %s152
    %s155 = sor.u32 %s153, %s154
    %p156 = scmp.eq.s32.totalorder %s155, 0
    %s158 = sadd.s32 %s157, 1
    %s159 = scalar_select %p156, %s157, %s158
    %p162 = pneg %p156
    %p163 = scmp.eq.s32.totalorder %s13, 3
    %p164 = por %p162, %p163
    %p165 = scmp.ne.s32.totalorder %s157, %s160
    %p166 = scmp.eq.s32.totalorder %s13, 0
    %p167 = por %p165, %p166
    %p168 = scmp.ne.s32.totalorder %s157, %s160
    %p169 = scmp.eq.s32.totalorder %s18, 3
    %p170 = por %p168, %p169
    %p171 = scmp.ne.s32.totalorder %s160, %s161
    %p172 = scmp.eq.s32.totalorder %s18, 0
    %p173 = por %p171, %p172
    %p174 = scmp.ne.s32.totalorder %s160, %s161
    %p175 = scmp.eq.s32.totalorder %s19, 3
    %p176 = por %p174, %p175
    %p178 = scmp.ne.s32.totalorder %s161, %s177
    %p179 = scmp.eq.s32.totalorder %s19, 0
    %p180 = por %p178, %p179
    %s181 = smul.u32 %s21, 8
    %s182 = sadd.s32 %s181, 8
    %p183 = scmp.lt.s32.totalorder %s182, 15
    %s184 = scalar_select %p183, %s182, 15
    %s185 = smul.u32 %s28, 8
    %s186 = sadd.s32 %s185, 8
    %p187 = scmp.lt.s32.totalorder %s186, 15
    %s188 = scalar_select %p187, %s186, 15
    %s189 = ssub.s32 %s20, %s32
    %s190 = ssub.s32 %s184, %s188
    %s191 = sor.u32 %s189, %s190
    %p192 = scmp.eq.s32.totalorder %s191, 0
    %s194 = sadd.s32 %s193, 1
    %s195 = scalar_select %p192, %s193, %s194
    %p198 = pneg %p192
    %p199 = scmp.eq.s32.totalorder %s13, 3
    %p200 = por %p198, %p199
    %p201 = scmp.ne.s32.totalorder %s193, %s196
    %p202 = scmp.eq.s32.totalorder %s13, 0
    %p203 = por %p201, %p202
    %p204 = scmp.ne.s32.totalorder %s193, %s196
    %p205 = scmp.eq.s32.totalorder %s18, 3
    %p206 = por %p204, %p205
    %p207 = scmp.ne.s32.totalorder %s196, %s197
    %p208 = scmp.eq.s32.totalorder %s18, 0
    %p209 = por %p207, %p208
    %p210 = scmp.ne.s32.totalorder %s196, %s197
    %p211 = scmp.eq.s32.totalorder %s19, 3
    %p212 = por %p210, %p211
    %p214 = scmp.ne.s32.totalorder %s197, %s213
    %p215 = scmp.eq.s32.totalorder %s19, 0
    %p216 = por %p214, %p215
    %s217 = ssub.s32 %s20, %s32
    %s218 = ssub.s32 %s21, %s28
    %s219 = sor.u32 %s217, %s218
    %p220 = scmp.eq.s32.totalorder %s219, 0
    %s222 = sadd.s32 %s221, 1
    %s223 = scalar_select %p220, %s221, %s222
    %p226 = pneg %p220
    %p227 = scmp.eq.s32.totalorder %s13, 3
    %p228 = por %p226, %p227
    %p229 = scmp.ne.s32.totalorder %s221, %s224
    %p230 = scmp.eq.s32.totalorder %s13, 0
    %p231 = por %p229, %p230
    %p232 = scmp.ne.s32.totalorder %s221, %s224
    %p233 = scmp.eq.s32.totalorder %s18, 3
    %p234 = por %p232, %p233
    %p235 = scmp.ne.s32.totalorder %s224, %s225
    %p236 = scmp.eq.s32.totalorder %s18, 0
    %p237 = por %p235, %p236
    %p238 = scmp.ne.s32.totalorder %s224, %s225
    %p239 = scmp.eq.s32.totalorder %s19, 3
    %p240 = por %p238, %p239
    %p242 = scmp.ne.s32.totalorder %s225, %s241
    %p243 = scmp.eq.s32.totalorder %s19, 0
    %p244 = por %p242, %p243
    %p245 = scmp.le.s32.totalorder 1, %s13
    %p246 = scmp.lt.s32.totalorder %s13, 5
    %p247 = pnand %p245, %p246
    %p248 = pneg %p247
    // Predicated region
    $region9: #{residual_dense_net.11} parent=5 // pred_check
      _
    $region10: #{residual_dense_net.11} parent=5 // pred_check_branch
      %250 = sbr.rel (%p247) target = $region12
    $region11: #{residual_dense_net.11} parent=5 // pred_region
      %s251 = ssub.s32 %s13, 1
      // Predicated region
      $region13: #{residual_dense_net.11} parent=11 // pred_check
        %p252 = pneg %p46
      $region14: #{residual_dense_net.11} parent=11 // pred_check_branch
        %254 = sbr.rel (%p252) target = $region16
      $region15: #{residual_dense_net.11} parent=11 // pred_region
        _
      $region16: #{residual_dense_net.11} parent=11 // pred_fallthru
        _
      // Predicated region
      $region17: #{residual_dense_net.11} parent=11 // pred_check
        %p255 = pneg %p67
      $region18: #{residual_dense_net.11} parent=11 // pred_check_branch
        %257 = sbr.rel (%p255) target = $region20
      $region19: #{residual_dense_net.11} parent=11 // pred_region
        _
      $region20: #{residual_dense_net.11} parent=11 // pred_fallthru
        _
      // Predicated region
      $region21: #{residual_dense_net.11} parent=11 // pred_check
        %p258 = pneg %p88
      $region22: #{residual_dense_net.11} parent=11 // pred_check_branch
        %260 = sbr.rel (%p258) target = $region24
      $region23: #{residual_dense_net.11} parent=11 // pred_region
        _
      $region24: #{residual_dense_net.11} parent=11 // pred_fallthru
        _
      // Predicated region
      $region25: #{residual_dense_net.11} parent=11 // pred_check
        %p261 = pneg %p109
      $region26: #{residual_dense_net.11} parent=11 // pred_check_branch
        %263 = sbr.rel (%p261) target = $region28
      $region27: #{residual_dense_net.11} parent=11 // pred_region
        _
      $region28: #{residual_dense_net.11} parent=11 // pred_fallthru
        _
    $region12: #{residual_dense_net.11} parent=5 // pred_fallthru
      _
    %p264 = scmp.lt.s32.totalorder %s13, 4
    // Predicated region
    $region29: #{residual_dense_net.11} parent=5 // pred_check
      %p265 = pneg %p264
    $region30: #{residual_dense_net.11} parent=5 // pred_check_branch
      %267 = sbr.rel (%p265) target = $region32
    $region31: #{residual_dense_net.11} parent=5 // pred_region
      // Predicated region
      $region33: #{residual_dense_net.11} parent=31 // pred_check
        %p268 = pneg %p131
      $region34: #{residual_dense_net.11} parent=31 // pred_check_branch
        %270 = sbr.rel (%p268) target = $region36
      $region35: #{residual_dense_net.11} parent=31 // pred_region
        %s271 = smul.u32 8, %s21
        %p272 = scmp.lt.s32.totalorder %s20, 1
        %s273 = scalar_select %p272, %s20, 1
        %p274 = scmp.lt.s32.totalorder %s271, 15
        %s275 = scalar_select %p274, %s271, 15
        %s276 = smul.addr %s275, 2
        %s277 = smul.addr %s273, 32
        %s278 = sadd.s32 %s276, %s277
        %s279 = smul.addr %s278, 8
        %s280 = scalar_lea.vmem %s4, %s279
        %s281 = smul.u32 8, %s21
      $region36: #{residual_dense_net.11} parent=31 // pred_fallthru
        _
      // Predicated region
      $region37: #{residual_dense_net.11} parent=31 // pred_check
        %p282 = pneg %p167
      $region38: #{residual_dense_net.11} parent=31 // pred_check_branch
        %284 = sbr.rel (%p282) target = $region40
      $region39: #{residual_dense_net.11} parent=31 // pred_region
        %s285 = smul.u32 %s21, 8
        %s286 = ssub.s32 %s285, 1
        %p287 = scmp.gt.s32.totalorder %s286, 0
        %s288 = scalar_select %p287, %s286, 0
        %p289 = scmp.lt.s32.totalorder %s20, 1
        %s290 = scalar_select %p289, %s20, 1
        %p291 = scmp.lt.s32.totalorder %s288, 15
        %s292 = scalar_select %p291, %s288, 15
        %s293 = smul.addr %s292, 2
        %s294 = smul.addr %s290, 32
        %s295 = sadd.s32 %s293, %s294
        %s296 = smul.addr %s295, 8
        %s297 = scalar_lea.vmem %s5, %s296
        %s298 = smul.u32 %s21, 8
        %s299 = ssub.s32 %s298, 1
        %p300 = scmp.gt.s32.totalorder %s299, 0
        %s301 = scalar_select %p300, %s299, 0
      $region40: #{residual_dense_net.11} parent=31 // pred_fallthru
        _
      // Predicated region
      $region41: #{residual_dense_net.11} parent=31 // pred_check
        %p302 = pneg %p203
      $region42: #{residual_dense_net.11} parent=31 // pred_check_branch
        %304 = sbr.rel (%p302) target = $region44
      $region43: #{residual_dense_net.11} parent=31 // pred_region
        %s305 = smul.u32 %s21, 8
        %s306 = sadd.s32 %s305, 8
        %p307 = scmp.lt.s32.totalorder %s306, 15
        %s308 = scalar_select %p307, %s306, 15
        %p309 = scmp.lt.s32.totalorder %s20, 1
        %s310 = scalar_select %p309, %s20, 1
        %p311 = scmp.lt.s32.totalorder %s308, 15
        %s312 = scalar_select %p311, %s308, 15
        %s313 = smul.addr %s312, 2
        %s314 = smul.addr %s310, 32
        %s315 = sadd.s32 %s313, %s314
        %s316 = smul.addr %s315, 8
        %s317 = scalar_lea.vmem %s6, %s316
        %s318 = smul.u32 %s21, 8
        %s319 = sadd.s32 %s318, 8
        %p320 = scmp.lt.s32.totalorder %s319, 15
        %s321 = scalar_select %p320, %s319, 15
      $region44: #{residual_dense_net.11} parent=31 // pred_fallthru
        _
    $region32: #{residual_dense_net.11} parent=5 // pred_fallthru
      _
    %p322 = scmp.le.s32.totalorder 1, %s13
    %p323 = scmp.lt.s32.totalorder %s13, 5
    %p324 = pnand %p322, %p323
    %p325 = pneg %p324
    // Predicated region
    $region45: #{residual_dense_net.11} parent=5 // pred_check
      _
    $region46: #{residual_dense_net.11} parent=5 // pred_check_branch
      %327 = sbr.rel (%p324) target = $region48
    $region47: #{residual_dense_net.11} parent=5 // pred_region
      %s328 = ssub.s32 %s13, 1
      %p329 = pneg %p46
      %p330 = pneg %p43
      %p331 = pneg %p67
      %p332 = pneg %p64
      %p333 = pneg %p88
      %p334 = pneg %p85
      %p335 = pneg %p109
      %p336 = pneg %p106
      %s337 = smul.u32 8, %s23
      %p338 = scmp.lt.s32.totalorder %s22, 1
      %s339 = scalar_select %p338, %s22, 1
      %p340 = scmp.lt.s32.totalorder %s337, 15
      %s341 = scalar_select %p340, %s337, 15
      %s342 = smul.addr %s341, 2
      %s343 = smul.addr %s339, 32
      %s344 = sadd.s32 %s342, %s343
      %s345 = smul.addr %s344, 8
      %s346 = scalar_lea.vmem %s4, %s345
      %p347 = pneg %p137
      %p348 = pneg %p134
      %s349 = smul.u32 %s23, 8
      %s350 = ssub.s32 %s349, 1
      %p351 = scmp.gt.s32.totalorder %s350, 0
      %s352 = scalar_select %p351, %s350, 0
      %p353 = scmp.lt.s32.totalorder %s22, 1
      %s354 = scalar_select %p353, %s22, 1
      %p355 = scmp.lt.s32.totalorder %s352, 15
      %s356 = scalar_select %p355, %s352, 15
      %s357 = smul.addr %s356, 2
      %s358 = smul.addr %s354, 32
      %s359 = sadd.s32 %s357, %s358
      %s360 = smul.addr %s359, 8
      %s361 = scalar_lea.vmem %s5, %s360
      %p362 = pneg %p173
      %p363 = pneg %p170
      %s364 = smul.u32 %s23, 8
      %s365 = sadd.s32 %s364, 8
      %p366 = scmp.lt.s32.totalorder %s365, 15
      %s367 = scalar_select %p366, %s365, 15
      %p368 = scmp.lt.s32.totalorder %s22, 1
      %s369 = scalar_select %p368, %s22, 1
      %p370 = scmp.lt.s32.totalorder %s367, 15
      %s371 = scalar_select %p370, %s367, 15
      %s372 = smul.addr %s371, 2
      %s373 = smul.addr %s369, 32
      %s374 = sadd.s32 %s372, %s373
      %s375 = smul.addr %s374, 8
      %s376 = scalar_lea.vmem %s6, %s375
      %p377 = pneg %p209
      %p378 = pneg %p206
      %p379 = pneg %p237
      %p380 = pneg %p234
      %s381 = smul.u32 8, %s23
      %p382 = scmp.lt.s32.totalorder %s22, 1
      %s383 = scalar_select %p382, %s22, 1
      %p384 = scmp.lt.s32.totalorder %s381, 15
      %s385 = scalar_select %p384, %s381, 15
      %s386 = smul.addr %s385, 2
      %s387 = smul.addr %s383, 32
      %s388 = sadd.s32 %s386, %s387
      %s389 = smul.addr %s388, 8
      %s390 = scalar_lea.vmem %s7, %s389
      %s391 = smul.u32 8, %s23
      %p392 = scmp.lt.s32.totalorder %s22, 1
      %s393 = scalar_select %p392, %s22, 1
      %p394 = scmp.lt.s32.totalorder %s391, 15
      %s395 = scalar_select %p394, %s391, 15
      %s396 = smul.addr %s395, 2
      %s397 = smul.addr %s393, 32
      %s398 = sadd.s32 %s396, %s397
      %s399 = smul.addr %s398, 8
      %s400 = scalar_lea.vmem %s4, %s399
      %s401 = smul.u32 8, %s23
      %s402 = smul.u32 %s23, 8
      %s403 = ssub.s32 %s402, 1
      %p404 = scmp.gt.s32.totalorder %s403, 0
      %s405 = scalar_select %p404, %s403, 0
      %p406 = scmp.lt.s32.totalorder %s22, 1
      %s407 = scalar_select %p406, %s22, 1
      %p408 = scmp.lt.s32.totalorder %s405, 15
      %s409 = scalar_select %p408, %s405, 15
      %s410 = smul.addr %s409, 2
      %s411 = smul.addr %s407, 32
      %s412 = sadd.s32 %s410, %s411
      %s413 = smul.addr %s412, 8
      %s414 = scalar_lea.vmem %s5, %s413
      %s415 = smul.u32 %s23, 8
      %s416 = ssub.s32 %s415, 1
      %p417 = scmp.gt.s32.totalorder %s416, 0
      %s418 = scalar_select %p417, %s416, 0
      %s419 = smul.u32 %s23, 8
      %s420 = sadd.s32 %s419, 8
      %p421 = scmp.lt.s32.totalorder %s420, 15
      %s422 = scalar_select %p421, %s420, 15
      %p423 = scmp.lt.s32.totalorder %s22, 1
      %s424 = scalar_select %p423, %s22, 1
      %p425 = scmp.lt.s32.totalorder %s422, 15
      %s426 = scalar_select %p425, %s422, 15
      %s427 = smul.addr %s426, 2
      %s428 = smul.addr %s424, 32
      %s429 = sadd.s32 %s427, %s428
      %s430 = smul.addr %s429, 8
      %s431 = scalar_lea.vmem %s6, %s430
      %s432 = smul.u32 %s23, 8
      %s433 = sadd.s32 %s432, 8
      %p434 = scmp.lt.s32.totalorder %s433, 15
      %s435 = scalar_select %p434, %s433, 15
      %s436 = smul.u32 8, %s23
      %p437 = scmp.lt.s32.totalorder %s22, 1
      %s438 = scalar_select %p437, %s22, 1
      %p439 = scmp.lt.s32.totalorder %s436, 15
      %s440 = scalar_select %p439, %s436, 15
      %s441 = smul.addr %s440, 2
      %s442 = smul.addr %s438, 32
      %s443 = sadd.s32 %s441, %s442
      %s444 = smul.addr %s443, 8
      %s445 = scalar_lea.vmem %s7, %s444
      %s446 = smul.u32 8, %s23
      %v448 = vld [vmem:[%s0] sm:$0x1]
      %v449 = vld [vmem:[%s1] sm:$0x1]
      %p450 = scmp.gt.s32.totalorder %s23, 0
      %s451 = scalar_select %p450, 1, 0
      %s452 = scvt.s32.f32 %s451
      %p453 = scmp.lt.s32.totalorder %s23, 1
      %s454 = scalar_select %p453, 1, 0
      %s455 = scvt.s32.f32 %s454
      %v456 = vld [vmem:[%s400] sm:$0xff]
      %v457 = vld [vmem:[%s400 + $0x8] sm:$0xff]
      %v458 = vld [vmem:[%s400 + $0x10] sm:$0xff]
      %v459 = vld [vmem:[%s400 + $0x18] sm:$0xff]
      %v460 = vld [vmem:[%s400 + $0x20] sm:$0xff]
      %v461 = vld [vmem:[%s400 + $0x28] sm:$0xff]
      %v462 = vld [vmem:[%s400 + $0x30] sm:$0xff]
      %v463 = vld [vmem:[%s400 + $0x38] sm:$0xff]
      %v464 = vld [vmem:[%s400 + $0x40] sm:$0xff]
      %v465 = vld [vmem:[%s400 + $0x48] sm:$0xff]
      %v466 = vld [vmem:[%s400 + $0x50] sm:$0xff]
      %v467 = vld [vmem:[%s400 + $0x58] sm:$0xff]
      %v468 = vld [vmem:[%s400 + $0x60] sm:$0xff]
      %v469 = vld [vmem:[%s400 + $0x68] sm:$0xff]
      %v470 = vld [vmem:[%s400 + $0x70] sm:$0xff]
      %v471 = vld [vmem:[%s400 + $0x78] sm:$0xff]
      %v472 = vld [vmem:[%s414] sm:$0xff]
      %v473 = vld [vmem:[%s414 + $0x8] sm:$0xff]
      %v474 = vld [vmem:[%s431] sm:$0xff]
      %v475 = vld [vmem:[%s431 + $0x8] sm:$0xff]
      %v477 = vlaneseq
      %v478 = vshrl.u32 %v477, 7
      %v479 = vsub.s32 0, %v478
      %v480 = vrot.slane %v448, %v479
      %v482 = vmul.f32 %v472, %v480
      %v483 = vmul.f32 %v473, %v480
      %v485 = vlaneseq
      %v486 = vshrl.u32 %v485, 7
      %v487 = vsub.s32 0, %v486
      %v488 = vrot.slane %v449, %v487
      %v490 = vadd.f32 %v482, %v488
      %v491 = vadd.f32 %v483, %v488
      %v492 = vmax.f32 %v490, 0.0
      %v493 = vmax.f32 %v491, 0.0
      %v494 = vstv %s452
      %v495 = vmul.f32 %v492, %v494
      %v496 = vmul.f32 %v493, %v494
      %vm497 = vcmask 97280
      %498 = vst.msk [vmem:[#allocation2] sm:$0xff] %vm497, %v495
      %499 = vst.msk [vmem:[#allocation2 + $0x8] sm:$0xff] %vm497, %v496
      %v500 = vmul.f32 %v456, %v480
      %v501 = vmul.f32 %v457, %v480
      %v502 = vmul.f32 %v458, %v480
      %v503 = vmul.f32 %v459, %v480
      %v504 = vmul.f32 %v460, %v480
      %v505 = vmul.f32 %v461, %v480
      %v506 = vmul.f32 %v462, %v480
      %v507 = vmul.f32 %v463, %v480
      %v508 = vmul.f32 %v464, %v480
      %v509 = vmul.f32 %v465, %v480
      %v510 = vmul.f32 %v466, %v480
      %v511 = vmul.f32 %v467, %v480
      %v512 = vmul.f32 %v468, %v480
      %v513 = vmul.f32 %v469, %v480
      %v514 = vmul.f32 %v470, %v480
      %v515 = vmul.f32 %v471, %v480
      %v516 = vadd.f32 %v500, %v488
      %v517 = vadd.f32 %v501, %v488
      %v518 = vadd.f32 %v502, %v488
      %v519 = vadd.f32 %v503, %v488
      %v520 = vadd.f32 %v504, %v488
      %v521 = vadd.f32 %v505, %v488
      %v522 = vadd.f32 %v506, %v488
      %v523 = vadd.f32 %v507, %v488
      %v524 = vadd.f32 %v508, %v488
      %v525 = vadd.f32 %v509, %v488
      %v526 = vadd.f32 %v510, %v488
      %v527 = vadd.f32 %v511, %v488
      %v528 = vadd.f32 %v512, %v488
      %v529 = vadd.f32 %v513, %v488
      %v530 = vadd.f32 %v514, %v488
      %v531 = vadd.f32 %v515, %v488
      %v532 = vmax.f32 %v516, 0.0
      %v533 = vmax.f32 %v517, 0.0
      %v534 = vmax.f32 %v518, 0.0
      %v535 = vmax.f32 %v519, 0.0
      %v536 = vmax.f32 %v520, 0.0
      %v537 = vmax.f32 %v521, 0.0
      %v538 = vmax.f32 %v522, 0.0
      %v539 = vmax.f32 %v523, 0.0
      %v540 = vmax.f32 %v524, 0.0
      %v541 = vmax.f32 %v525, 0.0
      %v542 = vmax.f32 %v526, 0.0
      %v543 = vmax.f32 %v527, 0.0
      %v544 = vmax.f32 %v528, 0.0
      %v545 = vmax.f32 %v529, 0.0
      %v546 = vmax.f32 %v530, 0.0
      %v547 = vmax.f32 %v531, 0.0
      %s548 = scalar_lea.vmem [#allocation2], 16
      %549 = vst.msk [vmem:[%s548] sm:$0xff] %vm497, %v532
      %550 = vst.msk [vmem:[%s548 + $0x8] sm:$0xff] %vm497, %v533
      %551 = vst.msk [vmem:[%s548 + $0x10] sm:$0xff] %vm497, %v534
      %552 = vst.msk [vmem:[%s548 + $0x18] sm:$0xff] %vm497, %v535
      %553 = vst.msk [vmem:[%s548 + $0x20] sm:$0xff] %vm497, %v536
      %554 = vst.msk [vmem:[%s548 + $0x28] sm:$0xff] %vm497, %v537
      %555 = vst.msk [vmem:[%s548 + $0x30] sm:$0xff] %vm497, %v538
      %556 = vst.msk [vmem:[%s548 + $0x38] sm:$0xff] %vm497, %v539
      %557 = vst.msk [vmem:[%s548 + $0x40] sm:$0xff] %vm497, %v540
      %558 = vst.msk [vmem:[%s548 + $0x48] sm:$0xff] %vm497, %v541
      %559 = vst.msk [vmem:[%s548 + $0x50] sm:$0xff] %vm497, %v542
      %560 = vst.msk [vmem:[%s548 + $0x58] sm:$0xff] %vm497, %v543
      %561 = vst.msk [vmem:[%s548 + $0x60] sm:$0xff] %vm497, %v544
      %562 = vst.msk [vmem:[%s548 + $0x68] sm:$0xff] %vm497, %v545
      %563 = vst.msk [vmem:[%s548 + $0x70] sm:$0xff] %vm497, %v546
      %564 = vst.msk [vmem:[%s548 + $0x78] sm:$0xff] %vm497, %v547
      %v565 = vmul.f32 %v474, %v480
      %v566 = vmul.f32 %v475, %v480
      %v567 = vadd.f32 %v565, %v488
      %v568 = vadd.f32 %v566, %v488
      %v569 = vmax.f32 %v567, 0.0
      %v570 = vmax.f32 %v568, 0.0
      %v571 = vstv %s455
      %v572 = vmul.f32 %v569, %v571
      %v573 = vmul.f32 %v570, %v571
      %s574 = scalar_lea.vmem [#allocation2], 144
      %575 = vst.msk [vmem:[%s574] sm:$0xff] %vm497, %v572
      %576 = vst.msk [vmem:[%s574 + $0x8] sm:$0xff] %vm497, %v573
      %v577 = vld [vmem:[#allocation2] sm:$0xff]
      %v578 = vld [vmem:[#allocation2 + $0x8] sm:$0xff]
      %v579 = vld [vmem:[#allocation2 + $0x10] sm:$0xff]
      %v580 = vld [vmem:[#allocation2 + $0x18] sm:$0xff]
      %v581 = vld [vmem:[#allocation2 + $0x20] sm:$0xff]
      %v582 = vld [vmem:[#allocation2 + $0x28] sm:$0xff]
      %v583 = vld [vmem:[#allocation2 + $0x30] sm:$0xff]
      %v584 = vld [vmem:[#allocation2 + $0x38] sm:$0xff]
      %v585 = vld [vmem:[#allocation2 + $0x40] sm:$0xff]
      %v586 = vld [vmem:[#allocation2 + $0x48] sm:$0xff]
      %v587 = vld [vmem:[#allocation2 + $0x50] sm:$0xff]
      %v588 = vld [vmem:[#allocation2 + $0x58] sm:$0xff]
      %v589 = vld [vmem:[#allocation2 + $0x60] sm:$0xff]
      %v590 = vld [vmem:[#allocation2 + $0x68] sm:$0xff]
      %v591 = vld [vmem:[#allocation2 + $0x70] sm:$0xff]
      %v592 = vld [vmem:[#allocation2 + $0x78] sm:$0xff]
      %v593 = vld [vmem:[#allocation2 + $0x80] sm:$0xff]
      %v594 = vld [vmem:[#allocation2 + $0x88] sm:$0xff]
      %v595 = vld [vmem:[#allocation2 + $0x90] sm:$0xff]
      %v596 = vld [vmem:[#allocation2 + $0x98] sm:$0xff]
      %v597 = vlaneseq
      %v598 = vshrl.u32 %v597, 7
      %v599 = vadd.s32 %v598, 8
      %v600 = vrot.slane %v577, 7
      %v601 = vrot.slane %v578, 7
      %v602 = vrot.slane %v579, 7
      %v603 = vrot.slane %v580, 7
      %v604 = vrot.slane %v581, 7
      %v605 = vrot.slane %v582, 7
      %v606 = vrot.slane %v583, 7
      %v607 = vrot.slane %v584, 7
      %v608 = vrot.slane %v585, 7
      %v609 = vrot.slane %v586, 7
      %v610 = vrot.slane %v587, 7
      %v611 = vrot.slane %v588, 7
      %v612 = vrot.slane %v589, 7
      %v613 = vrot.slane %v590, 7
      %v614 = vrot.slane %v591, 7
      %v615 = vrot.slane %v592, 7
      %v616 = vrot.slane %v593, 7
      %v617 = vrot.slane %v594, 7
      %v618 = vrot.slane %v595, 7
      %v619 = vrot.slane %v596, 7
      %vm620 = vcmp.lt.s32.totalorder %v598, 1
      %v621 = vsel %vm620, %v618, %v619
      %v622 = vsel %vm620, %v617, %v618
      %v623 = vsel %vm620, %v616, %v617
      %v624 = vsel %vm620, %v615, %v616
      %v625 = vsel %vm620, %v614, %v615
      %v626 = vsel %vm620, %v613, %v614
      %v627 = vsel %vm620, %v612, %v613
      %v628 = vsel %vm620, %v611, %v612
      %v629 = vsel %vm620, %v610, %v611
      %v630 = vsel %vm620, %v609, %v610
      %v631 = vsel %vm620, %v608, %v609
      %v632 = vsel %vm620, %v607, %v608
      %v633 = vsel %vm620, %v606, %v607
      %v634 = vsel %vm620, %v605, %v606
      %v635 = vsel %vm620, %v604, %v605
      %v636 = vsel %vm620, %v603, %v604
      %v637 = vsel %vm620, %v602, %v603
      %v638 = vsel %vm620, %v601, %v602
      %v639 = vsel %vm620, %v600, %v601
      %v640 = vsel %vm620, %v619, %v600
      %vm641 = vcmp.gt.s32.totalorder %v598, 0
      %vm642 = vcmp.gt.s32.totalorder %v599, 0
      %v643 = vsel %vm641, 1, 0
      %v644 = vsel %vm642, 1, 0
      %v645 = vcvt.s32.f32 %v643
      %v646 = vcvt.s32.f32 %v644
      %v647 = vmul.f32 %v640, %v645
      %v648 = vmul.f32 %v639, %v646
      %v649 = vmul.f32 %v638, %v645
      %v650 = vmul.f32 %v637, %v646
      %v651 = vmul.f32 %v636, %v645
      %v652 = vmul.f32 %v635, %v646
      %v653 = vmul.f32 %v634, %v645
      %v654 = vmul.f32 %v633, %v646
      %v655 = vmul.f32 %v632, %v645
      %v656 = vmul.f32 %v631, %v646
      %v657 = vmul.f32 %v630, %v645
      %v658 = vmul.f32 %v629, %v646
      %v659 = vmul.f32 %v628, %v645
      %v660 = vmul.f32 %v627, %v646
      %v661 = vmul.f32 %v626, %v645
      %v662 = vmul.f32 %v625, %v646
      %v663 = vmul.f32 %v624, %v645
      %v664 = vmul.f32 %v623, %v646
      %v665 = vmul.f32 %v622, %v645
      %v666 = vmul.f32 %v621, %v646
      %v667 = vrot.slane %v577, 1
      %v668 = vrot.slane %v578, 1
      %v669 = vrot.slane %v579, 1
      %v670 = vrot.slane %v580, 1
      %v671 = vrot.slane %v581, 1
      %v672 = vrot.slane %v582, 1
      %v673 = vrot.slane %v583, 1
      %v674 = vrot.slane %v584, 1
      %v675 = vrot.slane %v585, 1
      %v676 = vrot.slane %v586, 1
      %v677 = vrot.slane %v587, 1
      %v678 = vrot.slane %v588, 1
      %v679 = vrot.slane %v589, 1
      %v680 = vrot.slane %v590, 1
      %v681 = vrot.slane %v591, 1
      %v682 = vrot.slane %v592, 1
      %v683 = vrot.slane %v593, 1
      %v684 = vrot.slane %v594, 1
      %v685 = vrot.slane %v595, 1
      %v686 = vrot.slane %v596, 1
      %vm687 = vcmp.lt.s32.totalorder %v598, 7
      %v688 = vsel %vm687, %v685, %v686
      %v689 = vsel %vm687, %v684, %v685
      %v690 = vsel %vm687, %v683, %v684
      %v691 = vsel %vm687, %v682, %v683
      %v692 = vsel %vm687, %v681, %v682
      %v693 = vsel %vm687, %v680, %v681
      %v694 = vsel %vm687, %v679, %v680
      %v695 = vsel %vm687, %v678, %v679
      %v696 = vsel %vm687, %v677, %v678
      %v697 = vsel %vm687, %v676, %v677
      %v698 = vsel %vm687, %v675, %v676
      %v699 = vsel %vm687, %v674, %v675
      %v700 = vsel %vm687, %v673, %v674
      %v701 = vsel %vm687, %v672, %v673
      %v702 = vsel %vm687, %v671, %v672
      %v703 = vsel %vm687, %v670, %v671
      %v704 = vsel %vm687, %v669, %v670
      %v705 = vsel %vm687, %v668, %v669
      %v706 = vsel %vm687, %v667, %v668
      %v707 = vsel %vm687, %v686, %v667
      %vm708 = vcmp.lt.s32.totalorder %v598, 15
      %vm709 = vcmp.lt.s32.totalorder %v599, 15
      %v710 = vsel %vm708, 1, 0
      %v711 = vsel %vm709, 1, 0
      %v712 = vcvt.s32.f32 %v710
      %v713 = vcvt.s32.f32 %v711
      %v714 = vmul.f32 %v706, %v712
      %v715 = vmul.f32 %v705, %v713
      %v716 = vmul.f32 %v704, %v712
      %v717 = vmul.f32 %v703, %v713
      %v718 = vmul.f32 %v702, %v712
      %v719 = vmul.f32 %v701, %v713
      %v720 = vmul.f32 %v700, %v712
      %v721 = vmul.f32 %v699, %v713
      %v722 = vmul.f32 %v698, %v712
      %v723 = vmul.f32 %v697, %v713
      %v724 = vmul.f32 %v696, %v712
      %v725 = vmul.f32 %v695, %v713
      %v726 = vmul.f32 %v694, %v712
      %v727 = vmul.f32 %v693, %v713
      %v728 = vmul.f32 %v692, %v712
      %v729 = vmul.f32 %v691, %v713
      %v730 = vmul.f32 %v690, %v712
      %v731 = vmul.f32 %v689, %v713
      %v732 = vmul.f32 %v688, %v712
      %v733 = vmul.f32 %v707, %v713
      %734 = vst.msk [vmem:[#allocation3] sm:$0xff] %vm497, %v647
      %735 = vst.msk [vmem:[#allocation3 + $0x8] sm:$0xff] %vm497, %v648
      %736 = vst.msk [vmem:[#allocation3 + $0x10] sm:$0xff] %vm497, %v649
      %737 = vst.msk [vmem:[#allocation3 + $0x18] sm:$0xff] %vm497, %v650
      %738 = vst.msk [vmem:[#allocation3 + $0x20] sm:$0xff] %vm497, %v651
      %739 = vst.msk [vmem:[#allocation3 + $0x28] sm:$0xff] %vm497, %v652
      %740 = vst.msk [vmem:[#allocation3 + $0x30] sm:$0xff] %vm497, %v653
      %741 = vst.msk [vmem:[#allocation3 + $0x38] sm:$0xff] %vm497, %v654
      %742 = vst.msk [vmem:[#allocation3 + $0x40] sm:$0xff] %vm497, %v655
      %743 = vst.msk [vmem:[#allocation3 + $0x48] sm:$0xff] %vm497, %v656
      %744 = vst.msk [vmem:[#allocation3 + $0x50] sm:$0xff] %vm497, %v657
      %745 = vst.msk [vmem:[#allocation3 + $0x58] sm:$0xff] %vm497, %v658
      %746 = vst.msk [vmem:[#allocation3 + $0x60] sm:$0xff] %vm497, %v659
      %747 = vst.msk [vmem:[#allocation3 + $0x68] sm:$0xff] %vm497, %v660
      %748 = vst.msk [vmem:[#allocation3 + $0x70] sm:$0xff] %vm497, %v661
      %749 = vst.msk [vmem:[#allocation3 + $0x78] sm:$0xff] %vm497, %v662
      %766 = vrot.lane.b32.xlu0 %v577, 12
      %v767 = vpop.permute.xlu0 %766
      %768 = vrot.lane.b32.xlu0 %v578, 12
      %v769 = vpop.permute.xlu0 %768
      %770 = vrot.lane.b32.xlu0 %v579, 12
      %v771 = vpop.permute.xlu0 %770
      %772 = vrot.lane.b32.xlu0 %v580, 12
      %v773 = vpop.permute.xlu0 %772
      %774 = vrot.lane.b32.xlu0 %v581, 12
      %v775 = vpop.permute.xlu0 %774
      %776 = vrot.lane.b32.xlu0 %v582, 12
      %v777 = vpop.permute.xlu0 %776
      %778 = vrot.lane.b32.xlu0 %v583, 12
      %v779 = vpop.permute.xlu0 %778
      %780 = vrot.lane.b32.xlu0 %v584, 12
      %v781 = vpop.permute.xlu0 %780
      %782 = vrot.lane.b32.xlu0 %v585, 12
      %v783 = vpop.permute.xlu0 %782
      %784 = vrot.lane.b32.xlu0 %v586, 12
      %v785 = vpop.permute.xlu0 %784
      %786 = vrot.lane.b32.xlu0 %v587, 12
      %v787 = vpop.permute.xlu0 %786
      %788 = vrot.lane.b32.xlu0 %v588, 12
      %v789 = vpop.permute.xlu0 %788
      %790 = vrot.lane.b32.xlu0 %v589, 12
      %v791 = vpop.permute.xlu0 %790
      %792 = vrot.lane.b32.xlu0 %v590, 12
      %v793 = vpop.permute.xlu0 %792
      %794 = vrot.lane.b32.xlu0 %v591, 12
      %v795 = vpop.permute.xlu0 %794
      %796 = vrot.lane.b32.xlu0 %v592, 12
      %v797 = vpop.permute.xlu0 %796
      %vm814 = vcmask 195680
      %815 = vst.msk [vmem:[#allocation3] sm:$0xff] %vm814, %v767
      %816 = vst.msk [vmem:[#allocation3 + $0x8] sm:$0xff] %vm814, %v769
      %817 = vst.msk [vmem:[#allocation3 + $0x10] sm:$0xff] %vm814, %v771
      %818 = vst.msk [vmem:[#allocation3 + $0x18] sm:$0xff] %vm814, %v773
      %819 = vst.msk [vmem:[#allocation3 + $0x20] sm:$0xff] %vm814, %v775
      %820 = vst.msk [vmem:[#allocation3 + $0x28] sm:$0xff] %vm814, %v777
      %821 = vst.msk [vmem:[#allocation3 + $0x30] sm:$0xff] %vm814, %v779
      %822 = vst.msk [vmem:[#allocation3 + $0x38] sm:$0xff] %vm814, %v781
      %823 = vst.msk [vmem:[#allocation3 + $0x40] sm:$0xff] %vm814, %v783
      %824 = vst.msk [vmem:[#allocation3 + $0x48] sm:$0xff] %vm814, %v785
      %825 = vst.msk [vmem:[#allocation3 + $0x50] sm:$0xff] %vm814, %v787
      %826 = vst.msk [vmem:[#allocation3 + $0x58] sm:$0xff] %vm814, %v789
      %827 = vst.msk [vmem:[#allocation3 + $0x60] sm:$0xff] %vm814, %v791
      %828 = vst.msk [vmem:[#allocation3 + $0x68] sm:$0xff] %vm814, %v793
      %829 = vst.msk [vmem:[#allocation3 + $0x70] sm:$0xff] %vm814, %v795
      %830 = vst.msk [vmem:[#allocation3 + $0x78] sm:$0xff] %vm814, %v797
      %847 = vrot.lane.b32.xlu0 %v714, 24
      %v848 = vpop.permute.xlu0 %847
      %849 = vrot.lane.b32.xlu0 %v715, 24
      %v850 = vpop.permute.xlu0 %849
      %851 = vrot.lane.b32.xlu0 %v716, 24
      %v852 = vpop.permute.xlu0 %851
      %853 = vrot.lane.b32.xlu0 %v717, 24
      %v854 = vpop.permute.xlu0 %853
      %855 = vrot.lane.b32.xlu0 %v718, 24
      %v856 = vpop.permute.xlu0 %855
      %857 = vrot.lane.b32.xlu0 %v719, 24
      %v858 = vpop.permute.xlu0 %857
      %859 = vrot.lane.b32.xlu0 %v720, 24
      %v860 = vpop.permute.xlu0 %859
      %861 = vrot.lane.b32.xlu0 %v721, 24
      %v862 = vpop.permute.xlu0 %861
      %863 = vrot.lane.b32.xlu0 %v722, 24
      %v864 = vpop.permute.xlu0 %863
      %865 = vrot.lane.b32.xlu0 %v723, 24
      %v866 = vpop.permute.xlu0 %865
      %867 = vrot.lane.b32.xlu0 %v724, 24
      %v868 = vpop.permute.xlu0 %867
      %869 = vrot.lane.b32.xlu0 %v725, 24
      %v870 = vpop.permute.xlu0 %869
      %871 = vrot.lane.b32.xlu0 %v726, 24
      %v872 = vpop.permute.xlu0 %871
      %873 = vrot.lane.b32.xlu0 %v727, 24
      %v874 = vpop.permute.xlu0 %873
      %875 = vrot.lane.b32.xlu0 %v728, 24
      %v876 = vpop.permute.xlu0 %875
      %877 = vrot.lane.b32.xlu0 %v729, 24
      %v878 = vpop.permute.xlu0 %877
      %vm895 = vcmask 294080
      %896 = vst.msk [vmem:[#allocation3] sm:$0xff] %vm895, %v848
      %897 = vst.msk [vmem:[#allocation3 + $0x8] sm:$0xff] %vm895, %v850
      %898 = vst.msk [vmem:[#allocation3 + $0x10] sm:$0xff] %vm895, %v852
      %899 = vst.msk [vmem:[#allocation3 + $0x18] sm:$0xff] %vm895, %v854
      %900 = vst.msk [vmem:[#allocation3 + $0x20] sm:$0xff] %vm895, %v856
      %901 = vst.msk [vmem:[#allocation3 + $0x28] sm:$0xff] %vm895, %v858
      %902 = vst.msk [vmem:[#allocation3 + $0x30] sm:$0xff] %vm895, %v860
      %903 = vst.msk [vmem:[#allocation3 + $0x38] sm:$0xff] %vm895, %v862
      %904 = vst.msk [vmem:[#allocation3 + $0x40] sm:$0xff] %vm895, %v864
      %905 = vst.msk [vmem:[#allocation3 + $0x48] sm:$0xff] %vm895, %v866
      %906 = vst.msk [vmem:[#allocation3 + $0x50] sm:$0xff] %vm895, %v868
      %907 = vst.msk [vmem:[#allocation3 + $0x58] sm:$0xff] %vm895, %v870
      %908 = vst.msk [vmem:[#allocation3 + $0x60] sm:$0xff] %vm895, %v872
      %909 = vst.msk [vmem:[#allocation3 + $0x68] sm:$0xff] %vm895, %v874
      %910 = vst.msk [vmem:[#allocation3 + $0x70] sm:$0xff] %vm895, %v876
      %911 = vst.msk [vmem:[#allocation3 + $0x78] sm:$0xff] %vm895, %v878
      %928 = vrot.lane.b32.xlu0 %v649, 36
      %v929 = vpop.permute.xlu0 %928
      %930 = vrot.lane.b32.xlu0 %v650, 36
      %v931 = vpop.permute.xlu0 %930
      %932 = vrot.lane.b32.xlu0 %v651, 36
      %v933 = vpop.permute.xlu0 %932
      %934 = vrot.lane.b32.xlu0 %v652, 36
      %v935 = vpop.permute.xlu0 %934
      %936 = vrot.lane.b32.xlu0 %v653, 36
      %v937 = vpop.permute.xlu0 %936
      %938 = vrot.lane.b32.xlu0 %v654, 36
      %v939 = vpop.permute.xlu0 %938
      %940 = vrot.lane.b32.xlu0 %v655, 36
      %v941 = vpop.permute.xlu0 %940
      %942 = vrot.lane.b32.xlu0 %v656, 36
      %v943 = vpop.permute.xlu0 %942
      %944 = vrot.lane.b32.xlu0 %v657, 36
      %v945 = vpop.permute.xlu0 %944
      %946 = vrot.lane.b32.xlu0 %v658, 36
      %v947 = vpop.permute.xlu0 %946
      %948 = vrot.lane.b32.xlu0 %v659, 36
      %v949 = vpop.permute.xlu0 %948
      %950 = vrot.lane.b32.xlu0 %v660, 36
      %v951 = vpop.permute.xlu0 %950
      %952 = vrot.lane.b32.xlu0 %v661, 36
      %v953 = vpop.permute.xlu0 %952
      %954 = vrot.lane.b32.xlu0 %v662, 36
      %v955 = vpop.permute.xlu0 %954
      %956 = vrot.lane.b32.xlu0 %v663, 36
      %v957 = vpop.permute.xlu0 %956
      %958 = vrot.lane.b32.xlu0 %v664, 36
      %v959 = vpop.permute.xlu0 %958
      %vm976 = vcmask 392480
      %977 = vst.msk [vmem:[#allocation3] sm:$0xff] %vm976, %v929
      %978 = vst.msk [vmem:[#allocation3 + $0x8] sm:$0xff] %vm976, %v931
      %979 = vst.msk [vmem:[#allocation3 + $0x10] sm:$0xff] %vm976, %v933
      %980 = vst.msk [vmem:[#allocation3 + $0x18] sm:$0xff] %vm976, %v935
      %981 = vst.msk [vmem:[#allocation3 + $0x20] sm:$0xff] %vm976, %v937
      %982 = vst.msk [vmem:[#allocation3 + $0x28] sm:$0xff] %vm976, %v939
      %983 = vst.msk [vmem:[#allocation3 + $0x30] sm:$0xff] %vm976, %v941
      %984 = vst.msk [vmem:[#allocation3 + $0x38] sm:$0xff] %vm976, %v943
      %985 = vst.msk [vmem:[#allocation3 + $0x40] sm:$0xff] %vm976, %v945
      %986 = vst.msk [vmem:[#allocation3 + $0x48] sm:$0xff] %vm976, %v947
      %987 = vst.msk [vmem:[#allocation3 + $0x50] sm:$0xff] %vm976, %v949
      %988 = vst.msk [vmem:[#allocation3 + $0x58] sm:$0xff] %vm976, %v951
      %989 = vst.msk [vmem:[#allocation3 + $0x60] sm:$0xff] %vm976, %v953
      %990 = vst.msk [vmem:[#allocation3 + $0x68] sm:$0xff] %vm976, %v955
      %991 = vst.msk [vmem:[#allocation3 + $0x70] sm:$0xff] %vm976, %v957
      %992 = vst.msk [vmem:[#allocation3 + $0x78] sm:$0xff] %vm976, %v959
      %995 = vrot.lane.b32.xlu0 %v579, 48
      %v996 = vpop.permute.xlu0 %995
      %997 = vrot.lane.b32.xlu0 %v580, 48
      %v998 = vpop.permute.xlu0 %997
      %999 = vrot.lane.b32.xlu0 %v581, 48
      %v1000 = vpop.permute.xlu0 %999
      %1001 = vrot.lane.b32.xlu0 %v582, 48
      %v1002 = vpop.permute.xlu0 %1001
      %1003 = vrot.lane.b32.xlu0 %v583, 48
      %v1004 = vpop.permute.xlu0 %1003
      %1005 = vrot.lane.b32.xlu0 %v584, 48
      %v1006 = vpop.permute.xlu0 %1005
      %1007 = vrot.lane.b32.xlu0 %v585, 48
      %v1008 = vpop.permute.xlu0 %1007
      %1009 = vrot.lane.b32.xlu0 %v586, 48
      %v1010 = vpop.permute.xlu0 %1009
      %1011 = vrot.lane.b32.xlu0 %v587, 48
      %v1012 = vpop.permute.xlu0 %1011
      %1013 = vrot.lane.b32.xlu0 %v588, 48
      %v1014 = vpop.permute.xlu0 %1013
      %1015 = vrot.lane.b32.xlu0 %v589, 48
      %v1016 = vpop.permute.xlu0 %1015
      %1017 = vrot.lane.b32.xlu0 %v590, 48
      %v1018 = vpop.permute.xlu0 %1017
      %1019 = vrot.lane.b32.xlu0 %v591, 48
      %v1020 = vpop.permute.xlu0 %1019
      %1021 = vrot.lane.b32.xlu0 %v592, 48
      %v1022 = vpop.permute.xlu0 %1021
      %1023 = vrot.lane.b32.xlu0 %v593, 48
      %v1024 = vpop.permute.xlu0 %1023
      %1025 = vrot.lane.b32.xlu0 %v594, 48
      %v1026 = vpop.permute.xlu0 %1025
      %vm1043 = vcmask 490880
      %1044 = vst.msk [vmem:[#allocation3] sm:$0xff] %vm1043, %v996
      %1045 = vst.msk [vmem:[#allocation3 + $0x8] sm:$0xff] %vm1043, %v998
      %1046 = vst.msk [vmem:[#allocation3 + $0x10] sm:$0xff] %vm1043, %v1000
      %1047 = vst.msk [vmem:[#allocation3 + $0x18] sm:$0xff] %vm1043, %v1002
      %1048 = vst.msk [vmem:[#allocation3 + $0x20] sm:$0xff] %vm1043, %v1004
      %1049 = vst.msk [vmem:[#allocation3 + $0x28] sm:$0xff] %vm1043, %v1006
      %1050 = vst.msk [vmem:[#allocation3 + $0x30] sm:$0xff] %vm1043, %v1008
      %1051 = vst.msk [vmem:[#allocation3 + $0x38] sm:$0xff] %vm1043, %v1010
      %1052 = vst.msk [vmem:[#allocation3 + $0x40] sm:$0xff] %vm1043, %v1012
      %1053 = vst.msk [vmem:[#allocation3 + $0x48] sm:$0xff] %vm1043, %v1014
      %1054 = vst.msk [vmem:[#allocation3 + $0x50] sm:$0xff] %vm1043, %v1016
      %1055 = vst.msk [vmem:[#allocation3 + $0x58] sm:$0xff] %vm1043, %v1018
      %1056 = vst.msk [vmem:[#allocation3 + $0x60] sm:$0xff] %vm1043, %v1020
      %1057 = vst.msk [vmem:[#allocation3 + $0x68] sm:$0xff] %vm1043, %v1022
      %1058 = vst.msk [vmem:[#allocation3 + $0x70] sm:$0xff] %vm1043, %v1024
      %1059 = vst.msk [vmem:[#allocation3 + $0x78] sm:$0xff] %vm1043, %v1026
      %1062 = vrot.lane.b32.xlu0 %v716, 60
      %v1063 = vpop.permute.xlu0 %1062
      %1064 = vrot.lane.b32.xlu0 %v717, 60
      %v1065 = vpop.permute.xlu0 %1064
      %1066 = vrot.lane.b32.xlu0 %v718, 60
      %v1067 = vpop.permute.xlu0 %1066
      %1068 = vrot.lane.b32.xlu0 %v719, 60
      %v1069 = vpop.permute.xlu0 %1068
      %1070 = vrot.lane.b32.xlu0 %v720, 60
      %v1071 = vpop.permute.xlu0 %1070
      %1072 = vrot.lane.b32.xlu0 %v721, 60
      %v1073 = vpop.permute.xlu0 %1072
      %1074 = vrot.lane.b32.xlu0 %v722, 60
      %v1075 = vpop.permute.xlu0 %1074
      %1076 = vrot.lane.b32.xlu0 %v723, 60
      %v1077 = vpop.permute.xlu0 %1076
      %1078 = vrot.lane.b32.xlu0 %v724, 60
      %v1079 = vpop.permute.xlu0 %1078
      %1080 = vrot.lane.b32.xlu0 %v725, 60
      %v1081 = vpop.permute.xlu0 %1080
      %1082 = vrot.lane.b32.xlu0 %v726, 60
      %v1083 = vpop.permute.xlu0 %1082
      %1084 = vrot.lane.b32.xlu0 %v727, 60
      %v1085 = vpop.permute.xlu0 %1084
      %1086 = vrot.lane.b32.xlu0 %v728, 60
      %v1087 = vpop.permute.xlu0 %1086
      %1088 = vrot.lane.b32.xlu0 %v729, 60
      %v1089 = vpop.permute.xlu0 %1088
      %1090 = vrot.lane.b32.xlu0 %v730, 60
      %v1091 = vpop.permute.xlu0 %1090
      %1092 = vrot.lane.b32.xlu0 %v731, 60
      %v1093 = vpop.permute.xlu0 %1092
      %vm1110 = vcmask 589280
      %1111 = vst.msk [vmem:[#allocation3] sm:$0xff] %vm1110, %v1063
      %1112 = vst.msk [vmem:[#allocation3 + $0x8] sm:$0xff] %vm1110, %v1065
      %1113 = vst.msk [vmem:[#allocation3 + $0x10] sm:$0xff] %vm1110, %v1067
      %1114 = vst.msk [vmem:[#allocation3 + $0x18] sm:$0xff] %vm1110, %v1069
      %1115 = vst.msk [vmem:[#allocation3 + $0x20] sm:$0xff] %vm1110, %v1071
      %1116 = vst.msk [vmem:[#allocation3 + $0x28] sm:$0xff] %vm1110, %v1073
      %1117 = vst.msk [vmem:[#allocation3 + $0x30] sm:$0xff] %vm1110, %v1075
      %1118 = vst.msk [vmem:[#allocation3 + $0x38] sm:$0xff] %vm1110, %v1077
      %1119 = vst.msk [vmem:[#allocation3 + $0x40] sm:$0xff] %vm1110, %v1079
      %1120 = vst.msk [vmem:[#allocation3 + $0x48] sm:$0xff] %vm1110, %v1081
      %1121 = vst.msk [vmem:[#allocation3 + $0x50] sm:$0xff] %vm1110, %v1083
      %1122 = vst.msk [vmem:[#allocation3 + $0x58] sm:$0xff] %vm1110, %v1085
      %1123 = vst.msk [vmem:[#allocation3 + $0x60] sm:$0xff] %vm1110, %v1087
      %1124 = vst.msk [vmem:[#allocation3 + $0x68] sm:$0xff] %vm1110, %v1089
      %1125 = vst.msk [vmem:[#allocation3 + $0x70] sm:$0xff] %vm1110, %v1091
      %1126 = vst.msk [vmem:[#allocation3 + $0x78] sm:$0xff] %vm1110, %v1093
      %1129 = vrot.lane.b32.xlu0 %v651, 72
      %v1130 = vpop.permute.xlu0 %1129
      %1131 = vrot.lane.b32.xlu0 %v652, 72
      %v1132 = vpop.permute.xlu0 %1131
      %1133 = vrot.lane.b32.xlu0 %v653, 72
      %v1134 = vpop.permute.xlu0 %1133
      %1135 = vrot.lane.b32.xlu0 %v654, 72
      %v1136 = vpop.permute.xlu0 %1135
      %1137 = vrot.lane.b32.xlu0 %v655, 72
      %v1138 = vpop.permute.xlu0 %1137
      %1139 = vrot.lane.b32.xlu0 %v656, 72
      %v1140 = vpop.permute.xlu0 %1139
      %1141 = vrot.lane.b32.xlu0 %v657, 72
      %v1142 = vpop.permute.xlu0 %1141
      %1143 = vrot.lane.b32.xlu0 %v658, 72
      %v1144 = vpop.permute.xlu0 %1143
      %1145 = vrot.lane.b32.xlu0 %v659, 72
      %v1146 = vpop.permute.xlu0 %1145
      %1147 = vrot.lane.b32.xlu0 %v660, 72
      %v1148 = vpop.permute.xlu0 %1147
      %1149 = vrot.lane.b32.xlu0 %v661, 72
      %v1150 = vpop.permute.xlu0 %1149
      %1151 = vrot.lane.b32.xlu0 %v662, 72
      %v1152 = vpop.permute.xlu0 %1151
      %1153 = vrot.lane.b32.xlu0 %v663, 72
      %v1154 = vpop.permute.xlu0 %1153
      %1155 = vrot.lane.b32.xlu0 %v664, 72
      %v1156 = vpop.permute.xlu0 %1155
      %1157 = vrot.lane.b32.xlu0 %v665, 72
      %v1158 = vpop.permute.xlu0 %1157
      %1159 = vrot.lane.b32.xlu0 %v666, 72
      %v1160 = vpop.permute.xlu0 %1159
      %vm1177 = vcmask 687680
      %1178 = vst.msk [vmem:[#allocation3] sm:$0xff] %vm1177, %v1130
      %1179 = vst.msk [vmem:[#allocation3 + $0x8] sm:$0xff] %vm1177, %v1132
      %1180 = vst.msk [vmem:[#allocation3 + $0x10] sm:$0xff] %vm1177, %v1134
      %1181 = vst.msk [vmem:[#allocation3 + $0x18] sm:$0xff] %vm1177, %v1136
      %1182 = vst.msk [vmem:[#allocation3 + $0x20] sm:$0xff] %vm1177, %v1138
      %1183 = vst.msk [vmem:[#allocation3 + $0x28] sm:$0xff] %vm1177, %v1140
      %1184 = vst.msk [vmem:[#allocation3 + $0x30] sm:$0xff] %vm1177, %v1142
      %1185 = vst.msk [vmem:[#allocation3 + $0x38] sm:$0xff] %vm1177, %v1144
      %1186 = vst.msk [vmem:[#allocation3 + $0x40] sm:$0xff] %vm1177, %v1146
      %1187 = vst.msk [vmem:[#allocation3 + $0x48] sm:$0xff] %vm1177, %v1148
      %1188 = vst.msk [vmem:[#allocation3 + $0x50] sm:$0xff] %vm1177, %v1150
      %1189 = vst.msk [vmem:[#allocation3 + $0x58] sm:$0xff] %vm1177, %v1152
      %1190 = vst.msk [vmem:[#allocation3 + $0x60] sm:$0xff] %vm1177, %v1154
      %1191 = vst.msk [vmem:[#allocation3 + $0x68] sm:$0xff] %vm1177, %v1156
      %1192 = vst.msk [vmem:[#allocation3 + $0x70] sm:$0xff] %vm1177, %v1158
      %1193 = vst.msk [vmem:[#allocation3 + $0x78] sm:$0xff] %vm1177, %v1160
      %1196 = vrot.lane.b32.xlu0 %v581, 84
      %v1197 = vpop.permute.xlu0 %1196
      %1198 = vrot.lane.b32.xlu0 %v582, 84
      %v1199 = vpop.permute.xlu0 %1198
      %1200 = vrot.lane.b32.xlu0 %v583, 84
      %v1201 = vpop.permute.xlu0 %1200
      %1202 = vrot.lane.b32.xlu0 %v584, 84
      %v1203 = vpop.permute.xlu0 %1202
      %1204 = vrot.lane.b32.xlu0 %v585, 84
      %v1205 = vpop.permute.xlu0 %1204
      %1206 = vrot.lane.b32.xlu0 %v586, 84
      %v1207 = vpop.permute.xlu0 %1206
      %1208 = vrot.lane.b32.xlu0 %v587, 84
      %v1209 = vpop.permute.xlu0 %1208
      %1210 = vrot.lane.b32.xlu0 %v588, 84
      %v1211 = vpop.permute.xlu0 %1210
      %1212 = vrot.lane.b32.xlu0 %v589, 84
      %v1213 = vpop.permute.xlu0 %1212
      %1214 = vrot.lane.b32.xlu0 %v590, 84
      %v1215 = vpop.permute.xlu0 %1214
      %1216 = vrot.lane.b32.xlu0 %v591, 84
      %v1217 = vpop.permute.xlu0 %1216
      %1218 = vrot.lane.b32.xlu0 %v592, 84
      %v1219 = vpop.permute.xlu0 %1218
      %1220 = vrot.lane.b32.xlu0 %v593, 84
      %v1221 = vpop.permute.xlu0 %1220
      %1222 = vrot.lane.b32.xlu0 %v594, 84
      %v1223 = vpop.permute.xlu0 %1222
      %1224 = vrot.lane.b32.xlu0 %v595, 84
      %v1225 = vpop.permute.xlu0 %1224
      %1226 = vrot.lane.b32.xlu0 %v596, 84
      %v1227 = vpop.permute.xlu0 %1226
      %vm1244 = vcmask 786080
      %1245 = vst.msk [vmem:[#allocation3] sm:$0xff] %vm1244, %v1197
      %1246 = vst.msk [vmem:[#allocation3 + $0x8] sm:$0xff] %vm1244, %v1199
      %1247 = vst.msk [vmem:[#allocation3 + $0x10] sm:$0xff] %vm1244, %v1201
      %1248 = vst.msk [vmem:[#allocation3 + $0x18] sm:$0xff] %vm1244, %v1203
      %1249 = vst.msk [vmem:[#allocation3 + $0x20] sm:$0xff] %vm1244, %v1205
      %1250 = vst.msk [vmem:[#allocation3 + $0x28] sm:$0xff] %vm1244, %v1207
      %1251 = vst.msk [vmem:[#allocation3 + $0x30] sm:$0xff] %vm1244, %v1209
      %1252 = vst.msk [vmem:[#allocation3 + $0x38] sm:$0xff] %vm1244, %v1211
      %1253 = vst.msk [vmem:[#allocation3 + $0x40] sm:$0xff] %vm1244, %v1213
      %1254 = vst.msk [vmem:[#allocation3 + $0x48] sm:$0xff] %vm1244, %v1215
      %1255 = vst.msk [vmem:[#allocation3 + $0x50] sm:$0xff] %vm1244, %v1217
      %1256 = vst.msk [vmem:[#allocation3 + $0x58] sm:$0xff] %vm1244, %v1219
      %1257 = vst.msk [vmem:[#allocation3 + $0x60] sm:$0xff] %vm1244, %v1221
      %1258 = vst.msk [vmem:[#allocation3 + $0x68] sm:$0xff] %vm1244, %v1223
      %1259 = vst.msk [vmem:[#allocation3 + $0x70] sm:$0xff] %vm1244, %v1225
      %1260 = vst.msk [vmem:[#allocation3 + $0x78] sm:$0xff] %vm1244, %v1227
      %1263 = vrot.lane.b32.xlu0 %v718, 96
      %v1264 = vpop.permute.xlu0 %1263
      %1265 = vrot.lane.b32.xlu0 %v719, 96
      %v1266 = vpop.permute.xlu0 %1265
      %1267 = vrot.lane.b32.xlu0 %v720, 96
      %v1268 = vpop.permute.xlu0 %1267
      %1269 = vrot.lane.b32.xlu0 %v721, 96
      %v1270 = vpop.permute.xlu0 %1269
      %1271 = vrot.lane.b32.xlu0 %v722, 96
      %v1272 = vpop.permute.xlu0 %1271
      %1273 = vrot.lane.b32.xlu0 %v723, 96
      %v1274 = vpop.permute.xlu0 %1273
      %1275 = vrot.lane.b32.xlu0 %v724, 96
      %v1276 = vpop.permute.xlu0 %1275
      %1277 = vrot.lane.b32.xlu0 %v725, 96
      %v1278 = vpop.permute.xlu0 %1277
      %1279 = vrot.lane.b32.xlu0 %v726, 96
      %v1280 = vpop.permute.xlu0 %1279
      %1281 = vrot.lane.b32.xlu0 %v727, 96
      %v1282 = vpop.permute.xlu0 %1281
      %1283 = vrot.lane.b32.xlu0 %v728, 96
      %v1284 = vpop.permute.xlu0 %1283
      %1285 = vrot.lane.b32.xlu0 %v729, 96
      %v1286 = vpop.permute.xlu0 %1285
      %1287 = vrot.lane.b32.xlu0 %v730, 96
      %v1288 = vpop.permute.xlu0 %1287
      %1289 = vrot.lane.b32.xlu0 %v731, 96
      %v1290 = vpop.permute.xlu0 %1289
      %1291 = vrot.lane.b32.xlu0 %v732, 96
      %v1292 = vpop.permute.xlu0 %1291
      %1293 = vrot.lane.b32.xlu0 %v733, 96
      %v1294 = vpop.permute.xlu0 %1293
      %vm1311 = vcmask 884480
      %1312 = vst.msk [vmem:[#allocation3] sm:$0xff] %vm1311, %v1264
      %1313 = vst.msk [vmem:[#allocation3 + $0x8] sm:$0xff] %vm1311, %v1266
      %1314 = vst.msk [vmem:[#allocation3 + $0x10] sm:$0xff] %vm1311, %v1268
      %1315 = vst.msk [vmem:[#allocation3 + $0x18] sm:$0xff] %vm1311, %v1270
      %1316 = vst.msk [vmem:[#allocation3 + $0x20] sm:$0xff] %vm1311, %v1272
      %1317 = vst.msk [vmem:[#allocation3 + $0x28] sm:$0xff] %vm1311, %v1274
      %1318 = vst.msk [vmem:[#allocation3 + $0x30] sm:$0xff] %vm1311, %v1276
      %1319 = vst.msk [vmem:[#allocation3 + $0x38] sm:$0xff] %vm1311, %v1278
      %1320 = vst.msk [vmem:[#allocation3 + $0x40] sm:$0xff] %vm1311, %v1280
      %1321 = vst.msk [vmem:[#allocation3 + $0x48] sm:$0xff] %vm1311, %v1282
      %1322 = vst.msk [vmem:[#allocation3 + $0x50] sm:$0xff] %vm1311, %v1284
      %1323 = vst.msk [vmem:[#allocation3 + $0x58] sm:$0xff] %vm1311, %v1286
      %1324 = vst.msk [vmem:[#allocation3 + $0x60] sm:$0xff] %vm1311, %v1288
      %1325 = vst.msk [vmem:[#allocation3 + $0x68] sm:$0xff] %vm1311, %v1290
      %1326 = vst.msk [vmem:[#allocation3 + $0x70] sm:$0xff] %vm1311, %v1292
      %1327 = vst.msk [vmem:[#allocation3 + $0x78] sm:$0xff] %vm1311, %v1294
      %v1328 = vld [vmem:[#allocation3] sm:$0xff]
      %v1329 = vld [vmem:[#allocation3 + $0x8] sm:$0xff]
      %v1330 = vld [vmem:[#allocation3 + $0x10] sm:$0xff]
      %v1331 = vld [vmem:[#allocation3 + $0x18] sm:$0xff]
      %v1332 = vld [vmem:[#allocation3 + $0x20] sm:$0xff]
      %v1333 = vld [vmem:[#allocation3 + $0x28] sm:$0xff]
      %v1334 = vld [vmem:[#allocation3 + $0x30] sm:$0xff]
      %v1335 = vld [vmem:[#allocation3 + $0x38] sm:$0xff]
      %v1336 = vld [vmem:[#allocation3 + $0x40] sm:$0xff]
      %v1337 = vld [vmem:[#allocation3 + $0x48] sm:$0xff]
      %v1338 = vld [vmem:[#allocation3 + $0x50] sm:$0xff]
      %v1339 = vld [vmem:[#allocation3 + $0x58] sm:$0xff]
      %v1340 = vld [vmem:[#allocation3 + $0x60] sm:$0xff]
      %v1341 = vld [vmem:[#allocation3 + $0x68] sm:$0xff]
      %v1342 = vld [vmem:[#allocation3 + $0x70] sm:$0xff]
      %v1343 = vld [vmem:[#allocation3 + $0x78] sm:$0xff]
      %v1344 = vpack.c.bf16 %v1329, %v1328
      %v1345 = vpack.c.bf16 %v1331, %v1330
      %v1346 = vpack.c.bf16 %v1333, %v1332
      %v1347 = vpack.c.bf16 %v1335, %v1334
      %v1348 = vpack.c.bf16 %v1337, %v1336
      %v1349 = vpack.c.bf16 %v1339, %v1338
      %v1350 = vpack.c.bf16 %v1341, %v1340
      %v1351 = vpack.c.bf16 %v1343, %v1342
      %v1352 = vld [vmem:[%s2] sm:$0xf]
      %v1353 = vld [vmem:[%s2 + $0x4] sm:$0xf]
      %v1354 = vld [vmem:[%s2 + $0x8] sm:$0xf]
      %v1355 = vld [vmem:[%s2 + $0xc] sm:$0xf]
      %v1356 = vld [vmem:[%s2 + $0x10] sm:$0xf]
      %v1357 = vld [vmem:[%s2 + $0x14] sm:$0xf]
      %v1358 = vld [vmem:[%s2 + $0x18] sm:$0xf]
      %v1359 = vld [vmem:[%s2 + $0x1c] sm:$0xf]
      %v1360 = vld [vmem:[%s2 + $0x20] sm:$0xf]
      %v1361 = vld [vmem:[%s2 + $0x24] sm:$0xf]
      %v1362 = vld [vmem:[%s2 + $0x28] sm:$0xf]
      %v1363 = vld [vmem:[%s2 + $0x2c] sm:$0xf]
      %v1364 = vld [vmem:[%s2 + $0x30] sm:$0xf]
      %v1365 = vld [vmem:[%s2 + $0x34] sm:$0x3]
      %v1366 = vld [vmem:[%s3] sm:$0x1]
      %v1368 = vlaneseq
      %v1369 = vshrl.u32 %v1368, 7
      %v1370 = vsub.s32 0, %v1369
      %v1371 = vrot.slane %v1366, %v1370
      %v1387 = vunpack.c.l.b16 %v1352
      %v1388 = vunpack.c.l.b16 %v1353
      %v1389 = vunpack.c.l.b16 %v1354
      %v1390 = vunpack.c.l.b16 %v1355
      %v1391 = vunpack.c.l.b16 %v1356
      %v1392 = vunpack.c.l.b16 %v1357
      %v1393 = vunpack.c.l.b16 %v1358
      %v1394 = vunpack.c.l.b16 %v1359
      %v1395 = vunpack.c.l.b16 %v1360
      %v1396 = vunpack.c.l.b16 %v1361
      %v1397 = vunpack.c.l.b16 %v1362
      %v1398 = vunpack.c.l.b16 %v1363
      %v1399 = vunpack.c.l.b16 %v1364
      %v1400 = vunpack.c.l.b16 %v1365
      %v1401 = vpack.c.b16 %v1388, %v1387
      %v1402 = vpack.c.b16 %v1390, %v1389
      %v1403 = vpack.c.b16 %v1392, %v1391
      %v1404 = vpack.c.b16 %v1394, %v1393
      %v1405 = vpack.c.b16 %v1396, %v1395
      %v1406 = vpack.c.b16 %v1398, %v1397
      %v1407 = vpack.c.b16 %v1400, %v1399
      %vm1414 = vcmask 883712
      %v1416 = vsel %vm1414, %v1344, 0
      %v1419 = vsel %vm1414, %v1345, 0
      %v1422 = vsel %vm1414, %v1346, 0
      %v1425 = vsel %vm1414, %v1347, 0
      %v1428 = vsel %vm1414, %v1348, 0
      %v1431 = vsel %vm1414, %v1349, 0
      %v1434 = vsel %vm1414, %v1350, 0
      %v1437 = vsel %vm1414, %v1351, 0
      %vm1439 = vcmask 1045504
      %v1441 = vsel %vm1439, %v1407, 0
      %1443 = vmatprep.subr.bf16.mxu0 0
      %1444 = vmatpush1.bf16.msra.mxu0 %v1401
      %1445 = vmatprep.subr.bf16.mxu0 0
      %1446 = vmatpush1.bf16.msra.mxu0 %v1402
      %1447 = vmatprep.subr.bf16.mxu0 0
      %1448 = vmatpush1.bf16.msra.mxu0 %v1403
      %1449 = vmatprep.subr.bf16.mxu0 0
      %1450 = vmatpush1.bf16.msra.mxu0 %v1404
      %1451 = vmatprep.subr.bf16.mxu0 0
      %1452 = vmatpush1.bf16.msra.mxu0 %v1405
      %1453 = vmatprep.subr.bf16.mxu0 0
      %1454 = vmatpush1.bf16.msra.mxu0 %v1406
      %1455 = vmatprep.subr.bf16.mxu0 0
      %1456 = vmatpush1.bf16.msra.mxu0 %v1441
      %1457 = vmatprep.subr.bf16.mxu0 0
      %1458 = vmatpush1.bf16.msra.mxu0 0
      %1459 = vmatprep.subr.bf16.mxu0 0
      %1460 = vmatpush1.bf16.msra.mxu0 0
      %1461 = vmatprep.subr.bf16.mxu0 0
      %1462 = vmatpush1.bf16.msra.mxu0 0
      %1463 = vmatprep.subr.bf16.mxu0 0
      %1464 = vmatpush1.bf16.msra.mxu0 0
      %1465 = vmatprep.subr.bf16.mxu0 0
      %1466 = vmatpush1.bf16.msra.mxu0 0
      %1467 = vmatprep.subr.bf16.mxu0 0
      %1468 = vmatpush1.bf16.msra.mxu0 0
      %1469 = vmatprep.subr.bf16.mxu0 0
      %1470 = vmatpush1.bf16.msra.mxu0 0
      %1471 = vmatprep.subr.bf16.mxu0 0
      %1472 = vmatpush1.bf16.msra.mxu0 0
      %1473 = vmatprep.subr.bf16.mxu0 0
      %1474 = vmatpush1.bf16.msra.mxu0 0
      %1475 = vmatprep.mubr.bf16.mxu0 0
      %1476 = vmatmul.mubr.bf16.gmra.mrb[0].mxu0 %v1416
      %v1477 = vpop.f32.mrb[0].mxu0
      %v1478 = vadd.f32 %v1371, %v1477
      %v1479 = vpop.f32.mrb[0].mxu0
      %v1480 = vpop.f32.mrb[0].mxu0
      %v1481 = vadd.f32 %v1371, %v1480
      %v1482 = vpop.f32.mrb[0].mxu0
      %1483 = vmatprep.mubr.bf16.mxu0 0
      %1484 = vmatmul.mubr.bf16.gmra.mrb[0].mxu0 %v1419
      %v1485 = vpop.f32.mrb[0].mxu0
      %v1486 = vadd.f32 %v1371, %v1485
      %v1487 = vpop.f32.mrb[0].mxu0
      %v1488 = vpop.f32.mrb[0].mxu0
      %v1489 = vadd.f32 %v1371, %v1488
      %v1490 = vpop.f32.mrb[0].mxu0
      %1491 = vmatprep.mubr.bf16.mxu0 0
      %1492 = vmatmul.mubr.bf16.gmra.mrb[0].mxu0 %v1422
      %v1493 = vpop.f32.mrb[0].mxu0
      %v1494 = vadd.f32 %v1371, %v1493
      %v1495 = vpop.f32.mrb[0].mxu0
      %v1496 = vpop.f32.mrb[0].mxu0
      %v1497 = vadd.f32 %v1371, %v1496
      %v1498 = vpop.f32.mrb[0].mxu0
      %1499 = vmatprep.mubr.bf16.mxu0 0
      %1500 = vmatmul.mubr.bf16.gmra.mrb[0].mxu0 %v1425
      %v1501 = vpop.f32.mrb[0].mxu0
      %v1502 = vadd.f32 %v1371, %v1501
      %v1503 = vpop.f32.mrb[0].mxu0
      %v1504 = vpop.f32.mrb[0].mxu0
      %v1505 = vadd.f32 %v1371, %v1504
      %v1506 = vpop.f32.mrb[0].mxu0
      %1507 = vmatprep.mubr.bf16.mxu0 0
      %1508 = vmatmul.mubr.bf16.gmra.mrb[0].mxu0 %v1428
      %v1509 = vpop.f32.mrb[0].mxu0
      %v1510 = vadd.f32 %v1371, %v1509
      %v1511 = vpop.f32.mrb[0].mxu0
      %v1512 = vpop.f32.mrb[0].mxu0
      %v1513 = vadd.f32 %v1371, %v1512
      %v1514 = vpop.f32.mrb[0].mxu0
      %1515 = vmatprep.mubr.bf16.mxu0 0
      %1516 = vmatmul.mubr.bf16.gmra.mrb[0].mxu0 %v1431
      %v1517 = vpop.f32.mrb[0].mxu0
      %v1518 = vadd.f32 %v1371, %v1517
      %v1519 = vpop.f32.mrb[0].mxu0
      %v1520 = vpop.f32.mrb[0].mxu0
      %v1521 = vadd.f32 %v1371, %v1520
      %v1522 = vpop.f32.mrb[0].mxu0
      %1523 = vmatprep.mubr.bf16.mxu0 0
      %1524 = vmatmul.mubr.bf16.gmra.mrb[0].mxu0 %v1434
      %v1525 = vpop.f32.mrb[0].mxu0
      %v1526 = vadd.f32 %v1371, %v1525
      %v1527 = vpop.f32.mrb[0].mxu0
      %v1528 = vpop.f32.mrb[0].mxu0
      %v1529 = vadd.f32 %v1371, %v1528
      %v1530 = vpop.f32.mrb[0].mxu0
      %1531 = vmatprep.mubr.bf16.mxu0 0
      %1532 = vmatmul.mubr.bf16.gmra.mrb[0].mxu0 %v1437
      %v1533 = vpop.f32.mrb[0].mxu0
      %v1534 = vadd.f32 %v1371, %v1533
      %v1535 = vpop.f32.mrb[0].mxu0
      %v1536 = vpop.f32.mrb[0].mxu0
      %v1537 = vadd.f32 %v1371, %v1536
      %v1538 = vpop.f32.mrb[0].mxu0
      %1539 = vdwg.mxu0
      %vm1540 = vcmask 31744
      %1541 = vst.msk [vmem:[%s445] sm:$0xff] %vm1540, %v1478
      %1542 = vst.msk [vmem:[%s445 + $0x8] sm:$0xff] %vm1540, %v1481
      %1543 = vst.msk [vmem:[%s445 + $0x10] sm:$0xff] %vm1540, %v1486
      %1544 = vst.msk [vmem:[%s445 + $0x18] sm:$0xff] %vm1540, %v1489
      %1545 = vst.msk [vmem:[%s445 + $0x20] sm:$0xff] %vm1540, %v1494
      %1546 = vst.msk [vmem:[%s445 + $0x28] sm:$0xff] %vm1540, %v1497
      %1547 = vst.msk [vmem:[%s445 + $0x30] sm:$0xff] %vm1540, %v1502
      %1548 = vst.msk [vmem:[%s445 + $0x38] sm:$0xff] %vm1540, %v1505
      %1549 = vst.msk [vmem:[%s445 + $0x40] sm:$0xff] %vm1540, %v1510
      %1550 = vst.msk [vmem:[%s445 + $0x48] sm:$0xff] %vm1540, %v1513
      %1551 = vst.msk [vmem:[%s445 + $0x50] sm:$0xff] %vm1540, %v1518
      %1552 = vst.msk [vmem:[%s445 + $0x58] sm:$0xff] %vm1540, %v1521
      %1553 = vst.msk [vmem:[%s445 + $0x60] sm:$0xff] %vm1540, %v1526
      %1554 = vst.msk [vmem:[%s445 + $0x68] sm:$0xff] %vm1540, %v1529
      %1555 = vst.msk [vmem:[%s445 + $0x70] sm:$0xff] %vm1540, %v1534
      %1556 = vst.msk [vmem:[%s445 + $0x78] sm:$0xff] %vm1540, %v1537
      %s1557 = smul.u32 8, %s23
      %p1558 = scmp.lt.s32.totalorder %s22, 1
      %s1559 = scalar_select %p1558, %s22, 1
      %p1560 = scmp.lt.s32.totalorder %s1557, 15
      %s1561 = scalar_select %p1560, %s1557, 15
      %s1562 = smul.addr %s1561, 2
      %s1563 = smul.addr %s1559, 32
      %s1564 = sadd.s32 %s1562, %s1563
      %s1565 = smul.addr %s1564, 8
      %s1566 = scalar_lea.vmem %s7, %s1565
      // Predicated region
      $region49: #{residual_dense_net.11} parent=47 // pred_check
        %p1567 = pneg %p234
      $region50: #{residual_dense_net.11} parent=47 // pred_check_branch
        %1569 = sbr.rel (%p1567) target = $region52
      $region51: #{residual_dense_net.11} parent=47 // pred_region
        %s1570 = smul.u32 8, %s23
      $region52: #{residual_dense_net.11} parent=47 // pred_fallthru
        _
    $region48: #{residual_dense_net.11} parent=5 // pred_fallthru
      _
    %p1571 = scmp.le.s32.totalorder 2, %s13
    // Predicated region
    $region53: #{residual_dense_net.11} parent=5 // pred_check
      %p1572 = pneg %p1571
    $region54: #{residual_dense_net.11} parent=5 // pred_check_branch
      %1574 = sbr.rel (%p1572) target = $region56
    $region55: #{residual_dense_net.11} parent=5 // pred_region
      %s1575 = ssub.s32 %s13, 2
      // Predicated region
      $region57: #{residual_dense_net.11} parent=55 // pred_check
        %p1576 = pneg %p240
      $region58: #{residual_dense_net.11} parent=55 // pred_check_branch
        %1578 = sbr.rel (%p1576) target = $region60
      $region59: #{residual_dense_net.11} parent=55 // pred_region
        %s1579 = smul.u32 8, %s25
        %p1580 = scmp.lt.s32.totalorder %s24, 1
        %s1581 = scalar_select %p1580, %s24, 1
        %p1582 = scmp.lt.s32.totalorder %s1579, 15
        %s1583 = scalar_select %p1582, %s1579, 15
        %s1584 = smul.addr %s1583, 2
        %s1585 = smul.addr %s1581, 32
        %s1586 = sadd.s32 %s1584, %s1585
        %s1587 = smul.addr %s1586, 8
        %s1588 = scalar_lea.vmem %s7, %s1587
      $region60: #{residual_dense_net.11} parent=55 // pred_fallthru
        _
    $region56: #{residual_dense_net.11} parent=5 // pred_fallthru
      _
  $region6: #{residual_dense_net.11} parent=0 // loop_footer
    %s17 = sadd.s32 1, %s13
  $region7: #{residual_dense_net.11} parent=0 // loop_footer_branch
    %12 = sbr.rel target = $region3
  $region8: #{residual_dense_net.11} parent=0 // loop_exit
    _

</llo_original>
